<compile_context>
chip_gen: v7x
topology: tpu7x:2x2x1
jax: 0.10.0
libtpu: 0.0.40
codegen_flags: <defaults>
</compile_context>

<pallas_src>
import functools

import numpy as np

import jax
import jax.numpy as jnp
from jax.experimental import pallas as pl
from jax.experimental.pallas import tpu as pltpu

# --------------------------------------------------------------------------
# Static model configuration
# --------------------------------------------------------------------------
C = 30          # base_ch
NM = 6          # num_module
EPS = 1e-5      # BatchNorm2d eps

H = 16
W = 16
HW = H * W      # 256 -> lane-dense (2 x 128 lanes)
CP = 32         # padded channel count (sublane aligned)
CIN_SRM = 8     # padded input-channel count for the 1-channel SRM conv

NPW = 12        # number of 1x1 conv layers packed together
NSH = 20        # number of per-layer shift slots


def _offsets(K, pad, dil):
    """Flat lane offsets (dh*W + dw) for each conv tap, row-major taps."""
    return tuple((kh * dil - pad) * W + (kw * dil - pad)
                 for kh in range(K) for kw in range(K))


SRM_OFFS = _offsets(5, 2, 1)   # 5x5, pad 2, dil 1
CM_OFFS = _offsets(3, 1, 1)    # 3x3, pad 1, dil 1 (central-masked)
DCL_OFFS = _offsets(3, 2, 2)   # 3x3, pad 2, dil 2


# --------------------------------------------------------------------------
# Fused Pallas kernel: the whole forward pass for one image per grid step
# --------------------------------------------------------------------------
def _fused_kernel(x_ref, srm_w_ref, srm_m_ref, cm_w_ref, cm_m_ref,
                  dcl_w_ref, dcl_m_ref, pw_w_ref, sh_ref, o_ref, *,
                  srm_offs, cm_offs, dcl_offs):
    """All activations are channel-major (Cpad, H*W) f32, spatial in lanes."""

    def roll_lanes(a, off):
        # out[:, q] = a[:, (q + off) mod HW]   (wrap garbage is masked later)
        s = (-off) % HW
        if s == 0:
            return a
        return pltpu.roll(a, s, 1)

    def bias_relu(y, idx, relu):
        y = y + sh_ref[idx]                          # (CP,HW) + (CP,1)
        return jnp.maximum(y, 0.0) if relu else y

    def conv_spatial(a, w_mat, mask, offs, sh_idx, relu):
        # a: (Cin_p, HW), mask: (T*Cin_p, HW), w_mat: (CP, T*Cin_p)
        patches = jnp.concatenate([roll_lanes(a, off) for off in offs],
                                  axis=0)
        patches = patches * mask                     # zero padding / row edges
        y = jnp.dot(w_mat, patches, preferred_element_type=jnp.float32)
        return bias_relu(y, sh_idx, relu)

    def pointwise(a, w_idx, sh_idx, relu):
        y = jnp.dot(pw_w_ref[w_idx], a, preferred_element_type=jnp.float32)
        return bias_relu(y, sh_idx, relu)

    x = x_ref[0]                                     # (CIN_SRM, HW)

    # HPF: 5x5 SRM conv (no bias) + ReLU
    h = conv_spatial(x, srm_w_ref[...], srm_m_ref[...], srm_offs, 0, True)

    # branch1 head: central-masked 3x3 + BN + ReLU, then 2x (1x1 + BN + ReLU)
    h = conv_spatial(h, cm_w_ref[...], cm_m_ref[...], cm_offs, 1, True)
    h = pointwise(h, 0, 2, True)
    h = pointwise(h, 1, 3, True)

    # 6 x DCl residual blocks: (3x3 dil 2 + BN + ReLU, 1x1 + BN) + skip
    dcl_mask = dcl_m_ref[...]
    for i in range(NM):
        t = conv_spatial(h, dcl_w_ref[i], dcl_mask, dcl_offs, 4 + 2 * i, True)
        h = h + pointwise(t, 2 + i, 5 + 2 * i, False)

    # branch1 tail: 1x1 + BN + ReLU
    h = pointwise(h, 8, 16, True)

    # network tail: 30 -> 15 -> 15 -> 1 (bias, ReLU on first two)
    h = pointwise(h, 9, 17, True)
    h = pointwise(h, 10, 18, True)
    h = pointwise(h, 11, 19, False)

    o_ref[0] = h[0:1, :]                             # lane-dense (1, HW) write


# --------------------------------------------------------------------------
# Wrapper
# --------------------------------------------------------------------------
@jax.jit
def dbsnet_add_forward(x_nchw, kp):
    N, cin, hh, ww = x_nchw.shape
    assert cin == 1 and (hh, ww) == (H, W), x_nchw.shape

    x = x_nchw.reshape(N, 1, HW)
    x = jnp.pad(x, ((0, 0), (0, CIN_SRM - 1), (0, 0)))   # (N, 8, HW)

    kernel = functools.partial(_fused_kernel, srm_offs=SRM_OFFS,
                               cm_offs=CM_OFFS, dcl_offs=DCL_OFFS)

    def full(a):
        # Constant block index across the grid -> weights stay resident.
        return pl.BlockSpec(a.shape, lambda n: (0,) * a.ndim)

    out = pl.pallas_call(
        kernel,
        out_shape=jax.ShapeDtypeStruct((N, 1, HW), jnp.float32),
        grid=(N,),
        in_specs=[
            pl.BlockSpec((1, CIN_SRM, HW), lambda n: (n, 0, 0)),
            full(kp['srm_w']), full(kp['srm_m']),
            full(kp['cm_w']), full(kp['cm_m']),
            full(kp['dcl_w']), full(kp['dcl_m']),
            full(kp['pw_w']), full(kp['shifts']),
        ],
        out_specs=pl.BlockSpec((1, 1, HW), lambda n: (n, 0, 0)),
        compiler_params=pltpu.CompilerParams(
            dimension_semantics=("parallel",)),
    )(x, kp['srm_w'], kp['srm_m'], kp['cm_w'], kp['cm_m'],
      kp['dcl_w'], kp['dcl_m'], kp['pw_w'], kp['shifts'])

    return out.reshape(N, 1, H, W)


# --------------------------------------------------------------------------
# Parameter packing into kernel layout (BN scale folded into conv weights)
# --------------------------------------------------------------------------
def _pack_kernel_params(lp):
    def pack_spatial(w, cin_p, scale):
        cout, cin, k, _ = w.shape
        m = np.zeros((CP, k * k * cin_p), np.float32)
        for kh in range(k):
            for kw in range(k):
                t = kh * k + kw
                m[:cout, t * cin_p:t * cin_p + cin] = (
                    w[:, :, kh, kw] * scale[:, None])
        return m

    def pack_pw(w, scale):
        cout, cin = w.shape
        m = np.zeros((CP, CP), np.float32)
        m[:cout, :cin] = w * scale[:, None]
        return m

    def pack_vec(v):
        m = np.zeros((CP, 1), np.float32)
        m[:v.shape[0], 0] = v
        return m

    def make_mask(k, pad, dil, cin_p):
        m = np.zeros((k * k * cin_p, HW), np.float32)
        for kh in range(k):
            for kw in range(k):
                t = kh * k + kw
                dh, dw = kh * dil - pad, kw * dil - pad
                valid = np.zeros((H, W), np.float32)
                i0, i1 = max(0, -dh), min(H, H - dh)
                j0, j1 = max(0, -dw), min(W, W - dw)
                valid[i0:i1, j0:j1] = 1.0
                m[t * cin_p:(t + 1) * cin_p, :] = valid.reshape(1, HW)
        return m

    ones_c = np.ones(C, np.float32)
    hc = C // 2

    shifts = [pack_vec(np.zeros(C, np.float32)),        # 0 srm
              pack_vec(lp['cm_shift']),                 # 1 cm
              pack_vec(lp['pwA_shift']),                # 2
              pack_vec(lp['pwB_shift'])]                # 3
    for i in range(NM):                                 # 4+2i / 5+2i
        shifts.append(pack_vec(lp[f'dcl{i}_c3_shift']))
        shifts.append(pack_vec(lp[f'dcl{i}_pw_shift']))
    shifts.append(pack_vec(lp['pwC_shift']))            # 16
    shifts.append(pack_vec(lp['t1_b']))                 # 17
    shifts.append(pack_vec(lp['t2_b']))                 # 18
    shifts.append(pack_vec(lp['t3_b']))                 # 19
    assert len(shifts) == NSH

    pw_list = (
        [(lp['pwA_w'], lp['pwA_scale']), (lp['pwB_w'], lp['pwB_scale'])]
        + [(lp[f'dcl{i}_pw_w'], lp[f'dcl{i}_pw_scale']) for i in range(NM)]
        + [(lp['pwC_w'], lp['pwC_scale']),
           (lp['t1_w'], np.ones(hc, np.float32)),
           (lp['t2_w'], np.ones(hc, np.float32)),
           (lp['t3_w'], np.ones(1, np.float32))])
    assert len(pw_list) == NPW

    kp = dict(
        srm_w=pack_spatial(lp['srm_w'], CIN_SRM, ones_c),
        srm_m=make_mask(5, 2, 1, CIN_SRM),
        cm_w=pack_spatial(lp['cm_w'], CP, lp['cm_scale']),
        cm_m=make_mask(3, 1, 1, CP),
        dcl_w=np.stack([pack_spatial(lp[f'dcl{i}_c3_w'], CP,
                                     lp[f'dcl{i}_c3_scale'])
                        for i in range(NM)]),
        dcl_m=make_mask(3, 2, 2, CP),
        pw_w=np.stack([pack_pw(w, s) for (w, s) in pw_list]),
        shifts=np.stack(shifts),
    )
    return {k: jnp.asarray(v) for k, v in kp.items()}


# --------------------------------------------------------------------------
# Deterministic parameter construction (pure numpy)
# --------------------------------------------------------------------------
def make_params(seed=1):
    rng = np.random.RandomState(seed)

    def rnd(shape, s):
        return (s * rng.randn(*shape)).astype(np.float32)

    def bn_fold(conv_bias):
        # Eval-mode BatchNorm folded with the preceding conv bias.
        cout = conv_bias.shape[0]
        gamma = 1.0 + rnd((cout,), 0.1)
        beta = rnd((cout,), 0.1)
        mean = rnd((cout,), 0.1)
        var = (1.0 + 0.1 * rng.rand(cout)).astype(np.float32)
        scale = (gamma / np.sqrt(var + EPS)).astype(np.float32)
        shift = (beta - mean * scale + conv_bias * scale).astype(np.float32)
        return scale, shift

    lp = {}
    # TODO(synk): SRM_Kernels.npy is unavailable; deterministic random 5x5
    # filters are used in its place (same shape / no bias / not trained).
    lp['srm_w'] = rnd((C, 1, 5, 5), 0.3)

    w = rnd((C, C, 3, 3), 0.08)
    w[:, :, 1, 1] = 0.0                       # central-masked conv
    lp['cm_w'] = w
    lp['cm_scale'], lp['cm_shift'] = bn_fold(rnd((C,), 0.1))

    for name in ('pwA', 'pwB'):
        lp[f'{name}_w'] = rnd((C, C), 0.25)
        lp[f'{name}_scale'], lp[f'{name}_shift'] = bn_fold(rnd((C,), 0.1))

    for i in range(NM):
        lp[f'dcl{i}_c3_w'] = rnd((C, C, 3, 3), 0.08)
        lp[f'dcl{i}_c3_scale'], lp[f'dcl{i}_c3_shift'] = bn_fold(rnd((C,), 0.1))
        lp[f'dcl{i}_pw_w'] = rnd((C, C), 0.25)
        lp[f'dcl{i}_pw_scale'], lp[f'dcl{i}_pw_shift'] = bn_fold(rnd((C,), 0.1))

    lp['pwC_w'] = rnd((C, C), 0.25)
    lp['pwC_scale'], lp['pwC_shift'] = bn_fold(rnd((C,), 0.1))

    hc = C // 2
    lp['t1_w'] = rnd((hc, C), 0.25)
    lp['t1_b'] = rnd((hc,), 0.1)
    lp['t2_w'] = rnd((hc, hc), 0.25)
    lp['t2_b'] = rnd((hc,), 0.1)
    lp['t3_w'] = rnd((1, hc), 0.25)
    lp['t3_b'] = rnd((1,), 0.1)

    return lp, _pack_kernel_params(lp)


# --------------------------------------------------------------------------
# Pure-JAX (XLA) reference, used to validate the Pallas kernel
# --------------------------------------------------------------------------
def _ref_forward(x, lp):
    prec = jax.lax.Precision.HIGHEST

    def conv(h, w, pad, dil):
        return jax.lax.conv_general_dilated(
            h, jnp.asarray(w), window_strides=(1, 1),
            padding=((pad, pad), (pad, pad)), rhs_dilation=(dil, dil),
            dimension_numbers=('NCHW', 'OIHW', 'NCHW'), precision=prec)

    def pw(h, w):
        return conv(h, np.asarray(w)[:, :, None, None], 0, 1)

    def aff(h, scale, shift, relu=True):
        h = (h * jnp.asarray(scale).reshape(1, -1, 1, 1)
             + jnp.asarray(shift).reshape(1, -1, 1, 1))
        return jnp.maximum(h, 0.0) if relu else h

    h = jnp.maximum(conv(x, lp['srm_w'], 2, 1), 0.0)
    h = aff(conv(h, lp['cm_w'], 1, 1), lp['cm_scale'], lp['cm_shift'])
    h = aff(pw(h, lp['pwA_w']), lp['pwA_scale'], lp['pwA_shift'])
    h = aff(pw(h, lp['pwB_w']), lp['pwB_scale'], lp['pwB_shift'])
    for i in range(NM):
        t = aff(conv(h, lp[f'dcl{i}_c3_w'], 2, 2),
                lp[f'dcl{i}_c3_scale'], lp[f'dcl{i}_c3_shift'])
        t = aff(pw(t, lp[f'dcl{i}_pw_w']),
                lp[f'dcl{i}_pw_scale'], lp[f'dcl{i}_pw_shift'], relu=False)
        h = h + t
    h = aff(pw(h, lp['pwC_w']), lp['pwC_scale'], lp['pwC_shift'])
    h = aff(pw(h, lp['t1_w']), np.ones(C // 2, np.float32), lp['t1_b'])
    h = aff(pw(h, lp['t2_w']), np.ones(C // 2, np.float32), lp['t2_b'])
    h = aff(pw(h, lp['t3_w']), np.ones(1, np.float32), lp['t3_b'], relu=False)
    return h


# --------------------------------------------------------------------------
if __name__ == "__main__":
    x = jax.random.normal(jax.random.PRNGKey(0), (2, 1, H, W),
                          dtype=jnp.float32)
    lp, kp = make_params()

    out = dbsnet_add_forward(x, kp)
    out = jax.block_until_ready(out)
    assert out.shape == (2, 1, H, W), out.shape
    assert bool(jnp.all(jnp.isfinite(out)))

    ref = _ref_forward(x, lp)
    err = float(jnp.max(jnp.abs(out - ref)))
    ref_mag = float(jnp.max(jnp.abs(ref)))
    assert err <= 1e-3 + 0.05 * ref_mag, (err, ref_mag)

    print("KERNEL_OK")
</pallas_src>

<mosaic_0001>
module attributes {stable_mosaic.version = 11 : i64} {
  func.func @_fused_kernel(%arg0: i32, %arg1: memref<1x8x256xf32, #tpu.memory_space<vmem>>, %arg2: memref<32x200xf32, #tpu.memory_space<vmem>>, %arg3: memref<200x256xf32, #tpu.memory_space<vmem>>, %arg4: memref<32x288xf32, #tpu.memory_space<vmem>>, %arg5: memref<288x256xf32, #tpu.memory_space<vmem>>, %arg6: memref<6x32x288xf32, #tpu.memory_space<vmem>>, %arg7: memref<288x256xf32, #tpu.memory_space<vmem>>, %arg8: memref<12x32x32xf32, #tpu.memory_space<vmem>>, %arg9: memref<20x32x1xf32, #tpu.memory_space<vmem>>, %arg10: memref<1x1x256xf32, #tpu.memory_space<vmem>>) attributes {dimension_semantics = [#tpu.dimension_semantics<parallel>], iteration_bounds = array<i64: 2>, scalar_prefetch = 0 : i64, scratch_operands = 0 : i64, tpu.core_type = #tpu.core_type<tc>, window_params = [{transform_indices = @transform_0, window_bounds = array<i64: 1, 8, 256>}, {pipeline_mode = #tpu.pipeline_mode<synchronous>, transform_indices = @transform_1, window_bounds = array<i64: 32, 200>}, {pipeline_mode = #tpu.pipeline_mode<synchronous>, transform_indices = @transform_2, window_bounds = array<i64: 200, 256>}, {pipeline_mode = #tpu.pipeline_mode<synchronous>, transform_indices = @transform_3, window_bounds = array<i64: 32, 288>}, {pipeline_mode = #tpu.pipeline_mode<synchronous>, transform_indices = @transform_4, window_bounds = array<i64: 288, 256>}, {pipeline_mode = #tpu.pipeline_mode<synchronous>, transform_indices = @transform_5, window_bounds = array<i64: 6, 32, 288>}, {pipeline_mode = #tpu.pipeline_mode<synchronous>, transform_indices = @transform_6, window_bounds = array<i64: 288, 256>}, {pipeline_mode = #tpu.pipeline_mode<synchronous>, transform_indices = @transform_7, window_bounds = array<i64: 12, 32, 32>}, {pipeline_mode = #tpu.pipeline_mode<synchronous>, transform_indices = @transform_8, window_bounds = array<i64: 20, 32, 1>}, {transform_indices = @transform_9, window_bounds = array<i64: 1, 1, 256>}]} {
    %c0 = arith.constant 0 : index
    %c0_0 = arith.constant 0 : index
    %c0_1 = arith.constant 0 : index
    %0 = vector.load %arg1[%c0, %c0_0, %c0_1] : memref<1x8x256xf32, #tpu.memory_space<vmem>>, vector<1x8x256xf32>
    %1 = vector.shape_cast %0 : vector<1x8x256xf32> to vector<8x256xf32>
    %c0_2 = arith.constant 0 : index
    %c0_3 = arith.constant 0 : index
    %2 = vector.load %arg2[%c0_2, %c0_3] : memref<32x200xf32, #tpu.memory_space<vmem>>, vector<32x200xf32>
    %c0_4 = arith.constant 0 : index
    %c0_5 = arith.constant 0 : index
    %3 = vector.load %arg3[%c0_4, %c0_5] : memref<200x256xf32, #tpu.memory_space<vmem>>, vector<200x256xf32>
    %c34_i32 = arith.constant 34 : i32
    %4 = tpu.dynamic_rotate %1 by %c34_i32 dim 1 : vector<8x256xf32>, i32 -> vector<8x256xf32>
    %c33_i32 = arith.constant 33 : i32
    %5 = tpu.dynamic_rotate %1 by %c33_i32 dim 1 : vector<8x256xf32>, i32 -> vector<8x256xf32>
    %c32_i32 = arith.constant 32 : i32
    %6 = tpu.dynamic_rotate %1 by %c32_i32 dim 1 : vector<8x256xf32>, i32 -> vector<8x256xf32>
    %c31_i32 = arith.constant 31 : i32
    %7 = tpu.dynamic_rotate %1 by %c31_i32 dim 1 : vector<8x256xf32>, i32 -> vector<8x256xf32>
    %c30_i32 = arith.constant 30 : i32
    %8 = tpu.dynamic_rotate %1 by %c30_i32 dim 1 : vector<8x256xf32>, i32 -> vector<8x256xf32>
    %c18_i32 = arith.constant 18 : i32
    %9 = tpu.dynamic_rotate %1 by %c18_i32 dim 1 : vector<8x256xf32>, i32 -> vector<8x256xf32>
    %c17_i32 = arith.constant 17 : i32
    %10 = tpu.dynamic_rotate %1 by %c17_i32 dim 1 : vector<8x256xf32>, i32 -> vector<8x256xf32>
    %c16_i32 = arith.constant 16 : i32
    %11 = tpu.dynamic_rotate %1 by %c16_i32 dim 1 : vector<8x256xf32>, i32 -> vector<8x256xf32>
    %c15_i32 = arith.constant 15 : i32
    %12 = tpu.dynamic_rotate %1 by %c15_i32 dim 1 : vector<8x256xf32>, i32 -> vector<8x256xf32>
    %c14_i32 = arith.constant 14 : i32
    %13 = tpu.dynamic_rotate %1 by %c14_i32 dim 1 : vector<8x256xf32>, i32 -> vector<8x256xf32>
    %c2_i32 = arith.constant 2 : i32
    %14 = tpu.dynamic_rotate %1 by %c2_i32 dim 1 : vector<8x256xf32>, i32 -> vector<8x256xf32>
    %c1_i32 = arith.constant 1 : i32
    %15 = tpu.dynamic_rotate %1 by %c1_i32 dim 1 : vector<8x256xf32>, i32 -> vector<8x256xf32>
    %c255_i32 = arith.constant 255 : i32
    %16 = tpu.dynamic_rotate %1 by %c255_i32 dim 1 : vector<8x256xf32>, i32 -> vector<8x256xf32>
    %c254_i32 = arith.constant 254 : i32
    %17 = tpu.dynamic_rotate %1 by %c254_i32 dim 1 : vector<8x256xf32>, i32 -> vector<8x256xf32>
    %c242_i32 = arith.constant 242 : i32
    %18 = tpu.dynamic_rotate %1 by %c242_i32 dim 1 : vector<8x256xf32>, i32 -> vector<8x256xf32>
    %c241_i32 = arith.constant 241 : i32
    %19 = tpu.dynamic_rotate %1 by %c241_i32 dim 1 : vector<8x256xf32>, i32 -> vector<8x256xf32>
    %c240_i32 = arith.constant 240 : i32
    %20 = tpu.dynamic_rotate %1 by %c240_i32 dim 1 : vector<8x256xf32>, i32 -> vector<8x256xf32>
    %c239_i32 = arith.constant 239 : i32
    %21 = tpu.dynamic_rotate %1 by %c239_i32 dim 1 : vector<8x256xf32>, i32 -> vector<8x256xf32>
    %c238_i32 = arith.constant 238 : i32
    %22 = tpu.dynamic_rotate %1 by %c238_i32 dim 1 : vector<8x256xf32>, i32 -> vector<8x256xf32>
    %c226_i32 = arith.constant 226 : i32
    %23 = tpu.dynamic_rotate %1 by %c226_i32 dim 1 : vector<8x256xf32>, i32 -> vector<8x256xf32>
    %c225_i32 = arith.constant 225 : i32
    %24 = tpu.dynamic_rotate %1 by %c225_i32 dim 1 : vector<8x256xf32>, i32 -> vector<8x256xf32>
    %c224_i32 = arith.constant 224 : i32
    %25 = tpu.dynamic_rotate %1 by %c224_i32 dim 1 : vector<8x256xf32>, i32 -> vector<8x256xf32>
    %c223_i32 = arith.constant 223 : i32
    %26 = tpu.dynamic_rotate %1 by %c223_i32 dim 1 : vector<8x256xf32>, i32 -> vector<8x256xf32>
    %c222_i32 = arith.constant 222 : i32
    %27 = tpu.dynamic_rotate %1 by %c222_i32 dim 1 : vector<8x256xf32>, i32 -> vector<8x256xf32>
    %28 = tpu.concatenate %4, %5, %6, %7, %8, %9, %10, %11, %12, %13, %14, %15, %1, %16, %17, %18 in 0 : vector<8x256xf32>, vector<8x256xf32>, vector<8x256xf32>, vector<8x256xf32>, vector<8x256xf32>, vector<8x256xf32>, vector<8x256xf32>, vector<8x256xf32>, vector<8x256xf32>, vector<8x256xf32>, vector<8x256xf32>, vector<8x256xf32>, vector<8x256xf32>, vector<8x256xf32>, vector<8x256xf32>, vector<8x256xf32> -> vector<128x256xf32>
    %29 = tpu.concatenate %19, %20, %21, %22, %23, %24, %25, %26, %27 in 0 : vector<8x256xf32>, vector<8x256xf32>, vector<8x256xf32>, vector<8x256xf32>, vector<8x256xf32>, vector<8x256xf32>, vector<8x256xf32>, vector<8x256xf32>, vector<8x256xf32> -> vector<72x256xf32>
    %30 = tpu.concatenate %28, %29 in 0 : vector<128x256xf32>, vector<72x256xf32> -> vector<200x256xf32>
    %31 = arith.mulf %30, %3 : vector<200x256xf32>
    %cst = arith.constant dense<0.000000e+00> : vector<32x256xf32>
    %32 = tpu.matmul %2, %31, %cst {dimension_numbers = #tpu.dot_dimension_numbers<[1], [0], [0], [1], [0, 0, 1, 1], [], []>} : vector<32x200xf32>, vector<200x256xf32>, vector<32x256xf32> -> vector<32x256xf32>
    %c0_6 = arith.constant 0 : index
    %c0_7 = arith.constant 0 : index
    %c0_8 = arith.constant 0 : index
    %33 = vector.load %arg9[%c0_6, %c0_7, %c0_8] : memref<20x32x1xf32, #tpu.memory_space<vmem>>, vector<1x32x1xf32>
    %34 = vector.shape_cast %33 : vector<1x32x1xf32> to vector<32x1xf32>
    %35 = vector.broadcast %34 : vector<32x1xf32> to vector<32x256xf32>
    %36 = arith.addf %32, %35 : vector<32x256xf32>
    %cst_9 = arith.constant 0.000000e+00 : f32
    %37 = vector.broadcast %cst_9 : f32 to vector<32x256xf32>
    %38 = arith.maximumf %36, %37 : vector<32x256xf32>
    %c0_10 = arith.constant 0 : index
    %c0_11 = arith.constant 0 : index
    %39 = vector.load %arg4[%c0_10, %c0_11] : memref<32x288xf32, #tpu.memory_space<vmem>>, vector<32x288xf32>
    %c0_12 = arith.constant 0 : index
    %c0_13 = arith.constant 0 : index
    %40 = vector.load %arg5[%c0_12, %c0_13] : memref<288x256xf32, #tpu.memory_space<vmem>>, vector<288x256xf32>
    %c17_i32_14 = arith.constant 17 : i32
    %41 = tpu.dynamic_rotate %38 by %c17_i32_14 dim 1 : vector<32x256xf32>, i32 -> vector<32x256xf32>
    %c16_i32_15 = arith.constant 16 : i32
    %42 = tpu.dynamic_rotate %38 by %c16_i32_15 dim 1 : vector<32x256xf32>, i32 -> vector<32x256xf32>
    %c15_i32_16 = arith.constant 15 : i32
    %43 = tpu.dynamic_rotate %38 by %c15_i32_16 dim 1 : vector<32x256xf32>, i32 -> vector<32x256xf32>
    %c1_i32_17 = arith.constant 1 : i32
    %44 = tpu.dynamic_rotate %38 by %c1_i32_17 dim 1 : vector<32x256xf32>, i32 -> vector<32x256xf32>
    %c255_i32_18 = arith.constant 255 : i32
    %45 = tpu.dynamic_rotate %38 by %c255_i32_18 dim 1 : vector<32x256xf32>, i32 -> vector<32x256xf32>
    %c241_i32_19 = arith.constant 241 : i32
    %46 = tpu.dynamic_rotate %38 by %c241_i32_19 dim 1 : vector<32x256xf32>, i32 -> vector<32x256xf32>
    %c240_i32_20 = arith.constant 240 : i32
    %47 = tpu.dynamic_rotate %38 by %c240_i32_20 dim 1 : vector<32x256xf32>, i32 -> vector<32x256xf32>
    %c239_i32_21 = arith.constant 239 : i32
    %48 = tpu.dynamic_rotate %38 by %c239_i32_21 dim 1 : vector<32x256xf32>, i32 -> vector<32x256xf32>
    %49 = tpu.concatenate %41, %42, %43, %44, %38, %45, %46, %47, %48 in 0 : vector<32x256xf32>, vector<32x256xf32>, vector<32x256xf32>, vector<32x256xf32>, vector<32x256xf32>, vector<32x256xf32>, vector<32x256xf32>, vector<32x256xf32>, vector<32x256xf32> -> vector<288x256xf32>
    %50 = arith.mulf %49, %40 : vector<288x256xf32>
    %cst_22 = arith.constant dense<0.000000e+00> : vector<32x256xf32>
    %51 = tpu.matmul %39, %50, %cst_22 {dimension_numbers = #tpu.dot_dimension_numbers<[1], [0], [0], [1], [0, 0, 1, 1], [], []>} : vector<32x288xf32>, vector<288x256xf32>, vector<32x256xf32> -> vector<32x256xf32>
    %c1 = arith.constant 1 : index
    %c0_23 = arith.constant 0 : index
    %c0_24 = arith.constant 0 : index
    %52 = vector.load %arg9[%c1, %c0_23, %c0_24] : memref<20x32x1xf32, #tpu.memory_space<vmem>>, vector<1x32x1xf32>
    %53 = vector.shape_cast %52 : vector<1x32x1xf32> to vector<32x1xf32>
    %54 = vector.broadcast %53 : vector<32x1xf32> to vector<32x256xf32>
    %55 = arith.addf %51, %54 : vector<32x256xf32>
    %cst_25 = arith.constant 0.000000e+00 : f32
    %56 = vector.broadcast %cst_25 : f32 to vector<32x256xf32>
    %57 = arith.maximumf %55, %56 : vector<32x256xf32>
    %c0_26 = arith.constant 0 : index
    %c0_27 = arith.constant 0 : index
    %c0_28 = arith.constant 0 : index
    %58 = vector.load %arg8[%c0_26, %c0_27, %c0_28] : memref<12x32x32xf32, #tpu.memory_space<vmem>>, vector<1x32x32xf32>
    %59 = vector.shape_cast %58 : vector<1x32x32xf32> to vector<32x32xf32>
    %cst_29 = arith.constant dense<0.000000e+00> : vector<32x256xf32>
    %60 = tpu.matmul %59, %57, %cst_29 {dimension_numbers = #tpu.dot_dimension_numbers<[1], [0], [0], [1], [0, 0, 1, 1], [], []>} : vector<32x32xf32>, vector<32x256xf32>, vector<32x256xf32> -> vector<32x256xf32>
    %c2 = arith.constant 2 : index
    %c0_30 = arith.constant 0 : index
    %c0_31 = arith.constant 0 : index
    %61 = vector.load %arg9[%c2, %c0_30, %c0_31] : memref<20x32x1xf32, #tpu.memory_space<vmem>>, vector<1x32x1xf32>
    %62 = vector.shape_cast %61 : vector<1x32x1xf32> to vector<32x1xf32>
    %63 = vector.broadcast %62 : vector<32x1xf32> to vector<32x256xf32>
    %64 = arith.addf %60, %63 : vector<32x256xf32>
    %cst_32 = arith.constant 0.000000e+00 : f32
    %65 = vector.broadcast %cst_32 : f32 to vector<32x256xf32>
    %66 = arith.maximumf %64, %65 : vector<32x256xf32>
    %c1_33 = arith.constant 1 : index
    %c0_34 = arith.constant 0 : index
    %c0_35 = arith.constant 0 : index
    %67 = vector.load %arg8[%c1_33, %c0_34, %c0_35] : memref<12x32x32xf32, #tpu.memory_space<vmem>>, vector<1x32x32xf32>
    %68 = vector.shape_cast %67 : vector<1x32x32xf32> to vector<32x32xf32>
    %cst_36 = arith.constant dense<0.000000e+00> : vector<32x256xf32>
    %69 = tpu.matmul %68, %66, %cst_36 {dimension_numbers = #tpu.dot_dimension_numbers<[1], [0], [0], [1], [0, 0, 1, 1], [], []>} : vector<32x32xf32>, vector<32x256xf32>, vector<32x256xf32> -> vector<32x256xf32>
    %c3 = arith.constant 3 : index
    %c0_37 = arith.constant 0 : index
    %c0_38 = arith.constant 0 : index
    %70 = vector.load %arg9[%c3, %c0_37, %c0_38] : memref<20x32x1xf32, #tpu.memory_space<vmem>>, vector<1x32x1xf32>
    %71 = vector.shape_cast %70 : vector<1x32x1xf32> to vector<32x1xf32>
    %72 = vector.broadcast %71 : vector<32x1xf32> to vector<32x256xf32>
    %73 = arith.addf %69, %72 : vector<32x256xf32>
    %cst_39 = arith.constant 0.000000e+00 : f32
    %74 = vector.broadcast %cst_39 : f32 to vector<32x256xf32>
    %75 = arith.maximumf %73, %74 : vector<32x256xf32>
    %c0_40 = arith.constant 0 : index
    %c0_41 = arith.constant 0 : index
    %76 = vector.load %arg7[%c0_40, %c0_41] : memref<288x256xf32, #tpu.memory_space<vmem>>, vector<288x256xf32>
    %c0_42 = arith.constant 0 : index
    %c0_43 = arith.constant 0 : index
    %c0_44 = arith.constant 0 : index
    %77 = vector.load %arg6[%c0_42, %c0_43, %c0_44] : memref<6x32x288xf32, #tpu.memory_space<vmem>>, vector<1x32x288xf32>
    %78 = vector.shape_cast %77 : vector<1x32x288xf32> to vector<32x288xf32>
    %c34_i32_45 = arith.constant 34 : i32
    %79 = tpu.dynamic_rotate %75 by %c34_i32_45 dim 1 : vector<32x256xf32>, i32 -> vector<32x256xf32>
    %c32_i32_46 = arith.constant 32 : i32
    %80 = tpu.dynamic_rotate %75 by %c32_i32_46 dim 1 : vector<32x256xf32>, i32 -> vector<32x256xf32>
    %c30_i32_47 = arith.constant 30 : i32
    %81 = tpu.dynamic_rotate %75 by %c30_i32_47 dim 1 : vector<32x256xf32>, i32 -> vector<32x256xf32>
    %c2_i32_48 = arith.constant 2 : i32
    %82 = tpu.dynamic_rotate %75 by %c2_i32_48 dim 1 : vector<32x256xf32>, i32 -> vector<32x256xf32>
    %c254_i32_49 = arith.constant 254 : i32
    %83 = tpu.dynamic_rotate %75 by %c254_i32_49 dim 1 : vector<32x256xf32>, i32 -> vector<32x256xf32>
    %c226_i32_50 = arith.constant 226 : i32
    %84 = tpu.dynamic_rotate %75 by %c226_i32_50 dim 1 : vector<32x256xf32>, i32 -> vector<32x256xf32>
    %c224_i32_51 = arith.constant 224 : i32
    %85 = tpu.dynamic_rotate %75 by %c224_i32_51 dim 1 : vector<32x256xf32>, i32 -> vector<32x256xf32>
    %c222_i32_52 = arith.constant 222 : i32
    %86 = tpu.dynamic_rotate %75 by %c222_i32_52 dim 1 : vector<32x256xf32>, i32 -> vector<32x256xf32>
    %87 = tpu.concatenate %79, %80, %81, %82, %75, %83, %84, %85, %86 in 0 : vector<32x256xf32>, vector<32x256xf32>, vector<32x256xf32>, vector<32x256xf32>, vector<32x256xf32>, vector<32x256xf32>, vector<32x256xf32>, vector<32x256xf32>, vector<32x256xf32> -> vector<288x256xf32>
    %88 = arith.mulf %87, %76 : vector<288x256xf32>
    %cst_53 = arith.constant dense<0.000000e+00> : vector<32x256xf32>
    %89 = tpu.matmul %78, %88, %cst_53 {dimension_numbers = #tpu.dot_dimension_numbers<[1], [0], [0], [1], [0, 0, 1, 1], [], []>} : vector<32x288xf32>, vector<288x256xf32>, vector<32x256xf32> -> vector<32x256xf32>
    %c4 = arith.constant 4 : index
    %c0_54 = arith.constant 0 : index
    %c0_55 = arith.constant 0 : index
    %90 = vector.load %arg9[%c4, %c0_54, %c0_55] : memref<20x32x1xf32, #tpu.memory_space<vmem>>, vector<1x32x1xf32>
    %91 = vector.shape_cast %90 : vector<1x32x1xf32> to vector<32x1xf32>
    %92 = vector.broadcast %91 : vector<32x1xf32> to vector<32x256xf32>
    %93 = arith.addf %89, %92 : vector<32x256xf32>
    %cst_56 = arith.constant 0.000000e+00 : f32
    %94 = vector.broadcast %cst_56 : f32 to vector<32x256xf32>
    %95 = arith.maximumf %93, %94 : vector<32x256xf32>
    %c2_57 = arith.constant 2 : index
    %c0_58 = arith.constant 0 : index
    %c0_59 = arith.constant 0 : index
    %96 = vector.load %arg8[%c2_57, %c0_58, %c0_59] : memref<12x32x32xf32, #tpu.memory_space<vmem>>, vector<1x32x32xf32>
    %97 = vector.shape_cast %96 : vector<1x32x32xf32> to vector<32x32xf32>
    %cst_60 = arith.constant dense<0.000000e+00> : vector<32x256xf32>
    %98 = tpu.matmul %97, %95, %cst_60 {dimension_numbers = #tpu.dot_dimension_numbers<[1], [0], [0], [1], [0, 0, 1, 1], [], []>} : vector<32x32xf32>, vector<32x256xf32>, vector<32x256xf32> -> vector<32x256xf32>
    %c5 = arith.constant 5 : index
    %c0_61 = arith.constant 0 : index
    %c0_62 = arith.constant 0 : index
    %99 = vector.load %arg9[%c5, %c0_61, %c0_62] : memref<20x32x1xf32, #tpu.memory_space<vmem>>, vector<1x32x1xf32>
    %100 = vector.shape_cast %99 : vector<1x32x1xf32> to vector<32x1xf32>
    %101 = vector.broadcast %100 : vector<32x1xf32> to vector<32x256xf32>
    %102 = arith.addf %98, %101 : vector<32x256xf32>
    %103 = arith.addf %75, %102 : vector<32x256xf32>
    %c1_63 = arith.constant 1 : index
    %c0_64 = arith.constant 0 : index
    %c0_65 = arith.constant 0 : index
    %104 = vector.load %arg6[%c1_63, %c0_64, %c0_65] : memref<6x32x288xf32, #tpu.memory_space<vmem>>, vector<1x32x288xf32>
    %105 = vector.shape_cast %104 : vector<1x32x288xf32> to vector<32x288xf32>
    %c34_i32_66 = arith.constant 34 : i32
    %106 = tpu.dynamic_rotate %103 by %c34_i32_66 dim 1 : vector<32x256xf32>, i32 -> vector<32x256xf32>
    %c32_i32_67 = arith.constant 32 : i32
    %107 = tpu.dynamic_rotate %103 by %c32_i32_67 dim 1 : vector<32x256xf32>, i32 -> vector<32x256xf32>
    %c30_i32_68 = arith.constant 30 : i32
    %108 = tpu.dynamic_rotate %103 by %c30_i32_68 dim 1 : vector<32x256xf32>, i32 -> vector<32x256xf32>
    %c2_i32_69 = arith.constant 2 : i32
    %109 = tpu.dynamic_rotate %103 by %c2_i32_69 dim 1 : vector<32x256xf32>, i32 -> vector<32x256xf32>
    %c254_i32_70 = arith.constant 254 : i32
    %110 = tpu.dynamic_rotate %103 by %c254_i32_70 dim 1 : vector<32x256xf32>, i32 -> vector<32x256xf32>
    %c226_i32_71 = arith.constant 226 : i32
    %111 = tpu.dynamic_rotate %103 by %c226_i32_71 dim 1 : vector<32x256xf32>, i32 -> vector<32x256xf32>
    %c224_i32_72 = arith.constant 224 : i32
    %112 = tpu.dynamic_rotate %103 by %c224_i32_72 dim 1 : vector<32x256xf32>, i32 -> vector<32x256xf32>
    %c222_i32_73 = arith.constant 222 : i32
    %113 = tpu.dynamic_rotate %103 by %c222_i32_73 dim 1 : vector<32x256xf32>, i32 -> vector<32x256xf32>
    %114 = tpu.concatenate %106, %107, %108, %109, %103, %110, %111, %112, %113 in 0 : vector<32x256xf32>, vector<32x256xf32>, vector<32x256xf32>, vector<32x256xf32>, vector<32x256xf32>, vector<32x256xf32>, vector<32x256xf32>, vector<32x256xf32>, vector<32x256xf32> -> vector<288x256xf32>
    %115 = arith.mulf %114, %76 : vector<288x256xf32>
    %cst_74 = arith.constant dense<0.000000e+00> : vector<32x256xf32>
    %116 = tpu.matmul %105, %115, %cst_74 {dimension_numbers = #tpu.dot_dimension_numbers<[1], [0], [0], [1], [0, 0, 1, 1], [], []>} : vector<32x288xf32>, vector<288x256xf32>, vector<32x256xf32> -> vector<32x256xf32>
    %c6 = arith.constant 6 : index
    %c0_75 = arith.constant 0 : index
    %c0_76 = arith.constant 0 : index
    %117 = vector.load %arg9[%c6, %c0_75, %c0_76] : memref<20x32x1xf32, #tpu.memory_space<vmem>>, vector<1x32x1xf32>
    %118 = vector.shape_cast %117 : vector<1x32x1xf32> to vector<32x1xf32>
    %119 = vector.broadcast %118 : vector<32x1xf32> to vector<32x256xf32>
    %120 = arith.addf %116, %119 : vector<32x256xf32>
    %cst_77 = arith.constant 0.000000e+00 : f32
    %121 = vector.broadcast %cst_77 : f32 to vector<32x256xf32>
    %122 = arith.maximumf %120, %121 : vector<32x256xf32>
    %c3_78 = arith.constant 3 : index
    %c0_79 = arith.constant 0 : index
    %c0_80 = arith.constant 0 : index
    %123 = vector.load %arg8[%c3_78, %c0_79, %c0_80] : memref<12x32x32xf32, #tpu.memory_space<vmem>>, vector<1x32x32xf32>
    %124 = vector.shape_cast %123 : vector<1x32x32xf32> to vector<32x32xf32>
    %cst_81 = arith.constant dense<0.000000e+00> : vector<32x256xf32>
    %125 = tpu.matmul %124, %122, %cst_81 {dimension_numbers = #tpu.dot_dimension_numbers<[1], [0], [0], [1], [0, 0, 1, 1], [], []>} : vector<32x32xf32>, vector<32x256xf32>, vector<32x256xf32> -> vector<32x256xf32>
    %c7 = arith.constant 7 : index
    %c0_82 = arith.constant 0 : index
    %c0_83 = arith.constant 0 : index
    %126 = vector.load %arg9[%c7, %c0_82, %c0_83] : memref<20x32x1xf32, #tpu.memory_space<vmem>>, vector<1x32x1xf32>
    %127 = vector.shape_cast %126 : vector<1x32x1xf32> to vector<32x1xf32>
    %128 = vector.broadcast %127 : vector<32x1xf32> to vector<32x256xf32>
    %129 = arith.addf %125, %128 : vector<32x256xf32>
    %130 = arith.addf %103, %129 : vector<32x256xf32>
    %c2_84 = arith.constant 2 : index
    %c0_85 = arith.constant 0 : index
    %c0_86 = arith.constant 0 : index
    %131 = vector.load %arg6[%c2_84, %c0_85, %c0_86] : memref<6x32x288xf32, #tpu.memory_space<vmem>>, vector<1x32x288xf32>
    %132 = vector.shape_cast %131 : vector<1x32x288xf32> to vector<32x288xf32>
    %c34_i32_87 = arith.constant 34 : i32
    %133 = tpu.dynamic_rotate %130 by %c34_i32_87 dim 1 : vector<32x256xf32>, i32 -> vector<32x256xf32>
    %c32_i32_88 = arith.constant 32 : i32
    %134 = tpu.dynamic_rotate %130 by %c32_i32_88 dim 1 : vector<32x256xf32>, i32 -> vector<32x256xf32>
    %c30_i32_89 = arith.constant 30 : i32
    %135 = tpu.dynamic_rotate %130 by %c30_i32_89 dim 1 : vector<32x256xf32>, i32 -> vector<32x256xf32>
    %c2_i32_90 = arith.constant 2 : i32
    %136 = tpu.dynamic_rotate %130 by %c2_i32_90 dim 1 : vector<32x256xf32>, i32 -> vector<32x256xf32>
    %c254_i32_91 = arith.constant 254 : i32
    %137 = tpu.dynamic_rotate %130 by %c254_i32_91 dim 1 : vector<32x256xf32>, i32 -> vector<32x256xf32>
    %c226_i32_92 = arith.constant 226 : i32
    %138 = tpu.dynamic_rotate %130 by %c226_i32_92 dim 1 : vector<32x256xf32>, i32 -> vector<32x256xf32>
    %c224_i32_93 = arith.constant 224 : i32
    %139 = tpu.dynamic_rotate %130 by %c224_i32_93 dim 1 : vector<32x256xf32>, i32 -> vector<32x256xf32>
    %c222_i32_94 = arith.constant 222 : i32
    %140 = tpu.dynamic_rotate %130 by %c222_i32_94 dim 1 : vector<32x256xf32>, i32 -> vector<32x256xf32>
    %141 = tpu.concatenate %133, %134, %135, %136, %130, %137, %138, %139, %140 in 0 : vector<32x256xf32>, vector<32x256xf32>, vector<32x256xf32>, vector<32x256xf32>, vector<32x256xf32>, vector<32x256xf32>, vector<32x256xf32>, vector<32x256xf32>, vector<32x256xf32> -> vector<288x256xf32>
    %142 = arith.mulf %141, %76 : vector<288x256xf32>
    %cst_95 = arith.constant dense<0.000000e+00> : vector<32x256xf32>
    %143 = tpu.matmul %132, %142, %cst_95 {dimension_numbers = #tpu.dot_dimension_numbers<[1], [0], [0], [1], [0, 0, 1, 1], [], []>} : vector<32x288xf32>, vector<288x256xf32>, vector<32x256xf32> -> vector<32x256xf32>
    %c8 = arith.constant 8 : index
    %c0_96 = arith.constant 0 : index
    %c0_97 = arith.constant 0 : index
    %144 = vector.load %arg9[%c8, %c0_96, %c0_97] : memref<20x32x1xf32, #tpu.memory_space<vmem>>, vector<1x32x1xf32>
    %145 = vector.shape_cast %144 : vector<1x32x1xf32> to vector<32x1xf32>
    %146 = vector.broadcast %145 : vector<32x1xf32> to vector<32x256xf32>
    %147 = arith.addf %143, %146 : vector<32x256xf32>
    %cst_98 = arith.constant 0.000000e+00 : f32
    %148 = vector.broadcast %cst_98 : f32 to vector<32x256xf32>
    %149 = arith.maximumf %147, %148 : vector<32x256xf32>
    %c4_99 = arith.constant 4 : index
    %c0_100 = arith.constant 0 : index
    %c0_101 = arith.constant 0 : index
    %150 = vector.load %arg8[%c4_99, %c0_100, %c0_101] : memref<12x32x32xf32, #tpu.memory_space<vmem>>, vector<1x32x32xf32>
    %151 = vector.shape_cast %150 : vector<1x32x32xf32> to vector<32x32xf32>
    %cst_102 = arith.constant dense<0.000000e+00> : vector<32x256xf32>
    %152 = tpu.matmul %151, %149, %cst_102 {dimension_numbers = #tpu.dot_dimension_numbers<[1], [0], [0], [1], [0, 0, 1, 1], [], []>} : vector<32x32xf32>, vector<32x256xf32>, vector<32x256xf32> -> vector<32x256xf32>
    %c9 = arith.constant 9 : index
    %c0_103 = arith.constant 0 : index
    %c0_104 = arith.constant 0 : index
    %153 = vector.load %arg9[%c9, %c0_103, %c0_104] : memref<20x32x1xf32, #tpu.memory_space<vmem>>, vector<1x32x1xf32>
    %154 = vector.shape_cast %153 : vector<1x32x1xf32> to vector<32x1xf32>
    %155 = vector.broadcast %154 : vector<32x1xf32> to vector<32x256xf32>
    %156 = arith.addf %152, %155 : vector<32x256xf32>
    %157 = arith.addf %130, %156 : vector<32x256xf32>
    %c3_105 = arith.constant 3 : index
    %c0_106 = arith.constant 0 : index
    %c0_107 = arith.constant 0 : index
    %158 = vector.load %arg6[%c3_105, %c0_106, %c0_107] : memref<6x32x288xf32, #tpu.memory_space<vmem>>, vector<1x32x288xf32>
    %159 = vector.shape_cast %158 : vector<1x32x288xf32> to vector<32x288xf32>
    %c34_i32_108 = arith.constant 34 : i32
    %160 = tpu.dynamic_rotate %157 by %c34_i32_108 dim 1 : vector<32x256xf32>, i32 -> vector<32x256xf32>
    %c32_i32_109 = arith.constant 32 : i32
    %161 = tpu.dynamic_rotate %157 by %c32_i32_109 dim 1 : vector<32x256xf32>, i32 -> vector<32x256xf32>
    %c30_i32_110 = arith.constant 30 : i32
    %162 = tpu.dynamic_rotate %157 by %c30_i32_110 dim 1 : vector<32x256xf32>, i32 -> vector<32x256xf32>
    %c2_i32_111 = arith.constant 2 : i32
    %163 = tpu.dynamic_rotate %157 by %c2_i32_111 dim 1 : vector<32x256xf32>, i32 -> vector<32x256xf32>
    %c254_i32_112 = arith.constant 254 : i32
    %164 = tpu.dynamic_rotate %157 by %c254_i32_112 dim 1 : vector<32x256xf32>, i32 -> vector<32x256xf32>
    %c226_i32_113 = arith.constant 226 : i32
    %165 = tpu.dynamic_rotate %157 by %c226_i32_113 dim 1 : vector<32x256xf32>, i32 -> vector<32x256xf32>
    %c224_i32_114 = arith.constant 224 : i32
    %166 = tpu.dynamic_rotate %157 by %c224_i32_114 dim 1 : vector<32x256xf32>, i32 -> vector<32x256xf32>
    %c222_i32_115 = arith.constant 222 : i32
    %167 = tpu.dynamic_rotate %157 by %c222_i32_115 dim 1 : vector<32x256xf32>, i32 -> vector<32x256xf32>
    %168 = tpu.concatenate %160, %161, %162, %163, %157, %164, %165, %166, %167 in 0 : vector<32x256xf32>, vector<32x256xf32>, vector<32x256xf32>, vector<32x256xf32>, vector<32x256xf32>, vector<32x256xf32>, vector<32x256xf32>, vector<32x256xf32>, vector<32x256xf32> -> vector<288x256xf32>
    %169 = arith.mulf %168, %76 : vector<288x256xf32>
    %cst_116 = arith.constant dense<0.000000e+00> : vector<32x256xf32>
    %170 = tpu.matmul %159, %169, %cst_116 {dimension_numbers = #tpu.dot_dimension_numbers<[1], [0], [0], [1], [0, 0, 1, 1], [], []>} : vector<32x288xf32>, vector<288x256xf32>, vector<32x256xf32> -> vector<32x256xf32>
    %c10 = arith.constant 10 : index
    %c0_117 = arith.constant 0 : index
    %c0_118 = arith.constant 0 : index
    %171 = vector.load %arg9[%c10, %c0_117, %c0_118] : memref<20x32x1xf32, #tpu.memory_space<vmem>>, vector<1x32x1xf32>
    %172 = vector.shape_cast %171 : vector<1x32x1xf32> to vector<32x1xf32>
    %173 = vector.broadcast %172 : vector<32x1xf32> to vector<32x256xf32>
    %174 = arith.addf %170, %173 : vector<32x256xf32>
    %cst_119 = arith.constant 0.000000e+00 : f32
    %175 = vector.broadcast %cst_119 : f32 to vector<32x256xf32>
    %176 = arith.maximumf %174, %175 : vector<32x256xf32>
    %c5_120 = arith.constant 5 : index
    %c0_121 = arith.constant 0 : index
    %c0_122 = arith.constant 0 : index
    %177 = vector.load %arg8[%c5_120, %c0_121, %c0_122] : memref<12x32x32xf32, #tpu.memory_space<vmem>>, vector<1x32x32xf32>
    %178 = vector.shape_cast %177 : vector<1x32x32xf32> to vector<32x32xf32>
    %cst_123 = arith.constant dense<0.000000e+00> : vector<32x256xf32>
    %179 = tpu.matmul %178, %176, %cst_123 {dimension_numbers = #tpu.dot_dimension_numbers<[1], [0], [0], [1], [0, 0, 1, 1], [], []>} : vector<32x32xf32>, vector<32x256xf32>, vector<32x256xf32> -> vector<32x256xf32>
    %c11 = arith.constant 11 : index
    %c0_124 = arith.constant 0 : index
    %c0_125 = arith.constant 0 : index
    %180 = vector.load %arg9[%c11, %c0_124, %c0_125] : memref<20x32x1xf32, #tpu.memory_space<vmem>>, vector<1x32x1xf32>
    %181 = vector.shape_cast %180 : vector<1x32x1xf32> to vector<32x1xf32>
    %182 = vector.broadcast %181 : vector<32x1xf32> to vector<32x256xf32>
    %183 = arith.addf %179, %182 : vector<32x256xf32>
    %184 = arith.addf %157, %183 : vector<32x256xf32>
    %c4_126 = arith.constant 4 : index
    %c0_127 = arith.constant 0 : index
    %c0_128 = arith.constant 0 : index
    %185 = vector.load %arg6[%c4_126, %c0_127, %c0_128] : memref<6x32x288xf32, #tpu.memory_space<vmem>>, vector<1x32x288xf32>
    %186 = vector.shape_cast %185 : vector<1x32x288xf32> to vector<32x288xf32>
    %c34_i32_129 = arith.constant 34 : i32
    %187 = tpu.dynamic_rotate %184 by %c34_i32_129 dim 1 : vector<32x256xf32>, i32 -> vector<32x256xf32>
    %c32_i32_130 = arith.constant 32 : i32
    %188 = tpu.dynamic_rotate %184 by %c32_i32_130 dim 1 : vector<32x256xf32>, i32 -> vector<32x256xf32>
    %c30_i32_131 = arith.constant 30 : i32
    %189 = tpu.dynamic_rotate %184 by %c30_i32_131 dim 1 : vector<32x256xf32>, i32 -> vector<32x256xf32>
    %c2_i32_132 = arith.constant 2 : i32
    %190 = tpu.dynamic_rotate %184 by %c2_i32_132 dim 1 : vector<32x256xf32>, i32 -> vector<32x256xf32>
    %c254_i32_133 = arith.constant 254 : i32
    %191 = tpu.dynamic_rotate %184 by %c254_i32_133 dim 1 : vector<32x256xf32>, i32 -> vector<32x256xf32>
    %c226_i32_134 = arith.constant 226 : i32
    %192 = tpu.dynamic_rotate %184 by %c226_i32_134 dim 1 : vector<32x256xf32>, i32 -> vector<32x256xf32>
    %c224_i32_135 = arith.constant 224 : i32
    %193 = tpu.dynamic_rotate %184 by %c224_i32_135 dim 1 : vector<32x256xf32>, i32 -> vector<32x256xf32>
    %c222_i32_136 = arith.constant 222 : i32
    %194 = tpu.dynamic_rotate %184 by %c222_i32_136 dim 1 : vector<32x256xf32>, i32 -> vector<32x256xf32>
    %195 = tpu.concatenate %187, %188, %189, %190, %184, %191, %192, %193, %194 in 0 : vector<32x256xf32>, vector<32x256xf32>, vector<32x256xf32>, vector<32x256xf32>, vector<32x256xf32>, vector<32x256xf32>, vector<32x256xf32>, vector<32x256xf32>, vector<32x256xf32> -> vector<288x256xf32>
    %196 = arith.mulf %195, %76 : vector<288x256xf32>
    %cst_137 = arith.constant dense<0.000000e+00> : vector<32x256xf32>
    %197 = tpu.matmul %186, %196, %cst_137 {dimension_numbers = #tpu.dot_dimension_numbers<[1], [0], [0], [1], [0, 0, 1, 1], [], []>} : vector<32x288xf32>, vector<288x256xf32>, vector<32x256xf32> -> vector<32x256xf32>
    %c12 = arith.constant 12 : index
    %c0_138 = arith.constant 0 : index
    %c0_139 = arith.constant 0 : index
    %198 = vector.load %arg9[%c12, %c0_138, %c0_139] : memref<20x32x1xf32, #tpu.memory_space<vmem>>, vector<1x32x1xf32>
    %199 = vector.shape_cast %198 : vector<1x32x1xf32> to vector<32x1xf32>
    %200 = vector.broadcast %199 : vector<32x1xf32> to vector<32x256xf32>
    %201 = arith.addf %197, %200 : vector<32x256xf32>
    %cst_140 = arith.constant 0.000000e+00 : f32
    %202 = vector.broadcast %cst_140 : f32 to vector<32x256xf32>
    %203 = arith.maximumf %201, %202 : vector<32x256xf32>
    %c6_141 = arith.constant 6 : index
    %c0_142 = arith.constant 0 : index
    %c0_143 = arith.constant 0 : index
    %204 = vector.load %arg8[%c6_141, %c0_142, %c0_143] : memref<12x32x32xf32, #tpu.memory_space<vmem>>, vector<1x32x32xf32>
    %205 = vector.shape_cast %204 : vector<1x32x32xf32> to vector<32x32xf32>
    %cst_144 = arith.constant dense<0.000000e+00> : vector<32x256xf32>
    %206 = tpu.matmul %205, %203, %cst_144 {dimension_numbers = #tpu.dot_dimension_numbers<[1], [0], [0], [1], [0, 0, 1, 1], [], []>} : vector<32x32xf32>, vector<32x256xf32>, vector<32x256xf32> -> vector<32x256xf32>
    %c13 = arith.constant 13 : index
    %c0_145 = arith.constant 0 : index
    %c0_146 = arith.constant 0 : index
    %207 = vector.load %arg9[%c13, %c0_145, %c0_146] : memref<20x32x1xf32, #tpu.memory_space<vmem>>, vector<1x32x1xf32>
    %208 = vector.shape_cast %207 : vector<1x32x1xf32> to vector<32x1xf32>
    %209 = vector.broadcast %208 : vector<32x1xf32> to vector<32x256xf32>
    %210 = arith.addf %206, %209 : vector<32x256xf32>
    %211 = arith.addf %184, %210 : vector<32x256xf32>
    %c5_147 = arith.constant 5 : index
    %c0_148 = arith.constant 0 : index
    %c0_149 = arith.constant 0 : index
    %212 = vector.load %arg6[%c5_147, %c0_148, %c0_149] : memref<6x32x288xf32, #tpu.memory_space<vmem>>, vector<1x32x288xf32>
    %213 = vector.shape_cast %212 : vector<1x32x288xf32> to vector<32x288xf32>
    %c34_i32_150 = arith.constant 34 : i32
    %214 = tpu.dynamic_rotate %211 by %c34_i32_150 dim 1 : vector<32x256xf32>, i32 -> vector<32x256xf32>
    %c32_i32_151 = arith.constant 32 : i32
    %215 = tpu.dynamic_rotate %211 by %c32_i32_151 dim 1 : vector<32x256xf32>, i32 -> vector<32x256xf32>
    %c30_i32_152 = arith.constant 30 : i32
    %216 = tpu.dynamic_rotate %211 by %c30_i32_152 dim 1 : vector<32x256xf32>, i32 -> vector<32x256xf32>
    %c2_i32_153 = arith.constant 2 : i32
    %217 = tpu.dynamic_rotate %211 by %c2_i32_153 dim 1 : vector<32x256xf32>, i32 -> vector<32x256xf32>
    %c254_i32_154 = arith.constant 254 : i32
    %218 = tpu.dynamic_rotate %211 by %c254_i32_154 dim 1 : vector<32x256xf32>, i32 -> vector<32x256xf32>
    %c226_i32_155 = arith.constant 226 : i32
    %219 = tpu.dynamic_rotate %211 by %c226_i32_155 dim 1 : vector<32x256xf32>, i32 -> vector<32x256xf32>
    %c224_i32_156 = arith.constant 224 : i32
    %220 = tpu.dynamic_rotate %211 by %c224_i32_156 dim 1 : vector<32x256xf32>, i32 -> vector<32x256xf32>
    %c222_i32_157 = arith.constant 222 : i32
    %221 = tpu.dynamic_rotate %211 by %c222_i32_157 dim 1 : vector<32x256xf32>, i32 -> vector<32x256xf32>
    %222 = tpu.concatenate %214, %215, %216, %217, %211, %218, %219, %220, %221 in 0 : vector<32x256xf32>, vector<32x256xf32>, vector<32x256xf32>, vector<32x256xf32>, vector<32x256xf32>, vector<32x256xf32>, vector<32x256xf32>, vector<32x256xf32>, vector<32x256xf32> -> vector<288x256xf32>
    %223 = arith.mulf %222, %76 : vector<288x256xf32>
    %cst_158 = arith.constant dense<0.000000e+00> : vector<32x256xf32>
    %224 = tpu.matmul %213, %223, %cst_158 {dimension_numbers = #tpu.dot_dimension_numbers<[1], [0], [0], [1], [0, 0, 1, 1], [], []>} : vector<32x288xf32>, vector<288x256xf32>, vector<32x256xf32> -> vector<32x256xf32>
    %c14 = arith.constant 14 : index
    %c0_159 = arith.constant 0 : index
    %c0_160 = arith.constant 0 : index
    %225 = vector.load %arg9[%c14, %c0_159, %c0_160] : memref<20x32x1xf32, #tpu.memory_space<vmem>>, vector<1x32x1xf32>
    %226 = vector.shape_cast %225 : vector<1x32x1xf32> to vector<32x1xf32>
    %227 = vector.broadcast %226 : vector<32x1xf32> to vector<32x256xf32>
    %228 = arith.addf %224, %227 : vector<32x256xf32>
    %cst_161 = arith.constant 0.000000e+00 : f32
    %229 = vector.broadcast %cst_161 : f32 to vector<32x256xf32>
    %230 = arith.maximumf %228, %229 : vector<32x256xf32>
    %c7_162 = arith.constant 7 : index
    %c0_163 = arith.constant 0 : index
    %c0_164 = arith.constant 0 : index
    %231 = vector.load %arg8[%c7_162, %c0_163, %c0_164] : memref<12x32x32xf32, #tpu.memory_space<vmem>>, vector<1x32x32xf32>
    %232 = vector.shape_cast %231 : vector<1x32x32xf32> to vector<32x32xf32>
    %cst_165 = arith.constant dense<0.000000e+00> : vector<32x256xf32>
    %233 = tpu.matmul %232, %230, %cst_165 {dimension_numbers = #tpu.dot_dimension_numbers<[1], [0], [0], [1], [0, 0, 1, 1], [], []>} : vector<32x32xf32>, vector<32x256xf32>, vector<32x256xf32> -> vector<32x256xf32>
    %c15 = arith.constant 15 : index
    %c0_166 = arith.constant 0 : index
    %c0_167 = arith.constant 0 : index
    %234 = vector.load %arg9[%c15, %c0_166, %c0_167] : memref<20x32x1xf32, #tpu.memory_space<vmem>>, vector<1x32x1xf32>
    %235 = vector.shape_cast %234 : vector<1x32x1xf32> to vector<32x1xf32>
    %236 = vector.broadcast %235 : vector<32x1xf32> to vector<32x256xf32>
    %237 = arith.addf %233, %236 : vector<32x256xf32>
    %238 = arith.addf %211, %237 : vector<32x256xf32>
    %c8_168 = arith.constant 8 : index
    %c0_169 = arith.constant 0 : index
    %c0_170 = arith.constant 0 : index
    %239 = vector.load %arg8[%c8_168, %c0_169, %c0_170] : memref<12x32x32xf32, #tpu.memory_space<vmem>>, vector<1x32x32xf32>
    %240 = vector.shape_cast %239 : vector<1x32x32xf32> to vector<32x32xf32>
    %cst_171 = arith.constant dense<0.000000e+00> : vector<32x256xf32>
    %241 = tpu.matmul %240, %238, %cst_171 {dimension_numbers = #tpu.dot_dimension_numbers<[1], [0], [0], [1], [0, 0, 1, 1], [], []>} : vector<32x32xf32>, vector<32x256xf32>, vector<32x256xf32> -> vector<32x256xf32>
    %c16 = arith.constant 16 : index
    %c0_172 = arith.constant 0 : index
    %c0_173 = arith.constant 0 : index
    %242 = vector.load %arg9[%c16, %c0_172, %c0_173] : memref<20x32x1xf32, #tpu.memory_space<vmem>>, vector<1x32x1xf32>
    %243 = vector.shape_cast %242 : vector<1x32x1xf32> to vector<32x1xf32>
    %244 = vector.broadcast %243 : vector<32x1xf32> to vector<32x256xf32>
    %245 = arith.addf %241, %244 : vector<32x256xf32>
    %cst_174 = arith.constant 0.000000e+00 : f32
    %246 = vector.broadcast %cst_174 : f32 to vector<32x256xf32>
    %247 = arith.maximumf %245, %246 : vector<32x256xf32>
    %c9_175 = arith.constant 9 : index
    %c0_176 = arith.constant 0 : index
    %c0_177 = arith.constant 0 : index
    %248 = vector.load %arg8[%c9_175, %c0_176, %c0_177] : memref<12x32x32xf32, #tpu.memory_space<vmem>>, vector<1x32x32xf32>
    %249 = vector.shape_cast %248 : vector<1x32x32xf32> to vector<32x32xf32>
    %cst_178 = arith.constant dense<0.000000e+00> : vector<32x256xf32>
    %250 = tpu.matmul %249, %247, %cst_178 {dimension_numbers = #tpu.dot_dimension_numbers<[1], [0], [0], [1], [0, 0, 1, 1], [], []>} : vector<32x32xf32>, vector<32x256xf32>, vector<32x256xf32> -> vector<32x256xf32>
    %c17 = arith.constant 17 : index
    %c0_179 = arith.constant 0 : index
    %c0_180 = arith.constant 0 : index
    %251 = vector.load %arg9[%c17, %c0_179, %c0_180] : memref<20x32x1xf32, #tpu.memory_space<vmem>>, vector<1x32x1xf32>
    %252 = vector.shape_cast %251 : vector<1x32x1xf32> to vector<32x1xf32>
    %253 = vector.broadcast %252 : vector<32x1xf32> to vector<32x256xf32>
    %254 = arith.addf %250, %253 : vector<32x256xf32>
    %cst_181 = arith.constant 0.000000e+00 : f32
    %255 = vector.broadcast %cst_181 : f32 to vector<32x256xf32>
    %256 = arith.maximumf %254, %255 : vector<32x256xf32>
    %c10_182 = arith.constant 10 : index
    %c0_183 = arith.constant 0 : index
    %c0_184 = arith.constant 0 : index
    %257 = vector.load %arg8[%c10_182, %c0_183, %c0_184] : memref<12x32x32xf32, #tpu.memory_space<vmem>>, vector<1x32x32xf32>
    %258 = vector.shape_cast %257 : vector<1x32x32xf32> to vector<32x32xf32>
    %cst_185 = arith.constant dense<0.000000e+00> : vector<32x256xf32>
    %259 = tpu.matmul %258, %256, %cst_185 {dimension_numbers = #tpu.dot_dimension_numbers<[1], [0], [0], [1], [0, 0, 1, 1], [], []>} : vector<32x32xf32>, vector<32x256xf32>, vector<32x256xf32> -> vector<32x256xf32>
    %c18 = arith.constant 18 : index
    %c0_186 = arith.constant 0 : index
    %c0_187 = arith.constant 0 : index
    %260 = vector.load %arg9[%c18, %c0_186, %c0_187] : memref<20x32x1xf32, #tpu.memory_space<vmem>>, vector<1x32x1xf32>
    %261 = vector.shape_cast %260 : vector<1x32x1xf32> to vector<32x1xf32>
    %262 = vector.broadcast %261 : vector<32x1xf32> to vector<32x256xf32>
    %263 = arith.addf %259, %262 : vector<32x256xf32>
    %cst_188 = arith.constant 0.000000e+00 : f32
    %264 = vector.broadcast %cst_188 : f32 to vector<32x256xf32>
    %265 = arith.maximumf %263, %264 : vector<32x256xf32>
    %c11_189 = arith.constant 11 : index
    %c0_190 = arith.constant 0 : index
    %c0_191 = arith.constant 0 : index
    %266 = vector.load %arg8[%c11_189, %c0_190, %c0_191] : memref<12x32x32xf32, #tpu.memory_space<vmem>>, vector<1x32x32xf32>
    %267 = vector.shape_cast %266 : vector<1x32x32xf32> to vector<32x32xf32>
    %cst_192 = arith.constant dense<0.000000e+00> : vector<32x256xf32>
    %268 = tpu.matmul %267, %265, %cst_192 {dimension_numbers = #tpu.dot_dimension_numbers<[1], [0], [0], [1], [0, 0, 1, 1], [], []>} : vector<32x32xf32>, vector<32x256xf32>, vector<32x256xf32> -> vector<32x256xf32>
    %c19 = arith.constant 19 : index
    %c0_193 = arith.constant 0 : index
    %c0_194 = arith.constant 0 : index
    %269 = vector.load %arg9[%c19, %c0_193, %c0_194] : memref<20x32x1xf32, #tpu.memory_space<vmem>>, vector<1x32x1xf32>
    %270 = vector.shape_cast %269 : vector<1x32x1xf32> to vector<32x1xf32>
    %271 = vector.broadcast %270 : vector<32x1xf32> to vector<32x256xf32>
    %272 = arith.addf %268, %271 : vector<32x256xf32>
    %273 = vector.extract_strided_slice %272 {offsets = [0, 0], sizes = [1, 256], strides = [1, 1]} : vector<32x256xf32> to vector<1x256xf32>
    %c0_195 = arith.constant 0 : index
    %c0_196 = arith.constant 0 : index
    %c0_197 = arith.constant 0 : index
    %274 = vector.load %arg10[%c0_195, %c0_196, %c0_197] : memref<1x1x256xf32, #tpu.memory_space<vmem>>, vector<1x1x256xf32>
    %275 = vector.shape_cast %274 : vector<1x1x256xf32> to vector<1x256xf32>
    %276 = vector.shape_cast %273 : vector<1x256xf32> to vector<1x1x256xf32>
    tpu.vector_store %arg10[%c0_195, %c0_196, %c0_197], %276 {strides = array<i32>} : memref<1x1x256xf32, #tpu.memory_space<vmem>>, vector<1x1x256xf32>,
    return
  }
  func.func @transform_0(%arg0: i32) -> (i32, i32, i32) {
    %c0_i32 = arith.constant 0 : i32
    %c0_i32_0 = arith.constant 0 : i32
    %c0_i32_1 = arith.constant 0 : i32
    return %arg0, %c0_i32, %c0_i32_0 : i32, i32, i32
  }
  func.func @transform_1(%arg0: i32) -> (i32, i32) {
    %c0_i32 = arith.constant 0 : i32
    %c0_i32_0 = arith.constant 0 : i32
    %c0_i32_1 = arith.constant 0 : i32
    return %c0_i32, %c0_i32_0 : i32, i32
  }
  func.func @transform_2(%arg0: i32) -> (i32, i32) {
    %c0_i32 = arith.constant 0 : i32
    %c0_i32_0 = arith.constant 0 : i32
    %c0_i32_1 = arith.constant 0 : i32
    return %c0_i32, %c0_i32_0 : i32, i32
  }
  func.func @transform_3(%arg0: i32) -> (i32, i32) {
    %c0_i32 = arith.constant 0 : i32
    %c0_i32_0 = arith.constant 0 : i32
    %c0_i32_1 = arith.constant 0 : i32
    return %c0_i32, %c0_i32_0 : i32, i32
  }
  func.func @transform_4(%arg0: i32) -> (i32, i32) {
    %c0_i32 = arith.constant 0 : i32
    %c0_i32_0 = arith.constant 0 : i32
    %c0_i32_1 = arith.constant 0 : i32
    return %c0_i32, %c0_i32_0 : i32, i32
  }
  func.func @transform_5(%arg0: i32) -> (i32, i32, i32) {
    %c0_i32 = arith.constant 0 : i32
    %c0_i32_0 = arith.constant 0 : i32
    %c0_i32_1 = arith.constant 0 : i32
    %c0_i32_2 = arith.constant 0 : i32
    return %c0_i32, %c0_i32_0, %c0_i32_1 : i32, i32, i32
  }
  func.func @transform_6(%arg0: i32) -> (i32, i32) {
    %c0_i32 = arith.constant 0 : i32
    %c0_i32_0 = arith.constant 0 : i32
    %c0_i32_1 = arith.constant 0 : i32
    return %c0_i32, %c0_i32_0 : i32, i32
  }
  func.func @transform_7(%arg0: i32) -> (i32, i32, i32) {
    %c0_i32 = arith.constant 0 : i32
    %c0_i32_0 = arith.constant 0 : i32
    %c0_i32_1 = arith.constant 0 : i32
    %c0_i32_2 = arith.constant 0 : i32
    return %c0_i32, %c0_i32_0, %c0_i32_1 : i32, i32, i32
  }
  func.func @transform_8(%arg0: i32) -> (i32, i32, i32) {
    %c0_i32 = arith.constant 0 : i32
    %c0_i32_0 = arith.constant 0 : i32
    %c0_i32_1 = arith.constant 0 : i32
    %c0_i32_2 = arith.constant 0 : i32
    return %c0_i32, %c0_i32_0, %c0_i32_1 : i32, i32, i32
  }
  func.func @transform_9(%arg0: i32) -> (i32, i32, i32) {
    %c0_i32 = arith.constant 0 : i32
    %c0_i32_0 = arith.constant 0 : i32
    %c0_i32_1 = arith.constant 0 : i32
    return %arg0, %c0_i32, %c0_i32_0 : i32, i32, i32
  }
}

</mosaic_0001>

<llo_original>
// kernel: dbsnet_add_forward.1
$region0: #{dbsnet_add_forward.1}
  #allocation0 [shape = 'u32[]', space=smem, size = 0x4, offset = 0x4, fixed_abs, tag = 'smem constant byte address 0x4 - core index']
  #allocation1 [shape = 'u32[144,128]{1,0:T(1,128)}', space=vmem, size = 0x12000, scoped, tag = 'internal scratch']
  %s0 = inlined_call_operand.vmem [shape: f32[2,8,256], index: 0, kind: input, shape index: {}]
  %s1 = inlined_call_operand.vmem [shape: f32[32,200], index: 1, kind: input, shape index: {}]
  %s2 = inlined_call_operand.hbm [shape: f32[200,256], index: 2, kind: input, shape index: {}]
  %s3 = inlined_call_operand.vmem [shape: f32[32,288], index: 3, kind: input, shape index: {}]
  %s4 = inlined_call_operand.vmem [shape: f32[288,256], index: 4, kind: input, shape index: {}]
  %s5 = inlined_call_operand.hbm [shape: f32[6,32,288], index: 5, kind: input, shape index: {}]
  %s6 = inlined_call_operand.hbm [shape: f32[288,256], index: 6, kind: input, shape index: {}]
  %s7 = inlined_call_operand.hbm [shape: f32[12,32,32], index: 7, kind: input, shape index: {}]
  %s8 = inlined_call_operand.vmem [shape: f32[20,32,1], index: 8, kind: input, shape index: {}]
  %s9 = inlined_call_operand.vmem [shape: f32[2,1,256], index: 9, kind: output, shape index: {}]
  %s10 = sld [smem:[#allocation0]]
  $region85: #{dbsnet_add_forward.1} parent=0
    _
  %s12 = ssub.s32 1, %s10
  %s13 = scalar_select 0, %s12, %s10
  $region1: #{dbsnet_add_forward.1} parent=0
    #allocation2 [shape = 'u8[204800]{0}', space=vmem, size = 0x32000, scoped, tag = 'input window, operand 2, single buffered']
    #allocation3 [shape = 's32[2]{0}', space=sflag, size = 0x8, scoped, tag = 'scoped memory for dbsnet_add_forward.1']
    #allocation4 [shape = 'u8[294912]{0}', space=vmem, size = 0x48000, scoped, tag = 'input window, operand 5, single buffered']
    #allocation5 [shape = 's32[1]{0}', space=sflag, size = 0x4, scoped, tag = 'scoped memory for dbsnet_add_forward.1']
    #allocation6 [shape = 'u8[294912]{0}', space=vmem, size = 0x48000, scoped, tag = 'input window, operand 6, single buffered']
    #allocation7 [shape = 'u8[196608]{0}', space=vmem, size = 0x30000, scoped, tag = 'input window, operand 7, single buffered']
    #allocation8 [shape = 's32[1]{0}', space=sflag, size = 0x4, scoped, tag = 'scoped memory for dbsnet_add_forward.1']
    %14 = vsyncpa [#allocation3], 0
    %15 = vsyncpa [#allocation5], 0
    %16 = vsyncpa [#allocation8], 0
    loop: start=0, step=1, limit=4
    $region2: #{dbsnet_add_forward.1} parent=1 // loop_pre_header
      _
    $region3: #{dbsnet_add_forward.1} parent=1 // loop_header
      %s18 = sphi 0, %s22
      %p19 = scmp.ge.s32.totalorder %s18, 4
      %s28 = sphi 0, %s30
      %s31 = sphi 0, %s28
      %s32 = sphi 0, %s31
      %s48 = sphi 0, %s32
      %s52 = sphi 0, %s52
      %s54 = sphi 0, %s52
      %s55 = sphi 0, %s54
      %s69 = sphi 0, %s55
      %s73 = sphi 0, %s73
      %s75 = sphi 0, %s73
      %s76 = sphi 0, %s75
      %s90 = sphi 0, %s76
      %s94 = sphi 0, %s94
      %s96 = sphi 0, %s94
      %s97 = sphi 0, %s96
      %s111 = sphi 0, %s97
      %s115 = sphi 0, %s115
      %s117 = sphi 0, %s115
      %s118 = sphi 0, %s117
      %s132 = sphi 0, %s118
      %s136 = sphi 0, %s136
      %s138 = sphi 0, %s136
      %s139 = sphi 0, %s138
      %s153 = sphi 0, %s139
      %s157 = sphi 0, %s157
      %s159 = sphi 0, %s157
      %s160 = sphi 0, %s159
      %s174 = sphi 0, %s160
      %s178 = sphi 0, %s178
      %s180 = sphi 0, %s178
      %s181 = sphi 0, %s180
      %s195 = sphi 0, %s181
      %s199 = sphi 0, %s199
      %s201 = sphi 0, %s199
      %s202 = sphi 0, %s201
      %s216 = sphi 0, %s202
      %s222 = sphi 0, %s224
      %s225 = sphi 0, %s222
      %s226 = sphi 0, %s225
      %s242 = sphi 0, %s226
    $region4: #{dbsnet_add_forward.1} parent=1 // loop_header_branch
      %21 = sbr.rel (%p19) target = $region8
    $region5: #{dbsnet_add_forward.1} parent=1 // loop_body
      %s23 = ssub.s32 %s18, 1
      %s24 = ssub.s32 %s18, 2
      %s25 = sadd.s32 %s18, 1
      %s26 = ssub.s32 %s18, %s25
      %p27 = scmp.eq.s32.totalorder %s26, 0
      %s29 = sadd.s32 %s28, 1
      %s30 = scalar_select %p27, %s28, %s29
      %p33 = pneg %p27
      %p34 = scmp.eq.s32.totalorder %s18, 1
      %p35 = por %p33, %p34
      %p36 = scmp.ne.s32.totalorder %s28, %s31
      %p37 = scmp.eq.s32.totalorder %s18, 0
      %p38 = por %p36, %p37
      %p39 = scmp.ne.s32.totalorder %s28, %s31
      %p40 = scmp.eq.s32.totalorder %s23, 1
      %p41 = por %p39, %p40
      %p42 = scmp.ne.s32.totalorder %s31, %s32
      %p43 = scmp.eq.s32.totalorder %s23, 0
      %p44 = por %p42, %p43
      %p45 = scmp.ne.s32.totalorder %s31, %s32
      %p46 = scmp.eq.s32.totalorder %s24, 1
      %p47 = por %p45, %p46
      %p49 = scmp.ne.s32.totalorder %s32, %s48
      %p50 = scmp.eq.s32.totalorder %s24, 0
      %p51 = por %p49, %p50
      %s53 = sadd.s32 %s52, 1
      %p56 = scmp.eq.s32.totalorder %s18, 1
      %p57 = scmp.ne.s32.totalorder %s52, %s54
      %p58 = scmp.eq.s32.totalorder %s18, 0
      %p59 = por %p57, %p58
      %p60 = scmp.ne.s32.totalorder %s52, %s54
      %p61 = scmp.eq.s32.totalorder %s23, 1
      %p62 = por %p60, %p61
      %p63 = scmp.ne.s32.totalorder %s54, %s55
      %p64 = scmp.eq.s32.totalorder %s23, 0
      %p65 = por %p63, %p64
      %p66 = scmp.ne.s32.totalorder %s54, %s55
      %p67 = scmp.eq.s32.totalorder %s24, 1
      %p68 = por %p66, %p67
      %p70 = scmp.ne.s32.totalorder %s55, %s69
      %p71 = scmp.eq.s32.totalorder %s24, 0
      %p72 = por %p70, %p71
      %s74 = sadd.s32 %s73, 1
      %p77 = scmp.eq.s32.totalorder %s18, 1
      %p78 = scmp.ne.s32.totalorder %s73, %s75
      %p79 = scmp.eq.s32.totalorder %s18, 0
      %p80 = por %p78, %p79
      %p81 = scmp.ne.s32.totalorder %s73, %s75
      %p82 = scmp.eq.s32.totalorder %s23, 1
      %p83 = por %p81, %p82
      %p84 = scmp.ne.s32.totalorder %s75, %s76
      %p85 = scmp.eq.s32.totalorder %s23, 0
      %p86 = por %p84, %p85
      %p87 = scmp.ne.s32.totalorder %s75, %s76
      %p88 = scmp.eq.s32.totalorder %s24, 1
      %p89 = por %p87, %p88
      %p91 = scmp.ne.s32.totalorder %s76, %s90
      %p92 = scmp.eq.s32.totalorder %s24, 0
      %p93 = por %p91, %p92
      %s95 = sadd.s32 %s94, 1
      %p98 = scmp.eq.s32.totalorder %s18, 1
      %p99 = scmp.ne.s32.totalorder %s94, %s96
      %p100 = scmp.eq.s32.totalorder %s18, 0
      %p101 = por %p99, %p100
      %p102 = scmp.ne.s32.totalorder %s94, %s96
      %p103 = scmp.eq.s32.totalorder %s23, 1
      %p104 = por %p102, %p103
      %p105 = scmp.ne.s32.totalorder %s96, %s97
      %p106 = scmp.eq.s32.totalorder %s23, 0
      %p107 = por %p105, %p106
      %p108 = scmp.ne.s32.totalorder %s96, %s97
      %p109 = scmp.eq.s32.totalorder %s24, 1
      %p110 = por %p108, %p109
      %p112 = scmp.ne.s32.totalorder %s97, %s111
      %p113 = scmp.eq.s32.totalorder %s24, 0
      %p114 = por %p112, %p113
      %s116 = sadd.s32 %s115, 1
      %p119 = scmp.eq.s32.totalorder %s18, 1
      %p120 = scmp.ne.s32.totalorder %s115, %s117
      %p121 = scmp.eq.s32.totalorder %s18, 0
      %p122 = por %p120, %p121
      %p123 = scmp.ne.s32.totalorder %s115, %s117
      %p124 = scmp.eq.s32.totalorder %s23, 1
      %p125 = por %p123, %p124
      %p126 = scmp.ne.s32.totalorder %s117, %s118
      %p127 = scmp.eq.s32.totalorder %s23, 0
      %p128 = por %p126, %p127
      %p129 = scmp.ne.s32.totalorder %s117, %s118
      %p130 = scmp.eq.s32.totalorder %s24, 1
      %p131 = por %p129, %p130
      %p133 = scmp.ne.s32.totalorder %s118, %s132
      %p134 = scmp.eq.s32.totalorder %s24, 0
      %p135 = por %p133, %p134
      %s137 = sadd.s32 %s136, 1
      %p140 = scmp.eq.s32.totalorder %s18, 1
      %p141 = scmp.ne.s32.totalorder %s136, %s138
      %p142 = scmp.eq.s32.totalorder %s18, 0
      %p143 = por %p141, %p142
      %p144 = scmp.ne.s32.totalorder %s136, %s138
      %p145 = scmp.eq.s32.totalorder %s23, 1
      %p146 = por %p144, %p145
      %p147 = scmp.ne.s32.totalorder %s138, %s139
      %p148 = scmp.eq.s32.totalorder %s23, 0
      %p149 = por %p147, %p148
      %p150 = scmp.ne.s32.totalorder %s138, %s139
      %p151 = scmp.eq.s32.totalorder %s24, 1
      %p152 = por %p150, %p151
      %p154 = scmp.ne.s32.totalorder %s139, %s153
      %p155 = scmp.eq.s32.totalorder %s24, 0
      %p156 = por %p154, %p155
      %s158 = sadd.s32 %s157, 1
      %p161 = scmp.eq.s32.totalorder %s18, 1
      %p162 = scmp.ne.s32.totalorder %s157, %s159
      %p163 = scmp.eq.s32.totalorder %s18, 0
      %p164 = por %p162, %p163
      %p165 = scmp.ne.s32.totalorder %s157, %s159
      %p166 = scmp.eq.s32.totalorder %s23, 1
      %p167 = por %p165, %p166
      %p168 = scmp.ne.s32.totalorder %s159, %s160
      %p169 = scmp.eq.s32.totalorder %s23, 0
      %p170 = por %p168, %p169
      %p171 = scmp.ne.s32.totalorder %s159, %s160
      %p172 = scmp.eq.s32.totalorder %s24, 1
      %p173 = por %p171, %p172
      %p175 = scmp.ne.s32.totalorder %s160, %s174
      %p176 = scmp.eq.s32.totalorder %s24, 0
      %p177 = por %p175, %p176
      %s179 = sadd.s32 %s178, 1
      %p182 = scmp.eq.s32.totalorder %s18, 1
      %p183 = scmp.ne.s32.totalorder %s178, %s180
      %p184 = scmp.eq.s32.totalorder %s18, 0
      %p185 = por %p183, %p184
      %p186 = scmp.ne.s32.totalorder %s178, %s180
      %p187 = scmp.eq.s32.totalorder %s23, 1
      %p188 = por %p186, %p187
      %p189 = scmp.ne.s32.totalorder %s180, %s181
      %p190 = scmp.eq.s32.totalorder %s23, 0
      %p191 = por %p189, %p190
      %p192 = scmp.ne.s32.totalorder %s180, %s181
      %p193 = scmp.eq.s32.totalorder %s24, 1
      %p194 = por %p192, %p193
      %p196 = scmp.ne.s32.totalorder %s181, %s195
      %p197 = scmp.eq.s32.totalorder %s24, 0
      %p198 = por %p196, %p197
      %s200 = sadd.s32 %s199, 1
      %p203 = scmp.eq.s32.totalorder %s18, 1
      %p204 = scmp.ne.s32.totalorder %s199, %s201
      %p205 = scmp.eq.s32.totalorder %s18, 0
      %p206 = por %p204, %p205
      %p207 = scmp.ne.s32.totalorder %s199, %s201
      %p208 = scmp.eq.s32.totalorder %s23, 1
      %p209 = por %p207, %p208
      %p210 = scmp.ne.s32.totalorder %s201, %s202
      %p211 = scmp.eq.s32.totalorder %s23, 0
      %p212 = por %p210, %p211
      %p213 = scmp.ne.s32.totalorder %s201, %s202
      %p214 = scmp.eq.s32.totalorder %s24, 1
      %p215 = por %p213, %p214
      %p217 = scmp.ne.s32.totalorder %s202, %s216
      %p218 = scmp.eq.s32.totalorder %s24, 0
      %p219 = por %p217, %p218
      %s220 = ssub.s32 %s18, %s25
      %p221 = scmp.eq.s32.totalorder %s220, 0
      %s223 = sadd.s32 %s222, 1
      %s224 = scalar_select %p221, %s222, %s223
      %p227 = pneg %p221
      %p228 = scmp.eq.s32.totalorder %s18, 1
      %p229 = por %p227, %p228
      %p230 = scmp.ne.s32.totalorder %s222, %s225
      %p231 = scmp.eq.s32.totalorder %s18, 0
      %p232 = por %p230, %p231
      %p233 = scmp.ne.s32.totalorder %s222, %s225
      %p234 = scmp.eq.s32.totalorder %s23, 1
      %p235 = por %p233, %p234
      %p236 = scmp.ne.s32.totalorder %s225, %s226
      %p237 = scmp.eq.s32.totalorder %s23, 0
      %p238 = por %p236, %p237
      %p239 = scmp.ne.s32.totalorder %s225, %s226
      %p240 = scmp.eq.s32.totalorder %s24, 1
      %p241 = por %p239, %p240
      %p243 = scmp.ne.s32.totalorder %s226, %s242
      %p244 = scmp.eq.s32.totalorder %s24, 0
      %p245 = por %p243, %p244
      %p246 = scmp.le.s32.totalorder 1, %s18
      %p247 = scmp.lt.s32.totalorder %s18, 3
      %p248 = pnand %p246, %p247
      %p249 = pneg %p248
      // Predicated region
      $region9: #{dbsnet_add_forward.1} parent=5 // pred_check
        _
      $region10: #{dbsnet_add_forward.1} parent=5 // pred_check_branch
        %251 = sbr.rel (%p248) target = $region12
      $region11: #{dbsnet_add_forward.1} parent=5 // pred_region
        %s252 = ssub.s32 %s18, 1
        // Predicated region
        $region13: #{dbsnet_add_forward.1} parent=11 // pred_check
          %p253 = pneg %p65
        $region14: #{dbsnet_add_forward.1} parent=11 // pred_check_branch
          %255 = sbr.rel (%p253) target = $region16
        $region15: #{dbsnet_add_forward.1} parent=11 // pred_region
          _
        $region16: #{dbsnet_add_forward.1} parent=11 // pred_fallthru
          _
        // Predicated region
        $region17: #{dbsnet_add_forward.1} parent=11 // pred_check
          %p256 = pneg %p86
        $region18: #{dbsnet_add_forward.1} parent=11 // pred_check_branch
          %258 = sbr.rel (%p256) target = $region20
        $region19: #{dbsnet_add_forward.1} parent=11 // pred_region
          %s260 = ssub.s32 6400, 6400
          %261 = vsyncadd [#allocation3], %s260
          %s262 = sshll.u32 [#allocation2], 4
          %s263 = int_to_ptr.vmem [resolvable:$true] %s262
          %268 = dma.hbm_to_vmem [thread:$0]  %s2, 6400, %s263, [#allocation3], 256, 256, 16
        $region20: #{dbsnet_add_forward.1} parent=11 // pred_fallthru
          _
        // Predicated region
        $region21: #{dbsnet_add_forward.1} parent=11 // pred_check
          %p269 = pneg %p107
        $region22: #{dbsnet_add_forward.1} parent=11 // pred_check_branch
          %271 = sbr.rel (%p269) target = $region24
        $region23: #{dbsnet_add_forward.1} parent=11 // pred_region
          _
        $region24: #{dbsnet_add_forward.1} parent=11 // pred_fallthru
          _
        // Predicated region
        $region25: #{dbsnet_add_forward.1} parent=11 // pred_check
          %p272 = pneg %p128
        $region26: #{dbsnet_add_forward.1} parent=11 // pred_check_branch
          %274 = sbr.rel (%p272) target = $region28
        $region27: #{dbsnet_add_forward.1} parent=11 // pred_region
          _
        $region28: #{dbsnet_add_forward.1} parent=11 // pred_fallthru
          _
        // Predicated region
        $region29: #{dbsnet_add_forward.1} parent=11 // pred_check
          %p275 = pneg %p149
        $region30: #{dbsnet_add_forward.1} parent=11 // pred_check_branch
          %277 = sbr.rel (%p275) target = $region32
        $region31: #{dbsnet_add_forward.1} parent=11 // pred_region
          %s279 = ssub.s32 9216, 9216
          %280 = vsyncadd [#allocation5], %s279
          %s281 = sshll.u32 [#allocation4], 4
          %s282 = int_to_ptr.vmem [resolvable:$true] %s281
          %287 = dma.hbm_to_vmem [thread:$0]  %s5, 9216, %s282, [#allocation5], 384, 384, 24
        $region32: #{dbsnet_add_forward.1} parent=11 // pred_fallthru
          _
        // Predicated region
        $region33: #{dbsnet_add_forward.1} parent=11 // pred_check
          %p288 = pneg %p170
        $region34: #{dbsnet_add_forward.1} parent=11 // pred_check_branch
          %290 = sbr.rel (%p288) target = $region36
        $region35: #{dbsnet_add_forward.1} parent=11 // pred_region
          %s292 = ssub.s32 9216, 9216
          %293 = vsyncadd [#allocation5], %s292
          %s294 = sshll.u32 [#allocation6], 4
          %s295 = int_to_ptr.vmem [resolvable:$true] %s294
          %300 = dma.hbm_to_vmem [thread:$0]  %s6, 9216, %s295, [#allocation5], 256, 256, 16
        $region36: #{dbsnet_add_forward.1} parent=11 // pred_fallthru
          _
        // Predicated region
        $region37: #{dbsnet_add_forward.1} parent=11 // pred_check
          %p301 = pneg %p191
        $region38: #{dbsnet_add_forward.1} parent=11 // pred_check_branch
          %303 = sbr.rel (%p301) target = $region40
        $region39: #{dbsnet_add_forward.1} parent=11 // pred_region
          %s305 = ssub.s32 6144, 6144
          %306 = vsyncadd [#allocation8], %s305
          %s307 = sshll.u32 [#allocation7], 4
          %s308 = int_to_ptr.vmem [resolvable:$true] %s307
          %313 = dma.hbm_to_vmem [thread:$0]  %s7, 6144, %s308, [#allocation8], 128, 128, 8
        $region40: #{dbsnet_add_forward.1} parent=11 // pred_fallthru
          _
        // Predicated region
        $region41: #{dbsnet_add_forward.1} parent=11 // pred_check
          %p314 = pneg %p212
        $region42: #{dbsnet_add_forward.1} parent=11 // pred_check_branch
          %316 = sbr.rel (%p314) target = $region44
        $region43: #{dbsnet_add_forward.1} parent=11 // pred_region
          _
        $region44: #{dbsnet_add_forward.1} parent=11 // pred_fallthru
          _
      $region12: #{dbsnet_add_forward.1} parent=5 // pred_fallthru
        _
      %p317 = scmp.lt.s32.totalorder %s18, 2
      // Predicated region
      $region45: #{dbsnet_add_forward.1} parent=5 // pred_check
        %p318 = pneg %p317
      $region46: #{dbsnet_add_forward.1} parent=5 // pred_check_branch
        %320 = sbr.rel (%p318) target = $region48
      $region47: #{dbsnet_add_forward.1} parent=5 // pred_region
        // Predicated region
        $region49: #{dbsnet_add_forward.1} parent=47 // pred_check
          %p321 = pneg %p38
        $region50: #{dbsnet_add_forward.1} parent=47 // pred_check_branch
          %323 = sbr.rel (%p321) target = $region52
        $region51: #{dbsnet_add_forward.1} parent=47 // pred_region
          %p324 = scmp.lt.s32.totalorder %s18, 1
          %s325 = scalar_select %p324, %s18, 1
          %s326 = smul.addr %s325, 2
          %s327 = smul.addr %s326, 8
          %s328 = scalar_lea.vmem %s0, %s327
        $region52: #{dbsnet_add_forward.1} parent=47 // pred_fallthru
          _
      $region48: #{dbsnet_add_forward.1} parent=5 // pred_fallthru
        _
      %p329 = scmp.le.s32.totalorder 1, %s18
      %p330 = scmp.lt.s32.totalorder %s18, 3
      %p331 = pnand %p329, %p330
      %p332 = pneg %p331
      // Predicated region
      $region53: #{dbsnet_add_forward.1} parent=5 // pred_check
        _
      $region54: #{dbsnet_add_forward.1} parent=5 // pred_check_branch
        %334 = sbr.rel (%p331) target = $region56
      $region55: #{dbsnet_add_forward.1} parent=5 // pred_region
        %s335 = ssub.s32 %s18, 1
        // Predicated region
        $region57: #{dbsnet_add_forward.1} parent=55 // pred_check
          %p336 = pneg %p86
        $region58: #{dbsnet_add_forward.1} parent=55 // pred_check_branch
          %338 = sbr.rel (%p336) target = $region60
        $region59: #{dbsnet_add_forward.1} parent=55 // pred_region
          %339 = dma.done [#allocation3], 6400
        $region60: #{dbsnet_add_forward.1} parent=55 // pred_fallthru
          _
        // Predicated region
        $region61: #{dbsnet_add_forward.1} parent=55 // pred_check
          %p340 = pneg %p149
        $region62: #{dbsnet_add_forward.1} parent=55 // pred_check_branch
          %342 = sbr.rel (%p340) target = $region64
        $region63: #{dbsnet_add_forward.1} parent=55 // pred_region
          %343 = dma.done [#allocation5], 9216
        $region64: #{dbsnet_add_forward.1} parent=55 // pred_fallthru
          _
        // Predicated region
        $region65: #{dbsnet_add_forward.1} parent=55 // pred_check
          %p344 = pneg %p170
        $region66: #{dbsnet_add_forward.1} parent=55 // pred_check_branch
          %346 = sbr.rel (%p344) target = $region68
        $region67: #{dbsnet_add_forward.1} parent=55 // pred_region
          %347 = dma.done [#allocation5], 9216
        $region68: #{dbsnet_add_forward.1} parent=55 // pred_fallthru
          _
        // Predicated region
        $region69: #{dbsnet_add_forward.1} parent=55 // pred_check
          %p348 = pneg %p191
        $region70: #{dbsnet_add_forward.1} parent=55 // pred_check_branch
          %350 = sbr.rel (%p348) target = $region72
        $region71: #{dbsnet_add_forward.1} parent=55 // pred_region
          %351 = dma.done [#allocation8], 6144
        $region72: #{dbsnet_add_forward.1} parent=55 // pred_fallthru
          _
        %p352 = scmp.lt.s32.totalorder %s23, 1
        %s353 = scalar_select %p352, %s23, 1
        %s354 = smul.addr %s353, 2
        %s355 = smul.addr %s354, 8
        %s356 = scalar_lea.vmem %s0, %s355
        %p357 = pneg %p44
        %p358 = pneg %p41
        %p359 = pneg %p65
        %p360 = pneg %p62
        %p361 = pneg %p86
        %p362 = pneg %p83
        %p363 = pneg %p107
        %p364 = pneg %p104
        %p365 = pneg %p128
        %p366 = pneg %p125
        %p367 = pneg %p149
        %p368 = pneg %p146
        %p369 = pneg %p170
        %p370 = pneg %p167
        %p371 = pneg %p191
        %p372 = pneg %p188
        %p373 = pneg %p212
        %p374 = pneg %p209
        %p375 = pneg %p238
        %p376 = pneg %p235
        %p377 = scmp.lt.s32.totalorder %s23, 1
        %s378 = scalar_select %p377, %s23, 1
        %s379 = smul.addr %s378, 2
        %s380 = scalar_lea.vmem %s9, %s379
        %p381 = scmp.lt.s32.totalorder %s23, 1
        %s382 = scalar_select %p381, %s23, 1
        %s383 = smul.addr %s382, 2
        %s384 = smul.addr %s383, 8
        %s385 = scalar_lea.vmem %s0, %s384
        %p386 = scmp.lt.s32.totalorder %s23, 1
        %s387 = scalar_select %p386, %s23, 1
        %s388 = smul.addr %s387, 2
        %s389 = scalar_lea.vmem %s9, %s388
        %v390 = vld [vmem:[%s385] sm:$0xff]
        %v391 = vld [vmem:[%s385 + $0x8] sm:$0xff]
        %v392 = vld [vmem:[%s1] sm:$0xff]
        %v393 = vld [vmem:[%s1 + $0x8] sm:$0xff]
        %v394 = vld [vmem:[%s1 + $0x10] sm:$0xff]
        %v395 = vld [vmem:[%s1 + $0x18] sm:$0xff]
        %v396 = vld [vmem:[%s1 + $0x20] sm:$0xff]
        %v397 = vld [vmem:[%s1 + $0x28] sm:$0xff]
        %v398 = vld [vmem:[%s1 + $0x30] sm:$0xff]
        %v399 = vld [vmem:[%s1 + $0x38] sm:$0xff]
        %v400 = vld [vmem:[#allocation2] sm:$0xff]
        %v401 = vld [vmem:[#allocation2 + $0x8] sm:$0xff]
        %v402 = vld [vmem:[#allocation2 + $0x10] sm:$0xff]
        %v403 = vld [vmem:[#allocation2 + $0x18] sm:$0xff]
        %v404 = vld [vmem:[#allocation2 + $0x20] sm:$0xff]
        %v405 = vld [vmem:[#allocation2 + $0x28] sm:$0xff]
        %v406 = vld [vmem:[#allocation2 + $0x30] sm:$0xff]
        %v407 = vld [vmem:[#allocation2 + $0x38] sm:$0xff]
        %v408 = vld [vmem:[#allocation2 + $0x40] sm:$0xff]
        %v409 = vld [vmem:[#allocation2 + $0x48] sm:$0xff]
        %v410 = vld [vmem:[#allocation2 + $0x50] sm:$0xff]
        %v411 = vld [vmem:[#allocation2 + $0x58] sm:$0xff]
        %v412 = vld [vmem:[#allocation2 + $0x60] sm:$0xff]
        %v413 = vld [vmem:[#allocation2 + $0x68] sm:$0xff]
        %v414 = vld [vmem:[#allocation2 + $0x70] sm:$0xff]
        %v415 = vld [vmem:[#allocation2 + $0x78] sm:$0xff]
        %v416 = vld [vmem:[#allocation2 + $0x80] sm:$0xff]
        %v417 = vld [vmem:[#allocation2 + $0x88] sm:$0xff]
        %v418 = vld [vmem:[#allocation2 + $0x90] sm:$0xff]
        %v419 = vld [vmem:[#allocation2 + $0x98] sm:$0xff]
        %v420 = vld [vmem:[#allocation2 + $0xa0] sm:$0xff]
        %v421 = vld [vmem:[#allocation2 + $0xa8] sm:$0xff]
        %v422 = vld [vmem:[#allocation2 + $0xb0] sm:$0xff]
        %v423 = vld [vmem:[#allocation2 + $0xb8] sm:$0xff]
        %v424 = vld [vmem:[#allocation2 + $0xc0] sm:$0xff]
        %v425 = vld [vmem:[#allocation2 + $0xc8] sm:$0xff]
        %v426 = vld [vmem:[#allocation2 + $0xd0] sm:$0xff]
        %v427 = vld [vmem:[#allocation2 + $0xd8] sm:$0xff]
        %v428 = vld [vmem:[#allocation2 + $0xe0] sm:$0xff]
        %v429 = vld [vmem:[#allocation2 + $0xe8] sm:$0xff]
        %v430 = vld [vmem:[#allocation2 + $0xf0] sm:$0xff]
        %v431 = vld [vmem:[#allocation2 + $0xf8] sm:$0xff]
        %v432 = vld [vmem:[#allocation2 + $0x100] sm:$0xff]
        %v433 = vld [vmem:[#allocation2 + $0x108] sm:$0xff]
        %v434 = vld [vmem:[#allocation2 + $0x110] sm:$0xff]
        %v435 = vld [vmem:[#allocation2 + $0x118] sm:$0xff]
        %v436 = vld [vmem:[#allocation2 + $0x120] sm:$0xff]
        %v437 = vld [vmem:[#allocation2 + $0x128] sm:$0xff]
        %v438 = vld [vmem:[#allocation2 + $0x130] sm:$0xff]
        %v439 = vld [vmem:[#allocation2 + $0x138] sm:$0xff]
        %v440 = vld [vmem:[#allocation2 + $0x140] sm:$0xff]
        %v441 = vld [vmem:[#allocation2 + $0x148] sm:$0xff]
        %v442 = vld [vmem:[#allocation2 + $0x150] sm:$0xff]
        %v443 = vld [vmem:[#allocation2 + $0x158] sm:$0xff]
        %v444 = vld [vmem:[#allocation2 + $0x160] sm:$0xff]
        %v445 = vld [vmem:[#allocation2 + $0x168] sm:$0xff]
        %v446 = vld [vmem:[#allocation2 + $0x170] sm:$0xff]
        %v447 = vld [vmem:[#allocation2 + $0x178] sm:$0xff]
        %v448 = vld [vmem:[#allocation2 + $0x180] sm:$0xff]
        %v449 = vld [vmem:[#allocation2 + $0x188] sm:$0xff]
        %450 = vrot.lane.b32.xlu0 %v390, 34
        %v451 = vpop.permute.xlu0 %450
        %452 = vrot.lane.b32.xlu0 %v391, 34
        %v453 = vpop.permute.xlu0 %452
        %v454 = vlaneseq
        %v455 = vand.u32 %v454, 127
        %vm456 = vcmp.lt.s32.totalorder %v455, 34
        %v457 = vsel %vm456, %v451, %v453
        %v458 = vsel %vm456, %v453, %v451
        %459 = vrot.lane.b32.xlu0 %v390, 33
        %v460 = vpop.permute.xlu0 %459
        %461 = vrot.lane.b32.xlu0 %v391, 33
        %v462 = vpop.permute.xlu0 %461
        %vm463 = vcmp.lt.s32.totalorder %v455, 33
        %v464 = vsel %vm463, %v460, %v462
        %v465 = vsel %vm463, %v462, %v460
        %466 = vrot.lane.b32.xlu0 %v390, 32
        %v467 = vpop.permute.xlu0 %466
        %468 = vrot.lane.b32.xlu0 %v391, 32
        %v469 = vpop.permute.xlu0 %468
        %vm470 = vcmp.lt.s32.totalorder %v455, 32
        %v471 = vsel %vm470, %v467, %v469
        %v472 = vsel %vm470, %v469, %v467
        %473 = vrot.lane.b32.xlu0 %v390, 31
        %v474 = vpop.permute.xlu0 %473
        %475 = vrot.lane.b32.xlu0 %v391, 31
        %v476 = vpop.permute.xlu0 %475
        %vm477 = vcmp.lt.s32.totalorder %v455, 31
        %v478 = vsel %vm477, %v474, %v476
        %v479 = vsel %vm477, %v476, %v474
        %480 = vrot.lane.b32.xlu0 %v390, 30
        %v481 = vpop.permute.xlu0 %480
        %482 = vrot.lane.b32.xlu0 %v391, 30
        %v483 = vpop.permute.xlu0 %482
        %vm484 = vcmp.lt.s32.totalorder %v455, 30
        %v485 = vsel %vm484, %v481, %v483
        %v486 = vsel %vm484, %v483, %v481
        %487 = vrot.lane.b32.xlu0 %v390, 18
        %v488 = vpop.permute.xlu0 %487
        %489 = vrot.lane.b32.xlu0 %v391, 18
        %v490 = vpop.permute.xlu0 %489
        %vm491 = vcmp.lt.s32.totalorder %v455, 18
        %v492 = vsel %vm491, %v488, %v490
        %v493 = vsel %vm491, %v490, %v488
        %494 = vrot.lane.b32.xlu0 %v390, 17
        %v495 = vpop.permute.xlu0 %494
        %496 = vrot.lane.b32.xlu0 %v391, 17
        %v497 = vpop.permute.xlu0 %496
        %vm498 = vcmp.lt.s32.totalorder %v455, 17
        %v499 = vsel %vm498, %v495, %v497
        %v500 = vsel %vm498, %v497, %v495
        %501 = vrot.lane.b32.xlu0 %v390, 16
        %v502 = vpop.permute.xlu0 %501
        %503 = vrot.lane.b32.xlu0 %v391, 16
        %v504 = vpop.permute.xlu0 %503
        %vm505 = vcmp.lt.s32.totalorder %v455, 16
        %v506 = vsel %vm505, %v502, %v504
        %v507 = vsel %vm505, %v504, %v502
        %508 = vrot.lane.b32.xlu0 %v390, 15
        %v509 = vpop.permute.xlu0 %508
        %510 = vrot.lane.b32.xlu0 %v391, 15
        %v511 = vpop.permute.xlu0 %510
        %vm512 = vcmp.lt.s32.totalorder %v455, 15
        %v513 = vsel %vm512, %v509, %v511
        %v514 = vsel %vm512, %v511, %v509
        %515 = vrot.lane.b32.xlu0 %v390, 14
        %v516 = vpop.permute.xlu0 %515
        %517 = vrot.lane.b32.xlu0 %v391, 14
        %v518 = vpop.permute.xlu0 %517
        %vm519 = vcmp.lt.s32.totalorder %v455, 14
        %v520 = vsel %vm519, %v516, %v518
        %v521 = vsel %vm519, %v518, %v516
        %522 = vrot.lane.b32.xlu0 %v390, 2
        %v523 = vpop.permute.xlu0 %522
        %524 = vrot.lane.b32.xlu0 %v391, 2
        %v525 = vpop.permute.xlu0 %524
        %vm526 = vcmp.lt.s32.totalorder %v455, 2
        %v527 = vsel %vm526, %v523, %v525
        %v528 = vsel %vm526, %v525, %v523
        %529 = vrot.lane.b32.xlu0 %v390, 1
        %v530 = vpop.permute.xlu0 %529
        %531 = vrot.lane.b32.xlu0 %v391, 1
        %v532 = vpop.permute.xlu0 %531
        %vm533 = vcmp.lt.s32.totalorder %v455, 1
        %v534 = vsel %vm533, %v530, %v532
        %v535 = vsel %vm533, %v532, %v530
        %536 = vrot.lane.b32.xlu0 %v390, 127
        %v537 = vpop.permute.xlu0 %536
        %538 = vrot.lane.b32.xlu0 %v391, 127
        %v539 = vpop.permute.xlu0 %538
        %vm540 = vcmp.lt.s32.totalorder %v455, 127
        %v541 = vsel %vm540, %v537, %v539
        %v542 = vsel %vm540, %v539, %v537
        %543 = vrot.lane.b32.xlu0 %v390, 126
        %v544 = vpop.permute.xlu0 %543
        %545 = vrot.lane.b32.xlu0 %v391, 126
        %v546 = vpop.permute.xlu0 %545
        %vm547 = vcmp.lt.s32.totalorder %v455, 126
        %v548 = vsel %vm547, %v544, %v546
        %v549 = vsel %vm547, %v546, %v544
        %550 = vrot.lane.b32.xlu0 %v390, 114
        %v551 = vpop.permute.xlu0 %550
        %552 = vrot.lane.b32.xlu0 %v391, 114
        %v553 = vpop.permute.xlu0 %552
        %vm554 = vcmp.lt.s32.totalorder %v455, 114
        %v555 = vsel %vm554, %v551, %v553
        %v556 = vsel %vm554, %v553, %v551
        %557 = vrot.lane.b32.xlu0 %v390, 113
        %v558 = vpop.permute.xlu0 %557
        %559 = vrot.lane.b32.xlu0 %v391, 113
        %v560 = vpop.permute.xlu0 %559
        %vm561 = vcmp.lt.s32.totalorder %v455, 113
        %v562 = vsel %vm561, %v558, %v560
        %v563 = vsel %vm561, %v560, %v558
        %564 = vrot.lane.b32.xlu0 %v390, 112
        %v565 = vpop.permute.xlu0 %564
        %566 = vrot.lane.b32.xlu0 %v391, 112
        %v567 = vpop.permute.xlu0 %566
        %vm568 = vcmp.lt.s32.totalorder %v455, 112
        %v569 = vsel %vm568, %v565, %v567
        %v570 = vsel %vm568, %v567, %v565
        %571 = vrot.lane.b32.xlu0 %v390, 111
        %v572 = vpop.permute.xlu0 %571
        %573 = vrot.lane.b32.xlu0 %v391, 111
        %v574 = vpop.permute.xlu0 %573
        %vm575 = vcmp.lt.s32.totalorder %v455, 111
        %v576 = vsel %vm575, %v572, %v574
        %v577 = vsel %vm575, %v574, %v572
        %578 = vrot.lane.b32.xlu0 %v390, 110
        %v579 = vpop.permute.xlu0 %578
        %580 = vrot.lane.b32.xlu0 %v391, 110
        %v581 = vpop.permute.xlu0 %580
        %vm582 = vcmp.lt.s32.totalorder %v455, 110
        %v583 = vsel %vm582, %v579, %v581
        %v584 = vsel %vm582, %v581, %v579
        %585 = vrot.lane.b32.xlu0 %v390, 98
        %v586 = vpop.permute.xlu0 %585
        %587 = vrot.lane.b32.xlu0 %v391, 98
        %v588 = vpop.permute.xlu0 %587
        %vm589 = vcmp.lt.s32.totalorder %v455, 98
        %v590 = vsel %vm589, %v586, %v588
        %v591 = vsel %vm589, %v588, %v586
        %592 = vrot.lane.b32.xlu0 %v390, 97
        %v593 = vpop.permute.xlu0 %592
        %594 = vrot.lane.b32.xlu0 %v391, 97
        %v595 = vpop.permute.xlu0 %594
        %vm596 = vcmp.lt.s32.totalorder %v455, 97
        %v597 = vsel %vm596, %v593, %v595
        %v598 = vsel %vm596, %v595, %v593
        %599 = vrot.lane.b32.xlu0 %v390, 96
        %v600 = vpop.permute.xlu0 %599
        %601 = vrot.lane.b32.xlu0 %v391, 96
        %v602 = vpop.permute.xlu0 %601
        %vm603 = vcmp.lt.s32.totalorder %v455, 96
        %v604 = vsel %vm603, %v600, %v602
        %v605 = vsel %vm603, %v602, %v600
        %606 = vrot.lane.b32.xlu0 %v390, 95
        %v607 = vpop.permute.xlu0 %606
        %608 = vrot.lane.b32.xlu0 %v391, 95
        %v609 = vpop.permute.xlu0 %608
        %vm610 = vcmp.lt.s32.totalorder %v455, 95
        %v611 = vsel %vm610, %v607, %v609
        %v612 = vsel %vm610, %v609, %v607
        %613 = vrot.lane.b32.xlu0 %v390, 94
        %v614 = vpop.permute.xlu0 %613
        %615 = vrot.lane.b32.xlu0 %v391, 94
        %v616 = vpop.permute.xlu0 %615
        %vm617 = vcmp.lt.s32.totalorder %v455, 94
        %v618 = vsel %vm617, %v614, %v616
        %v619 = vsel %vm617, %v616, %v614
        %v620 = vmul.f32 %v458, %v400
        %v621 = vmul.f32 %v457, %v401
        %v622 = vmul.f32 %v465, %v402
        %v623 = vmul.f32 %v464, %v403
        %v624 = vmul.f32 %v472, %v404
        %v625 = vmul.f32 %v471, %v405
        %v626 = vmul.f32 %v479, %v406
        %v627 = vmul.f32 %v478, %v407
        %v628 = vmul.f32 %v486, %v408
        %v629 = vmul.f32 %v485, %v409
        %v630 = vmul.f32 %v493, %v410
        %v631 = vmul.f32 %v492, %v411
        %v632 = vmul.f32 %v500, %v412
        %v633 = vmul.f32 %v499, %v413
        %v634 = vmul.f32 %v507, %v414
        %v635 = vmul.f32 %v506, %v415
        %v636 = vmul.f32 %v514, %v416
        %v637 = vmul.f32 %v513, %v417
        %v638 = vmul.f32 %v521, %v418
        %v639 = vmul.f32 %v520, %v419
        %v640 = vmul.f32 %v528, %v420
        %v641 = vmul.f32 %v527, %v421
        %v642 = vmul.f32 %v535, %v422
        %v643 = vmul.f32 %v534, %v423
        %v644 = vmul.f32 %v390, %v424
        %v645 = vmul.f32 %v391, %v425
        %v646 = vmul.f32 %v541, %v426
        %v647 = vmul.f32 %v542, %v427
        %v648 = vmul.f32 %v548, %v428
        %v649 = vmul.f32 %v549, %v429
        %v650 = vmul.f32 %v555, %v430
        %v651 = vmul.f32 %v556, %v431
        %v652 = vmul.f32 %v562, %v432
        %v653 = vmul.f32 %v563, %v433
        %v654 = vmul.f32 %v569, %v434
        %v655 = vmul.f32 %v570, %v435
        %v656 = vmul.f32 %v576, %v436
        %v657 = vmul.f32 %v577, %v437
        %v658 = vmul.f32 %v583, %v438
        %v659 = vmul.f32 %v584, %v439
        %v660 = vmul.f32 %v590, %v440
        %v661 = vmul.f32 %v591, %v441
        %v662 = vmul.f32 %v597, %v442
        %v663 = vmul.f32 %v598, %v443
        %v664 = vmul.f32 %v604, %v444
        %v665 = vmul.f32 %v605, %v445
        %v666 = vmul.f32 %v611, %v446
        %v667 = vmul.f32 %v612, %v447
        %v668 = vmul.f32 %v618, %v448
        %v669 = vmul.f32 %v619, %v449
        %v670 = vld [vmem:[%s8] sm:$0xff]
        %v671 = vld [vmem:[%s8 + $0x8] sm:$0xff]
        %v672 = vld [vmem:[%s8 + $0x10] sm:$0xff]
        %v673 = vld [vmem:[%s8 + $0x18] sm:$0xff]
        %675 = vset.pattern.permute.xlu0 0
        %676 = vperm.xlu0 %675, %v670
        %v677 = vpop.permute.xlu0 %676
        %680 = vset.pattern.permute.xlu0 0
        %681 = vperm.xlu0 %680, %v671
        %v682 = vpop.permute.xlu0 %681
        %685 = vset.pattern.permute.xlu0 0
        %686 = vperm.xlu0 %685, %v672
        %v687 = vpop.permute.xlu0 %686
        %690 = vset.pattern.permute.xlu0 0
        %691 = vperm.xlu0 %690, %v673
        %v692 = vpop.permute.xlu0 %691
        %vm694 = vcmask 588800
        %v696 = vsel %vm694, %v393, 0
        %v699 = vsel %vm694, %v395, 0
        %v702 = vsel %vm694, %v397, 0
        %v705 = vsel %vm694, %v399, 0
        %707 = vmatprep.subr.mxu0 %v621
        %708 = vmatpush1.msra.mxu0 %v620
        %709 = vmatprep.subr.mxu0 %v623
        %710 = vmatpush1.msra.mxu0 %v622
        %711 = vmatprep.subr.mxu0 %v625
        %712 = vmatpush1.msra.mxu0 %v624
        %713 = vmatprep.subr.mxu0 %v627
        %714 = vmatpush1.msra.mxu0 %v626
        %715 = vmatprep.subr.mxu0 %v629
        %716 = vmatpush1.msra.mxu0 %v628
        %717 = vmatprep.subr.mxu0 %v631
        %718 = vmatpush1.msra.mxu0 %v630
        %719 = vmatprep.subr.mxu0 %v633
        %720 = vmatpush1.msra.mxu0 %v632
        %721 = vmatprep.subr.mxu0 %v635
        %722 = vmatpush1.msra.mxu0 %v634
        %723 = vmatprep.subr.mxu0 %v637
        %724 = vmatpush1.msra.mxu0 %v636
        %725 = vmatprep.subr.mxu0 %v639
        %726 = vmatpush1.msra.mxu0 %v638
        %727 = vmatprep.subr.mxu0 %v641
        %728 = vmatpush1.msra.mxu0 %v640
        %729 = vmatprep.subr.mxu0 %v643
        %730 = vmatpush1.msra.mxu0 %v642
        %731 = vmatprep.subr.mxu0 %v645
        %732 = vmatpush1.msra.mxu0 %v644
        %733 = vmatprep.subr.mxu0 %v647
        %734 = vmatpush1.msra.mxu0 %v646
        %735 = vmatprep.subr.mxu0 %v649
        %736 = vmatpush1.msra.mxu0 %v648
        %737 = vmatprep.subr.mxu0 %v651
        %738 = vmatpush1.msra.mxu0 %v650
        %739 = vmatprep.subr.mxu0 %v653
        %740 = vmatpush1.msra.mxu0 %v652
        %741 = vmatprep.subr.mxu0 %v655
        %742 = vmatpush1.msra.mxu0 %v654
        %743 = vmatprep.subr.mxu0 %v657
        %744 = vmatpush1.msra.mxu0 %v656
        %745 = vmatprep.subr.mxu0 %v659
        %746 = vmatpush1.msra.mxu0 %v658
        %747 = vmatprep.subr.mxu0 %v661
        %748 = vmatpush1.msra.mxu0 %v660
        %749 = vmatprep.subr.mxu0 %v663
        %750 = vmatpush1.msra.mxu0 %v662
        %751 = vmatprep.subr.mxu0 %v665
        %752 = vmatpush1.msra.mxu0 %v664
        %753 = vmatprep.subr.mxu0 %v667
        %754 = vmatpush1.msra.mxu0 %v666
        %755 = vmatprep.subr.mxu0 %v669
        %756 = vmatpush1.msra.mxu0 %v668
        %757 = vmatprep.subr.mxu0 0.0
        %758 = vmatpush1.msra.mxu0 0.0
        %759 = vmatprep.subr.mxu0 0.0
        %760 = vmatpush1.msra.mxu0 0.0
        %761 = vmatprep.subr.mxu0 0.0
        %762 = vmatpush1.msra.mxu0 0.0
        %763 = vmatprep.subr.mxu0 0.0
        %764 = vmatpush1.msra.mxu0 0.0
        %765 = vmatprep.subr.mxu0 0.0
        %766 = vmatpush1.msra.mxu0 0.0
        %767 = vmatprep.subr.mxu0 0.0
        %768 = vmatpush1.msra.mxu0 0.0
        %769 = vmatprep.subr.mxu0 0.0
        %770 = vmatpush1.msra.mxu0 0.0
        %771 = vmatprep.mubr.f32.mxu0 %v696
        %772 = vmatmul.mubr.f32.gmra.mrb[0].mxu0 %v392
        %v773 = vpop.f32.mrb[0].mxu0
        %v774 = vadd.f32 %v677, %v773
        %v775 = vpop.f32.mrb[0].mxu0
        %v776 = vadd.f32 %v677, %v775
        %777 = vmatprep.mubr.f32.mxu0 %v699
        %778 = vmatmul.mubr.f32.gmra.mrb[0].mxu0 %v394
        %v779 = vpop.f32.mrb[0].mxu0
        %v780 = vadd.f32 %v682, %v779
        %v781 = vpop.f32.mrb[0].mxu0
        %v782 = vadd.f32 %v682, %v781
        %783 = vmatprep.mubr.f32.mxu0 %v702
        %784 = vmatmul.mubr.f32.gmra.mrb[0].mxu0 %v396
        %v785 = vpop.f32.mrb[0].mxu0
        %v786 = vadd.f32 %v687, %v785
        %v787 = vpop.f32.mrb[0].mxu0
        %v788 = vadd.f32 %v687, %v787
        %789 = vmatprep.mubr.f32.mxu0 %v705
        %790 = vmatmul.mubr.f32.gmra.mrb[0].mxu0 %v398
        %v791 = vpop.f32.mrb[0].mxu0
        %v792 = vadd.f32 %v692, %v791
        %v793 = vpop.f32.mrb[0].mxu0
        %v794 = vadd.f32 %v692, %v793
        %795 = vdwg.mxu0
        %v796 = vmax.f32 %v774, 0.0
        %v797 = vmax.f32 %v776, 0.0
        %v798 = vmax.f32 %v780, 0.0
        %v799 = vmax.f32 %v782, 0.0
        %v800 = vmax.f32 %v786, 0.0
        %v801 = vmax.f32 %v788, 0.0
        %v802 = vmax.f32 %v792, 0.0
        %v803 = vmax.f32 %v794, 0.0
        %v804 = vld [vmem:[%s3] sm:$0xff]
        %v805 = vld [vmem:[%s3 + $0x8] sm:$0xff]
        %v806 = vld [vmem:[%s3 + $0x10] sm:$0xff]
        %v807 = vld [vmem:[%s3 + $0x18] sm:$0xff]
        %v808 = vld [vmem:[%s3 + $0x20] sm:$0xff]
        %v809 = vld [vmem:[%s3 + $0x28] sm:$0xff]
        %v810 = vld [vmem:[%s3 + $0x30] sm:$0xff]
        %v811 = vld [vmem:[%s3 + $0x38] sm:$0xff]
        %v812 = vld [vmem:[%s3 + $0x40] sm:$0xff]
        %v813 = vld [vmem:[%s3 + $0x48] sm:$0xff]
        %v814 = vld [vmem:[%s3 + $0x50] sm:$0xff]
        %v815 = vld [vmem:[%s3 + $0x58] sm:$0xff]
        %v816 = vld [vmem:[%s4] sm:$0xff]
        %v817 = vld [vmem:[%s4 + $0x8] sm:$0xff]
        %v818 = vld [vmem:[%s4 + $0x10] sm:$0xff]
        %v819 = vld [vmem:[%s4 + $0x18] sm:$0xff]
        %v820 = vld [vmem:[%s4 + $0x20] sm:$0xff]
        %v821 = vld [vmem:[%s4 + $0x28] sm:$0xff]
        %v822 = vld [vmem:[%s4 + $0x30] sm:$0xff]
        %v823 = vld [vmem:[%s4 + $0x38] sm:$0xff]
        %v824 = vld [vmem:[%s4 + $0x40] sm:$0xff]
        %v825 = vld [vmem:[%s4 + $0x48] sm:$0xff]
        %v826 = vld [vmem:[%s4 + $0x50] sm:$0xff]
        %v827 = vld [vmem:[%s4 + $0x58] sm:$0xff]
        %v828 = vld [vmem:[%s4 + $0x60] sm:$0xff]
        %v829 = vld [vmem:[%s4 + $0x68] sm:$0xff]
        %v830 = vld [vmem:[%s4 + $0x70] sm:$0xff]
        %v831 = vld [vmem:[%s4 + $0x78] sm:$0xff]
        %v832 = vld [vmem:[%s4 + $0x80] sm:$0xff]
        %v833 = vld [vmem:[%s4 + $0x88] sm:$0xff]
        %v834 = vld [vmem:[%s4 + $0x90] sm:$0xff]
        %v835 = vld [vmem:[%s4 + $0x98] sm:$0xff]
        %v836 = vld [vmem:[%s4 + $0xa0] sm:$0xff]
        %v837 = vld [vmem:[%s4 + $0xa8] sm:$0xff]
        %v838 = vld [vmem:[%s4 + $0xb0] sm:$0xff]
        %v839 = vld [vmem:[%s4 + $0xb8] sm:$0xff]
        %v840 = vld [vmem:[%s4 + $0xc0] sm:$0xff]
        %v841 = vld [vmem:[%s4 + $0xc8] sm:$0xff]
        %v842 = vld [vmem:[%s4 + $0xd0] sm:$0xff]
        %v843 = vld [vmem:[%s4 + $0xd8] sm:$0xff]
        %v844 = vld [vmem:[%s4 + $0xe0] sm:$0xff]
        %v845 = vld [vmem:[%s4 + $0xe8] sm:$0xff]
        %v846 = vld [vmem:[%s4 + $0xf0] sm:$0xff]
        %v847 = vld [vmem:[%s4 + $0xf8] sm:$0xff]
        %v848 = vld [vmem:[%s4 + $0x100] sm:$0xff]
        %v849 = vld [vmem:[%s4 + $0x108] sm:$0xff]
        %v850 = vld [vmem:[%s4 + $0x110] sm:$0xff]
        %v851 = vld [vmem:[%s4 + $0x118] sm:$0xff]
        %v852 = vld [vmem:[%s4 + $0x120] sm:$0xff]
        %v853 = vld [vmem:[%s4 + $0x128] sm:$0xff]
        %v854 = vld [vmem:[%s4 + $0x130] sm:$0xff]
        %v855 = vld [vmem:[%s4 + $0x138] sm:$0xff]
        %v856 = vld [vmem:[%s4 + $0x140] sm:$0xff]
        %v857 = vld [vmem:[%s4 + $0x148] sm:$0xff]
        %v858 = vld [vmem:[%s4 + $0x150] sm:$0xff]
        %v859 = vld [vmem:[%s4 + $0x158] sm:$0xff]
        %v860 = vld [vmem:[%s4 + $0x160] sm:$0xff]
        %v861 = vld [vmem:[%s4 + $0x168] sm:$0xff]
        %v862 = vld [vmem:[%s4 + $0x170] sm:$0xff]
        %v863 = vld [vmem:[%s4 + $0x178] sm:$0xff]
        %v864 = vld [vmem:[%s4 + $0x180] sm:$0xff]
        %v865 = vld [vmem:[%s4 + $0x188] sm:$0xff]
        %v866 = vld [vmem:[%s4 + $0x190] sm:$0xff]
        %v867 = vld [vmem:[%s4 + $0x198] sm:$0xff]
        %v868 = vld [vmem:[%s4 + $0x1a0] sm:$0xff]
        %v869 = vld [vmem:[%s4 + $0x1a8] sm:$0xff]
        %v870 = vld [vmem:[%s4 + $0x1b0] sm:$0xff]
        %v871 = vld [vmem:[%s4 + $0x1b8] sm:$0xff]
        %v872 = vld [vmem:[%s4 + $0x1c0] sm:$0xff]
        %v873 = vld [vmem:[%s4 + $0x1c8] sm:$0xff]
        %v874 = vld [vmem:[%s4 + $0x1d0] sm:$0xff]
        %v875 = vld [vmem:[%s4 + $0x1d8] sm:$0xff]
        %v876 = vld [vmem:[%s4 + $0x1e0] sm:$0xff]
        %v877 = vld [vmem:[%s4 + $0x1e8] sm:$0xff]
        %v878 = vld [vmem:[%s4 + $0x1f0] sm:$0xff]
        %v879 = vld [vmem:[%s4 + $0x1f8] sm:$0xff]
        %v880 = vld [vmem:[%s4 + $0x200] sm:$0xff]
        %v881 = vld [vmem:[%s4 + $0x208] sm:$0xff]
        %v882 = vld [vmem:[%s4 + $0x210] sm:$0xff]
        %v883 = vld [vmem:[%s4 + $0x218] sm:$0xff]
        %v884 = vld [vmem:[%s4 + $0x220] sm:$0xff]
        %v885 = vld [vmem:[%s4 + $0x228] sm:$0xff]
        %v886 = vld [vmem:[%s4 + $0x230] sm:$0xff]
        %v887 = vld [vmem:[%s4 + $0x238] sm:$0xff]
        %888 = vrot.lane.b32.xlu0 %v796, 17
        %v889 = vpop.permute.xlu0 %888
        %890 = vrot.lane.b32.xlu0 %v798, 17
        %v891 = vpop.permute.xlu0 %890
        %892 = vrot.lane.b32.xlu0 %v800, 17
        %v893 = vpop.permute.xlu0 %892
        %894 = vrot.lane.b32.xlu0 %v802, 17
        %v895 = vpop.permute.xlu0 %894
        %896 = vrot.lane.b32.xlu0 %v797, 17
        %v897 = vpop.permute.xlu0 %896
        %898 = vrot.lane.b32.xlu0 %v799, 17
        %v899 = vpop.permute.xlu0 %898
        %900 = vrot.lane.b32.xlu0 %v801, 17
        %v901 = vpop.permute.xlu0 %900
        %902 = vrot.lane.b32.xlu0 %v803, 17
        %v903 = vpop.permute.xlu0 %902
        %v904 = vsel %vm498, %v889, %v897
        %v905 = vsel %vm498, %v891, %v899
        %v906 = vsel %vm498, %v893, %v901
        %v907 = vsel %vm498, %v895, %v903
        %v908 = vsel %vm498, %v897, %v889
        %v909 = vsel %vm498, %v899, %v891
        %v910 = vsel %vm498, %v901, %v893
        %v911 = vsel %vm498, %v903, %v895
        %912 = vrot.lane.b32.xlu0 %v796, 16
        %v913 = vpop.permute.xlu0 %912
        %914 = vrot.lane.b32.xlu0 %v798, 16
        %v915 = vpop.permute.xlu0 %914
        %916 = vrot.lane.b32.xlu0 %v800, 16
        %v917 = vpop.permute.xlu0 %916
        %918 = vrot.lane.b32.xlu0 %v802, 16
        %v919 = vpop.permute.xlu0 %918
        %920 = vrot.lane.b32.xlu0 %v797, 16
        %v921 = vpop.permute.xlu0 %920
        %922 = vrot.lane.b32.xlu0 %v799, 16
        %v923 = vpop.permute.xlu0 %922
        %924 = vrot.lane.b32.xlu0 %v801, 16
        %v925 = vpop.permute.xlu0 %924
        %926 = vrot.lane.b32.xlu0 %v803, 16
        %v927 = vpop.permute.xlu0 %926
        %v928 = vsel %vm505, %v913, %v921
        %v929 = vsel %vm505, %v915, %v923
        %v930 = vsel %vm505, %v917, %v925
        %v931 = vsel %vm505, %v919, %v927
        %v932 = vsel %vm505, %v921, %v913
        %v933 = vsel %vm505, %v923, %v915
        %v934 = vsel %vm505, %v925, %v917
        %v935 = vsel %vm505, %v927, %v919
        %936 = vrot.lane.b32.xlu0 %v796, 15
        %v937 = vpop.permute.xlu0 %936
        %938 = vrot.lane.b32.xlu0 %v798, 15
        %v939 = vpop.permute.xlu0 %938
        %940 = vrot.lane.b32.xlu0 %v800, 15
        %v941 = vpop.permute.xlu0 %940
        %942 = vrot.lane.b32.xlu0 %v802, 15
        %v943 = vpop.permute.xlu0 %942
        %944 = vrot.lane.b32.xlu0 %v797, 15
        %v945 = vpop.permute.xlu0 %944
        %946 = vrot.lane.b32.xlu0 %v799, 15
        %v947 = vpop.permute.xlu0 %946
        %948 = vrot.lane.b32.xlu0 %v801, 15
        %v949 = vpop.permute.xlu0 %948
        %950 = vrot.lane.b32.xlu0 %v803, 15
        %v951 = vpop.permute.xlu0 %950
        %v952 = vsel %vm512, %v937, %v945
        %v953 = vsel %vm512, %v939, %v947
        %v954 = vsel %vm512, %v941, %v949
        %v955 = vsel %vm512, %v943, %v951
        %v956 = vsel %vm512, %v945, %v937
        %v957 = vsel %vm512, %v947, %v939
        %v958 = vsel %vm512, %v949, %v941
        %v959 = vsel %vm512, %v951, %v943
        %960 = vrot.lane.b32.xlu0 %v796, 1
        %v961 = vpop.permute.xlu0 %960
        %962 = vrot.lane.b32.xlu0 %v798, 1
        %v963 = vpop.permute.xlu0 %962
        %964 = vrot.lane.b32.xlu0 %v800, 1
        %v965 = vpop.permute.xlu0 %964
        %966 = vrot.lane.b32.xlu0 %v802, 1
        %v967 = vpop.permute.xlu0 %966
        %968 = vrot.lane.b32.xlu0 %v797, 1
        %v969 = vpop.permute.xlu0 %968
        %970 = vrot.lane.b32.xlu0 %v799, 1
        %v971 = vpop.permute.xlu0 %970
        %972 = vrot.lane.b32.xlu0 %v801, 1
        %v973 = vpop.permute.xlu0 %972
        %974 = vrot.lane.b32.xlu0 %v803, 1
        %v975 = vpop.permute.xlu0 %974
        %v976 = vsel %vm533, %v961, %v969
        %v977 = vsel %vm533, %v963, %v971
        %v978 = vsel %vm533, %v965, %v973
        %v979 = vsel %vm533, %v967, %v975
        %v980 = vsel %vm533, %v969, %v961
        %v981 = vsel %vm533, %v971, %v963
        %v982 = vsel %vm533, %v973, %v965
        %v983 = vsel %vm533, %v975, %v967
        %984 = vrot.lane.b32.xlu0 %v796, 127
        %v985 = vpop.permute.xlu0 %984
        %986 = vrot.lane.b32.xlu0 %v798, 127
        %v987 = vpop.permute.xlu0 %986
        %988 = vrot.lane.b32.xlu0 %v800, 127
        %v989 = vpop.permute.xlu0 %988
        %990 = vrot.lane.b32.xlu0 %v802, 127
        %v991 = vpop.permute.xlu0 %990
        %992 = vrot.lane.b32.xlu0 %v797, 127
        %v993 = vpop.permute.xlu0 %992
        %994 = vrot.lane.b32.xlu0 %v799, 127
        %v995 = vpop.permute.xlu0 %994
        %996 = vrot.lane.b32.xlu0 %v801, 127
        %v997 = vpop.permute.xlu0 %996
        %998 = vrot.lane.b32.xlu0 %v803, 127
        %v999 = vpop.permute.xlu0 %998
        %v1000 = vsel %vm540, %v985, %v993
        %v1001 = vsel %vm540, %v987, %v995
        %v1002 = vsel %vm540, %v989, %v997
        %v1003 = vsel %vm540, %v991, %v999
        %v1004 = vsel %vm540, %v993, %v985
        %v1005 = vsel %vm540, %v995, %v987
        %v1006 = vsel %vm540, %v997, %v989
        %v1007 = vsel %vm540, %v999, %v991
        %1008 = vrot.lane.b32.xlu0 %v796, 113
        %v1009 = vpop.permute.xlu0 %1008
        %1010 = vrot.lane.b32.xlu0 %v798, 113
        %v1011 = vpop.permute.xlu0 %1010
        %1012 = vrot.lane.b32.xlu0 %v800, 113
        %v1013 = vpop.permute.xlu0 %1012
        %1014 = vrot.lane.b32.xlu0 %v802, 113
        %v1015 = vpop.permute.xlu0 %1014
        %1016 = vrot.lane.b32.xlu0 %v797, 113
        %v1017 = vpop.permute.xlu0 %1016
        %1018 = vrot.lane.b32.xlu0 %v799, 113
        %v1019 = vpop.permute.xlu0 %1018
        %1020 = vrot.lane.b32.xlu0 %v801, 113
        %v1021 = vpop.permute.xlu0 %1020
        %1022 = vrot.lane.b32.xlu0 %v803, 113
        %v1023 = vpop.permute.xlu0 %1022
        %v1024 = vsel %vm561, %v1009, %v1017
        %v1025 = vsel %vm561, %v1011, %v1019
        %v1026 = vsel %vm561, %v1013, %v1021
        %v1027 = vsel %vm561, %v1015, %v1023
        %v1028 = vsel %vm561, %v1017, %v1009
        %v1029 = vsel %vm561, %v1019, %v1011
        %v1030 = vsel %vm561, %v1021, %v1013
        %v1031 = vsel %vm561, %v1023, %v1015
        %1032 = vrot.lane.b32.xlu0 %v796, 112
        %v1033 = vpop.permute.xlu0 %1032
        %1034 = vrot.lane.b32.xlu0 %v798, 112
        %v1035 = vpop.permute.xlu0 %1034
        %1036 = vrot.lane.b32.xlu0 %v800, 112
        %v1037 = vpop.permute.xlu0 %1036
        %1038 = vrot.lane.b32.xlu0 %v802, 112
        %v1039 = vpop.permute.xlu0 %1038
        %1040 = vrot.lane.b32.xlu0 %v797, 112
        %v1041 = vpop.permute.xlu0 %1040
        %1042 = vrot.lane.b32.xlu0 %v799, 112
        %v1043 = vpop.permute.xlu0 %1042
        %1044 = vrot.lane.b32.xlu0 %v801, 112
        %v1045 = vpop.permute.xlu0 %1044
        %1046 = vrot.lane.b32.xlu0 %v803, 112
        %v1047 = vpop.permute.xlu0 %1046
        %v1048 = vsel %vm568, %v1033, %v1041
        %v1049 = vsel %vm568, %v1035, %v1043
        %v1050 = vsel %vm568, %v1037, %v1045
        %v1051 = vsel %vm568, %v1039, %v1047
        %v1052 = vsel %vm568, %v1041, %v1033
        %v1053 = vsel %vm568, %v1043, %v1035
        %v1054 = vsel %vm568, %v1045, %v1037
        %v1055 = vsel %vm568, %v1047, %v1039
        %1056 = vrot.lane.b32.xlu0 %v796, 111
        %v1057 = vpop.permute.xlu0 %1056
        %1058 = vrot.lane.b32.xlu0 %v798, 111
        %v1059 = vpop.permute.xlu0 %1058
        %1060 = vrot.lane.b32.xlu0 %v800, 111
        %v1061 = vpop.permute.xlu0 %1060
        %1062 = vrot.lane.b32.xlu0 %v802, 111
        %v1063 = vpop.permute.xlu0 %1062
        %1064 = vrot.lane.b32.xlu0 %v797, 111
        %v1065 = vpop.permute.xlu0 %1064
        %1066 = vrot.lane.b32.xlu0 %v799, 111
        %v1067 = vpop.permute.xlu0 %1066
        %1068 = vrot.lane.b32.xlu0 %v801, 111
        %v1069 = vpop.permute.xlu0 %1068
        %1070 = vrot.lane.b32.xlu0 %v803, 111
        %v1071 = vpop.permute.xlu0 %1070
        %v1072 = vsel %vm575, %v1057, %v1065
        %v1073 = vsel %vm575, %v1059, %v1067
        %v1074 = vsel %vm575, %v1061, %v1069
        %v1075 = vsel %vm575, %v1063, %v1071
        %v1076 = vsel %vm575, %v1065, %v1057
        %v1077 = vsel %vm575, %v1067, %v1059
        %v1078 = vsel %vm575, %v1069, %v1061
        %v1079 = vsel %vm575, %v1071, %v1063
        %v1080 = vmul.f32 %v908, %v816
        %v1081 = vmul.f32 %v904, %v817
        %v1082 = vmul.f32 %v909, %v818
        %v1083 = vmul.f32 %v905, %v819
        %v1084 = vmul.f32 %v910, %v820
        %v1085 = vmul.f32 %v906, %v821
        %v1086 = vmul.f32 %v911, %v822
        %v1087 = vmul.f32 %v907, %v823
        %v1088 = vmul.f32 %v932, %v824
        %v1089 = vmul.f32 %v928, %v825
        %v1090 = vmul.f32 %v933, %v826
        %v1091 = vmul.f32 %v929, %v827
        %v1092 = vmul.f32 %v934, %v828
        %v1093 = vmul.f32 %v930, %v829
        %v1094 = vmul.f32 %v935, %v830
        %v1095 = vmul.f32 %v931, %v831
        %v1096 = vmul.f32 %v956, %v832
        %v1097 = vmul.f32 %v952, %v833
        %v1098 = vmul.f32 %v957, %v834
        %v1099 = vmul.f32 %v953, %v835
        %v1100 = vmul.f32 %v958, %v836
        %v1101 = vmul.f32 %v954, %v837
        %v1102 = vmul.f32 %v959, %v838
        %v1103 = vmul.f32 %v955, %v839
        %v1104 = vmul.f32 %v980, %v840
        %v1105 = vmul.f32 %v976, %v841
        %v1106 = vmul.f32 %v981, %v842
        %v1107 = vmul.f32 %v977, %v843
        %v1108 = vmul.f32 %v982, %v844
        %v1109 = vmul.f32 %v978, %v845
        %v1110 = vmul.f32 %v983, %v846
        %v1111 = vmul.f32 %v979, %v847
        %v1112 = vmul.f32 %v796, %v848
        %v1113 = vmul.f32 %v797, %v849
        %v1114 = vmul.f32 %v798, %v850
        %v1115 = vmul.f32 %v799, %v851
        %v1116 = vmul.f32 %v800, %v852
        %v1117 = vmul.f32 %v801, %v853
        %v1118 = vmul.f32 %v802, %v854
        %v1119 = vmul.f32 %v803, %v855
        %v1120 = vmul.f32 %v1000, %v856
        %v1121 = vmul.f32 %v1004, %v857
        %v1122 = vmul.f32 %v1001, %v858
        %v1123 = vmul.f32 %v1005, %v859
        %v1124 = vmul.f32 %v1002, %v860
        %v1125 = vmul.f32 %v1006, %v861
        %v1126 = vmul.f32 %v1003, %v862
        %v1127 = vmul.f32 %v1007, %v863
        %v1128 = vmul.f32 %v1024, %v864
        %v1129 = vmul.f32 %v1028, %v865
        %v1130 = vmul.f32 %v1025, %v866
        %v1131 = vmul.f32 %v1029, %v867
        %v1132 = vmul.f32 %v1026, %v868
        %v1133 = vmul.f32 %v1030, %v869
        %v1134 = vmul.f32 %v1027, %v870
        %v1135 = vmul.f32 %v1031, %v871
        %v1136 = vmul.f32 %v1048, %v872
        %v1137 = vmul.f32 %v1052, %v873
        %v1138 = vmul.f32 %v1049, %v874
        %v1139 = vmul.f32 %v1053, %v875
        %v1140 = vmul.f32 %v1050, %v876
        %v1141 = vmul.f32 %v1054, %v877
        %v1142 = vmul.f32 %v1051, %v878
        %v1143 = vmul.f32 %v1055, %v879
        %v1144 = vmul.f32 %v1072, %v880
        %v1145 = vmul.f32 %v1076, %v881
        %v1146 = vmul.f32 %v1073, %v882
        %v1147 = vmul.f32 %v1077, %v883
        %v1148 = vmul.f32 %v1074, %v884
        %v1149 = vmul.f32 %v1078, %v885
        %v1150 = vmul.f32 %v1075, %v886
        %v1151 = vmul.f32 %v1079, %v887
        %s1152 = scalar_lea.vmem %s8, 32
        %v1153 = vld [vmem:[%s1152] sm:$0xff]
        %v1154 = vld [vmem:[%s1152 + $0x8] sm:$0xff]
        %v1155 = vld [vmem:[%s1152 + $0x10] sm:$0xff]
        %v1156 = vld [vmem:[%s1152 + $0x18] sm:$0xff]
        %1158 = vset.pattern.permute.xlu0 0
        %1159 = vperm.xlu0 %1158, %v1153
        %v1160 = vpop.permute.xlu0 %1159
        %1163 = vset.pattern.permute.xlu0 0
        %1164 = vperm.xlu0 %1163, %v1154
        %v1165 = vpop.permute.xlu0 %1164
        %1168 = vset.pattern.permute.xlu0 0
        %1169 = vperm.xlu0 %1168, %v1155
        %v1170 = vpop.permute.xlu0 %1169
        %1173 = vset.pattern.permute.xlu0 0
        %1174 = vperm.xlu0 %1173, %v1156
        %v1175 = vpop.permute.xlu0 %1174
        %vm1177 = vcmask 261120
        %v1179 = vsel %vm1177, %v806, 0
        %v1182 = vsel %vm1177, %v809, 0
        %v1185 = vsel %vm1177, %v812, 0
        %v1188 = vsel %vm1177, %v815, 0
        %1190 = vmatprep.subr.mxu0 %v1081
        %1191 = vmatpush1.msra.mxu0 %v1080
        %1192 = vmatprep.subr.mxu0 %v1083
        %1193 = vmatpush1.msra.mxu0 %v1082
        %1194 = vmatprep.subr.mxu0 %v1085
        %1195 = vmatpush1.msra.mxu0 %v1084
        %1196 = vmatprep.subr.mxu0 %v1087
        %1197 = vmatpush1.msra.mxu0 %v1086
        %1198 = vmatprep.subr.mxu0 %v1089
        %1199 = vmatpush1.msra.mxu0 %v1088
        %1200 = vmatprep.subr.mxu0 %v1091
        %1201 = vmatpush1.msra.mxu0 %v1090
        %1202 = vmatprep.subr.mxu0 %v1093
        %1203 = vmatpush1.msra.mxu0 %v1092
        %1204 = vmatprep.subr.mxu0 %v1095
        %1205 = vmatpush1.msra.mxu0 %v1094
        %1206 = vmatprep.subr.mxu0 %v1097
        %1207 = vmatpush1.msra.mxu0 %v1096
        %1208 = vmatprep.subr.mxu0 %v1099
        %1209 = vmatpush1.msra.mxu0 %v1098
        %1210 = vmatprep.subr.mxu0 %v1101
        %1211 = vmatpush1.msra.mxu0 %v1100
        %1212 = vmatprep.subr.mxu0 %v1103
        %1213 = vmatpush1.msra.mxu0 %v1102
        %1214 = vmatprep.subr.mxu0 %v1105
        %1215 = vmatpush1.msra.mxu0 %v1104
        %1216 = vmatprep.subr.mxu0 %v1107
        %1217 = vmatpush1.msra.mxu0 %v1106
        %1218 = vmatprep.subr.mxu0 %v1109
        %1219 = vmatpush1.msra.mxu0 %v1108
        %1220 = vmatprep.subr.mxu0 %v1111
        %1221 = vmatpush1.msra.mxu0 %v1110
        %1222 = vmatprep.subr.mxu0 %v1113
        %1223 = vmatpush1.msra.mxu0 %v1112
        %1224 = vmatprep.subr.mxu0 %v1115
        %1225 = vmatpush1.msra.mxu0 %v1114
        %1226 = vmatprep.subr.mxu0 %v1117
        %1227 = vmatpush1.msra.mxu0 %v1116
        %1228 = vmatprep.subr.mxu0 %v1119
        %1229 = vmatpush1.msra.mxu0 %v1118
        %1230 = vmatprep.subr.mxu0 %v1121
        %1231 = vmatpush1.msra.mxu0 %v1120
        %1232 = vmatprep.subr.mxu0 %v1123
        %1233 = vmatpush1.msra.mxu0 %v1122
        %1234 = vmatprep.subr.mxu0 %v1125
        %1235 = vmatpush1.msra.mxu0 %v1124
        %1236 = vmatprep.subr.mxu0 %v1127
        %1237 = vmatpush1.msra.mxu0 %v1126
        %1238 = vmatprep.subr.mxu0 %v1129
        %1239 = vmatpush1.msra.mxu0 %v1128
        %1240 = vmatprep.subr.mxu0 %v1131
        %1241 = vmatpush1.msra.mxu0 %v1130
        %1242 = vmatprep.subr.mxu0 %v1133
        %1243 = vmatpush1.msra.mxu0 %v1132
        %1244 = vmatprep.subr.mxu0 %v1135
        %1245 = vmatpush1.msra.mxu0 %v1134
        %1246 = vmatprep.subr.mxu0 %v1137
        %1247 = vmatpush1.msra.mxu0 %v1136
        %1248 = vmatprep.subr.mxu0 %v1139
        %1249 = vmatpush1.msra.mxu0 %v1138
        %1250 = vmatprep.subr.mxu0 %v1141
        %1251 = vmatpush1.msra.mxu0 %v1140
        %1252 = vmatprep.subr.mxu0 %v1143
        %1253 = vmatpush1.msra.mxu0 %v1142
        %1254 = vmatprep.mubr.f32.mxu0 %v805
        %1255 = vmatmul.mubr.f32.gmra.mrb[0].mxu0 %v804
        %v1256 = vpop.f32.mrb[0].mxu0
        %v1257 = vadd.f32 %v1160, %v1256
        %v1258 = vpop.f32.mrb[0].mxu0
        %v1259 = vadd.f32 %v1160, %v1258
        %1260 = vmatprep.mubr.f32.mxu0 %v808
        %1261 = vmatmul.mubr.f32.gmra.mrb[0].mxu0 %v807
        %v1262 = vpop.f32.mrb[0].mxu0
        %v1263 = vadd.f32 %v1165, %v1262
        %v1264 = vpop.f32.mrb[0].mxu0
        %v1265 = vadd.f32 %v1165, %v1264
        %1266 = vmatprep.mubr.f32.mxu0 %v811
        %1267 = vmatmul.mubr.f32.gmra.mrb[0].mxu0 %v810
        %v1268 = vpop.f32.mrb[0].mxu0
        %v1269 = vadd.f32 %v1170, %v1268
        %v1270 = vpop.f32.mrb[0].mxu0
        %v1271 = vadd.f32 %v1170, %v1270
        %1272 = vmatprep.mubr.f32.mxu0 %v814
        %1273 = vmatmul.mubr.f32.gmra.mrb[0].mxu0 %v813
        %v1274 = vpop.f32.mrb[0].mxu0
        %v1275 = vadd.f32 %v1175, %v1274
        %v1276 = vpop.f32.mrb[0].mxu0
        %v1277 = vadd.f32 %v1175, %v1276
        %1278 = vdwg.mxu0
        %1279 = vmatprep.subr.mxu0 %v1145
        %1280 = vmatpush1.msra.mxu0 %v1144
        %1281 = vmatprep.subr.mxu0 %v1147
        %1282 = vmatpush1.msra.mxu0 %v1146
        %1283 = vmatprep.subr.mxu0 %v1149
        %1284 = vmatpush1.msra.mxu0 %v1148
        %1285 = vmatprep.subr.mxu0 %v1151
        %1286 = vmatpush1.msra.mxu0 %v1150
        %1287 = vmatprep.subr.mxu0 0.0
        %1288 = vmatpush1.msra.mxu0 0.0
        %1289 = vmatprep.subr.mxu0 0.0
        %1290 = vmatpush1.msra.mxu0 0.0
        %1291 = vmatprep.subr.mxu0 0.0
        %1292 = vmatpush1.msra.mxu0 0.0
        %1293 = vmatprep.subr.mxu0 0.0
        %1294 = vmatpush1.msra.mxu0 0.0
        %1295 = vmatprep.subr.mxu0 0.0
        %1296 = vmatpush1.msra.mxu0 0.0
        %1297 = vmatprep.subr.mxu0 0.0
        %1298 = vmatpush1.msra.mxu0 0.0
        %1299 = vmatprep.subr.mxu0 0.0
        %1300 = vmatpush1.msra.mxu0 0.0
        %1301 = vmatprep.subr.mxu0 0.0
        %1302 = vmatpush1.msra.mxu0 0.0
        %1303 = vmatprep.subr.mxu0 0.0
        %1304 = vmatpush1.msra.mxu0 0.0
        %1305 = vmatprep.subr.mxu0 0.0
        %1306 = vmatpush1.msra.mxu0 0.0
        %1307 = vmatprep.subr.mxu0 0.0
        %1308 = vmatpush1.msra.mxu0 0.0
        %1309 = vmatprep.subr.mxu0 0.0
        %1310 = vmatpush1.msra.mxu0 0.0
        %1311 = vmatprep.subr.mxu0 0.0
        %1312 = vmatpush1.msra.mxu0 0.0
        %1313 = vmatprep.subr.mxu0 0.0
        %1314 = vmatpush1.msra.mxu0 0.0
        %1315 = vmatprep.subr.mxu0 0.0
        %1316 = vmatpush1.msra.mxu0 0.0
        %1317 = vmatprep.subr.mxu0 0.0
        %1318 = vmatpush1.msra.mxu0 0.0
        %1319 = vmatprep.subr.mxu0 0.0
        %1320 = vmatpush1.msra.mxu0 0.0
        %1321 = vmatprep.subr.mxu0 0.0
        %1322 = vmatpush1.msra.mxu0 0.0
        %1323 = vmatprep.subr.mxu0 0.0
        %1324 = vmatpush1.msra.mxu0 0.0
        %1325 = vmatprep.subr.mxu0 0.0
        %1326 = vmatpush1.msra.mxu0 0.0
        %1327 = vmatprep.subr.mxu0 0.0
        %1328 = vmatpush1.msra.mxu0 0.0
        %1329 = vmatprep.subr.mxu0 0.0
        %1330 = vmatpush1.msra.mxu0 0.0
        %1331 = vmatprep.subr.mxu0 0.0
        %1332 = vmatpush1.msra.mxu0 0.0
        %1333 = vmatprep.subr.mxu0 0.0
        %1334 = vmatpush1.msra.mxu0 0.0
        %1335 = vmatprep.subr.mxu0 0.0
        %1336 = vmatpush1.msra.mxu0 0.0
        %1337 = vmatprep.subr.mxu0 0.0
        %1338 = vmatpush1.msra.mxu0 0.0
        %1339 = vmatprep.subr.mxu0 0.0
        %1340 = vmatpush1.msra.mxu0 0.0
        %1341 = vmatprep.subr.mxu0 0.0
        %1342 = vmatpush1.msra.mxu0 0.0
        %1343 = vmatprep.mubr.f32.mxu0 0.0
        %1344 = vmatmul.mubr.f32.gmra.mrb[0].mxu0 %v1179
        %v1345 = vpop.f32.mrb[0].mxu0
        %v1346 = vadd.f32 %v1257, %v1345
        %v1347 = vpop.f32.mrb[0].mxu0
        %v1348 = vadd.f32 %v1259, %v1347
        %1349 = vmatprep.mubr.f32.mxu0 0.0
        %1350 = vmatmul.mubr.f32.gmra.mrb[0].mxu0 %v1182
        %v1351 = vpop.f32.mrb[0].mxu0
        %v1352 = vadd.f32 %v1263, %v1351
        %v1353 = vpop.f32.mrb[0].mxu0
        %v1354 = vadd.f32 %v1265, %v1353
        %1355 = vmatprep.mubr.f32.mxu0 0.0
        %1356 = vmatmul.mubr.f32.gmra.mrb[0].mxu0 %v1185
        %v1357 = vpop.f32.mrb[0].mxu0
        %v1358 = vadd.f32 %v1269, %v1357
        %v1359 = vpop.f32.mrb[0].mxu0
        %v1360 = vadd.f32 %v1271, %v1359
        %1361 = vmatprep.mubr.f32.mxu0 0.0
        %1362 = vmatmul.mubr.f32.gmra.mrb[0].mxu0 %v1188
        %v1363 = vpop.f32.mrb[0].mxu0
        %v1364 = vadd.f32 %v1275, %v1363
        %v1365 = vpop.f32.mrb[0].mxu0
        %v1366 = vadd.f32 %v1277, %v1365
        %1367 = vdwg.mxu0
        %v1368 = vmax.f32 %v1346, 0.0
        %v1369 = vmax.f32 %v1348, 0.0
        %v1370 = vmax.f32 %v1352, 0.0
        %v1371 = vmax.f32 %v1354, 0.0
        %v1372 = vmax.f32 %v1358, 0.0
        %v1373 = vmax.f32 %v1360, 0.0
        %v1374 = vmax.f32 %v1364, 0.0
        %v1375 = vmax.f32 %v1366, 0.0
        %v1376 = vld [vmem:[#allocation7] sm:$0xff]
        %v1377 = vld [vmem:[#allocation7 + $0x8] sm:$0xff]
        %v1378 = vld [vmem:[#allocation7 + $0x10] sm:$0xff]
        %v1379 = vld [vmem:[#allocation7 + $0x18] sm:$0xff]
        %s1380 = scalar_lea.vmem %s8, 64
        %v1381 = vld [vmem:[%s1380] sm:$0xff]
        %v1382 = vld [vmem:[%s1380 + $0x8] sm:$0xff]
        %v1383 = vld [vmem:[%s1380 + $0x10] sm:$0xff]
        %v1384 = vld [vmem:[%s1380 + $0x18] sm:$0xff]
        %1386 = vset.pattern.permute.xlu0 0
        %1387 = vperm.xlu0 %1386, %v1381
        %v1388 = vpop.permute.xlu0 %1387
        %1391 = vset.pattern.permute.xlu0 0
        %1392 = vperm.xlu0 %1391, %v1382
        %v1393 = vpop.permute.xlu0 %1392
        %1396 = vset.pattern.permute.xlu0 0
        %1397 = vperm.xlu0 %1396, %v1383
        %v1398 = vpop.permute.xlu0 %1397
        %1401 = vset.pattern.permute.xlu0 0
        %1402 = vperm.xlu0 %1401, %v1384
        %v1403 = vpop.permute.xlu0 %1402
        %v1406 = vsel %vm1177, %v1376, 0
        %v1409 = vsel %vm1177, %v1377, 0
        %v1412 = vsel %vm1177, %v1378, 0
        %v1415 = vsel %vm1177, %v1379, 0
        %1417 = vmatprep.subr.mxu0 %v1369
        %1418 = vmatpush1.msra.mxu0 %v1368
        %1419 = vmatprep.subr.mxu0 %v1371
        %1420 = vmatpush1.msra.mxu0 %v1370
        %1421 = vmatprep.subr.mxu0 %v1373
        %1422 = vmatpush1.msra.mxu0 %v1372
        %1423 = vmatprep.subr.mxu0 %v1375
        %1424 = vmatpush1.msra.mxu0 %v1374
        %1425 = vmatprep.subr.mxu0 0.0
        %1426 = vmatpush1.msra.mxu0 0.0
        %1427 = vmatprep.subr.mxu0 0.0
        %1428 = vmatpush1.msra.mxu0 0.0
        %1429 = vmatprep.subr.mxu0 0.0
        %1430 = vmatpush1.msra.mxu0 0.0
        %1431 = vmatprep.subr.mxu0 0.0
        %1432 = vmatpush1.msra.mxu0 0.0
        %1433 = vmatprep.subr.mxu0 0.0
        %1434 = vmatpush1.msra.mxu0 0.0
        %1435 = vmatprep.subr.mxu0 0.0
        %1436 = vmatpush1.msra.mxu0 0.0
        %1437 = vmatprep.subr.mxu0 0.0
        %1438 = vmatpush1.msra.mxu0 0.0
        %1439 = vmatprep.subr.mxu0 0.0
        %1440 = vmatpush1.msra.mxu0 0.0
        %1441 = vmatprep.subr.mxu0 0.0
        %1442 = vmatpush1.msra.mxu0 0.0
        %1443 = vmatprep.subr.mxu0 0.0
        %1444 = vmatpush1.msra.mxu0 0.0
        %1445 = vmatprep.subr.mxu0 0.0
        %1446 = vmatpush1.msra.mxu0 0.0
        %1447 = vmatprep.subr.mxu0 0.0
        %1448 = vmatpush1.msra.mxu0 0.0
        %1449 = vmatprep.subr.mxu0 0.0
        %1450 = vmatpush1.msra.mxu0 0.0
        %1451 = vmatprep.subr.mxu0 0.0
        %1452 = vmatpush1.msra.mxu0 0.0
        %1453 = vmatprep.subr.mxu0 0.0
        %1454 = vmatpush1.msra.mxu0 0.0
        %1455 = vmatprep.subr.mxu0 0.0
        %1456 = vmatpush1.msra.mxu0 0.0
        %1457 = vmatprep.subr.mxu0 0.0
        %1458 = vmatpush1.msra.mxu0 0.0
        %1459 = vmatprep.subr.mxu0 0.0
        %1460 = vmatpush1.msra.mxu0 0.0
        %1461 = vmatprep.subr.mxu0 0.0
        %1462 = vmatpush1.msra.mxu0 0.0
        %1463 = vmatprep.subr.mxu0 0.0
        %1464 = vmatpush1.msra.mxu0 0.0
        %1465 = vmatprep.subr.mxu0 0.0
        %1466 = vmatpush1.msra.mxu0 0.0
        %1467 = vmatprep.subr.mxu0 0.0
        %1468 = vmatpush1.msra.mxu0 0.0
        %1469 = vmatprep.subr.mxu0 0.0
        %1470 = vmatpush1.msra.mxu0 0.0
        %1471 = vmatprep.subr.mxu0 0.0
        %1472 = vmatpush1.msra.mxu0 0.0
        %1473 = vmatprep.subr.mxu0 0.0
        %1474 = vmatpush1.msra.mxu0 0.0
        %1475 = vmatprep.subr.mxu0 0.0
        %1476 = vmatpush1.msra.mxu0 0.0
        %1477 = vmatprep.subr.mxu0 0.0
        %1478 = vmatpush1.msra.mxu0 0.0
        %1479 = vmatprep.subr.mxu0 0.0
        %1480 = vmatpush1.msra.mxu0 0.0
        %1481 = vmatprep.mubr.f32.mxu0 0.0
        %1482 = vmatmul.mubr.f32.gmra.mrb[0].mxu0 %v1406
        %v1483 = vpop.f32.mrb[0].mxu0
        %v1484 = vadd.f32 %v1388, %v1483
        %v1485 = vpop.f32.mrb[0].mxu0
        %v1486 = vadd.f32 %v1388, %v1485
        %1487 = vmatprep.mubr.f32.mxu0 0.0
        %1488 = vmatmul.mubr.f32.gmra.mrb[0].mxu0 %v1409
        %v1489 = vpop.f32.mrb[0].mxu0
        %v1490 = vadd.f32 %v1393, %v1489
        %v1491 = vpop.f32.mrb[0].mxu0
        %v1492 = vadd.f32 %v1393, %v1491
        %1493 = vmatprep.mubr.f32.mxu0 0.0
        %1494 = vmatmul.mubr.f32.gmra.mrb[0].mxu0 %v1412
        %v1495 = vpop.f32.mrb[0].mxu0
        %v1496 = vadd.f32 %v1398, %v1495
        %v1497 = vpop.f32.mrb[0].mxu0
        %v1498 = vadd.f32 %v1398, %v1497
        %1499 = vmatprep.mubr.f32.mxu0 0.0
        %1500 = vmatmul.mubr.f32.gmra.mrb[0].mxu0 %v1415
        %v1501 = vpop.f32.mrb[0].mxu0
        %v1502 = vadd.f32 %v1403, %v1501
        %v1503 = vpop.f32.mrb[0].mxu0
        %v1504 = vadd.f32 %v1403, %v1503
        %1505 = vdwg.mxu0
        %v1506 = vmax.f32 %v1484, 0.0
        %v1507 = vmax.f32 %v1486, 0.0
        %v1508 = vmax.f32 %v1490, 0.0
        %v1509 = vmax.f32 %v1492, 0.0
        %v1510 = vmax.f32 %v1496, 0.0
        %v1511 = vmax.f32 %v1498, 0.0
        %v1512 = vmax.f32 %v1502, 0.0
        %v1513 = vmax.f32 %v1504, 0.0
        %s1514 = scalar_lea.vmem [#allocation7], 32
        %v1515 = vld [vmem:[%s1514] sm:$0xff]
        %v1516 = vld [vmem:[%s1514 + $0x8] sm:$0xff]
        %v1517 = vld [vmem:[%s1514 + $0x10] sm:$0xff]
        %v1518 = vld [vmem:[%s1514 + $0x18] sm:$0xff]
        %s1519 = scalar_lea.vmem %s8, 96
        %v1520 = vld [vmem:[%s1519] sm:$0xff]
        %v1521 = vld [vmem:[%s1519 + $0x8] sm:$0xff]
        %v1522 = vld [vmem:[%s1519 + $0x10] sm:$0xff]
        %v1523 = vld [vmem:[%s1519 + $0x18] sm:$0xff]
        %1525 = vset.pattern.permute.xlu0 0
        %1526 = vperm.xlu0 %1525, %v1520
        %v1527 = vpop.permute.xlu0 %1526
        %1530 = vset.pattern.permute.xlu0 0
        %1531 = vperm.xlu0 %1530, %v1521
        %v1532 = vpop.permute.xlu0 %1531
        %1535 = vset.pattern.permute.xlu0 0
        %1536 = vperm.xlu0 %1535, %v1522
        %v1537 = vpop.permute.xlu0 %1536
        %1540 = vset.pattern.permute.xlu0 0
        %1541 = vperm.xlu0 %1540, %v1523
        %v1542 = vpop.permute.xlu0 %1541
        %v1545 = vsel %vm1177, %v1515, 0
        %v1548 = vsel %vm1177, %v1516, 0
        %v1551 = vsel %vm1177, %v1517, 0
        %v1554 = vsel %vm1177, %v1518, 0
        %1556 = vmatprep.subr.mxu0 %v1507
        %1557 = vmatpush1.msra.mxu0 %v1506
        %1558 = vmatprep.subr.mxu0 %v1509
        %1559 = vmatpush1.msra.mxu0 %v1508
        %1560 = vmatprep.subr.mxu0 %v1511
        %1561 = vmatpush1.msra.mxu0 %v1510
        %1562 = vmatprep.subr.mxu0 %v1513
        %1563 = vmatpush1.msra.mxu0 %v1512
        %1564 = vmatprep.subr.mxu0 0.0
        %1565 = vmatpush1.msra.mxu0 0.0
        %1566 = vmatprep.subr.mxu0 0.0
        %1567 = vmatpush1.msra.mxu0 0.0
        %1568 = vmatprep.subr.mxu0 0.0
        %1569 = vmatpush1.msra.mxu0 0.0
        %1570 = vmatprep.subr.mxu0 0.0
        %1571 = vmatpush1.msra.mxu0 0.0
        %1572 = vmatprep.subr.mxu0 0.0
        %1573 = vmatpush1.msra.mxu0 0.0
        %1574 = vmatprep.subr.mxu0 0.0
        %1575 = vmatpush1.msra.mxu0 0.0
        %1576 = vmatprep.subr.mxu0 0.0
        %1577 = vmatpush1.msra.mxu0 0.0
        %1578 = vmatprep.subr.mxu0 0.0
        %1579 = vmatpush1.msra.mxu0 0.0
        %1580 = vmatprep.subr.mxu0 0.0
        %1581 = vmatpush1.msra.mxu0 0.0
        %1582 = vmatprep.subr.mxu0 0.0
        %1583 = vmatpush1.msra.mxu0 0.0
        %1584 = vmatprep.subr.mxu0 0.0
        %1585 = vmatpush1.msra.mxu0 0.0
        %1586 = vmatprep.subr.mxu0 0.0
        %1587 = vmatpush1.msra.mxu0 0.0
        %1588 = vmatprep.subr.mxu0 0.0
        %1589 = vmatpush1.msra.mxu0 0.0
        %1590 = vmatprep.subr.mxu0 0.0
        %1591 = vmatpush1.msra.mxu0 0.0
        %1592 = vmatprep.subr.mxu0 0.0
        %1593 = vmatpush1.msra.mxu0 0.0
        %1594 = vmatprep.subr.mxu0 0.0
        %1595 = vmatpush1.msra.mxu0 0.0
        %1596 = vmatprep.subr.mxu0 0.0
        %1597 = vmatpush1.msra.mxu0 0.0
        %1598 = vmatprep.subr.mxu0 0.0
        %1599 = vmatpush1.msra.mxu0 0.0
        %1600 = vmatprep.subr.mxu0 0.0
        %1601 = vmatpush1.msra.mxu0 0.0
        %1602 = vmatprep.subr.mxu0 0.0
        %1603 = vmatpush1.msra.mxu0 0.0
        %1604 = vmatprep.subr.mxu0 0.0
        %1605 = vmatpush1.msra.mxu0 0.0
        %1606 = vmatprep.subr.mxu0 0.0
        %1607 = vmatpush1.msra.mxu0 0.0
        %1608 = vmatprep.subr.mxu0 0.0
        %1609 = vmatpush1.msra.mxu0 0.0
        %1610 = vmatprep.subr.mxu0 0.0
        %1611 = vmatpush1.msra.mxu0 0.0
        %1612 = vmatprep.subr.mxu0 0.0
        %1613 = vmatpush1.msra.mxu0 0.0
        %1614 = vmatprep.subr.mxu0 0.0
        %1615 = vmatpush1.msra.mxu0 0.0
        %1616 = vmatprep.subr.mxu0 0.0
        %1617 = vmatpush1.msra.mxu0 0.0
        %1618 = vmatprep.subr.mxu0 0.0
        %1619 = vmatpush1.msra.mxu0 0.0
        %1620 = vmatprep.mubr.f32.mxu0 0.0
        %1621 = vmatmul.mubr.f32.gmra.mrb[0].mxu0 %v1545
        %v1622 = vpop.f32.mrb[0].mxu0
        %v1623 = vadd.f32 %v1527, %v1622
        %v1624 = vpop.f32.mrb[0].mxu0
        %v1625 = vadd.f32 %v1527, %v1624
        %1626 = vmatprep.mubr.f32.mxu0 0.0
        %1627 = vmatmul.mubr.f32.gmra.mrb[0].mxu0 %v1548
        %v1628 = vpop.f32.mrb[0].mxu0
        %v1629 = vadd.f32 %v1532, %v1628
        %v1630 = vpop.f32.mrb[0].mxu0
        %v1631 = vadd.f32 %v1532, %v1630
        %1632 = vmatprep.mubr.f32.mxu0 0.0
        %1633 = vmatmul.mubr.f32.gmra.mrb[0].mxu0 %v1551
        %v1634 = vpop.f32.mrb[0].mxu0
        %v1635 = vadd.f32 %v1537, %v1634
        %v1636 = vpop.f32.mrb[0].mxu0
        %v1637 = vadd.f32 %v1537, %v1636
        %1638 = vmatprep.mubr.f32.mxu0 0.0
        %1639 = vmatmul.mubr.f32.gmra.mrb[0].mxu0 %v1554
        %v1640 = vpop.f32.mrb[0].mxu0
        %v1641 = vadd.f32 %v1542, %v1640
        %v1642 = vpop.f32.mrb[0].mxu0
        %v1643 = vadd.f32 %v1542, %v1642
        %1644 = vdwg.mxu0
        %v1645 = vmax.f32 %v1623, 0.0
        %v1646 = vmax.f32 %v1625, 0.0
        %v1647 = vmax.f32 %v1629, 0.0
        %v1648 = vmax.f32 %v1631, 0.0
        %v1649 = vmax.f32 %v1635, 0.0
        %v1650 = vmax.f32 %v1637, 0.0
        %v1651 = vmax.f32 %v1641, 0.0
        %v1652 = vmax.f32 %v1643, 0.0
        %v1653 = vld [vmem:[#allocation6] sm:$0xff]
        %v1654 = vld [vmem:[#allocation6 + $0x8] sm:$0xff]
        %v1655 = vld [vmem:[#allocation6 + $0x10] sm:$0xff]
        %v1656 = vld [vmem:[#allocation6 + $0x18] sm:$0xff]
        %v1657 = vld [vmem:[#allocation6 + $0x20] sm:$0xff]
        %v1658 = vld [vmem:[#allocation6 + $0x28] sm:$0xff]
        %v1659 = vld [vmem:[#allocation6 + $0x30] sm:$0xff]
        %v1660 = vld [vmem:[#allocation6 + $0x38] sm:$0xff]
        %v1661 = vld [vmem:[#allocation6 + $0x40] sm:$0xff]
        %v1662 = vld [vmem:[#allocation6 + $0x48] sm:$0xff]
        %v1663 = vld [vmem:[#allocation6 + $0x50] sm:$0xff]
        %v1664 = vld [vmem:[#allocation6 + $0x58] sm:$0xff]
        %v1665 = vld [vmem:[#allocation6 + $0x60] sm:$0xff]
        %v1666 = vld [vmem:[#allocation6 + $0x68] sm:$0xff]
        %v1667 = vld [vmem:[#allocation6 + $0x70] sm:$0xff]
        %v1668 = vld [vmem:[#allocation6 + $0x78] sm:$0xff]
        %v1669 = vld [vmem:[#allocation6 + $0x80] sm:$0xff]
        %v1670 = vld [vmem:[#allocation6 + $0x88] sm:$0xff]
        %v1671 = vld [vmem:[#allocation6 + $0x90] sm:$0xff]
        %v1672 = vld [vmem:[#allocation6 + $0x98] sm:$0xff]
        %v1673 = vld [vmem:[#allocation6 + $0xa0] sm:$0xff]
        %v1674 = vld [vmem:[#allocation6 + $0xa8] sm:$0xff]
        %v1675 = vld [vmem:[#allocation6 + $0xb0] sm:$0xff]
        %v1676 = vld [vmem:[#allocation6 + $0xb8] sm:$0xff]
        %v1677 = vld [vmem:[#allocation6 + $0xc0] sm:$0xff]
        %v1678 = vld [vmem:[#allocation6 + $0xc8] sm:$0xff]
        %v1679 = vld [vmem:[#allocation6 + $0xd0] sm:$0xff]
        %v1680 = vld [vmem:[#allocation6 + $0xd8] sm:$0xff]
        %v1681 = vld [vmem:[#allocation6 + $0xe0] sm:$0xff]
        %v1682 = vld [vmem:[#allocation6 + $0xe8] sm:$0xff]
        %v1683 = vld [vmem:[#allocation6 + $0xf0] sm:$0xff]
        %v1684 = vld [vmem:[#allocation6 + $0xf8] sm:$0xff]
        %v1685 = vld [vmem:[#allocation6 + $0x100] sm:$0xff]
        %v1686 = vld [vmem:[#allocation6 + $0x108] sm:$0xff]
        %v1687 = vld [vmem:[#allocation6 + $0x110] sm:$0xff]
        %v1688 = vld [vmem:[#allocation6 + $0x118] sm:$0xff]
        %v1689 = vld [vmem:[#allocation6 + $0x120] sm:$0xff]
        %v1690 = vld [vmem:[#allocation6 + $0x128] sm:$0xff]
        %v1691 = vld [vmem:[#allocation6 + $0x130] sm:$0xff]
        %v1692 = vld [vmem:[#allocation6 + $0x138] sm:$0xff]
        %v1693 = vld [vmem:[#allocation6 + $0x140] sm:$0xff]
        %v1694 = vld [vmem:[#allocation6 + $0x148] sm:$0xff]
        %v1695 = vld [vmem:[#allocation6 + $0x150] sm:$0xff]
        %v1696 = vld [vmem:[#allocation6 + $0x158] sm:$0xff]
        %v1697 = vld [vmem:[#allocation6 + $0x160] sm:$0xff]
        %v1698 = vld [vmem:[#allocation6 + $0x168] sm:$0xff]
        %v1699 = vld [vmem:[#allocation6 + $0x170] sm:$0xff]
        %v1700 = vld [vmem:[#allocation6 + $0x178] sm:$0xff]
        %v1701 = vld [vmem:[#allocation6 + $0x180] sm:$0xff]
        %v1702 = vld [vmem:[#allocation6 + $0x188] sm:$0xff]
        %v1703 = vld [vmem:[#allocation6 + $0x190] sm:$0xff]
        %v1704 = vld [vmem:[#allocation6 + $0x198] sm:$0xff]
        %v1705 = vld [vmem:[#allocation6 + $0x1a0] sm:$0xff]
        %v1706 = vld [vmem:[#allocation6 + $0x1a8] sm:$0xff]
        %v1707 = vld [vmem:[#allocation6 + $0x1b0] sm:$0xff]
        %v1708 = vld [vmem:[#allocation6 + $0x1b8] sm:$0xff]
        %v1709 = vld [vmem:[#allocation6 + $0x1c0] sm:$0xff]
        %v1710 = vld [vmem:[#allocation6 + $0x1c8] sm:$0xff]
        %v1711 = vld [vmem:[#allocation6 + $0x1d0] sm:$0xff]
        %v1712 = vld [vmem:[#allocation6 + $0x1d8] sm:$0xff]
        %v1713 = vld [vmem:[#allocation6 + $0x1e0] sm:$0xff]
        %v1714 = vld [vmem:[#allocation6 + $0x1e8] sm:$0xff]
        %v1715 = vld [vmem:[#allocation6 + $0x1f0] sm:$0xff]
        %v1716 = vld [vmem:[#allocation6 + $0x1f8] sm:$0xff]
        %v1717 = vld [vmem:[#allocation6 + $0x200] sm:$0xff]
        %v1718 = vld [vmem:[#allocation6 + $0x208] sm:$0xff]
        %v1719 = vld [vmem:[#allocation6 + $0x210] sm:$0xff]
        %v1720 = vld [vmem:[#allocation6 + $0x218] sm:$0xff]
        %v1721 = vld [vmem:[#allocation6 + $0x220] sm:$0xff]
        %v1722 = vld [vmem:[#allocation6 + $0x228] sm:$0xff]
        %v1723 = vld [vmem:[#allocation6 + $0x230] sm:$0xff]
        %v1724 = vld [vmem:[#allocation6 + $0x238] sm:$0xff]
        %v1725 = vld [vmem:[#allocation4] sm:$0xff]
        %v1726 = vld [vmem:[#allocation4 + $0x8] sm:$0xff]
        %v1727 = vld [vmem:[#allocation4 + $0x10] sm:$0xff]
        %v1728 = vld [vmem:[#allocation4 + $0x18] sm:$0xff]
        %v1729 = vld [vmem:[#allocation4 + $0x20] sm:$0xff]
        %v1730 = vld [vmem:[#allocation4 + $0x28] sm:$0xff]
        %v1731 = vld [vmem:[#allocation4 + $0x30] sm:$0xff]
        %v1732 = vld [vmem:[#allocation4 + $0x38] sm:$0xff]
        %v1733 = vld [vmem:[#allocation4 + $0x40] sm:$0xff]
        %v1734 = vld [vmem:[#allocation4 + $0x48] sm:$0xff]
        %v1735 = vld [vmem:[#allocation4 + $0x50] sm:$0xff]
        %v1736 = vld [vmem:[#allocation4 + $0x58] sm:$0xff]
        %1737 = vrot.lane.b32.xlu0 %v1645, 34
        %v1738 = vpop.permute.xlu0 %1737
        %1739 = vrot.lane.b32.xlu0 %v1647, 34
        %v1740 = vpop.permute.xlu0 %1739
        %1741 = vrot.lane.b32.xlu0 %v1649, 34
        %v1742 = vpop.permute.xlu0 %1741
        %1743 = vrot.lane.b32.xlu0 %v1651, 34
        %v1744 = vpop.permute.xlu0 %1743
        %1745 = vrot.lane.b32.xlu0 %v1646, 34
        %v1746 = vpop.permute.xlu0 %1745
        %1747 = vrot.lane.b32.xlu0 %v1648, 34
        %v1748 = vpop.permute.xlu0 %1747
        %1749 = vrot.lane.b32.xlu0 %v1650, 34
        %v1750 = vpop.permute.xlu0 %1749
        %1751 = vrot.lane.b32.xlu0 %v1652, 34
        %v1752 = vpop.permute.xlu0 %1751
        %v1753 = vsel %vm456, %v1738, %v1746
        %v1754 = vsel %vm456, %v1740, %v1748
        %v1755 = vsel %vm456, %v1742, %v1750
        %v1756 = vsel %vm456, %v1744, %v1752
        %v1757 = vsel %vm456, %v1746, %v1738
        %v1758 = vsel %vm456, %v1748, %v1740
        %v1759 = vsel %vm456, %v1750, %v1742
        %v1760 = vsel %vm456, %v1752, %v1744
        %1761 = vrot.lane.b32.xlu0 %v1645, 32
        %v1762 = vpop.permute.xlu0 %1761
        %1763 = vrot.lane.b32.xlu0 %v1647, 32
        %v1764 = vpop.permute.xlu0 %1763
        %1765 = vrot.lane.b32.xlu0 %v1649, 32
        %v1766 = vpop.permute.xlu0 %1765
        %1767 = vrot.lane.b32.xlu0 %v1651, 32
        %v1768 = vpop.permute.xlu0 %1767
        %1769 = vrot.lane.b32.xlu0 %v1646, 32
        %v1770 = vpop.permute.xlu0 %1769
        %1771 = vrot.lane.b32.xlu0 %v1648, 32
        %v1772 = vpop.permute.xlu0 %1771
        %1773 = vrot.lane.b32.xlu0 %v1650, 32
        %v1774 = vpop.permute.xlu0 %1773
        %1775 = vrot.lane.b32.xlu0 %v1652, 32
        %v1776 = vpop.permute.xlu0 %1775
        %v1777 = vsel %vm470, %v1762, %v1770
        %v1778 = vsel %vm470, %v1764, %v1772
        %v1779 = vsel %vm470, %v1766, %v1774
        %v1780 = vsel %vm470, %v1768, %v1776
        %v1781 = vsel %vm470, %v1770, %v1762
        %v1782 = vsel %vm470, %v1772, %v1764
        %v1783 = vsel %vm470, %v1774, %v1766
        %v1784 = vsel %vm470, %v1776, %v1768
        %1785 = vrot.lane.b32.xlu0 %v1645, 30
        %v1786 = vpop.permute.xlu0 %1785
        %1787 = vrot.lane.b32.xlu0 %v1647, 30
        %v1788 = vpop.permute.xlu0 %1787
        %1789 = vrot.lane.b32.xlu0 %v1649, 30
        %v1790 = vpop.permute.xlu0 %1789
        %1791 = vrot.lane.b32.xlu0 %v1651, 30
        %v1792 = vpop.permute.xlu0 %1791
        %1793 = vrot.lane.b32.xlu0 %v1646, 30
        %v1794 = vpop.permute.xlu0 %1793
        %1795 = vrot.lane.b32.xlu0 %v1648, 30
        %v1796 = vpop.permute.xlu0 %1795
        %1797 = vrot.lane.b32.xlu0 %v1650, 30
        %v1798 = vpop.permute.xlu0 %1797
        %1799 = vrot.lane.b32.xlu0 %v1652, 30
        %v1800 = vpop.permute.xlu0 %1799
        %v1801 = vsel %vm484, %v1786, %v1794
        %v1802 = vsel %vm484, %v1788, %v1796
        %v1803 = vsel %vm484, %v1790, %v1798
        %v1804 = vsel %vm484, %v1792, %v1800
        %v1805 = vsel %vm484, %v1794, %v1786
        %v1806 = vsel %vm484, %v1796, %v1788
        %v1807 = vsel %vm484, %v1798, %v1790
        %v1808 = vsel %vm484, %v1800, %v1792
        %1809 = vrot.lane.b32.xlu0 %v1645, 2
        %v1810 = vpop.permute.xlu0 %1809
        %1811 = vrot.lane.b32.xlu0 %v1647, 2
        %v1812 = vpop.permute.xlu0 %1811
        %1813 = vrot.lane.b32.xlu0 %v1649, 2
        %v1814 = vpop.permute.xlu0 %1813
        %1815 = vrot.lane.b32.xlu0 %v1651, 2
        %v1816 = vpop.permute.xlu0 %1815
        %1817 = vrot.lane.b32.xlu0 %v1646, 2
        %v1818 = vpop.permute.xlu0 %1817
        %1819 = vrot.lane.b32.xlu0 %v1648, 2
        %v1820 = vpop.permute.xlu0 %1819
        %1821 = vrot.lane.b32.xlu0 %v1650, 2
        %v1822 = vpop.permute.xlu0 %1821
        %1823 = vrot.lane.b32.xlu0 %v1652, 2
        %v1824 = vpop.permute.xlu0 %1823
        %v1825 = vsel %vm526, %v1810, %v1818
        %v1826 = vsel %vm526, %v1812, %v1820
        %v1827 = vsel %vm526, %v1814, %v1822
        %v1828 = vsel %vm526, %v1816, %v1824
        %v1829 = vsel %vm526, %v1818, %v1810
        %v1830 = vsel %vm526, %v1820, %v1812
        %v1831 = vsel %vm526, %v1822, %v1814
        %v1832 = vsel %vm526, %v1824, %v1816
        %1833 = vrot.lane.b32.xlu0 %v1645, 126
        %v1834 = vpop.permute.xlu0 %1833
        %1835 = vrot.lane.b32.xlu0 %v1647, 126
        %v1836 = vpop.permute.xlu0 %1835
        %1837 = vrot.lane.b32.xlu0 %v1649, 126
        %v1838 = vpop.permute.xlu0 %1837
        %1839 = vrot.lane.b32.xlu0 %v1651, 126
        %v1840 = vpop.permute.xlu0 %1839
        %1841 = vrot.lane.b32.xlu0 %v1646, 126
        %v1842 = vpop.permute.xlu0 %1841
        %1843 = vrot.lane.b32.xlu0 %v1648, 126
        %v1844 = vpop.permute.xlu0 %1843
        %1845 = vrot.lane.b32.xlu0 %v1650, 126
        %v1846 = vpop.permute.xlu0 %1845
        %1847 = vrot.lane.b32.xlu0 %v1652, 126
        %v1848 = vpop.permute.xlu0 %1847
        %v1849 = vsel %vm547, %v1834, %v1842
        %v1850 = vsel %vm547, %v1836, %v1844
        %v1851 = vsel %vm547, %v1838, %v1846
        %v1852 = vsel %vm547, %v1840, %v1848
        %v1853 = vsel %vm547, %v1842, %v1834
        %v1854 = vsel %vm547, %v1844, %v1836
        %v1855 = vsel %vm547, %v1846, %v1838
        %v1856 = vsel %vm547, %v1848, %v1840
        %1857 = vrot.lane.b32.xlu0 %v1645, 98
        %v1858 = vpop.permute.xlu0 %1857
        %1859 = vrot.lane.b32.xlu0 %v1647, 98
        %v1860 = vpop.permute.xlu0 %1859
        %1861 = vrot.lane.b32.xlu0 %v1649, 98
        %v1862 = vpop.permute.xlu0 %1861
        %1863 = vrot.lane.b32.xlu0 %v1651, 98
        %v1864 = vpop.permute.xlu0 %1863
        %1865 = vrot.lane.b32.xlu0 %v1646, 98
        %v1866 = vpop.permute.xlu0 %1865
        %1867 = vrot.lane.b32.xlu0 %v1648, 98
        %v1868 = vpop.permute.xlu0 %1867
        %1869 = vrot.lane.b32.xlu0 %v1650, 98
        %v1870 = vpop.permute.xlu0 %1869
        %1871 = vrot.lane.b32.xlu0 %v1652, 98
        %v1872 = vpop.permute.xlu0 %1871
        %v1873 = vsel %vm589, %v1858, %v1866
        %v1874 = vsel %vm589, %v1860, %v1868
        %v1875 = vsel %vm589, %v1862, %v1870
        %v1876 = vsel %vm589, %v1864, %v1872
        %v1877 = vsel %vm589, %v1866, %v1858
        %v1878 = vsel %vm589, %v1868, %v1860
        %v1879 = vsel %vm589, %v1870, %v1862
        %v1880 = vsel %vm589, %v1872, %v1864
        %1881 = vrot.lane.b32.xlu0 %v1645, 96
        %v1882 = vpop.permute.xlu0 %1881
        %1883 = vrot.lane.b32.xlu0 %v1647, 96
        %v1884 = vpop.permute.xlu0 %1883
        %1885 = vrot.lane.b32.xlu0 %v1649, 96
        %v1886 = vpop.permute.xlu0 %1885
        %1887 = vrot.lane.b32.xlu0 %v1651, 96
        %v1888 = vpop.permute.xlu0 %1887
        %1889 = vrot.lane.b32.xlu0 %v1646, 96
        %v1890 = vpop.permute.xlu0 %1889
        %1891 = vrot.lane.b32.xlu0 %v1648, 96
        %v1892 = vpop.permute.xlu0 %1891
        %1893 = vrot.lane.b32.xlu0 %v1650, 96
        %v1894 = vpop.permute.xlu0 %1893
        %1895 = vrot.lane.b32.xlu0 %v1652, 96
        %v1896 = vpop.permute.xlu0 %1895
        %v1897 = vsel %vm603, %v1882, %v1890
        %v1898 = vsel %vm603, %v1884, %v1892
        %v1899 = vsel %vm603, %v1886, %v1894
        %v1900 = vsel %vm603, %v1888, %v1896
        %v1901 = vsel %vm603, %v1890, %v1882
        %v1902 = vsel %vm603, %v1892, %v1884
        %v1903 = vsel %vm603, %v1894, %v1886
        %v1904 = vsel %vm603, %v1896, %v1888
        %1905 = vrot.lane.b32.xlu0 %v1645, 94
        %v1906 = vpop.permute.xlu0 %1905
        %1907 = vrot.lane.b32.xlu0 %v1647, 94
        %v1908 = vpop.permute.xlu0 %1907
        %1909 = vrot.lane.b32.xlu0 %v1649, 94
        %v1910 = vpop.permute.xlu0 %1909
        %1911 = vrot.lane.b32.xlu0 %v1651, 94
        %v1912 = vpop.permute.xlu0 %1911
        %1913 = vrot.lane.b32.xlu0 %v1646, 94
        %v1914 = vpop.permute.xlu0 %1913
        %1915 = vrot.lane.b32.xlu0 %v1648, 94
        %v1916 = vpop.permute.xlu0 %1915
        %1917 = vrot.lane.b32.xlu0 %v1650, 94
        %v1918 = vpop.permute.xlu0 %1917
        %1919 = vrot.lane.b32.xlu0 %v1652, 94
        %v1920 = vpop.permute.xlu0 %1919
        %v1921 = vsel %vm617, %v1906, %v1914
        %v1922 = vsel %vm617, %v1908, %v1916
        %v1923 = vsel %vm617, %v1910, %v1918
        %v1924 = vsel %vm617, %v1912, %v1920
        %v1925 = vsel %vm617, %v1914, %v1906
        %v1926 = vsel %vm617, %v1916, %v1908
        %v1927 = vsel %vm617, %v1918, %v1910
        %v1928 = vsel %vm617, %v1920, %v1912
        %v1929 = vmul.f32 %v1757, %v1653
        %v1930 = vmul.f32 %v1753, %v1654
        %v1931 = vmul.f32 %v1758, %v1655
        %v1932 = vmul.f32 %v1754, %v1656
        %v1933 = vmul.f32 %v1759, %v1657
        %v1934 = vmul.f32 %v1755, %v1658
        %v1935 = vmul.f32 %v1760, %v1659
        %v1936 = vmul.f32 %v1756, %v1660
        %v1937 = vmul.f32 %v1781, %v1661
        %v1938 = vmul.f32 %v1777, %v1662
        %v1939 = vmul.f32 %v1782, %v1663
        %v1940 = vmul.f32 %v1778, %v1664
        %v1941 = vmul.f32 %v1783, %v1665
        %v1942 = vmul.f32 %v1779, %v1666
        %v1943 = vmul.f32 %v1784, %v1667
        %v1944 = vmul.f32 %v1780, %v1668
        %v1945 = vmul.f32 %v1805, %v1669
        %v1946 = vmul.f32 %v1801, %v1670
        %v1947 = vmul.f32 %v1806, %v1671
        %v1948 = vmul.f32 %v1802, %v1672
        %v1949 = vmul.f32 %v1807, %v1673
        %v1950 = vmul.f32 %v1803, %v1674
        %v1951 = vmul.f32 %v1808, %v1675
        %v1952 = vmul.f32 %v1804, %v1676
        %v1953 = vmul.f32 %v1829, %v1677
        %v1954 = vmul.f32 %v1825, %v1678
        %v1955 = vmul.f32 %v1830, %v1679
        %v1956 = vmul.f32 %v1826, %v1680
        %v1957 = vmul.f32 %v1831, %v1681
        %v1958 = vmul.f32 %v1827, %v1682
        %v1959 = vmul.f32 %v1832, %v1683
        %v1960 = vmul.f32 %v1828, %v1684
        %v1961 = vmul.f32 %v1645, %v1685
        %v1962 = vmul.f32 %v1646, %v1686
        %v1963 = vmul.f32 %v1647, %v1687
        %v1964 = vmul.f32 %v1648, %v1688
        %v1965 = vmul.f32 %v1649, %v1689
        %v1966 = vmul.f32 %v1650, %v1690
        %v1967 = vmul.f32 %v1651, %v1691
        %v1968 = vmul.f32 %v1652, %v1692
        %v1969 = vmul.f32 %v1849, %v1693
        %v1970 = vmul.f32 %v1853, %v1694
        %v1971 = vmul.f32 %v1850, %v1695
        %v1972 = vmul.f32 %v1854, %v1696
        %v1973 = vmul.f32 %v1851, %v1697
        %v1974 = vmul.f32 %v1855, %v1698
        %v1975 = vmul.f32 %v1852, %v1699
        %v1976 = vmul.f32 %v1856, %v1700
        %v1977 = vmul.f32 %v1873, %v1701
        %v1978 = vmul.f32 %v1877, %v1702
        %v1979 = vmul.f32 %v1874, %v1703
        %v1980 = vmul.f32 %v1878, %v1704
        %v1981 = vmul.f32 %v1875, %v1705
        %v1982 = vmul.f32 %v1879, %v1706
        %v1983 = vmul.f32 %v1876, %v1707
        %v1984 = vmul.f32 %v1880, %v1708
        %v1985 = vmul.f32 %v1897, %v1709
        %v1986 = vmul.f32 %v1901, %v1710
        %v1987 = vmul.f32 %v1898, %v1711
        %v1988 = vmul.f32 %v1902, %v1712
        %v1989 = vmul.f32 %v1899, %v1713
        %v1990 = vmul.f32 %v1903, %v1714
        %v1991 = vmul.f32 %v1900, %v1715
        %v1992 = vmul.f32 %v1904, %v1716
        %v1993 = vmul.f32 %v1921, %v1717
        %v1994 = vmul.f32 %v1925, %v1718
        %v1995 = vmul.f32 %v1922, %v1719
        %v1996 = vmul.f32 %v1926, %v1720
        %v1997 = vmul.f32 %v1923, %v1721
        %v1998 = vmul.f32 %v1927, %v1722
        %v1999 = vmul.f32 %v1924, %v1723
        %v2000 = vmul.f32 %v1928, %v1724
        %s2001 = scalar_lea.vmem %s8, 128
        %v2002 = vld [vmem:[%s2001] sm:$0xff]
        %v2003 = vld [vmem:[%s2001 + $0x8] sm:$0xff]
        %v2004 = vld [vmem:[%s2001 + $0x10] sm:$0xff]
        %v2005 = vld [vmem:[%s2001 + $0x18] sm:$0xff]
        %2007 = vset.pattern.permute.xlu0 0
        %2008 = vperm.xlu0 %2007, %v2002
        %v2009 = vpop.permute.xlu0 %2008
        %2012 = vset.pattern.permute.xlu0 0
        %2013 = vperm.xlu0 %2012, %v2003
        %v2014 = vpop.permute.xlu0 %2013
        %2017 = vset.pattern.permute.xlu0 0
        %2018 = vperm.xlu0 %2017, %v2004
        %v2019 = vpop.permute.xlu0 %2018
        %2022 = vset.pattern.permute.xlu0 0
        %2023 = vperm.xlu0 %2022, %v2005
        %v2024 = vpop.permute.xlu0 %2023
        %v2027 = vsel %vm1177, %v1727, 0
        %v2030 = vsel %vm1177, %v1730, 0
        %v2033 = vsel %vm1177, %v1733, 0
        %v2036 = vsel %vm1177, %v1736, 0
        %2038 = vmatprep.subr.mxu0 %v1930
        %2039 = vmatpush1.msra.mxu0 %v1929
        %2040 = vmatprep.subr.mxu0 %v1932
        %2041 = vmatpush1.msra.mxu0 %v1931
        %2042 = vmatprep.subr.mxu0 %v1934
        %2043 = vmatpush1.msra.mxu0 %v1933
        %2044 = vmatprep.subr.mxu0 %v1936
        %2045 = vmatpush1.msra.mxu0 %v1935
        %2046 = vmatprep.subr.mxu0 %v1938
        %2047 = vmatpush1.msra.mxu0 %v1937
        %2048 = vmatprep.subr.mxu0 %v1940
        %2049 = vmatpush1.msra.mxu0 %v1939
        %2050 = vmatprep.subr.mxu0 %v1942
        %2051 = vmatpush1.msra.mxu0 %v1941
        %2052 = vmatprep.subr.mxu0 %v1944
        %2053 = vmatpush1.msra.mxu0 %v1943
        %2054 = vmatprep.subr.mxu0 %v1946
        %2055 = vmatpush1.msra.mxu0 %v1945
        %2056 = vmatprep.subr.mxu0 %v1948
        %2057 = vmatpush1.msra.mxu0 %v1947
        %2058 = vmatprep.subr.mxu0 %v1950
        %2059 = vmatpush1.msra.mxu0 %v1949
        %2060 = vmatprep.subr.mxu0 %v1952
        %2061 = vmatpush1.msra.mxu0 %v1951
        %2062 = vmatprep.subr.mxu0 %v1954
        %2063 = vmatpush1.msra.mxu0 %v1953
        %2064 = vmatprep.subr.mxu0 %v1956
        %2065 = vmatpush1.msra.mxu0 %v1955
        %2066 = vmatprep.subr.mxu0 %v1958
        %2067 = vmatpush1.msra.mxu0 %v1957
        %2068 = vmatprep.subr.mxu0 %v1960
        %2069 = vmatpush1.msra.mxu0 %v1959
        %2070 = vmatprep.subr.mxu0 %v1962
        %2071 = vmatpush1.msra.mxu0 %v1961
        %2072 = vmatprep.subr.mxu0 %v1964
        %2073 = vmatpush1.msra.mxu0 %v1963
        %2074 = vmatprep.subr.mxu0 %v1966
        %2075 = vmatpush1.msra.mxu0 %v1965
        %2076 = vmatprep.subr.mxu0 %v1968
        %2077 = vmatpush1.msra.mxu0 %v1967
        %2078 = vmatprep.subr.mxu0 %v1970
        %2079 = vmatpush1.msra.mxu0 %v1969
        %2080 = vmatprep.subr.mxu0 %v1972
        %2081 = vmatpush1.msra.mxu0 %v1971
        %2082 = vmatprep.subr.mxu0 %v1974
        %2083 = vmatpush1.msra.mxu0 %v1973
        %2084 = vmatprep.subr.mxu0 %v1976
        %2085 = vmatpush1.msra.mxu0 %v1975
        %2086 = vmatprep.subr.mxu0 %v1978
        %2087 = vmatpush1.msra.mxu0 %v1977
        %2088 = vmatprep.subr.mxu0 %v1980
        %2089 = vmatpush1.msra.mxu0 %v1979
        %2090 = vmatprep.subr.mxu0 %v1982
        %2091 = vmatpush1.msra.mxu0 %v1981
        %2092 = vmatprep.subr.mxu0 %v1984
        %2093 = vmatpush1.msra.mxu0 %v1983
        %2094 = vmatprep.subr.mxu0 %v1986
        %2095 = vmatpush1.msra.mxu0 %v1985
        %2096 = vmatprep.subr.mxu0 %v1988
        %2097 = vmatpush1.msra.mxu0 %v1987
        %2098 = vmatprep.subr.mxu0 %v1990
        %2099 = vmatpush1.msra.mxu0 %v1989
        %2100 = vmatprep.subr.mxu0 %v1992
        %2101 = vmatpush1.msra.mxu0 %v1991
        %2102 = vmatprep.mubr.f32.mxu0 %v1726
        %2103 = vmatmul.mubr.f32.gmra.mrb[0].mxu0 %v1725
        %v2104 = vpop.f32.mrb[0].mxu0
        %v2105 = vadd.f32 %v2009, %v2104
        %v2106 = vpop.f32.mrb[0].mxu0
        %v2107 = vadd.f32 %v2009, %v2106
        %2108 = vmatprep.mubr.f32.mxu0 %v1729
        %2109 = vmatmul.mubr.f32.gmra.mrb[0].mxu0 %v1728
        %v2110 = vpop.f32.mrb[0].mxu0
        %v2111 = vadd.f32 %v2014, %v2110
        %v2112 = vpop.f32.mrb[0].mxu0
        %v2113 = vadd.f32 %v2014, %v2112
        %2114 = vmatprep.mubr.f32.mxu0 %v1732
        %2115 = vmatmul.mubr.f32.gmra.mrb[0].mxu0 %v1731
        %v2116 = vpop.f32.mrb[0].mxu0
        %v2117 = vadd.f32 %v2019, %v2116
        %v2118 = vpop.f32.mrb[0].mxu0
        %v2119 = vadd.f32 %v2019, %v2118
        %2120 = vmatprep.mubr.f32.mxu0 %v1735
        %2121 = vmatmul.mubr.f32.gmra.mrb[0].mxu0 %v1734
        %v2122 = vpop.f32.mrb[0].mxu0
        %v2123 = vadd.f32 %v2024, %v2122
        %v2124 = vpop.f32.mrb[0].mxu0
        %v2125 = vadd.f32 %v2024, %v2124
        %2126 = vdwg.mxu0
        %2127 = vmatprep.subr.mxu0 %v1994
        %2128 = vmatpush1.msra.mxu0 %v1993
        %2129 = vmatprep.subr.mxu0 %v1996
        %2130 = vmatpush1.msra.mxu0 %v1995
        %2131 = vmatprep.subr.mxu0 %v1998
        %2132 = vmatpush1.msra.mxu0 %v1997
        %2133 = vmatprep.subr.mxu0 %v2000
        %2134 = vmatpush1.msra.mxu0 %v1999
        %2135 = vmatprep.subr.mxu0 0.0
        %2136 = vmatpush1.msra.mxu0 0.0
        %2137 = vmatprep.subr.mxu0 0.0
        %2138 = vmatpush1.msra.mxu0 0.0
        %2139 = vmatprep.subr.mxu0 0.0
        %2140 = vmatpush1.msra.mxu0 0.0
        %2141 = vmatprep.subr.mxu0 0.0
        %2142 = vmatpush1.msra.mxu0 0.0
        %2143 = vmatprep.subr.mxu0 0.0
        %2144 = vmatpush1.msra.mxu0 0.0
        %2145 = vmatprep.subr.mxu0 0.0
        %2146 = vmatpush1.msra.mxu0 0.0
        %2147 = vmatprep.subr.mxu0 0.0
        %2148 = vmatpush1.msra.mxu0 0.0
        %2149 = vmatprep.subr.mxu0 0.0
        %2150 = vmatpush1.msra.mxu0 0.0
        %2151 = vmatprep.subr.mxu0 0.0
        %2152 = vmatpush1.msra.mxu0 0.0
        %2153 = vmatprep.subr.mxu0 0.0
        %2154 = vmatpush1.msra.mxu0 0.0
        %2155 = vmatprep.subr.mxu0 0.0
        %2156 = vmatpush1.msra.mxu0 0.0
        %2157 = vmatprep.subr.mxu0 0.0
        %2158 = vmatpush1.msra.mxu0 0.0
        %2159 = vmatprep.subr.mxu0 0.0
        %2160 = vmatpush1.msra.mxu0 0.0
        %2161 = vmatprep.subr.mxu0 0.0
        %2162 = vmatpush1.msra.mxu0 0.0
        %2163 = vmatprep.subr.mxu0 0.0
        %2164 = vmatpush1.msra.mxu0 0.0
        %2165 = vmatprep.subr.mxu0 0.0
        %2166 = vmatpush1.msra.mxu0 0.0
        %2167 = vmatprep.subr.mxu0 0.0
        %2168 = vmatpush1.msra.mxu0 0.0
        %2169 = vmatprep.subr.mxu0 0.0
        %2170 = vmatpush1.msra.mxu0 0.0
        %2171 = vmatprep.subr.mxu0 0.0
        %2172 = vmatpush1.msra.mxu0 0.0
        %2173 = vmatprep.subr.mxu0 0.0
        %2174 = vmatpush1.msra.mxu0 0.0
        %2175 = vmatprep.subr.mxu0 0.0
        %2176 = vmatpush1.msra.mxu0 0.0
        %2177 = vmatprep.subr.mxu0 0.0
        %2178 = vmatpush1.msra.mxu0 0.0
        %2179 = vmatprep.subr.mxu0 0.0
        %2180 = vmatpush1.msra.mxu0 0.0
        %2181 = vmatprep.subr.mxu0 0.0
        %2182 = vmatpush1.msra.mxu0 0.0
        %2183 = vmatprep.subr.mxu0 0.0
        %2184 = vmatpush1.msra.mxu0 0.0
        %2185 = vmatprep.subr.mxu0 0.0
        %2186 = vmatpush1.msra.mxu0 0.0
        %2187 = vmatprep.subr.mxu0 0.0
        %2188 = vmatpush1.msra.mxu0 0.0
        %2189 = vmatprep.subr.mxu0 0.0
        %2190 = vmatpush1.msra.mxu0 0.0
        %2191 = vmatprep.mubr.f32.mxu0 0.0
        %2192 = vmatmul.mubr.f32.gmra.mrb[0].mxu0 %v2027
        %v2193 = vpop.f32.mrb[0].mxu0
        %v2194 = vadd.f32 %v2105, %v2193
        %v2195 = vpop.f32.mrb[0].mxu0
        %v2196 = vadd.f32 %v2107, %v2195
        %2197 = vmatprep.mubr.f32.mxu0 0.0
        %2198 = vmatmul.mubr.f32.gmra.mrb[0].mxu0 %v2030
        %v2199 = vpop.f32.mrb[0].mxu0
        %v2200 = vadd.f32 %v2111, %v2199
        %v2201 = vpop.f32.mrb[0].mxu0
        %v2202 = vadd.f32 %v2113, %v2201
        %2203 = vmatprep.mubr.f32.mxu0 0.0
        %2204 = vmatmul.mubr.f32.gmra.mrb[0].mxu0 %v2033
        %v2205 = vpop.f32.mrb[0].mxu0
        %v2206 = vadd.f32 %v2117, %v2205
        %v2207 = vpop.f32.mrb[0].mxu0
        %v2208 = vadd.f32 %v2119, %v2207
        %2209 = vmatprep.mubr.f32.mxu0 0.0
        %2210 = vmatmul.mubr.f32.gmra.mrb[0].mxu0 %v2036
        %v2211 = vpop.f32.mrb[0].mxu0
        %v2212 = vadd.f32 %v2123, %v2211
        %v2213 = vpop.f32.mrb[0].mxu0
        %v2214 = vadd.f32 %v2125, %v2213
        %2215 = vdwg.mxu0
        %v2216 = vmax.f32 %v2194, 0.0
        %v2217 = vmax.f32 %v2196, 0.0
        %v2218 = vmax.f32 %v2200, 0.0
        %v2219 = vmax.f32 %v2202, 0.0
        %v2220 = vmax.f32 %v2206, 0.0
        %v2221 = vmax.f32 %v2208, 0.0
        %v2222 = vmax.f32 %v2212, 0.0
        %v2223 = vmax.f32 %v2214, 0.0
        %s2224 = scalar_lea.vmem [#allocation7], 64
        %v2225 = vld [vmem:[%s2224] sm:$0xff]
        %v2226 = vld [vmem:[%s2224 + $0x8] sm:$0xff]
        %v2227 = vld [vmem:[%s2224 + $0x10] sm:$0xff]
        %v2228 = vld [vmem:[%s2224 + $0x18] sm:$0xff]
        %s2229 = scalar_lea.vmem %s8, 160
        %v2230 = vld [vmem:[%s2229] sm:$0xff]
        %v2231 = vld [vmem:[%s2229 + $0x8] sm:$0xff]
        %v2232 = vld [vmem:[%s2229 + $0x10] sm:$0xff]
        %v2233 = vld [vmem:[%s2229 + $0x18] sm:$0xff]
        %2235 = vset.pattern.permute.xlu0 0
        %2236 = vperm.xlu0 %2235, %v2230
        %v2237 = vpop.permute.xlu0 %2236
        %2240 = vset.pattern.permute.xlu0 0
        %2241 = vperm.xlu0 %2240, %v2231
        %v2242 = vpop.permute.xlu0 %2241
        %2245 = vset.pattern.permute.xlu0 0
        %2246 = vperm.xlu0 %2245, %v2232
        %v2247 = vpop.permute.xlu0 %2246
        %2250 = vset.pattern.permute.xlu0 0
        %2251 = vperm.xlu0 %2250, %v2233
        %v2252 = vpop.permute.xlu0 %2251
        %v2255 = vsel %vm1177, %v2225, 0
        %v2258 = vsel %vm1177, %v2226, 0
        %v2261 = vsel %vm1177, %v2227, 0
        %v2264 = vsel %vm1177, %v2228, 0
        %2266 = vmatprep.subr.mxu0 %v2217
        %2267 = vmatpush1.msra.mxu0 %v2216
        %2268 = vmatprep.subr.mxu0 %v2219
        %2269 = vmatpush1.msra.mxu0 %v2218
        %2270 = vmatprep.subr.mxu0 %v2221
        %2271 = vmatpush1.msra.mxu0 %v2220
        %2272 = vmatprep.subr.mxu0 %v2223
        %2273 = vmatpush1.msra.mxu0 %v2222
        %2274 = vmatprep.subr.mxu0 0.0
        %2275 = vmatpush1.msra.mxu0 0.0
        %2276 = vmatprep.subr.mxu0 0.0
        %2277 = vmatpush1.msra.mxu0 0.0
        %2278 = vmatprep.subr.mxu0 0.0
        %2279 = vmatpush1.msra.mxu0 0.0
        %2280 = vmatprep.subr.mxu0 0.0
        %2281 = vmatpush1.msra.mxu0 0.0
        %2282 = vmatprep.subr.mxu0 0.0
        %2283 = vmatpush1.msra.mxu0 0.0
        %2284 = vmatprep.subr.mxu0 0.0
        %2285 = vmatpush1.msra.mxu0 0.0
        %2286 = vmatprep.subr.mxu0 0.0
        %2287 = vmatpush1.msra.mxu0 0.0
        %2288 = vmatprep.subr.mxu0 0.0
        %2289 = vmatpush1.msra.mxu0 0.0
        %2290 = vmatprep.subr.mxu0 0.0
        %2291 = vmatpush1.msra.mxu0 0.0
        %2292 = vmatprep.subr.mxu0 0.0
        %2293 = vmatpush1.msra.mxu0 0.0
        %2294 = vmatprep.subr.mxu0 0.0
        %2295 = vmatpush1.msra.mxu0 0.0
        %2296 = vmatprep.subr.mxu0 0.0
        %2297 = vmatpush1.msra.mxu0 0.0
        %2298 = vmatprep.subr.mxu0 0.0
        %2299 = vmatpush1.msra.mxu0 0.0
        %2300 = vmatprep.subr.mxu0 0.0
        %2301 = vmatpush1.msra.mxu0 0.0
        %2302 = vmatprep.subr.mxu0 0.0
        %2303 = vmatpush1.msra.mxu0 0.0
        %2304 = vmatprep.subr.mxu0 0.0
        %2305 = vmatpush1.msra.mxu0 0.0
        %2306 = vmatprep.subr.mxu0 0.0
        %2307 = vmatpush1.msra.mxu0 0.0
        %2308 = vmatprep.subr.mxu0 0.0
        %2309 = vmatpush1.msra.mxu0 0.0
        %2310 = vmatprep.subr.mxu0 0.0
        %2311 = vmatpush1.msra.mxu0 0.0
        %2312 = vmatprep.subr.mxu0 0.0
        %2313 = vmatpush1.msra.mxu0 0.0
        %2314 = vmatprep.subr.mxu0 0.0
        %2315 = vmatpush1.msra.mxu0 0.0
        %2316 = vmatprep.subr.mxu0 0.0
        %2317 = vmatpush1.msra.mxu0 0.0
        %2318 = vmatprep.subr.mxu0 0.0
        %2319 = vmatpush1.msra.mxu0 0.0
        %2320 = vmatprep.subr.mxu0 0.0
        %2321 = vmatpush1.msra.mxu0 0.0
        %2322 = vmatprep.subr.mxu0 0.0
        %2323 = vmatpush1.msra.mxu0 0.0
        %2324 = vmatprep.subr.mxu0 0.0
        %2325 = vmatpush1.msra.mxu0 0.0
        %2326 = vmatprep.subr.mxu0 0.0
        %2327 = vmatpush1.msra.mxu0 0.0
        %2328 = vmatprep.subr.mxu0 0.0
        %2329 = vmatpush1.msra.mxu0 0.0
        %2330 = vmatprep.mubr.f32.mxu0 0.0
        %2331 = vmatmul.mubr.f32.gmra.mrb[0].mxu0 %v2255
        %v2332 = vpop.f32.mrb[0].mxu0
        %v2333 = vadd.f32 %v2237, %v2332
        %v2334 = vpop.f32.mrb[0].mxu0
        %v2335 = vadd.f32 %v2237, %v2334
        %2336 = vmatprep.mubr.f32.mxu0 0.0
        %2337 = vmatmul.mubr.f32.gmra.mrb[0].mxu0 %v2258
        %v2338 = vpop.f32.mrb[0].mxu0
        %v2339 = vadd.f32 %v2242, %v2338
        %v2340 = vpop.f32.mrb[0].mxu0
        %v2341 = vadd.f32 %v2242, %v2340
        %2342 = vmatprep.mubr.f32.mxu0 0.0
        %2343 = vmatmul.mubr.f32.gmra.mrb[0].mxu0 %v2261
        %v2344 = vpop.f32.mrb[0].mxu0
        %v2345 = vadd.f32 %v2247, %v2344
        %v2346 = vpop.f32.mrb[0].mxu0
        %v2347 = vadd.f32 %v2247, %v2346
        %2348 = vmatprep.mubr.f32.mxu0 0.0
        %2349 = vmatmul.mubr.f32.gmra.mrb[0].mxu0 %v2264
        %v2350 = vpop.f32.mrb[0].mxu0
        %v2351 = vadd.f32 %v2252, %v2350
        %v2352 = vpop.f32.mrb[0].mxu0
        %v2353 = vadd.f32 %v2252, %v2352
        %2354 = vdwg.mxu0
        %v2355 = vadd.f32 %v1645, %v2333
        %v2356 = vadd.f32 %v1646, %v2335
        %v2357 = vadd.f32 %v1647, %v2339
        %v2358 = vadd.f32 %v1648, %v2341
        %v2359 = vadd.f32 %v1649, %v2345
        %v2360 = vadd.f32 %v1650, %v2347
        %v2361 = vadd.f32 %v1651, %v2351
        %v2362 = vadd.f32 %v1652, %v2353
        %s2363 = scalar_lea.vmem [#allocation4], 96
        %v2364 = vld [vmem:[%s2363] sm:$0xff]
        %v2365 = vld [vmem:[%s2363 + $0x8] sm:$0xff]
        %v2366 = vld [vmem:[%s2363 + $0x10] sm:$0xff]
        %v2367 = vld [vmem:[%s2363 + $0x18] sm:$0xff]
        %v2368 = vld [vmem:[%s2363 + $0x20] sm:$0xff]
        %v2369 = vld [vmem:[%s2363 + $0x28] sm:$0xff]
        %v2370 = vld [vmem:[%s2363 + $0x30] sm:$0xff]
        %v2371 = vld [vmem:[%s2363 + $0x38] sm:$0xff]
        %v2372 = vld [vmem:[%s2363 + $0x40] sm:$0xff]
        %v2373 = vld [vmem:[%s2363 + $0x48] sm:$0xff]
        %v2374 = vld [vmem:[%s2363 + $0x50] sm:$0xff]
        %v2375 = vld [vmem:[%s2363 + $0x58] sm:$0xff]
        %2376 = vrot.lane.b32.xlu0 %v2355, 34
        %v2377 = vpop.permute.xlu0 %2376
        %2378 = vrot.lane.b32.xlu0 %v2357, 34
        %v2379 = vpop.permute.xlu0 %2378
        %2380 = vrot.lane.b32.xlu0 %v2359, 34
        %v2381 = vpop.permute.xlu0 %2380
        %2382 = vrot.lane.b32.xlu0 %v2361, 34
        %v2383 = vpop.permute.xlu0 %2382
        %2384 = vrot.lane.b32.xlu0 %v2356, 34
        %v2385 = vpop.permute.xlu0 %2384
        %2386 = vrot.lane.b32.xlu0 %v2358, 34
        %v2387 = vpop.permute.xlu0 %2386
        %2388 = vrot.lane.b32.xlu0 %v2360, 34
        %v2389 = vpop.permute.xlu0 %2388
        %2390 = vrot.lane.b32.xlu0 %v2362, 34
        %v2391 = vpop.permute.xlu0 %2390
        %v2392 = vsel %vm456, %v2377, %v2385
        %v2393 = vsel %vm456, %v2379, %v2387
        %v2394 = vsel %vm456, %v2381, %v2389
        %v2395 = vsel %vm456, %v2383, %v2391
        %v2396 = vsel %vm456, %v2385, %v2377
        %v2397 = vsel %vm456, %v2387, %v2379
        %v2398 = vsel %vm456, %v2389, %v2381
        %v2399 = vsel %vm456, %v2391, %v2383
        %2400 = vrot.lane.b32.xlu0 %v2355, 32
        %v2401 = vpop.permute.xlu0 %2400
        %2402 = vrot.lane.b32.xlu0 %v2357, 32
        %v2403 = vpop.permute.xlu0 %2402
        %2404 = vrot.lane.b32.xlu0 %v2359, 32
        %v2405 = vpop.permute.xlu0 %2404
        %2406 = vrot.lane.b32.xlu0 %v2361, 32
        %v2407 = vpop.permute.xlu0 %2406
        %2408 = vrot.lane.b32.xlu0 %v2356, 32
        %v2409 = vpop.permute.xlu0 %2408
        %2410 = vrot.lane.b32.xlu0 %v2358, 32
        %v2411 = vpop.permute.xlu0 %2410
        %2412 = vrot.lane.b32.xlu0 %v2360, 32
        %v2413 = vpop.permute.xlu0 %2412
        %2414 = vrot.lane.b32.xlu0 %v2362, 32
        %v2415 = vpop.permute.xlu0 %2414
        %v2416 = vsel %vm470, %v2401, %v2409
        %v2417 = vsel %vm470, %v2403, %v2411
        %v2418 = vsel %vm470, %v2405, %v2413
        %v2419 = vsel %vm470, %v2407, %v2415
        %v2420 = vsel %vm470, %v2409, %v2401
        %v2421 = vsel %vm470, %v2411, %v2403
        %v2422 = vsel %vm470, %v2413, %v2405
        %v2423 = vsel %vm470, %v2415, %v2407
        %2424 = vrot.lane.b32.xlu0 %v2355, 30
        %v2425 = vpop.permute.xlu0 %2424
        %2426 = vrot.lane.b32.xlu0 %v2357, 30
        %v2427 = vpop.permute.xlu0 %2426
        %2428 = vrot.lane.b32.xlu0 %v2359, 30
        %v2429 = vpop.permute.xlu0 %2428
        %2430 = vrot.lane.b32.xlu0 %v2361, 30
        %v2431 = vpop.permute.xlu0 %2430
        %2432 = vrot.lane.b32.xlu0 %v2356, 30
        %v2433 = vpop.permute.xlu0 %2432
        %2434 = vrot.lane.b32.xlu0 %v2358, 30
        %v2435 = vpop.permute.xlu0 %2434
        %2436 = vrot.lane.b32.xlu0 %v2360, 30
        %v2437 = vpop.permute.xlu0 %2436
        %2438 = vrot.lane.b32.xlu0 %v2362, 30
        %v2439 = vpop.permute.xlu0 %2438
        %v2440 = vsel %vm484, %v2425, %v2433
        %v2441 = vsel %vm484, %v2427, %v2435
        %v2442 = vsel %vm484, %v2429, %v2437
        %v2443 = vsel %vm484, %v2431, %v2439
        %v2444 = vsel %vm484, %v2433, %v2425
        %v2445 = vsel %vm484, %v2435, %v2427
        %v2446 = vsel %vm484, %v2437, %v2429
        %v2447 = vsel %vm484, %v2439, %v2431
        %2448 = vrot.lane.b32.xlu0 %v2355, 2
        %v2449 = vpop.permute.xlu0 %2448
        %2450 = vrot.lane.b32.xlu0 %v2357, 2
        %v2451 = vpop.permute.xlu0 %2450
        %2452 = vrot.lane.b32.xlu0 %v2359, 2
        %v2453 = vpop.permute.xlu0 %2452
        %2454 = vrot.lane.b32.xlu0 %v2361, 2
        %v2455 = vpop.permute.xlu0 %2454
        %2456 = vrot.lane.b32.xlu0 %v2356, 2
        %v2457 = vpop.permute.xlu0 %2456
        %2458 = vrot.lane.b32.xlu0 %v2358, 2
        %v2459 = vpop.permute.xlu0 %2458
        %2460 = vrot.lane.b32.xlu0 %v2360, 2
        %v2461 = vpop.permute.xlu0 %2460
        %2462 = vrot.lane.b32.xlu0 %v2362, 2
        %v2463 = vpop.permute.xlu0 %2462
        %v2464 = vsel %vm526, %v2449, %v2457
        %v2465 = vsel %vm526, %v2451, %v2459
        %v2466 = vsel %vm526, %v2453, %v2461
        %v2467 = vsel %vm526, %v2455, %v2463
        %v2468 = vsel %vm526, %v2457, %v2449
        %v2469 = vsel %vm526, %v2459, %v2451
        %v2470 = vsel %vm526, %v2461, %v2453
        %v2471 = vsel %vm526, %v2463, %v2455
        %2472 = vrot.lane.b32.xlu0 %v2355, 126
        %v2473 = vpop.permute.xlu0 %2472
        %2474 = vrot.lane.b32.xlu0 %v2357, 126
        %v2475 = vpop.permute.xlu0 %2474
        %2476 = vrot.lane.b32.xlu0 %v2359, 126
        %v2477 = vpop.permute.xlu0 %2476
        %2478 = vrot.lane.b32.xlu0 %v2361, 126
        %v2479 = vpop.permute.xlu0 %2478
        %2480 = vrot.lane.b32.xlu0 %v2356, 126
        %v2481 = vpop.permute.xlu0 %2480
        %2482 = vrot.lane.b32.xlu0 %v2358, 126
        %v2483 = vpop.permute.xlu0 %2482
        %2484 = vrot.lane.b32.xlu0 %v2360, 126
        %v2485 = vpop.permute.xlu0 %2484
        %2486 = vrot.lane.b32.xlu0 %v2362, 126
        %v2487 = vpop.permute.xlu0 %2486
        %v2488 = vsel %vm547, %v2473, %v2481
        %v2489 = vsel %vm547, %v2475, %v2483
        %v2490 = vsel %vm547, %v2477, %v2485
        %v2491 = vsel %vm547, %v2479, %v2487
        %v2492 = vsel %vm547, %v2481, %v2473
        %v2493 = vsel %vm547, %v2483, %v2475
        %v2494 = vsel %vm547, %v2485, %v2477
        %v2495 = vsel %vm547, %v2487, %v2479
        %2496 = vrot.lane.b32.xlu0 %v2355, 98
        %v2497 = vpop.permute.xlu0 %2496
        %2498 = vrot.lane.b32.xlu0 %v2357, 98
        %v2499 = vpop.permute.xlu0 %2498
        %2500 = vrot.lane.b32.xlu0 %v2359, 98
        %v2501 = vpop.permute.xlu0 %2500
        %2502 = vrot.lane.b32.xlu0 %v2361, 98
        %v2503 = vpop.permute.xlu0 %2502
        %2504 = vrot.lane.b32.xlu0 %v2356, 98
        %v2505 = vpop.permute.xlu0 %2504
        %2506 = vrot.lane.b32.xlu0 %v2358, 98
        %v2507 = vpop.permute.xlu0 %2506
        %2508 = vrot.lane.b32.xlu0 %v2360, 98
        %v2509 = vpop.permute.xlu0 %2508
        %2510 = vrot.lane.b32.xlu0 %v2362, 98
        %v2511 = vpop.permute.xlu0 %2510
        %v2512 = vsel %vm589, %v2497, %v2505
        %v2513 = vsel %vm589, %v2499, %v2507
        %v2514 = vsel %vm589, %v2501, %v2509
        %v2515 = vsel %vm589, %v2503, %v2511
        %v2516 = vsel %vm589, %v2505, %v2497
        %v2517 = vsel %vm589, %v2507, %v2499
        %v2518 = vsel %vm589, %v2509, %v2501
        %v2519 = vsel %vm589, %v2511, %v2503
        %2520 = vrot.lane.b32.xlu0 %v2355, 96
        %v2521 = vpop.permute.xlu0 %2520
        %2522 = vrot.lane.b32.xlu0 %v2357, 96
        %v2523 = vpop.permute.xlu0 %2522
        %2524 = vrot.lane.b32.xlu0 %v2359, 96
        %v2525 = vpop.permute.xlu0 %2524
        %2526 = vrot.lane.b32.xlu0 %v2361, 96
        %v2527 = vpop.permute.xlu0 %2526
        %2528 = vrot.lane.b32.xlu0 %v2356, 96
        %v2529 = vpop.permute.xlu0 %2528
        %2530 = vrot.lane.b32.xlu0 %v2358, 96
        %v2531 = vpop.permute.xlu0 %2530
        %2532 = vrot.lane.b32.xlu0 %v2360, 96
        %v2533 = vpop.permute.xlu0 %2532
        %2534 = vrot.lane.b32.xlu0 %v2362, 96
        %v2535 = vpop.permute.xlu0 %2534
        %v2536 = vsel %vm603, %v2521, %v2529
        %v2537 = vsel %vm603, %v2523, %v2531
        %v2538 = vsel %vm603, %v2525, %v2533
        %v2539 = vsel %vm603, %v2527, %v2535
        %v2540 = vsel %vm603, %v2529, %v2521
        %v2541 = vsel %vm603, %v2531, %v2523
        %v2542 = vsel %vm603, %v2533, %v2525
        %v2543 = vsel %vm603, %v2535, %v2527
        %2544 = vrot.lane.b32.xlu0 %v2355, 94
        %v2545 = vpop.permute.xlu0 %2544
        %2546 = vrot.lane.b32.xlu0 %v2357, 94
        %v2547 = vpop.permute.xlu0 %2546
        %2548 = vrot.lane.b32.xlu0 %v2359, 94
        %v2549 = vpop.permute.xlu0 %2548
        %2550 = vrot.lane.b32.xlu0 %v2361, 94
        %v2551 = vpop.permute.xlu0 %2550
        %2552 = vrot.lane.b32.xlu0 %v2356, 94
        %v2553 = vpop.permute.xlu0 %2552
        %2554 = vrot.lane.b32.xlu0 %v2358, 94
        %v2555 = vpop.permute.xlu0 %2554
        %2556 = vrot.lane.b32.xlu0 %v2360, 94
        %v2557 = vpop.permute.xlu0 %2556
        %2558 = vrot.lane.b32.xlu0 %v2362, 94
        %v2559 = vpop.permute.xlu0 %2558
        %v2560 = vsel %vm617, %v2545, %v2553
        %v2561 = vsel %vm617, %v2547, %v2555
        %v2562 = vsel %vm617, %v2549, %v2557
        %v2563 = vsel %vm617, %v2551, %v2559
        %v2564 = vsel %vm617, %v2553, %v2545
        %v2565 = vsel %vm617, %v2555, %v2547
        %v2566 = vsel %vm617, %v2557, %v2549
        %v2567 = vsel %vm617, %v2559, %v2551
        %v2568 = vmul.f32 %v2396, %v1653
        %v2569 = vmul.f32 %v2392, %v1654
        %v2570 = vmul.f32 %v2397, %v1655
        %v2571 = vmul.f32 %v2393, %v1656
        %v2572 = vmul.f32 %v2398, %v1657
        %v2573 = vmul.f32 %v2394, %v1658
        %v2574 = vmul.f32 %v2399, %v1659
        %v2575 = vmul.f32 %v2395, %v1660
        %v2576 = vmul.f32 %v2420, %v1661
        %v2577 = vmul.f32 %v2416, %v1662
        %v2578 = vmul.f32 %v2421, %v1663
        %v2579 = vmul.f32 %v2417, %v1664
        %v2580 = vmul.f32 %v2422, %v1665
        %v2581 = vmul.f32 %v2418, %v1666
        %v2582 = vmul.f32 %v2423, %v1667
        %v2583 = vmul.f32 %v2419, %v1668
        %v2584 = vmul.f32 %v2444, %v1669
        %v2585 = vmul.f32 %v2440, %v1670
        %v2586 = vmul.f32 %v2445, %v1671
        %v2587 = vmul.f32 %v2441, %v1672
        %v2588 = vmul.f32 %v2446, %v1673
        %v2589 = vmul.f32 %v2442, %v1674
        %v2590 = vmul.f32 %v2447, %v1675
        %v2591 = vmul.f32 %v2443, %v1676
        %v2592 = vmul.f32 %v2468, %v1677
        %v2593 = vmul.f32 %v2464, %v1678
        %v2594 = vmul.f32 %v2469, %v1679
        %v2595 = vmul.f32 %v2465, %v1680
        %v2596 = vmul.f32 %v2470, %v1681
        %v2597 = vmul.f32 %v2466, %v1682
        %v2598 = vmul.f32 %v2471, %v1683
        %v2599 = vmul.f32 %v2467, %v1684
        %v2600 = vmul.f32 %v2355, %v1685
        %v2601 = vmul.f32 %v2356, %v1686
        %v2602 = vmul.f32 %v2357, %v1687
        %v2603 = vmul.f32 %v2358, %v1688
        %v2604 = vmul.f32 %v2359, %v1689
        %v2605 = vmul.f32 %v2360, %v1690
        %v2606 = vmul.f32 %v2361, %v1691
        %v2607 = vmul.f32 %v2362, %v1692
        %v2608 = vmul.f32 %v2488, %v1693
        %v2609 = vmul.f32 %v2492, %v1694
        %v2610 = vmul.f32 %v2489, %v1695
        %v2611 = vmul.f32 %v2493, %v1696
        %v2612 = vmul.f32 %v2490, %v1697
        %v2613 = vmul.f32 %v2494, %v1698
        %v2614 = vmul.f32 %v2491, %v1699
        %v2615 = vmul.f32 %v2495, %v1700
        %v2616 = vmul.f32 %v2512, %v1701
        %v2617 = vmul.f32 %v2516, %v1702
        %v2618 = vmul.f32 %v2513, %v1703
        %v2619 = vmul.f32 %v2517, %v1704
        %v2620 = vmul.f32 %v2514, %v1705
        %v2621 = vmul.f32 %v2518, %v1706
        %v2622 = vmul.f32 %v2515, %v1707
        %v2623 = vmul.f32 %v2519, %v1708
        %v2624 = vmul.f32 %v2536, %v1709
        %v2625 = vmul.f32 %v2540, %v1710
        %v2626 = vmul.f32 %v2537, %v1711
        %v2627 = vmul.f32 %v2541, %v1712
        %v2628 = vmul.f32 %v2538, %v1713
        %v2629 = vmul.f32 %v2542, %v1714
        %v2630 = vmul.f32 %v2539, %v1715
        %v2631 = vmul.f32 %v2543, %v1716
        %v2632 = vmul.f32 %v2560, %v1717
        %v2633 = vmul.f32 %v2564, %v1718
        %v2634 = vmul.f32 %v2561, %v1719
        %v2635 = vmul.f32 %v2565, %v1720
        %v2636 = vmul.f32 %v2562, %v1721
        %v2637 = vmul.f32 %v2566, %v1722
        %v2638 = vmul.f32 %v2563, %v1723
        %v2639 = vmul.f32 %v2567, %v1724
        %s2640 = scalar_lea.vmem %s8, 192
        %v2641 = vld [vmem:[%s2640] sm:$0xff]
        %v2642 = vld [vmem:[%s2640 + $0x8] sm:$0xff]
        %v2643 = vld [vmem:[%s2640 + $0x10] sm:$0xff]
        %v2644 = vld [vmem:[%s2640 + $0x18] sm:$0xff]
        %2646 = vset.pattern.permute.xlu0 0
        %2647 = vperm.xlu0 %2646, %v2641
        %v2648 = vpop.permute.xlu0 %2647
        %2651 = vset.pattern.permute.xlu0 0
        %2652 = vperm.xlu0 %2651, %v2642
        %v2653 = vpop.permute.xlu0 %2652
        %2656 = vset.pattern.permute.xlu0 0
        %2657 = vperm.xlu0 %2656, %v2643
        %v2658 = vpop.permute.xlu0 %2657
        %2661 = vset.pattern.permute.xlu0 0
        %2662 = vperm.xlu0 %2661, %v2644
        %v2663 = vpop.permute.xlu0 %2662
        %v2666 = vsel %vm1177, %v2366, 0
        %v2669 = vsel %vm1177, %v2369, 0
        %v2672 = vsel %vm1177, %v2372, 0
        %v2675 = vsel %vm1177, %v2375, 0
        %2677 = vmatprep.subr.mxu0 %v2569
        %2678 = vmatpush1.msra.mxu0 %v2568
        %2679 = vmatprep.subr.mxu0 %v2571
        %2680 = vmatpush1.msra.mxu0 %v2570
        %2681 = vmatprep.subr.mxu0 %v2573
        %2682 = vmatpush1.msra.mxu0 %v2572
        %2683 = vmatprep.subr.mxu0 %v2575
        %2684 = vmatpush1.msra.mxu0 %v2574
        %2685 = vmatprep.subr.mxu0 %v2577
        %2686 = vmatpush1.msra.mxu0 %v2576
        %2687 = vmatprep.subr.mxu0 %v2579
        %2688 = vmatpush1.msra.mxu0 %v2578
        %2689 = vmatprep.subr.mxu0 %v2581
        %2690 = vmatpush1.msra.mxu0 %v2580
        %2691 = vmatprep.subr.mxu0 %v2583
        %2692 = vmatpush1.msra.mxu0 %v2582
        %2693 = vmatprep.subr.mxu0 %v2585
        %2694 = vmatpush1.msra.mxu0 %v2584
        %2695 = vmatprep.subr.mxu0 %v2587
        %2696 = vmatpush1.msra.mxu0 %v2586
        %2697 = vmatprep.subr.mxu0 %v2589
        %2698 = vmatpush1.msra.mxu0 %v2588
        %2699 = vmatprep.subr.mxu0 %v2591
        %2700 = vmatpush1.msra.mxu0 %v2590
        %2701 = vmatprep.subr.mxu0 %v2593
        %2702 = vmatpush1.msra.mxu0 %v2592
        %2703 = vmatprep.subr.mxu0 %v2595
        %2704 = vmatpush1.msra.mxu0 %v2594
        %2705 = vmatprep.subr.mxu0 %v2597
        %2706 = vmatpush1.msra.mxu0 %v2596
        %2707 = vmatprep.subr.mxu0 %v2599
        %2708 = vmatpush1.msra.mxu0 %v2598
        %2709 = vmatprep.subr.mxu0 %v2601
        %2710 = vmatpush1.msra.mxu0 %v2600
        %2711 = vmatprep.subr.mxu0 %v2603
        %2712 = vmatpush1.msra.mxu0 %v2602
        %2713 = vmatprep.subr.mxu0 %v2605
        %2714 = vmatpush1.msra.mxu0 %v2604
        %2715 = vmatprep.subr.mxu0 %v2607
        %2716 = vmatpush1.msra.mxu0 %v2606
        %2717 = vmatprep.subr.mxu0 %v2609
        %2718 = vmatpush1.msra.mxu0 %v2608
        %2719 = vmatprep.subr.mxu0 %v2611
        %2720 = vmatpush1.msra.mxu0 %v2610
        %2721 = vmatprep.subr.mxu0 %v2613
        %2722 = vmatpush1.msra.mxu0 %v2612
        %2723 = vmatprep.subr.mxu0 %v2615
        %2724 = vmatpush1.msra.mxu0 %v2614
        %2725 = vmatprep.subr.mxu0 %v2617
        %2726 = vmatpush1.msra.mxu0 %v2616
        %2727 = vmatprep.subr.mxu0 %v2619
        %2728 = vmatpush1.msra.mxu0 %v2618
        %2729 = vmatprep.subr.mxu0 %v2621
        %2730 = vmatpush1.msra.mxu0 %v2620
        %2731 = vmatprep.subr.mxu0 %v2623
        %2732 = vmatpush1.msra.mxu0 %v2622
        %2733 = vmatprep.subr.mxu0 %v2625
        %2734 = vmatpush1.msra.mxu0 %v2624
        %2735 = vmatprep.subr.mxu0 %v2627
        %2736 = vmatpush1.msra.mxu0 %v2626
        %2737 = vmatprep.subr.mxu0 %v2629
        %2738 = vmatpush1.msra.mxu0 %v2628
        %2739 = vmatprep.subr.mxu0 %v2631
        %2740 = vmatpush1.msra.mxu0 %v2630
        %2741 = vmatprep.mubr.f32.mxu0 %v2365
        %2742 = vmatmul.mubr.f32.gmra.mrb[0].mxu0 %v2364
        %v2743 = vpop.f32.mrb[0].mxu0
        %v2744 = vadd.f32 %v2648, %v2743
        %v2745 = vpop.f32.mrb[0].mxu0
        %v2746 = vadd.f32 %v2648, %v2745
        %2747 = vmatprep.mubr.f32.mxu0 %v2368
        %2748 = vmatmul.mubr.f32.gmra.mrb[0].mxu0 %v2367
        %v2749 = vpop.f32.mrb[0].mxu0
        %v2750 = vadd.f32 %v2653, %v2749
        %v2751 = vpop.f32.mrb[0].mxu0
        %v2752 = vadd.f32 %v2653, %v2751
        %2753 = vmatprep.mubr.f32.mxu0 %v2371
        %2754 = vmatmul.mubr.f32.gmra.mrb[0].mxu0 %v2370
        %v2755 = vpop.f32.mrb[0].mxu0
        %v2756 = vadd.f32 %v2658, %v2755
        %v2757 = vpop.f32.mrb[0].mxu0
        %v2758 = vadd.f32 %v2658, %v2757
        %2759 = vmatprep.mubr.f32.mxu0 %v2374
        %2760 = vmatmul.mubr.f32.gmra.mrb[0].mxu0 %v2373
        %v2761 = vpop.f32.mrb[0].mxu0
        %v2762 = vadd.f32 %v2663, %v2761
        %v2763 = vpop.f32.mrb[0].mxu0
        %v2764 = vadd.f32 %v2663, %v2763
        %2765 = vdwg.mxu0
        %2766 = vmatprep.subr.mxu0 %v2633
        %2767 = vmatpush1.msra.mxu0 %v2632
        %2768 = vmatprep.subr.mxu0 %v2635
        %2769 = vmatpush1.msra.mxu0 %v2634
        %2770 = vmatprep.subr.mxu0 %v2637
        %2771 = vmatpush1.msra.mxu0 %v2636
        %2772 = vmatprep.subr.mxu0 %v2639
        %2773 = vmatpush1.msra.mxu0 %v2638
        %2774 = vmatprep.subr.mxu0 0.0
        %2775 = vmatpush1.msra.mxu0 0.0
        %2776 = vmatprep.subr.mxu0 0.0
        %2777 = vmatpush1.msra.mxu0 0.0
        %2778 = vmatprep.subr.mxu0 0.0
        %2779 = vmatpush1.msra.mxu0 0.0
        %2780 = vmatprep.subr.mxu0 0.0
        %2781 = vmatpush1.msra.mxu0 0.0
        %2782 = vmatprep.subr.mxu0 0.0
        %2783 = vmatpush1.msra.mxu0 0.0
        %2784 = vmatprep.subr.mxu0 0.0
        %2785 = vmatpush1.msra.mxu0 0.0
        %2786 = vmatprep.subr.mxu0 0.0
        %2787 = vmatpush1.msra.mxu0 0.0
        %2788 = vmatprep.subr.mxu0 0.0
        %2789 = vmatpush1.msra.mxu0 0.0
        %2790 = vmatprep.subr.mxu0 0.0
        %2791 = vmatpush1.msra.mxu0 0.0
        %2792 = vmatprep.subr.mxu0 0.0
        %2793 = vmatpush1.msra.mxu0 0.0
        %2794 = vmatprep.subr.mxu0 0.0
        %2795 = vmatpush1.msra.mxu0 0.0
        %2796 = vmatprep.subr.mxu0 0.0
        %2797 = vmatpush1.msra.mxu0 0.0
        %2798 = vmatprep.subr.mxu0 0.0
        %2799 = vmatpush1.msra.mxu0 0.0
        %2800 = vmatprep.subr.mxu0 0.0
        %2801 = vmatpush1.msra.mxu0 0.0
        %2802 = vmatprep.subr.mxu0 0.0
        %2803 = vmatpush1.msra.mxu0 0.0
        %2804 = vmatprep.subr.mxu0 0.0
        %2805 = vmatpush1.msra.mxu0 0.0
        %2806 = vmatprep.subr.mxu0 0.0
        %2807 = vmatpush1.msra.mxu0 0.0
        %2808 = vmatprep.subr.mxu0 0.0
        %2809 = vmatpush1.msra.mxu0 0.0
        %2810 = vmatprep.subr.mxu0 0.0
        %2811 = vmatpush1.msra.mxu0 0.0
        %2812 = vmatprep.subr.mxu0 0.0
        %2813 = vmatpush1.msra.mxu0 0.0
        %2814 = vmatprep.subr.mxu0 0.0
        %2815 = vmatpush1.msra.mxu0 0.0
        %2816 = vmatprep.subr.mxu0 0.0
        %2817 = vmatpush1.msra.mxu0 0.0
        %2818 = vmatprep.subr.mxu0 0.0
        %2819 = vmatpush1.msra.mxu0 0.0
        %2820 = vmatprep.subr.mxu0 0.0
        %2821 = vmatpush1.msra.mxu0 0.0
        %2822 = vmatprep.subr.mxu0 0.0
        %2823 = vmatpush1.msra.mxu0 0.0
        %2824 = vmatprep.subr.mxu0 0.0
        %2825 = vmatpush1.msra.mxu0 0.0
        %2826 = vmatprep.subr.mxu0 0.0
        %2827 = vmatpush1.msra.mxu0 0.0
        %2828 = vmatprep.subr.mxu0 0.0
        %2829 = vmatpush1.msra.mxu0 0.0
        %2830 = vmatprep.mubr.f32.mxu0 0.0
        %2831 = vmatmul.mubr.f32.gmra.mrb[0].mxu0 %v2666
        %v2832 = vpop.f32.mrb[0].mxu0
        %v2833 = vadd.f32 %v2744, %v2832
        %v2834 = vpop.f32.mrb[0].mxu0
        %v2835 = vadd.f32 %v2746, %v2834
        %2836 = vmatprep.mubr.f32.mxu0 0.0
        %2837 = vmatmul.mubr.f32.gmra.mrb[0].mxu0 %v2669
        %v2838 = vpop.f32.mrb[0].mxu0
        %v2839 = vadd.f32 %v2750, %v2838
        %v2840 = vpop.f32.mrb[0].mxu0
        %v2841 = vadd.f32 %v2752, %v2840
        %2842 = vmatprep.mubr.f32.mxu0 0.0
        %2843 = vmatmul.mubr.f32.gmra.mrb[0].mxu0 %v2672
        %v2844 = vpop.f32.mrb[0].mxu0
        %v2845 = vadd.f32 %v2756, %v2844
        %v2846 = vpop.f32.mrb[0].mxu0
        %v2847 = vadd.f32 %v2758, %v2846
        %2848 = vmatprep.mubr.f32.mxu0 0.0
        %2849 = vmatmul.mubr.f32.gmra.mrb[0].mxu0 %v2675
        %v2850 = vpop.f32.mrb[0].mxu0
        %v2851 = vadd.f32 %v2762, %v2850
        %v2852 = vpop.f32.mrb[0].mxu0
        %v2853 = vadd.f32 %v2764, %v2852
        %2854 = vdwg.mxu0
        %v2855 = vmax.f32 %v2833, 0.0
        %v2856 = vmax.f32 %v2835, 0.0
        %v2857 = vmax.f32 %v2839, 0.0
        %v2858 = vmax.f32 %v2841, 0.0
        %v2859 = vmax.f32 %v2845, 0.0
        %v2860 = vmax.f32 %v2847, 0.0
        %v2861 = vmax.f32 %v2851, 0.0
        %v2862 = vmax.f32 %v2853, 0.0
        %s2863 = scalar_lea.vmem [#allocation7], 96
        %v2864 = vld [vmem:[%s2863] sm:$0xff]
        %v2865 = vld [vmem:[%s2863 + $0x8] sm:$0xff]
        %v2866 = vld [vmem:[%s2863 + $0x10] sm:$0xff]
        %v2867 = vld [vmem:[%s2863 + $0x18] sm:$0xff]
        %s2868 = scalar_lea.vmem %s8, 224
        %v2869 = vld [vmem:[%s2868] sm:$0xff]
        %v2870 = vld [vmem:[%s2868 + $0x8] sm:$0xff]
        %v2871 = vld [vmem:[%s2868 + $0x10] sm:$0xff]
        %v2872 = vld [vmem:[%s2868 + $0x18] sm:$0xff]
        %2874 = vset.pattern.permute.xlu0 0
        %2875 = vperm.xlu0 %2874, %v2869
        %v2876 = vpop.permute.xlu0 %2875
        %2879 = vset.pattern.permute.xlu0 0
        %2880 = vperm.xlu0 %2879, %v2870
        %v2881 = vpop.permute.xlu0 %2880
        %2884 = vset.pattern.permute.xlu0 0
        %2885 = vperm.xlu0 %2884, %v2871
        %v2886 = vpop.permute.xlu0 %2885
        %2889 = vset.pattern.permute.xlu0 0
        %2890 = vperm.xlu0 %2889, %v2872
        %v2891 = vpop.permute.xlu0 %2890
        %v2894 = vsel %vm1177, %v2864, 0
        %v2897 = vsel %vm1177, %v2865, 0
        %v2900 = vsel %vm1177, %v2866, 0
        %v2903 = vsel %vm1177, %v2867, 0
        %2905 = vmatprep.subr.mxu0 %v2856
        %2906 = vmatpush1.msra.mxu0 %v2855
        %2907 = vmatprep.subr.mxu0 %v2858
        %2908 = vmatpush1.msra.mxu0 %v2857
        %2909 = vmatprep.subr.mxu0 %v2860
        %2910 = vmatpush1.msra.mxu0 %v2859
        %2911 = vmatprep.subr.mxu0 %v2862
        %2912 = vmatpush1.msra.mxu0 %v2861
        %2913 = vmatprep.subr.mxu0 0.0
        %2914 = vmatpush1.msra.mxu0 0.0
        %2915 = vmatprep.subr.mxu0 0.0
        %2916 = vmatpush1.msra.mxu0 0.0
        %2917 = vmatprep.subr.mxu0 0.0
        %2918 = vmatpush1.msra.mxu0 0.0
        %2919 = vmatprep.subr.mxu0 0.0
        %2920 = vmatpush1.msra.mxu0 0.0
        %2921 = vmatprep.subr.mxu0 0.0
        %2922 = vmatpush1.msra.mxu0 0.0
        %2923 = vmatprep.subr.mxu0 0.0
        %2924 = vmatpush1.msra.mxu0 0.0
        %2925 = vmatprep.subr.mxu0 0.0
        %2926 = vmatpush1.msra.mxu0 0.0
        %2927 = vmatprep.subr.mxu0 0.0
        %2928 = vmatpush1.msra.mxu0 0.0
        %2929 = vmatprep.subr.mxu0 0.0
        %2930 = vmatpush1.msra.mxu0 0.0
        %2931 = vmatprep.subr.mxu0 0.0
        %2932 = vmatpush1.msra.mxu0 0.0
        %2933 = vmatprep.subr.mxu0 0.0
        %2934 = vmatpush1.msra.mxu0 0.0
        %2935 = vmatprep.subr.mxu0 0.0
        %2936 = vmatpush1.msra.mxu0 0.0
        %2937 = vmatprep.subr.mxu0 0.0
        %2938 = vmatpush1.msra.mxu0 0.0
        %2939 = vmatprep.subr.mxu0 0.0
        %2940 = vmatpush1.msra.mxu0 0.0
        %2941 = vmatprep.subr.mxu0 0.0
        %2942 = vmatpush1.msra.mxu0 0.0
        %2943 = vmatprep.subr.mxu0 0.0
        %2944 = vmatpush1.msra.mxu0 0.0
        %2945 = vmatprep.subr.mxu0 0.0
        %2946 = vmatpush1.msra.mxu0 0.0
        %2947 = vmatprep.subr.mxu0 0.0
        %2948 = vmatpush1.msra.mxu0 0.0
        %2949 = vmatprep.subr.mxu0 0.0
        %2950 = vmatpush1.msra.mxu0 0.0
        %2951 = vmatprep.subr.mxu0 0.0
        %2952 = vmatpush1.msra.mxu0 0.0
        %2953 = vmatprep.subr.mxu0 0.0
        %2954 = vmatpush1.msra.mxu0 0.0
        %2955 = vmatprep.subr.mxu0 0.0
        %2956 = vmatpush1.msra.mxu0 0.0
        %2957 = vmatprep.subr.mxu0 0.0
        %2958 = vmatpush1.msra.mxu0 0.0
        %2959 = vmatprep.subr.mxu0 0.0
        %2960 = vmatpush1.msra.mxu0 0.0
        %2961 = vmatprep.subr.mxu0 0.0
        %2962 = vmatpush1.msra.mxu0 0.0
        %2963 = vmatprep.subr.mxu0 0.0
        %2964 = vmatpush1.msra.mxu0 0.0
        %2965 = vmatprep.subr.mxu0 0.0
        %2966 = vmatpush1.msra.mxu0 0.0
        %2967 = vmatprep.subr.mxu0 0.0
        %2968 = vmatpush1.msra.mxu0 0.0
        %2969 = vmatprep.mubr.f32.mxu0 0.0
        %2970 = vmatmul.mubr.f32.gmra.mrb[0].mxu0 %v2894
        %v2971 = vpop.f32.mrb[0].mxu0
        %v2972 = vadd.f32 %v2876, %v2971
        %v2973 = vpop.f32.mrb[0].mxu0
        %v2974 = vadd.f32 %v2876, %v2973
        %2975 = vmatprep.mubr.f32.mxu0 0.0
        %2976 = vmatmul.mubr.f32.gmra.mrb[0].mxu0 %v2897
        %v2977 = vpop.f32.mrb[0].mxu0
        %v2978 = vadd.f32 %v2881, %v2977
        %v2979 = vpop.f32.mrb[0].mxu0
        %v2980 = vadd.f32 %v2881, %v2979
        %2981 = vmatprep.mubr.f32.mxu0 0.0
        %2982 = vmatmul.mubr.f32.gmra.mrb[0].mxu0 %v2900
        %v2983 = vpop.f32.mrb[0].mxu0
        %v2984 = vadd.f32 %v2886, %v2983
        %v2985 = vpop.f32.mrb[0].mxu0
        %v2986 = vadd.f32 %v2886, %v2985
        %2987 = vmatprep.mubr.f32.mxu0 0.0
        %2988 = vmatmul.mubr.f32.gmra.mrb[0].mxu0 %v2903
        %v2989 = vpop.f32.mrb[0].mxu0
        %v2990 = vadd.f32 %v2891, %v2989
        %v2991 = vpop.f32.mrb[0].mxu0
        %v2992 = vadd.f32 %v2891, %v2991
        %2993 = vdwg.mxu0
        %v2994 = vadd.f32 %v2355, %v2972
        %v2995 = vadd.f32 %v2356, %v2974
        %v2996 = vadd.f32 %v2357, %v2978
        %v2997 = vadd.f32 %v2358, %v2980
        %v2998 = vadd.f32 %v2359, %v2984
        %v2999 = vadd.f32 %v2360, %v2986
        %v3000 = vadd.f32 %v2361, %v2990
        %v3001 = vadd.f32 %v2362, %v2992
        %s3002 = scalar_lea.vmem [#allocation4], 192
        %v3003 = vld [vmem:[%s3002] sm:$0xff]
        %v3004 = vld [vmem:[%s3002 + $0x8] sm:$0xff]
        %v3005 = vld [vmem:[%s3002 + $0x10] sm:$0xff]
        %v3006 = vld [vmem:[%s3002 + $0x18] sm:$0xff]
        %v3007 = vld [vmem:[%s3002 + $0x20] sm:$0xff]
        %v3008 = vld [vmem:[%s3002 + $0x28] sm:$0xff]
        %v3009 = vld [vmem:[%s3002 + $0x30] sm:$0xff]
        %v3010 = vld [vmem:[%s3002 + $0x38] sm:$0xff]
        %v3011 = vld [vmem:[%s3002 + $0x40] sm:$0xff]
        %v3012 = vld [vmem:[%s3002 + $0x48] sm:$0xff]
        %v3013 = vld [vmem:[%s3002 + $0x50] sm:$0xff]
        %v3014 = vld [vmem:[%s3002 + $0x58] sm:$0xff]
        %3015 = vrot.lane.b32.xlu0 %v2994, 34
        %v3016 = vpop.permute.xlu0 %3015
        %3017 = vrot.lane.b32.xlu0 %v2996, 34
        %v3018 = vpop.permute.xlu0 %3017
        %3019 = vrot.lane.b32.xlu0 %v2998, 34
        %v3020 = vpop.permute.xlu0 %3019
        %3021 = vrot.lane.b32.xlu0 %v3000, 34
        %v3022 = vpop.permute.xlu0 %3021
        %3023 = vrot.lane.b32.xlu0 %v2995, 34
        %v3024 = vpop.permute.xlu0 %3023
        %3025 = vrot.lane.b32.xlu0 %v2997, 34
        %v3026 = vpop.permute.xlu0 %3025
        %3027 = vrot.lane.b32.xlu0 %v2999, 34
        %v3028 = vpop.permute.xlu0 %3027
        %3029 = vrot.lane.b32.xlu0 %v3001, 34
        %v3030 = vpop.permute.xlu0 %3029
        %v3031 = vsel %vm456, %v3016, %v3024
        %v3032 = vsel %vm456, %v3018, %v3026
        %v3033 = vsel %vm456, %v3020, %v3028
        %v3034 = vsel %vm456, %v3022, %v3030
        %v3035 = vsel %vm456, %v3024, %v3016
        %v3036 = vsel %vm456, %v3026, %v3018
        %v3037 = vsel %vm456, %v3028, %v3020
        %v3038 = vsel %vm456, %v3030, %v3022
        %3039 = vrot.lane.b32.xlu0 %v2994, 32
        %v3040 = vpop.permute.xlu0 %3039
        %3041 = vrot.lane.b32.xlu0 %v2996, 32
        %v3042 = vpop.permute.xlu0 %3041
        %3043 = vrot.lane.b32.xlu0 %v2998, 32
        %v3044 = vpop.permute.xlu0 %3043
        %3045 = vrot.lane.b32.xlu0 %v3000, 32
        %v3046 = vpop.permute.xlu0 %3045
        %3047 = vrot.lane.b32.xlu0 %v2995, 32
        %v3048 = vpop.permute.xlu0 %3047
        %3049 = vrot.lane.b32.xlu0 %v2997, 32
        %v3050 = vpop.permute.xlu0 %3049
        %3051 = vrot.lane.b32.xlu0 %v2999, 32
        %v3052 = vpop.permute.xlu0 %3051
        %3053 = vrot.lane.b32.xlu0 %v3001, 32
        %v3054 = vpop.permute.xlu0 %3053
        %v3055 = vsel %vm470, %v3040, %v3048
        %v3056 = vsel %vm470, %v3042, %v3050
        %v3057 = vsel %vm470, %v3044, %v3052
        %v3058 = vsel %vm470, %v3046, %v3054
        %v3059 = vsel %vm470, %v3048, %v3040
        %v3060 = vsel %vm470, %v3050, %v3042
        %v3061 = vsel %vm470, %v3052, %v3044
        %v3062 = vsel %vm470, %v3054, %v3046
        %3063 = vrot.lane.b32.xlu0 %v2994, 30
        %v3064 = vpop.permute.xlu0 %3063
        %3065 = vrot.lane.b32.xlu0 %v2996, 30
        %v3066 = vpop.permute.xlu0 %3065
        %3067 = vrot.lane.b32.xlu0 %v2998, 30
        %v3068 = vpop.permute.xlu0 %3067
        %3069 = vrot.lane.b32.xlu0 %v3000, 30
        %v3070 = vpop.permute.xlu0 %3069
        %3071 = vrot.lane.b32.xlu0 %v2995, 30
        %v3072 = vpop.permute.xlu0 %3071
        %3073 = vrot.lane.b32.xlu0 %v2997, 30
        %v3074 = vpop.permute.xlu0 %3073
        %3075 = vrot.lane.b32.xlu0 %v2999, 30
        %v3076 = vpop.permute.xlu0 %3075
        %3077 = vrot.lane.b32.xlu0 %v3001, 30
        %v3078 = vpop.permute.xlu0 %3077
        %v3079 = vsel %vm484, %v3064, %v3072
        %v3080 = vsel %vm484, %v3066, %v3074
        %v3081 = vsel %vm484, %v3068, %v3076
        %v3082 = vsel %vm484, %v3070, %v3078
        %v3083 = vsel %vm484, %v3072, %v3064
        %v3084 = vsel %vm484, %v3074, %v3066
        %v3085 = vsel %vm484, %v3076, %v3068
        %v3086 = vsel %vm484, %v3078, %v3070
        %3087 = vrot.lane.b32.xlu0 %v2994, 2
        %v3088 = vpop.permute.xlu0 %3087
        %3089 = vrot.lane.b32.xlu0 %v2996, 2
        %v3090 = vpop.permute.xlu0 %3089
        %3091 = vrot.lane.b32.xlu0 %v2998, 2
        %v3092 = vpop.permute.xlu0 %3091
        %3093 = vrot.lane.b32.xlu0 %v3000, 2
        %v3094 = vpop.permute.xlu0 %3093
        %3095 = vrot.lane.b32.xlu0 %v2995, 2
        %v3096 = vpop.permute.xlu0 %3095
        %3097 = vrot.lane.b32.xlu0 %v2997, 2
        %v3098 = vpop.permute.xlu0 %3097
        %3099 = vrot.lane.b32.xlu0 %v2999, 2
        %v3100 = vpop.permute.xlu0 %3099
        %3101 = vrot.lane.b32.xlu0 %v3001, 2
        %v3102 = vpop.permute.xlu0 %3101
        %v3103 = vsel %vm526, %v3088, %v3096
        %v3104 = vsel %vm526, %v3090, %v3098
        %v3105 = vsel %vm526, %v3092, %v3100
        %v3106 = vsel %vm526, %v3094, %v3102
        %v3107 = vsel %vm526, %v3096, %v3088
        %v3108 = vsel %vm526, %v3098, %v3090
        %v3109 = vsel %vm526, %v3100, %v3092
        %v3110 = vsel %vm526, %v3102, %v3094
        %3111 = vrot.lane.b32.xlu0 %v2994, 126
        %v3112 = vpop.permute.xlu0 %3111
        %3113 = vrot.lane.b32.xlu0 %v2996, 126
        %v3114 = vpop.permute.xlu0 %3113
        %3115 = vrot.lane.b32.xlu0 %v2998, 126
        %v3116 = vpop.permute.xlu0 %3115
        %3117 = vrot.lane.b32.xlu0 %v3000, 126
        %v3118 = vpop.permute.xlu0 %3117
        %3119 = vrot.lane.b32.xlu0 %v2995, 126
        %v3120 = vpop.permute.xlu0 %3119
        %3121 = vrot.lane.b32.xlu0 %v2997, 126
        %v3122 = vpop.permute.xlu0 %3121
        %3123 = vrot.lane.b32.xlu0 %v2999, 126
        %v3124 = vpop.permute.xlu0 %3123
        %3125 = vrot.lane.b32.xlu0 %v3001, 126
        %v3126 = vpop.permute.xlu0 %3125
        %v3127 = vsel %vm547, %v3112, %v3120
        %v3128 = vsel %vm547, %v3114, %v3122
        %v3129 = vsel %vm547, %v3116, %v3124
        %v3130 = vsel %vm547, %v3118, %v3126
        %v3131 = vsel %vm547, %v3120, %v3112
        %v3132 = vsel %vm547, %v3122, %v3114
        %v3133 = vsel %vm547, %v3124, %v3116
        %v3134 = vsel %vm547, %v3126, %v3118
        %3135 = vrot.lane.b32.xlu0 %v2994, 98
        %v3136 = vpop.permute.xlu0 %3135
        %3137 = vrot.lane.b32.xlu0 %v2996, 98
        %v3138 = vpop.permute.xlu0 %3137
        %3139 = vrot.lane.b32.xlu0 %v2998, 98
        %v3140 = vpop.permute.xlu0 %3139
        %3141 = vrot.lane.b32.xlu0 %v3000, 98
        %v3142 = vpop.permute.xlu0 %3141
        %3143 = vrot.lane.b32.xlu0 %v2995, 98
        %v3144 = vpop.permute.xlu0 %3143
        %3145 = vrot.lane.b32.xlu0 %v2997, 98
        %v3146 = vpop.permute.xlu0 %3145
        %3147 = vrot.lane.b32.xlu0 %v2999, 98
        %v3148 = vpop.permute.xlu0 %3147
        %3149 = vrot.lane.b32.xlu0 %v3001, 98
        %v3150 = vpop.permute.xlu0 %3149
        %v3151 = vsel %vm589, %v3136, %v3144
        %v3152 = vsel %vm589, %v3138, %v3146
        %v3153 = vsel %vm589, %v3140, %v3148
        %v3154 = vsel %vm589, %v3142, %v3150
        %v3155 = vsel %vm589, %v3144, %v3136
        %v3156 = vsel %vm589, %v3146, %v3138
        %v3157 = vsel %vm589, %v3148, %v3140
        %v3158 = vsel %vm589, %v3150, %v3142
        %3159 = vrot.lane.b32.xlu0 %v2994, 96
        %v3160 = vpop.permute.xlu0 %3159
        %3161 = vrot.lane.b32.xlu0 %v2996, 96
        %v3162 = vpop.permute.xlu0 %3161
        %3163 = vrot.lane.b32.xlu0 %v2998, 96
        %v3164 = vpop.permute.xlu0 %3163
        %3165 = vrot.lane.b32.xlu0 %v3000, 96
        %v3166 = vpop.permute.xlu0 %3165
        %3167 = vrot.lane.b32.xlu0 %v2995, 96
        %v3168 = vpop.permute.xlu0 %3167
        %3169 = vrot.lane.b32.xlu0 %v2997, 96
        %v3170 = vpop.permute.xlu0 %3169
        %3171 = vrot.lane.b32.xlu0 %v2999, 96
        %v3172 = vpop.permute.xlu0 %3171
        %3173 = vrot.lane.b32.xlu0 %v3001, 96
        %v3174 = vpop.permute.xlu0 %3173
        %v3175 = vsel %vm603, %v3160, %v3168
        %v3176 = vsel %vm603, %v3162, %v3170
        %v3177 = vsel %vm603, %v3164, %v3172
        %v3178 = vsel %vm603, %v3166, %v3174
        %v3179 = vsel %vm603, %v3168, %v3160
        %v3180 = vsel %vm603, %v3170, %v3162
        %v3181 = vsel %vm603, %v3172, %v3164
        %v3182 = vsel %vm603, %v3174, %v3166
        %3183 = vrot.lane.b32.xlu0 %v2994, 94
        %v3184 = vpop.permute.xlu0 %3183
        %3185 = vrot.lane.b32.xlu0 %v2996, 94
        %v3186 = vpop.permute.xlu0 %3185
        %3187 = vrot.lane.b32.xlu0 %v2998, 94
        %v3188 = vpop.permute.xlu0 %3187
        %3189 = vrot.lane.b32.xlu0 %v3000, 94
        %v3190 = vpop.permute.xlu0 %3189
        %3191 = vrot.lane.b32.xlu0 %v2995, 94
        %v3192 = vpop.permute.xlu0 %3191
        %3193 = vrot.lane.b32.xlu0 %v2997, 94
        %v3194 = vpop.permute.xlu0 %3193
        %3195 = vrot.lane.b32.xlu0 %v2999, 94
        %v3196 = vpop.permute.xlu0 %3195
        %3197 = vrot.lane.b32.xlu0 %v3001, 94
        %v3198 = vpop.permute.xlu0 %3197
        %v3199 = vsel %vm617, %v3184, %v3192
        %v3200 = vsel %vm617, %v3186, %v3194
        %v3201 = vsel %vm617, %v3188, %v3196
        %v3202 = vsel %vm617, %v3190, %v3198
        %v3203 = vsel %vm617, %v3192, %v3184
        %v3204 = vsel %vm617, %v3194, %v3186
        %v3205 = vsel %vm617, %v3196, %v3188
        %v3206 = vsel %vm617, %v3198, %v3190
        %v3207 = vmul.f32 %v3035, %v1653
        %v3208 = vmul.f32 %v3031, %v1654
        %v3209 = vmul.f32 %v3036, %v1655
        %v3210 = vmul.f32 %v3032, %v1656
        %v3211 = vmul.f32 %v3037, %v1657
        %v3212 = vmul.f32 %v3033, %v1658
        %v3213 = vmul.f32 %v3038, %v1659
        %v3214 = vmul.f32 %v3034, %v1660
        %v3215 = vmul.f32 %v3059, %v1661
        %v3216 = vmul.f32 %v3055, %v1662
        %v3217 = vmul.f32 %v3060, %v1663
        %v3218 = vmul.f32 %v3056, %v1664
        %v3219 = vmul.f32 %v3061, %v1665
        %v3220 = vmul.f32 %v3057, %v1666
        %v3221 = vmul.f32 %v3062, %v1667
        %v3222 = vmul.f32 %v3058, %v1668
        %v3223 = vmul.f32 %v3083, %v1669
        %v3224 = vmul.f32 %v3079, %v1670
        %v3225 = vmul.f32 %v3084, %v1671
        %v3226 = vmul.f32 %v3080, %v1672
        %v3227 = vmul.f32 %v3085, %v1673
        %v3228 = vmul.f32 %v3081, %v1674
        %v3229 = vmul.f32 %v3086, %v1675
        %v3230 = vmul.f32 %v3082, %v1676
        %v3231 = vmul.f32 %v3107, %v1677
        %v3232 = vmul.f32 %v3103, %v1678
        %v3233 = vmul.f32 %v3108, %v1679
        %v3234 = vmul.f32 %v3104, %v1680
        %v3235 = vmul.f32 %v3109, %v1681
        %v3236 = vmul.f32 %v3105, %v1682
        %v3237 = vmul.f32 %v3110, %v1683
        %v3238 = vmul.f32 %v3106, %v1684
        %v3239 = vmul.f32 %v2994, %v1685
        %v3240 = vmul.f32 %v2995, %v1686
        %v3241 = vmul.f32 %v2996, %v1687
        %v3242 = vmul.f32 %v2997, %v1688
        %v3243 = vmul.f32 %v2998, %v1689
        %v3244 = vmul.f32 %v2999, %v1690
        %v3245 = vmul.f32 %v3000, %v1691
        %v3246 = vmul.f32 %v3001, %v1692
        %v3247 = vmul.f32 %v3127, %v1693
        %v3248 = vmul.f32 %v3131, %v1694
        %v3249 = vmul.f32 %v3128, %v1695
        %v3250 = vmul.f32 %v3132, %v1696
        %v3251 = vmul.f32 %v3129, %v1697
        %v3252 = vmul.f32 %v3133, %v1698
        %v3253 = vmul.f32 %v3130, %v1699
        %v3254 = vmul.f32 %v3134, %v1700
        %v3255 = vmul.f32 %v3151, %v1701
        %v3256 = vmul.f32 %v3155, %v1702
        %v3257 = vmul.f32 %v3152, %v1703
        %v3258 = vmul.f32 %v3156, %v1704
        %v3259 = vmul.f32 %v3153, %v1705
        %v3260 = vmul.f32 %v3157, %v1706
        %v3261 = vmul.f32 %v3154, %v1707
        %v3262 = vmul.f32 %v3158, %v1708
        %v3263 = vmul.f32 %v3175, %v1709
        %v3264 = vmul.f32 %v3179, %v1710
        %v3265 = vmul.f32 %v3176, %v1711
        %v3266 = vmul.f32 %v3180, %v1712
        %v3267 = vmul.f32 %v3177, %v1713
        %v3268 = vmul.f32 %v3181, %v1714
        %v3269 = vmul.f32 %v3178, %v1715
        %v3270 = vmul.f32 %v3182, %v1716
        %v3271 = vmul.f32 %v3199, %v1717
        %v3272 = vmul.f32 %v3203, %v1718
        %v3273 = vmul.f32 %v3200, %v1719
        %v3274 = vmul.f32 %v3204, %v1720
        %v3275 = vmul.f32 %v3201, %v1721
        %v3276 = vmul.f32 %v3205, %v1722
        %v3277 = vmul.f32 %v3202, %v1723
        %v3278 = vmul.f32 %v3206, %v1724
        %s3279 = scalar_lea.vmem %s8, 256
        %v3280 = vld [vmem:[%s3279] sm:$0xff]
        %v3281 = vld [vmem:[%s3279 + $0x8] sm:$0xff]
        %v3282 = vld [vmem:[%s3279 + $0x10] sm:$0xff]
        %v3283 = vld [vmem:[%s3279 + $0x18] sm:$0xff]
        %3285 = vset.pattern.permute.xlu0 0
        %3286 = vperm.xlu0 %3285, %v3280
        %v3287 = vpop.permute.xlu0 %3286
        %3290 = vset.pattern.permute.xlu0 0
        %3291 = vperm.xlu0 %3290, %v3281
        %v3292 = vpop.permute.xlu0 %3291
        %3295 = vset.pattern.permute.xlu0 0
        %3296 = vperm.xlu0 %3295, %v3282
        %v3297 = vpop.permute.xlu0 %3296
        %3300 = vset.pattern.permute.xlu0 0
        %3301 = vperm.xlu0 %3300, %v3283
        %v3302 = vpop.permute.xlu0 %3301
        %v3305 = vsel %vm1177, %v3005, 0
        %v3308 = vsel %vm1177, %v3008, 0
        %v3311 = vsel %vm1177, %v3011, 0
        %v3314 = vsel %vm1177, %v3014, 0
        %3316 = vmatprep.subr.mxu0 %v3208
        %3317 = vmatpush1.msra.mxu0 %v3207
        %3318 = vmatprep.subr.mxu0 %v3210
        %3319 = vmatpush1.msra.mxu0 %v3209
        %3320 = vmatprep.subr.mxu0 %v3212
        %3321 = vmatpush1.msra.mxu0 %v3211
        %3322 = vmatprep.subr.mxu0 %v3214
        %3323 = vmatpush1.msra.mxu0 %v3213
        %3324 = vmatprep.subr.mxu0 %v3216
        %3325 = vmatpush1.msra.mxu0 %v3215
        %3326 = vmatprep.subr.mxu0 %v3218
        %3327 = vmatpush1.msra.mxu0 %v3217
        %3328 = vmatprep.subr.mxu0 %v3220
        %3329 = vmatpush1.msra.mxu0 %v3219
        %3330 = vmatprep.subr.mxu0 %v3222
        %3331 = vmatpush1.msra.mxu0 %v3221
        %3332 = vmatprep.subr.mxu0 %v3224
        %3333 = vmatpush1.msra.mxu0 %v3223
        %3334 = vmatprep.subr.mxu0 %v3226
        %3335 = vmatpush1.msra.mxu0 %v3225
        %3336 = vmatprep.subr.mxu0 %v3228
        %3337 = vmatpush1.msra.mxu0 %v3227
        %3338 = vmatprep.subr.mxu0 %v3230
        %3339 = vmatpush1.msra.mxu0 %v3229
        %3340 = vmatprep.subr.mxu0 %v3232
        %3341 = vmatpush1.msra.mxu0 %v3231
        %3342 = vmatprep.subr.mxu0 %v3234
        %3343 = vmatpush1.msra.mxu0 %v3233
        %3344 = vmatprep.subr.mxu0 %v3236
        %3345 = vmatpush1.msra.mxu0 %v3235
        %3346 = vmatprep.subr.mxu0 %v3238
        %3347 = vmatpush1.msra.mxu0 %v3237
        %3348 = vmatprep.subr.mxu0 %v3240
        %3349 = vmatpush1.msra.mxu0 %v3239
        %3350 = vmatprep.subr.mxu0 %v3242
        %3351 = vmatpush1.msra.mxu0 %v3241
        %3352 = vmatprep.subr.mxu0 %v3244
        %3353 = vmatpush1.msra.mxu0 %v3243
        %3354 = vmatprep.subr.mxu0 %v3246
        %3355 = vmatpush1.msra.mxu0 %v3245
        %3356 = vmatprep.subr.mxu0 %v3248
        %3357 = vmatpush1.msra.mxu0 %v3247
        %3358 = vmatprep.subr.mxu0 %v3250
        %3359 = vmatpush1.msra.mxu0 %v3249
        %3360 = vmatprep.subr.mxu0 %v3252
        %3361 = vmatpush1.msra.mxu0 %v3251
        %3362 = vmatprep.subr.mxu0 %v3254
        %3363 = vmatpush1.msra.mxu0 %v3253
        %3364 = vmatprep.subr.mxu0 %v3256
        %3365 = vmatpush1.msra.mxu0 %v3255
        %3366 = vmatprep.subr.mxu0 %v3258
        %3367 = vmatpush1.msra.mxu0 %v3257
        %3368 = vmatprep.subr.mxu0 %v3260
        %3369 = vmatpush1.msra.mxu0 %v3259
        %3370 = vmatprep.subr.mxu0 %v3262
        %3371 = vmatpush1.msra.mxu0 %v3261
        %3372 = vmatprep.subr.mxu0 %v3264
        %3373 = vmatpush1.msra.mxu0 %v3263
        %3374 = vmatprep.subr.mxu0 %v3266
        %3375 = vmatpush1.msra.mxu0 %v3265
        %3376 = vmatprep.subr.mxu0 %v3268
        %3377 = vmatpush1.msra.mxu0 %v3267
        %3378 = vmatprep.subr.mxu0 %v3270
        %3379 = vmatpush1.msra.mxu0 %v3269
        %3380 = vmatprep.mubr.f32.mxu0 %v3004
        %3381 = vmatmul.mubr.f32.gmra.mrb[0].mxu0 %v3003
        %v3382 = vpop.f32.mrb[0].mxu0
        %v3383 = vadd.f32 %v3287, %v3382
        %v3384 = vpop.f32.mrb[0].mxu0
        %v3385 = vadd.f32 %v3287, %v3384
        %3386 = vmatprep.mubr.f32.mxu0 %v3007
        %3387 = vmatmul.mubr.f32.gmra.mrb[0].mxu0 %v3006
        %v3388 = vpop.f32.mrb[0].mxu0
        %v3389 = vadd.f32 %v3292, %v3388
        %v3390 = vpop.f32.mrb[0].mxu0
        %v3391 = vadd.f32 %v3292, %v3390
        %3392 = vmatprep.mubr.f32.mxu0 %v3010
        %3393 = vmatmul.mubr.f32.gmra.mrb[0].mxu0 %v3009
        %v3394 = vpop.f32.mrb[0].mxu0
        %v3395 = vadd.f32 %v3297, %v3394
        %v3396 = vpop.f32.mrb[0].mxu0
        %v3397 = vadd.f32 %v3297, %v3396
        %3398 = vmatprep.mubr.f32.mxu0 %v3013
        %3399 = vmatmul.mubr.f32.gmra.mrb[0].mxu0 %v3012
        %v3400 = vpop.f32.mrb[0].mxu0
        %v3401 = vadd.f32 %v3302, %v3400
        %v3402 = vpop.f32.mrb[0].mxu0
        %v3403 = vadd.f32 %v3302, %v3402
        %3404 = vdwg.mxu0
        %3405 = vmatprep.subr.mxu0 %v3272
        %3406 = vmatpush1.msra.mxu0 %v3271
        %3407 = vmatprep.subr.mxu0 %v3274
        %3408 = vmatpush1.msra.mxu0 %v3273
        %3409 = vmatprep.subr.mxu0 %v3276
        %3410 = vmatpush1.msra.mxu0 %v3275
        %3411 = vmatprep.subr.mxu0 %v3278
        %3412 = vmatpush1.msra.mxu0 %v3277
        %3413 = vmatprep.subr.mxu0 0.0
        %3414 = vmatpush1.msra.mxu0 0.0
        %3415 = vmatprep.subr.mxu0 0.0
        %3416 = vmatpush1.msra.mxu0 0.0
        %3417 = vmatprep.subr.mxu0 0.0
        %3418 = vmatpush1.msra.mxu0 0.0
        %3419 = vmatprep.subr.mxu0 0.0
        %3420 = vmatpush1.msra.mxu0 0.0
        %3421 = vmatprep.subr.mxu0 0.0
        %3422 = vmatpush1.msra.mxu0 0.0
        %3423 = vmatprep.subr.mxu0 0.0
        %3424 = vmatpush1.msra.mxu0 0.0
        %3425 = vmatprep.subr.mxu0 0.0
        %3426 = vmatpush1.msra.mxu0 0.0
        %3427 = vmatprep.subr.mxu0 0.0
        %3428 = vmatpush1.msra.mxu0 0.0
        %3429 = vmatprep.subr.mxu0 0.0
        %3430 = vmatpush1.msra.mxu0 0.0
        %3431 = vmatprep.subr.mxu0 0.0
        %3432 = vmatpush1.msra.mxu0 0.0
        %3433 = vmatprep.subr.mxu0 0.0
        %3434 = vmatpush1.msra.mxu0 0.0
        %3435 = vmatprep.subr.mxu0 0.0
        %3436 = vmatpush1.msra.mxu0 0.0
        %3437 = vmatprep.subr.mxu0 0.0
        %3438 = vmatpush1.msra.mxu0 0.0
        %3439 = vmatprep.subr.mxu0 0.0
        %3440 = vmatpush1.msra.mxu0 0.0
        %3441 = vmatprep.subr.mxu0 0.0
        %3442 = vmatpush1.msra.mxu0 0.0
        %3443 = vmatprep.subr.mxu0 0.0
        %3444 = vmatpush1.msra.mxu0 0.0
        %3445 = vmatprep.subr.mxu0 0.0
        %3446 = vmatpush1.msra.mxu0 0.0
        %3447 = vmatprep.subr.mxu0 0.0
        %3448 = vmatpush1.msra.mxu0 0.0
        %3449 = vmatprep.subr.mxu0 0.0
        %3450 = vmatpush1.msra.mxu0 0.0
        %3451 = vmatprep.subr.mxu0 0.0
        %3452 = vmatpush1.msra.mxu0 0.0
        %3453 = vmatprep.subr.mxu0 0.0
        %3454 = vmatpush1.msra.mxu0 0.0
        %3455 = vmatprep.subr.mxu0 0.0
        %3456 = vmatpush1.msra.mxu0 0.0
        %3457 = vmatprep.subr.mxu0 0.0
        %3458 = vmatpush1.msra.mxu0 0.0
        %3459 = vmatprep.subr.mxu0 0.0
        %3460 = vmatpush1.msra.mxu0 0.0
        %3461 = vmatprep.subr.mxu0 0.0
        %3462 = vmatpush1.msra.mxu0 0.0
        %3463 = vmatprep.subr.mxu0 0.0
        %3464 = vmatpush1.msra.mxu0 0.0
        %3465 = vmatprep.subr.mxu0 0.0
        %3466 = vmatpush1.msra.mxu0 0.0
        %3467 = vmatprep.subr.mxu0 0.0
        %3468 = vmatpush1.msra.mxu0 0.0
        %3469 = vmatprep.mubr.f32.mxu0 0.0
        %3470 = vmatmul.mubr.f32.gmra.mrb[0].mxu0 %v3305
        %v3471 = vpop.f32.mrb[0].mxu0
        %v3472 = vadd.f32 %v3383, %v3471
        %v3473 = vpop.f32.mrb[0].mxu0
        %v3474 = vadd.f32 %v3385, %v3473
        %3475 = vmatprep.mubr.f32.mxu0 0.0
        %3476 = vmatmul.mubr.f32.gmra.mrb[0].mxu0 %v3308
        %v3477 = vpop.f32.mrb[0].mxu0
        %v3478 = vadd.f32 %v3389, %v3477
        %v3479 = vpop.f32.mrb[0].mxu0
        %v3480 = vadd.f32 %v3391, %v3479
        %3481 = vmatprep.mubr.f32.mxu0 0.0
        %3482 = vmatmul.mubr.f32.gmra.mrb[0].mxu0 %v3311
        %v3483 = vpop.f32.mrb[0].mxu0
        %v3484 = vadd.f32 %v3395, %v3483
        %v3485 = vpop.f32.mrb[0].mxu0
        %v3486 = vadd.f32 %v3397, %v3485
        %3487 = vmatprep.mubr.f32.mxu0 0.0
        %3488 = vmatmul.mubr.f32.gmra.mrb[0].mxu0 %v3314
        %v3489 = vpop.f32.mrb[0].mxu0
        %v3490 = vadd.f32 %v3401, %v3489
        %v3491 = vpop.f32.mrb[0].mxu0
        %v3492 = vadd.f32 %v3403, %v3491
        %3493 = vdwg.mxu0
        %v3494 = vmax.f32 %v3472, 0.0
        %v3495 = vmax.f32 %v3474, 0.0
        %v3496 = vmax.f32 %v3478, 0.0
        %v3497 = vmax.f32 %v3480, 0.0
        %v3498 = vmax.f32 %v3484, 0.0
        %v3499 = vmax.f32 %v3486, 0.0
        %v3500 = vmax.f32 %v3490, 0.0
        %v3501 = vmax.f32 %v3492, 0.0
        %s3502 = scalar_lea.vmem [#allocation7], 128
        %v3503 = vld [vmem:[%s3502] sm:$0xff]
        %v3504 = vld [vmem:[%s3502 + $0x8] sm:$0xff]
        %v3505 = vld [vmem:[%s3502 + $0x10] sm:$0xff]
        %v3506 = vld [vmem:[%s3502 + $0x18] sm:$0xff]
        %s3507 = scalar_lea.vmem %s8, 288
        %v3508 = vld [vmem:[%s3507] sm:$0xff]
        %v3509 = vld [vmem:[%s3507 + $0x8] sm:$0xff]
        %v3510 = vld [vmem:[%s3507 + $0x10] sm:$0xff]
        %v3511 = vld [vmem:[%s3507 + $0x18] sm:$0xff]
        %3513 = vset.pattern.permute.xlu0 0
        %3514 = vperm.xlu0 %3513, %v3508
        %v3515 = vpop.permute.xlu0 %3514
        %3518 = vset.pattern.permute.xlu0 0
        %3519 = vperm.xlu0 %3518, %v3509
        %v3520 = vpop.permute.xlu0 %3519
        %3523 = vset.pattern.permute.xlu0 0
        %3524 = vperm.xlu0 %3523, %v3510
        %v3525 = vpop.permute.xlu0 %3524
        %3528 = vset.pattern.permute.xlu0 0
        %3529 = vperm.xlu0 %3528, %v3511
        %v3530 = vpop.permute.xlu0 %3529
        %v3533 = vsel %vm1177, %v3503, 0
        %v3536 = vsel %vm1177, %v3504, 0
        %v3539 = vsel %vm1177, %v3505, 0
        %v3542 = vsel %vm1177, %v3506, 0
        %3544 = vmatprep.subr.mxu0 %v3495
        %3545 = vmatpush1.msra.mxu0 %v3494
        %3546 = vmatprep.subr.mxu0 %v3497
        %3547 = vmatpush1.msra.mxu0 %v3496
        %3548 = vmatprep.subr.mxu0 %v3499
        %3549 = vmatpush1.msra.mxu0 %v3498
        %3550 = vmatprep.subr.mxu0 %v3501
        %3551 = vmatpush1.msra.mxu0 %v3500
        %3552 = vmatprep.subr.mxu0 0.0
        %3553 = vmatpush1.msra.mxu0 0.0
        %3554 = vmatprep.subr.mxu0 0.0
        %3555 = vmatpush1.msra.mxu0 0.0
        %3556 = vmatprep.subr.mxu0 0.0
        %3557 = vmatpush1.msra.mxu0 0.0
        %3558 = vmatprep.subr.mxu0 0.0
        %3559 = vmatpush1.msra.mxu0 0.0
        %3560 = vmatprep.subr.mxu0 0.0
        %3561 = vmatpush1.msra.mxu0 0.0
        %3562 = vmatprep.subr.mxu0 0.0
        %3563 = vmatpush1.msra.mxu0 0.0
        %3564 = vmatprep.subr.mxu0 0.0
        %3565 = vmatpush1.msra.mxu0 0.0
        %3566 = vmatprep.subr.mxu0 0.0
        %3567 = vmatpush1.msra.mxu0 0.0
        %3568 = vmatprep.subr.mxu0 0.0
        %3569 = vmatpush1.msra.mxu0 0.0
        %3570 = vmatprep.subr.mxu0 0.0
        %3571 = vmatpush1.msra.mxu0 0.0
        %3572 = vmatprep.subr.mxu0 0.0
        %3573 = vmatpush1.msra.mxu0 0.0
        %3574 = vmatprep.subr.mxu0 0.0
        %3575 = vmatpush1.msra.mxu0 0.0
        %3576 = vmatprep.subr.mxu0 0.0
        %3577 = vmatpush1.msra.mxu0 0.0
        %3578 = vmatprep.subr.mxu0 0.0
        %3579 = vmatpush1.msra.mxu0 0.0
        %3580 = vmatprep.subr.mxu0 0.0
        %3581 = vmatpush1.msra.mxu0 0.0
        %3582 = vmatprep.subr.mxu0 0.0
        %3583 = vmatpush1.msra.mxu0 0.0
        %3584 = vmatprep.subr.mxu0 0.0
        %3585 = vmatpush1.msra.mxu0 0.0
        %3586 = vmatprep.subr.mxu0 0.0
        %3587 = vmatpush1.msra.mxu0 0.0
        %3588 = vmatprep.subr.mxu0 0.0
        %3589 = vmatpush1.msra.mxu0 0.0
        %3590 = vmatprep.subr.mxu0 0.0
        %3591 = vmatpush1.msra.mxu0 0.0
        %3592 = vmatprep.subr.mxu0 0.0
        %3593 = vmatpush1.msra.mxu0 0.0
        %3594 = vmatprep.subr.mxu0 0.0
        %3595 = vmatpush1.msra.mxu0 0.0
        %3596 = vmatprep.subr.mxu0 0.0
        %3597 = vmatpush1.msra.mxu0 0.0
        %3598 = vmatprep.subr.mxu0 0.0
        %3599 = vmatpush1.msra.mxu0 0.0
        %3600 = vmatprep.subr.mxu0 0.0
        %3601 = vmatpush1.msra.mxu0 0.0
        %3602 = vmatprep.subr.mxu0 0.0
        %3603 = vmatpush1.msra.mxu0 0.0
        %3604 = vmatprep.subr.mxu0 0.0
        %3605 = vmatpush1.msra.mxu0 0.0
        %3606 = vmatprep.subr.mxu0 0.0
        %3607 = vmatpush1.msra.mxu0 0.0
        %3608 = vmatprep.mubr.f32.mxu0 0.0
        %3609 = vmatmul.mubr.f32.gmra.mrb[0].mxu0 %v3533
        %v3610 = vpop.f32.mrb[0].mxu0
        %v3611 = vadd.f32 %v3515, %v3610
        %v3612 = vpop.f32.mrb[0].mxu0
        %v3613 = vadd.f32 %v3515, %v3612
        %3614 = vmatprep.mubr.f32.mxu0 0.0
        %3615 = vmatmul.mubr.f32.gmra.mrb[0].mxu0 %v3536
        %v3616 = vpop.f32.mrb[0].mxu0
        %v3617 = vadd.f32 %v3520, %v3616
        %v3618 = vpop.f32.mrb[0].mxu0
        %v3619 = vadd.f32 %v3520, %v3618
        %3620 = vmatprep.mubr.f32.mxu0 0.0
        %3621 = vmatmul.mubr.f32.gmra.mrb[0].mxu0 %v3539
        %v3622 = vpop.f32.mrb[0].mxu0
        %v3623 = vadd.f32 %v3525, %v3622
        %v3624 = vpop.f32.mrb[0].mxu0
        %v3625 = vadd.f32 %v3525, %v3624
        %3626 = vmatprep.mubr.f32.mxu0 0.0
        %3627 = vmatmul.mubr.f32.gmra.mrb[0].mxu0 %v3542
        %v3628 = vpop.f32.mrb[0].mxu0
        %v3629 = vadd.f32 %v3530, %v3628
        %v3630 = vpop.f32.mrb[0].mxu0
        %v3631 = vadd.f32 %v3530, %v3630
        %3632 = vdwg.mxu0
        %v3633 = vadd.f32 %v2994, %v3611
        %v3634 = vadd.f32 %v2995, %v3613
        %v3635 = vadd.f32 %v2996, %v3617
        %v3636 = vadd.f32 %v2997, %v3619
        %v3637 = vadd.f32 %v2998, %v3623
        %v3638 = vadd.f32 %v2999, %v3625
        %v3639 = vadd.f32 %v3000, %v3629
        %v3640 = vadd.f32 %v3001, %v3631
        %s3641 = scalar_lea.vmem [#allocation4], 288
        %v3642 = vld [vmem:[%s3641] sm:$0xff]
        %v3643 = vld [vmem:[%s3641 + $0x8] sm:$0xff]
        %v3644 = vld [vmem:[%s3641 + $0x10] sm:$0xff]
        %v3645 = vld [vmem:[%s3641 + $0x18] sm:$0xff]
        %v3646 = vld [vmem:[%s3641 + $0x20] sm:$0xff]
        %v3647 = vld [vmem:[%s3641 + $0x28] sm:$0xff]
        %v3648 = vld [vmem:[%s3641 + $0x30] sm:$0xff]
        %v3649 = vld [vmem:[%s3641 + $0x38] sm:$0xff]
        %v3650 = vld [vmem:[%s3641 + $0x40] sm:$0xff]
        %v3651 = vld [vmem:[%s3641 + $0x48] sm:$0xff]
        %v3652 = vld [vmem:[%s3641 + $0x50] sm:$0xff]
        %v3653 = vld [vmem:[%s3641 + $0x58] sm:$0xff]
        %3654 = vrot.lane.b32.xlu0 %v3633, 34
        %v3655 = vpop.permute.xlu0 %3654
        %3656 = vrot.lane.b32.xlu0 %v3635, 34
        %v3657 = vpop.permute.xlu0 %3656
        %3658 = vrot.lane.b32.xlu0 %v3637, 34
        %v3659 = vpop.permute.xlu0 %3658
        %3660 = vrot.lane.b32.xlu0 %v3639, 34
        %v3661 = vpop.permute.xlu0 %3660
        %3662 = vrot.lane.b32.xlu0 %v3634, 34
        %v3663 = vpop.permute.xlu0 %3662
        %3664 = vrot.lane.b32.xlu0 %v3636, 34
        %v3665 = vpop.permute.xlu0 %3664
        %3666 = vrot.lane.b32.xlu0 %v3638, 34
        %v3667 = vpop.permute.xlu0 %3666
        %3668 = vrot.lane.b32.xlu0 %v3640, 34
        %v3669 = vpop.permute.xlu0 %3668
        %v3670 = vsel %vm456, %v3655, %v3663
        %v3671 = vsel %vm456, %v3657, %v3665
        %v3672 = vsel %vm456, %v3659, %v3667
        %v3673 = vsel %vm456, %v3661, %v3669
        %v3674 = vsel %vm456, %v3663, %v3655
        %v3675 = vsel %vm456, %v3665, %v3657
        %v3676 = vsel %vm456, %v3667, %v3659
        %v3677 = vsel %vm456, %v3669, %v3661
        %3678 = vrot.lane.b32.xlu0 %v3633, 32
        %v3679 = vpop.permute.xlu0 %3678
        %3680 = vrot.lane.b32.xlu0 %v3635, 32
        %v3681 = vpop.permute.xlu0 %3680
        %3682 = vrot.lane.b32.xlu0 %v3637, 32
        %v3683 = vpop.permute.xlu0 %3682
        %3684 = vrot.lane.b32.xlu0 %v3639, 32
        %v3685 = vpop.permute.xlu0 %3684
        %3686 = vrot.lane.b32.xlu0 %v3634, 32
        %v3687 = vpop.permute.xlu0 %3686
        %3688 = vrot.lane.b32.xlu0 %v3636, 32
        %v3689 = vpop.permute.xlu0 %3688
        %3690 = vrot.lane.b32.xlu0 %v3638, 32
        %v3691 = vpop.permute.xlu0 %3690
        %3692 = vrot.lane.b32.xlu0 %v3640, 32
        %v3693 = vpop.permute.xlu0 %3692
        %v3694 = vsel %vm470, %v3679, %v3687
        %v3695 = vsel %vm470, %v3681, %v3689
        %v3696 = vsel %vm470, %v3683, %v3691
        %v3697 = vsel %vm470, %v3685, %v3693
        %v3698 = vsel %vm470, %v3687, %v3679
        %v3699 = vsel %vm470, %v3689, %v3681
        %v3700 = vsel %vm470, %v3691, %v3683
        %v3701 = vsel %vm470, %v3693, %v3685
        %3702 = vrot.lane.b32.xlu0 %v3633, 30
        %v3703 = vpop.permute.xlu0 %3702
        %3704 = vrot.lane.b32.xlu0 %v3635, 30
        %v3705 = vpop.permute.xlu0 %3704
        %3706 = vrot.lane.b32.xlu0 %v3637, 30
        %v3707 = vpop.permute.xlu0 %3706
        %3708 = vrot.lane.b32.xlu0 %v3639, 30
        %v3709 = vpop.permute.xlu0 %3708
        %3710 = vrot.lane.b32.xlu0 %v3634, 30
        %v3711 = vpop.permute.xlu0 %3710
        %3712 = vrot.lane.b32.xlu0 %v3636, 30
        %v3713 = vpop.permute.xlu0 %3712
        %3714 = vrot.lane.b32.xlu0 %v3638, 30
        %v3715 = vpop.permute.xlu0 %3714
        %3716 = vrot.lane.b32.xlu0 %v3640, 30
        %v3717 = vpop.permute.xlu0 %3716
        %v3718 = vsel %vm484, %v3703, %v3711
        %v3719 = vsel %vm484, %v3705, %v3713
        %v3720 = vsel %vm484, %v3707, %v3715
        %v3721 = vsel %vm484, %v3709, %v3717
        %v3722 = vsel %vm484, %v3711, %v3703
        %v3723 = vsel %vm484, %v3713, %v3705
        %v3724 = vsel %vm484, %v3715, %v3707
        %v3725 = vsel %vm484, %v3717, %v3709
        %3726 = vrot.lane.b32.xlu0 %v3633, 2
        %v3727 = vpop.permute.xlu0 %3726
        %3728 = vrot.lane.b32.xlu0 %v3635, 2
        %v3729 = vpop.permute.xlu0 %3728
        %3730 = vrot.lane.b32.xlu0 %v3637, 2
        %v3731 = vpop.permute.xlu0 %3730
        %3732 = vrot.lane.b32.xlu0 %v3639, 2
        %v3733 = vpop.permute.xlu0 %3732
        %3734 = vrot.lane.b32.xlu0 %v3634, 2
        %v3735 = vpop.permute.xlu0 %3734
        %3736 = vrot.lane.b32.xlu0 %v3636, 2
        %v3737 = vpop.permute.xlu0 %3736
        %3738 = vrot.lane.b32.xlu0 %v3638, 2
        %v3739 = vpop.permute.xlu0 %3738
        %3740 = vrot.lane.b32.xlu0 %v3640, 2
        %v3741 = vpop.permute.xlu0 %3740
        %v3742 = vsel %vm526, %v3727, %v3735
        %v3743 = vsel %vm526, %v3729, %v3737
        %v3744 = vsel %vm526, %v3731, %v3739
        %v3745 = vsel %vm526, %v3733, %v3741
        %v3746 = vsel %vm526, %v3735, %v3727
        %v3747 = vsel %vm526, %v3737, %v3729
        %v3748 = vsel %vm526, %v3739, %v3731
        %v3749 = vsel %vm526, %v3741, %v3733
        %3750 = vrot.lane.b32.xlu0 %v3633, 126
        %v3751 = vpop.permute.xlu0 %3750
        %3752 = vrot.lane.b32.xlu0 %v3635, 126
        %v3753 = vpop.permute.xlu0 %3752
        %3754 = vrot.lane.b32.xlu0 %v3637, 126
        %v3755 = vpop.permute.xlu0 %3754
        %3756 = vrot.lane.b32.xlu0 %v3639, 126
        %v3757 = vpop.permute.xlu0 %3756
        %3758 = vrot.lane.b32.xlu0 %v3634, 126
        %v3759 = vpop.permute.xlu0 %3758
        %3760 = vrot.lane.b32.xlu0 %v3636, 126
        %v3761 = vpop.permute.xlu0 %3760
        %3762 = vrot.lane.b32.xlu0 %v3638, 126
        %v3763 = vpop.permute.xlu0 %3762
        %3764 = vrot.lane.b32.xlu0 %v3640, 126
        %v3765 = vpop.permute.xlu0 %3764
        %v3766 = vsel %vm547, %v3751, %v3759
        %v3767 = vsel %vm547, %v3753, %v3761
        %v3768 = vsel %vm547, %v3755, %v3763
        %v3769 = vsel %vm547, %v3757, %v3765
        %v3770 = vsel %vm547, %v3759, %v3751
        %v3771 = vsel %vm547, %v3761, %v3753
        %v3772 = vsel %vm547, %v3763, %v3755
        %v3773 = vsel %vm547, %v3765, %v3757
        %3774 = vrot.lane.b32.xlu0 %v3633, 98
        %v3775 = vpop.permute.xlu0 %3774
        %3776 = vrot.lane.b32.xlu0 %v3635, 98
        %v3777 = vpop.permute.xlu0 %3776
        %3778 = vrot.lane.b32.xlu0 %v3637, 98
        %v3779 = vpop.permute.xlu0 %3778
        %3780 = vrot.lane.b32.xlu0 %v3639, 98
        %v3781 = vpop.permute.xlu0 %3780
        %3782 = vrot.lane.b32.xlu0 %v3634, 98
        %v3783 = vpop.permute.xlu0 %3782
        %3784 = vrot.lane.b32.xlu0 %v3636, 98
        %v3785 = vpop.permute.xlu0 %3784
        %3786 = vrot.lane.b32.xlu0 %v3638, 98
        %v3787 = vpop.permute.xlu0 %3786
        %3788 = vrot.lane.b32.xlu0 %v3640, 98
        %v3789 = vpop.permute.xlu0 %3788
        %v3790 = vsel %vm589, %v3775, %v3783
        %v3791 = vsel %vm589, %v3777, %v3785
        %v3792 = vsel %vm589, %v3779, %v3787
        %v3793 = vsel %vm589, %v3781, %v3789
        %v3794 = vsel %vm589, %v3783, %v3775
        %v3795 = vsel %vm589, %v3785, %v3777
        %v3796 = vsel %vm589, %v3787, %v3779
        %v3797 = vsel %vm589, %v3789, %v3781
        %3798 = vrot.lane.b32.xlu0 %v3633, 96
        %v3799 = vpop.permute.xlu0 %3798
        %3800 = vrot.lane.b32.xlu0 %v3635, 96
        %v3801 = vpop.permute.xlu0 %3800
        %3802 = vrot.lane.b32.xlu0 %v3637, 96
        %v3803 = vpop.permute.xlu0 %3802
        %3804 = vrot.lane.b32.xlu0 %v3639, 96
        %v3805 = vpop.permute.xlu0 %3804
        %3806 = vrot.lane.b32.xlu0 %v3634, 96
        %v3807 = vpop.permute.xlu0 %3806
        %3808 = vrot.lane.b32.xlu0 %v3636, 96
        %v3809 = vpop.permute.xlu0 %3808
        %3810 = vrot.lane.b32.xlu0 %v3638, 96
        %v3811 = vpop.permute.xlu0 %3810
        %3812 = vrot.lane.b32.xlu0 %v3640, 96
        %v3813 = vpop.permute.xlu0 %3812
        %v3814 = vsel %vm603, %v3799, %v3807
        %v3815 = vsel %vm603, %v3801, %v3809
        %v3816 = vsel %vm603, %v3803, %v3811
        %v3817 = vsel %vm603, %v3805, %v3813
        %v3818 = vsel %vm603, %v3807, %v3799
        %v3819 = vsel %vm603, %v3809, %v3801
        %v3820 = vsel %vm603, %v3811, %v3803
        %v3821 = vsel %vm603, %v3813, %v3805
        %3822 = vrot.lane.b32.xlu0 %v3633, 94
        %v3823 = vpop.permute.xlu0 %3822
        %3824 = vrot.lane.b32.xlu0 %v3635, 94
        %v3825 = vpop.permute.xlu0 %3824
        %3826 = vrot.lane.b32.xlu0 %v3637, 94
        %v3827 = vpop.permute.xlu0 %3826
        %3828 = vrot.lane.b32.xlu0 %v3639, 94
        %v3829 = vpop.permute.xlu0 %3828
        %3830 = vrot.lane.b32.xlu0 %v3634, 94
        %v3831 = vpop.permute.xlu0 %3830
        %3832 = vrot.lane.b32.xlu0 %v3636, 94
        %v3833 = vpop.permute.xlu0 %3832
        %3834 = vrot.lane.b32.xlu0 %v3638, 94
        %v3835 = vpop.permute.xlu0 %3834
        %3836 = vrot.lane.b32.xlu0 %v3640, 94
        %v3837 = vpop.permute.xlu0 %3836
        %v3838 = vsel %vm617, %v3823, %v3831
        %v3839 = vsel %vm617, %v3825, %v3833
        %v3840 = vsel %vm617, %v3827, %v3835
        %v3841 = vsel %vm617, %v3829, %v3837
        %v3842 = vsel %vm617, %v3831, %v3823
        %v3843 = vsel %vm617, %v3833, %v3825
        %v3844 = vsel %vm617, %v3835, %v3827
        %v3845 = vsel %vm617, %v3837, %v3829
        %v3846 = vmul.f32 %v3674, %v1653
        %v3847 = vmul.f32 %v3670, %v1654
        %v3848 = vmul.f32 %v3675, %v1655
        %v3849 = vmul.f32 %v3671, %v1656
        %v3850 = vmul.f32 %v3676, %v1657
        %v3851 = vmul.f32 %v3672, %v1658
        %v3852 = vmul.f32 %v3677, %v1659
        %v3853 = vmul.f32 %v3673, %v1660
        %v3854 = vmul.f32 %v3698, %v1661
        %v3855 = vmul.f32 %v3694, %v1662
        %v3856 = vmul.f32 %v3699, %v1663
        %v3857 = vmul.f32 %v3695, %v1664
        %v3858 = vmul.f32 %v3700, %v1665
        %v3859 = vmul.f32 %v3696, %v1666
        %v3860 = vmul.f32 %v3701, %v1667
        %v3861 = vmul.f32 %v3697, %v1668
        %v3862 = vmul.f32 %v3722, %v1669
        %v3863 = vmul.f32 %v3718, %v1670
        %v3864 = vmul.f32 %v3723, %v1671
        %v3865 = vmul.f32 %v3719, %v1672
        %v3866 = vmul.f32 %v3724, %v1673
        %v3867 = vmul.f32 %v3720, %v1674
        %v3868 = vmul.f32 %v3725, %v1675
        %v3869 = vmul.f32 %v3721, %v1676
        %v3870 = vmul.f32 %v3746, %v1677
        %v3871 = vmul.f32 %v3742, %v1678
        %v3872 = vmul.f32 %v3747, %v1679
        %v3873 = vmul.f32 %v3743, %v1680
        %v3874 = vmul.f32 %v3748, %v1681
        %v3875 = vmul.f32 %v3744, %v1682
        %v3876 = vmul.f32 %v3749, %v1683
        %v3877 = vmul.f32 %v3745, %v1684
        %v3878 = vmul.f32 %v3633, %v1685
        %v3879 = vmul.f32 %v3634, %v1686
        %v3880 = vmul.f32 %v3635, %v1687
        %v3881 = vmul.f32 %v3636, %v1688
        %v3882 = vmul.f32 %v3637, %v1689
        %v3883 = vmul.f32 %v3638, %v1690
        %v3884 = vmul.f32 %v3639, %v1691
        %v3885 = vmul.f32 %v3640, %v1692
        %v3886 = vmul.f32 %v3766, %v1693
        %v3887 = vmul.f32 %v3770, %v1694
        %v3888 = vmul.f32 %v3767, %v1695
        %v3889 = vmul.f32 %v3771, %v1696
        %v3890 = vmul.f32 %v3768, %v1697
        %v3891 = vmul.f32 %v3772, %v1698
        %v3892 = vmul.f32 %v3769, %v1699
        %v3893 = vmul.f32 %v3773, %v1700
        %v3894 = vmul.f32 %v3790, %v1701
        %v3895 = vmul.f32 %v3794, %v1702
        %v3896 = vmul.f32 %v3791, %v1703
        %v3897 = vmul.f32 %v3795, %v1704
        %v3898 = vmul.f32 %v3792, %v1705
        %v3899 = vmul.f32 %v3796, %v1706
        %v3900 = vmul.f32 %v3793, %v1707
        %v3901 = vmul.f32 %v3797, %v1708
        %v3902 = vmul.f32 %v3814, %v1709
        %v3903 = vmul.f32 %v3818, %v1710
        %v3904 = vmul.f32 %v3815, %v1711
        %v3905 = vmul.f32 %v3819, %v1712
        %v3906 = vmul.f32 %v3816, %v1713
        %v3907 = vmul.f32 %v3820, %v1714
        %v3908 = vmul.f32 %v3817, %v1715
        %v3909 = vmul.f32 %v3821, %v1716
        %v3910 = vmul.f32 %v3838, %v1717
        %v3911 = vmul.f32 %v3842, %v1718
        %v3912 = vmul.f32 %v3839, %v1719
        %v3913 = vmul.f32 %v3843, %v1720
        %v3914 = vmul.f32 %v3840, %v1721
        %v3915 = vmul.f32 %v3844, %v1722
        %v3916 = vmul.f32 %v3841, %v1723
        %v3917 = vmul.f32 %v3845, %v1724
        %s3918 = scalar_lea.vmem %s8, 320
        %v3919 = vld [vmem:[%s3918] sm:$0xff]
        %v3920 = vld [vmem:[%s3918 + $0x8] sm:$0xff]
        %v3921 = vld [vmem:[%s3918 + $0x10] sm:$0xff]
        %v3922 = vld [vmem:[%s3918 + $0x18] sm:$0xff]
        %3924 = vset.pattern.permute.xlu0 0
        %3925 = vperm.xlu0 %3924, %v3919
        %v3926 = vpop.permute.xlu0 %3925
        %3929 = vset.pattern.permute.xlu0 0
        %3930 = vperm.xlu0 %3929, %v3920
        %v3931 = vpop.permute.xlu0 %3930
        %3934 = vset.pattern.permute.xlu0 0
        %3935 = vperm.xlu0 %3934, %v3921
        %v3936 = vpop.permute.xlu0 %3935
        %3939 = vset.pattern.permute.xlu0 0
        %3940 = vperm.xlu0 %3939, %v3922
        %v3941 = vpop.permute.xlu0 %3940
        %v3944 = vsel %vm1177, %v3644, 0
        %v3947 = vsel %vm1177, %v3647, 0
        %v3950 = vsel %vm1177, %v3650, 0
        %v3953 = vsel %vm1177, %v3653, 0
        %3955 = vmatprep.subr.mxu0 %v3847
        %3956 = vmatpush1.msra.mxu0 %v3846
        %3957 = vmatprep.subr.mxu0 %v3849
        %3958 = vmatpush1.msra.mxu0 %v3848
        %3959 = vmatprep.subr.mxu0 %v3851
        %3960 = vmatpush1.msra.mxu0 %v3850
        %3961 = vmatprep.subr.mxu0 %v3853
        %3962 = vmatpush1.msra.mxu0 %v3852
        %3963 = vmatprep.subr.mxu0 %v3855
        %3964 = vmatpush1.msra.mxu0 %v3854
        %3965 = vmatprep.subr.mxu0 %v3857
        %3966 = vmatpush1.msra.mxu0 %v3856
        %3967 = vmatprep.subr.mxu0 %v3859
        %3968 = vmatpush1.msra.mxu0 %v3858
        %3969 = vmatprep.subr.mxu0 %v3861
        %3970 = vmatpush1.msra.mxu0 %v3860
        %3971 = vmatprep.subr.mxu0 %v3863
        %3972 = vmatpush1.msra.mxu0 %v3862
        %3973 = vmatprep.subr.mxu0 %v3865
        %3974 = vmatpush1.msra.mxu0 %v3864
        %3975 = vmatprep.subr.mxu0 %v3867
        %3976 = vmatpush1.msra.mxu0 %v3866
        %3977 = vmatprep.subr.mxu0 %v3869
        %3978 = vmatpush1.msra.mxu0 %v3868
        %3979 = vmatprep.subr.mxu0 %v3871
        %3980 = vmatpush1.msra.mxu0 %v3870
        %3981 = vmatprep.subr.mxu0 %v3873
        %3982 = vmatpush1.msra.mxu0 %v3872
        %3983 = vmatprep.subr.mxu0 %v3875
        %3984 = vmatpush1.msra.mxu0 %v3874
        %3985 = vmatprep.subr.mxu0 %v3877
        %3986 = vmatpush1.msra.mxu0 %v3876
        %3987 = vmatprep.subr.mxu0 %v3879
        %3988 = vmatpush1.msra.mxu0 %v3878
        %3989 = vmatprep.subr.mxu0 %v3881
        %3990 = vmatpush1.msra.mxu0 %v3880
        %3991 = vmatprep.subr.mxu0 %v3883
        %3992 = vmatpush1.msra.mxu0 %v3882
        %3993 = vmatprep.subr.mxu0 %v3885
        %3994 = vmatpush1.msra.mxu0 %v3884
        %3995 = vmatprep.subr.mxu0 %v3887
        %3996 = vmatpush1.msra.mxu0 %v3886
        %3997 = vmatprep.subr.mxu0 %v3889
        %3998 = vmatpush1.msra.mxu0 %v3888
        %3999 = vmatprep.subr.mxu0 %v3891
        %4000 = vmatpush1.msra.mxu0 %v3890
        %4001 = vmatprep.subr.mxu0 %v3893
        %4002 = vmatpush1.msra.mxu0 %v3892
        %4003 = vmatprep.subr.mxu0 %v3895
        %4004 = vmatpush1.msra.mxu0 %v3894
        %4005 = vmatprep.subr.mxu0 %v3897
        %4006 = vmatpush1.msra.mxu0 %v3896
        %4007 = vmatprep.subr.mxu0 %v3899
        %4008 = vmatpush1.msra.mxu0 %v3898
        %4009 = vmatprep.subr.mxu0 %v3901
        %4010 = vmatpush1.msra.mxu0 %v3900
        %4011 = vmatprep.subr.mxu0 %v3903
        %4012 = vmatpush1.msra.mxu0 %v3902
        %4013 = vmatprep.subr.mxu0 %v3905
        %4014 = vmatpush1.msra.mxu0 %v3904
        %4015 = vmatprep.subr.mxu0 %v3907
        %4016 = vmatpush1.msra.mxu0 %v3906
        %4017 = vmatprep.subr.mxu0 %v3909
        %4018 = vmatpush1.msra.mxu0 %v3908
        %4019 = vmatprep.mubr.f32.mxu0 %v3643
        %4020 = vmatmul.mubr.f32.gmra.mrb[0].mxu0 %v3642
        %v4021 = vpop.f32.mrb[0].mxu0
        %v4022 = vadd.f32 %v3926, %v4021
        %v4023 = vpop.f32.mrb[0].mxu0
        %v4024 = vadd.f32 %v3926, %v4023
        %4025 = vmatprep.mubr.f32.mxu0 %v3646
        %4026 = vmatmul.mubr.f32.gmra.mrb[0].mxu0 %v3645
        %v4027 = vpop.f32.mrb[0].mxu0
        %v4028 = vadd.f32 %v3931, %v4027
        %v4029 = vpop.f32.mrb[0].mxu0
        %v4030 = vadd.f32 %v3931, %v4029
        %4031 = vmatprep.mubr.f32.mxu0 %v3649
        %4032 = vmatmul.mubr.f32.gmra.mrb[0].mxu0 %v3648
        %v4033 = vpop.f32.mrb[0].mxu0
        %v4034 = vadd.f32 %v3936, %v4033
        %v4035 = vpop.f32.mrb[0].mxu0
        %v4036 = vadd.f32 %v3936, %v4035
        %4037 = vmatprep.mubr.f32.mxu0 %v3652
        %4038 = vmatmul.mubr.f32.gmra.mrb[0].mxu0 %v3651
        %v4039 = vpop.f32.mrb[0].mxu0
        %v4040 = vadd.f32 %v3941, %v4039
        %v4041 = vpop.f32.mrb[0].mxu0
        %v4042 = vadd.f32 %v3941, %v4041
        %4043 = vdwg.mxu0
        %4044 = vmatprep.subr.mxu0 %v3911
        %4045 = vmatpush1.msra.mxu0 %v3910
        %4046 = vmatprep.subr.mxu0 %v3913
        %4047 = vmatpush1.msra.mxu0 %v3912
        %4048 = vmatprep.subr.mxu0 %v3915
        %4049 = vmatpush1.msra.mxu0 %v3914
        %4050 = vmatprep.subr.mxu0 %v3917
        %4051 = vmatpush1.msra.mxu0 %v3916
        %4052 = vmatprep.subr.mxu0 0.0
        %4053 = vmatpush1.msra.mxu0 0.0
        %4054 = vmatprep.subr.mxu0 0.0
        %4055 = vmatpush1.msra.mxu0 0.0
        %4056 = vmatprep.subr.mxu0 0.0
        %4057 = vmatpush1.msra.mxu0 0.0
        %4058 = vmatprep.subr.mxu0 0.0
        %4059 = vmatpush1.msra.mxu0 0.0
        %4060 = vmatprep.subr.mxu0 0.0
        %4061 = vmatpush1.msra.mxu0 0.0
        %4062 = vmatprep.subr.mxu0 0.0
        %4063 = vmatpush1.msra.mxu0 0.0
        %4064 = vmatprep.subr.mxu0 0.0
        %4065 = vmatpush1.msra.mxu0 0.0
        %4066 = vmatprep.subr.mxu0 0.0
        %4067 = vmatpush1.msra.mxu0 0.0
        %4068 = vmatprep.subr.mxu0 0.0
        %4069 = vmatpush1.msra.mxu0 0.0
        %4070 = vmatprep.subr.mxu0 0.0
        %4071 = vmatpush1.msra.mxu0 0.0
        %4072 = vmatprep.subr.mxu0 0.0
        %4073 = vmatpush1.msra.mxu0 0.0
        %4074 = vmatprep.subr.mxu0 0.0
        %4075 = vmatpush1.msra.mxu0 0.0
        %4076 = vmatprep.subr.mxu0 0.0
        %4077 = vmatpush1.msra.mxu0 0.0
        %4078 = vmatprep.subr.mxu0 0.0
        %4079 = vmatpush1.msra.mxu0 0.0
        %4080 = vmatprep.subr.mxu0 0.0
        %4081 = vmatpush1.msra.mxu0 0.0
        %4082 = vmatprep.subr.mxu0 0.0
        %4083 = vmatpush1.msra.mxu0 0.0
        %4084 = vmatprep.subr.mxu0 0.0
        %4085 = vmatpush1.msra.mxu0 0.0
        %4086 = vmatprep.subr.mxu0 0.0
        %4087 = vmatpush1.msra.mxu0 0.0
        %4088 = vmatprep.subr.mxu0 0.0
        %4089 = vmatpush1.msra.mxu0 0.0
        %4090 = vmatprep.subr.mxu0 0.0
        %4091 = vmatpush1.msra.mxu0 0.0
        %4092 = vmatprep.subr.mxu0 0.0
        %4093 = vmatpush1.msra.mxu0 0.0
        %4094 = vmatprep.subr.mxu0 0.0
        %4095 = vmatpush1.msra.mxu0 0.0
        %4096 = vmatprep.subr.mxu0 0.0
        %4097 = vmatpush1.msra.mxu0 0.0
        %4098 = vmatprep.subr.mxu0 0.0
        %4099 = vmatpush1.msra.mxu0 0.0
        %4100 = vmatprep.subr.mxu0 0.0
        %4101 = vmatpush1.msra.mxu0 0.0
        %4102 = vmatprep.subr.mxu0 0.0
        %4103 = vmatpush1.msra.mxu0 0.0
        %4104 = vmatprep.subr.mxu0 0.0
        %4105 = vmatpush1.msra.mxu0 0.0
        %4106 = vmatprep.subr.mxu0 0.0
        %4107 = vmatpush1.msra.mxu0 0.0
        %4108 = vmatprep.mubr.f32.mxu0 0.0
        %4109 = vmatmul.mubr.f32.gmra.mrb[0].mxu0 %v3944
        %v4110 = vpop.f32.mrb[0].mxu0
        %v4111 = vadd.f32 %v4022, %v4110
        %v4112 = vpop.f32.mrb[0].mxu0
        %v4113 = vadd.f32 %v4024, %v4112
        %4114 = vmatprep.mubr.f32.mxu0 0.0
        %4115 = vmatmul.mubr.f32.gmra.mrb[0].mxu0 %v3947
        %v4116 = vpop.f32.mrb[0].mxu0
        %v4117 = vadd.f32 %v4028, %v4116
        %v4118 = vpop.f32.mrb[0].mxu0
        %v4119 = vadd.f32 %v4030, %v4118
        %4120 = vmatprep.mubr.f32.mxu0 0.0
        %4121 = vmatmul.mubr.f32.gmra.mrb[0].mxu0 %v3950
        %v4122 = vpop.f32.mrb[0].mxu0
        %v4123 = vadd.f32 %v4034, %v4122
        %v4124 = vpop.f32.mrb[0].mxu0
        %v4125 = vadd.f32 %v4036, %v4124
        %4126 = vmatprep.mubr.f32.mxu0 0.0
        %4127 = vmatmul.mubr.f32.gmra.mrb[0].mxu0 %v3953
        %v4128 = vpop.f32.mrb[0].mxu0
        %v4129 = vadd.f32 %v4040, %v4128
        %v4130 = vpop.f32.mrb[0].mxu0
        %v4131 = vadd.f32 %v4042, %v4130
        %4132 = vdwg.mxu0
        %v4133 = vmax.f32 %v4111, 0.0
        %v4134 = vmax.f32 %v4113, 0.0
        %v4135 = vmax.f32 %v4117, 0.0
        %v4136 = vmax.f32 %v4119, 0.0
        %v4137 = vmax.f32 %v4123, 0.0
        %v4138 = vmax.f32 %v4125, 0.0
        %v4139 = vmax.f32 %v4129, 0.0
        %v4140 = vmax.f32 %v4131, 0.0
        %s4141 = scalar_lea.vmem [#allocation7], 160
        %v4142 = vld [vmem:[%s4141] sm:$0xff]
        %v4143 = vld [vmem:[%s4141 + $0x8] sm:$0xff]
        %v4144 = vld [vmem:[%s4141 + $0x10] sm:$0xff]
        %v4145 = vld [vmem:[%s4141 + $0x18] sm:$0xff]
        %s4146 = scalar_lea.vmem %s8, 352
        %v4147 = vld [vmem:[%s4146] sm:$0xff]
        %v4148 = vld [vmem:[%s4146 + $0x8] sm:$0xff]
        %v4149 = vld [vmem:[%s4146 + $0x10] sm:$0xff]
        %v4150 = vld [vmem:[%s4146 + $0x18] sm:$0xff]
        %4152 = vset.pattern.permute.xlu0 0
        %4153 = vperm.xlu0 %4152, %v4147
        %v4154 = vpop.permute.xlu0 %4153
        %4157 = vset.pattern.permute.xlu0 0
        %4158 = vperm.xlu0 %4157, %v4148
        %v4159 = vpop.permute.xlu0 %4158
        %4162 = vset.pattern.permute.xlu0 0
        %4163 = vperm.xlu0 %4162, %v4149
        %v4164 = vpop.permute.xlu0 %4163
        %4167 = vset.pattern.permute.xlu0 0
        %4168 = vperm.xlu0 %4167, %v4150
        %v4169 = vpop.permute.xlu0 %4168
        %v4172 = vsel %vm1177, %v4142, 0
        %v4175 = vsel %vm1177, %v4143, 0
        %v4178 = vsel %vm1177, %v4144, 0
        %v4181 = vsel %vm1177, %v4145, 0
        %4183 = vmatprep.subr.mxu0 %v4134
        %4184 = vmatpush1.msra.mxu0 %v4133
        %4185 = vmatprep.subr.mxu0 %v4136
        %4186 = vmatpush1.msra.mxu0 %v4135
        %4187 = vmatprep.subr.mxu0 %v4138
        %4188 = vmatpush1.msra.mxu0 %v4137
        %4189 = vmatprep.subr.mxu0 %v4140
        %4190 = vmatpush1.msra.mxu0 %v4139
        %4191 = vmatprep.subr.mxu0 0.0
        %4192 = vmatpush1.msra.mxu0 0.0
        %4193 = vmatprep.subr.mxu0 0.0
        %4194 = vmatpush1.msra.mxu0 0.0
        %4195 = vmatprep.subr.mxu0 0.0
        %4196 = vmatpush1.msra.mxu0 0.0
        %4197 = vmatprep.subr.mxu0 0.0
        %4198 = vmatpush1.msra.mxu0 0.0
        %4199 = vmatprep.subr.mxu0 0.0
        %4200 = vmatpush1.msra.mxu0 0.0
        %4201 = vmatprep.subr.mxu0 0.0
        %4202 = vmatpush1.msra.mxu0 0.0
        %4203 = vmatprep.subr.mxu0 0.0
        %4204 = vmatpush1.msra.mxu0 0.0
        %4205 = vmatprep.subr.mxu0 0.0
        %4206 = vmatpush1.msra.mxu0 0.0
        %4207 = vmatprep.subr.mxu0 0.0
        %4208 = vmatpush1.msra.mxu0 0.0
        %4209 = vmatprep.subr.mxu0 0.0
        %4210 = vmatpush1.msra.mxu0 0.0
        %4211 = vmatprep.subr.mxu0 0.0
        %4212 = vmatpush1.msra.mxu0 0.0
        %4213 = vmatprep.subr.mxu0 0.0
        %4214 = vmatpush1.msra.mxu0 0.0
        %4215 = vmatprep.subr.mxu0 0.0
        %4216 = vmatpush1.msra.mxu0 0.0
        %4217 = vmatprep.subr.mxu0 0.0
        %4218 = vmatpush1.msra.mxu0 0.0
        %4219 = vmatprep.subr.mxu0 0.0
        %4220 = vmatpush1.msra.mxu0 0.0
        %4221 = vmatprep.subr.mxu0 0.0
        %4222 = vmatpush1.msra.mxu0 0.0
        %4223 = vmatprep.subr.mxu0 0.0
        %4224 = vmatpush1.msra.mxu0 0.0
        %4225 = vmatprep.subr.mxu0 0.0
        %4226 = vmatpush1.msra.mxu0 0.0
        %4227 = vmatprep.subr.mxu0 0.0
        %4228 = vmatpush1.msra.mxu0 0.0
        %4229 = vmatprep.subr.mxu0 0.0
        %4230 = vmatpush1.msra.mxu0 0.0
        %4231 = vmatprep.subr.mxu0 0.0
        %4232 = vmatpush1.msra.mxu0 0.0
        %4233 = vmatprep.subr.mxu0 0.0
        %4234 = vmatpush1.msra.mxu0 0.0
        %4235 = vmatprep.subr.mxu0 0.0
        %4236 = vmatpush1.msra.mxu0 0.0
        %4237 = vmatprep.subr.mxu0 0.0
        %4238 = vmatpush1.msra.mxu0 0.0
        %4239 = vmatprep.subr.mxu0 0.0
        %4240 = vmatpush1.msra.mxu0 0.0
        %4241 = vmatprep.subr.mxu0 0.0
        %4242 = vmatpush1.msra.mxu0 0.0
        %4243 = vmatprep.subr.mxu0 0.0
        %4244 = vmatpush1.msra.mxu0 0.0
        %4245 = vmatprep.subr.mxu0 0.0
        %4246 = vmatpush1.msra.mxu0 0.0
        %4247 = vmatprep.mubr.f32.mxu0 0.0
        %4248 = vmatmul.mubr.f32.gmra.mrb[0].mxu0 %v4172
        %v4249 = vpop.f32.mrb[0].mxu0
        %v4250 = vadd.f32 %v4154, %v4249
        %v4251 = vpop.f32.mrb[0].mxu0
        %v4252 = vadd.f32 %v4154, %v4251
        %4253 = vmatprep.mubr.f32.mxu0 0.0
        %4254 = vmatmul.mubr.f32.gmra.mrb[0].mxu0 %v4175
        %v4255 = vpop.f32.mrb[0].mxu0
        %v4256 = vadd.f32 %v4159, %v4255
        %v4257 = vpop.f32.mrb[0].mxu0
        %v4258 = vadd.f32 %v4159, %v4257
        %4259 = vmatprep.mubr.f32.mxu0 0.0
        %4260 = vmatmul.mubr.f32.gmra.mrb[0].mxu0 %v4178
        %v4261 = vpop.f32.mrb[0].mxu0
        %v4262 = vadd.f32 %v4164, %v4261
        %v4263 = vpop.f32.mrb[0].mxu0
        %v4264 = vadd.f32 %v4164, %v4263
        %4265 = vmatprep.mubr.f32.mxu0 0.0
        %4266 = vmatmul.mubr.f32.gmra.mrb[0].mxu0 %v4181
        %v4267 = vpop.f32.mrb[0].mxu0
        %v4268 = vadd.f32 %v4169, %v4267
        %v4269 = vpop.f32.mrb[0].mxu0
        %v4270 = vadd.f32 %v4169, %v4269
        %4271 = vdwg.mxu0
        %v4272 = vadd.f32 %v3633, %v4250
        %v4273 = vadd.f32 %v3634, %v4252
        %v4274 = vadd.f32 %v3635, %v4256
        %v4275 = vadd.f32 %v3636, %v4258
        %v4276 = vadd.f32 %v3637, %v4262
        %v4277 = vadd.f32 %v3638, %v4264
        %v4278 = vadd.f32 %v3639, %v4268
        %v4279 = vadd.f32 %v3640, %v4270
        %s4280 = scalar_lea.vmem [#allocation4], 384
        %v4281 = vld [vmem:[%s4280] sm:$0xff]
        %v4282 = vld [vmem:[%s4280 + $0x8] sm:$0xff]
        %v4283 = vld [vmem:[%s4280 + $0x10] sm:$0xff]
        %v4284 = vld [vmem:[%s4280 + $0x18] sm:$0xff]
        %v4285 = vld [vmem:[%s4280 + $0x20] sm:$0xff]
        %v4286 = vld [vmem:[%s4280 + $0x28] sm:$0xff]
        %v4287 = vld [vmem:[%s4280 + $0x30] sm:$0xff]
        %v4288 = vld [vmem:[%s4280 + $0x38] sm:$0xff]
        %v4289 = vld [vmem:[%s4280 + $0x40] sm:$0xff]
        %v4290 = vld [vmem:[%s4280 + $0x48] sm:$0xff]
        %v4291 = vld [vmem:[%s4280 + $0x50] sm:$0xff]
        %v4292 = vld [vmem:[%s4280 + $0x58] sm:$0xff]
        %4293 = vrot.lane.b32.xlu0 %v4272, 34
        %v4294 = vpop.permute.xlu0 %4293
        %4295 = vrot.lane.b32.xlu0 %v4274, 34
        %v4296 = vpop.permute.xlu0 %4295
        %4297 = vrot.lane.b32.xlu0 %v4276, 34
        %v4298 = vpop.permute.xlu0 %4297
        %4299 = vrot.lane.b32.xlu0 %v4278, 34
        %v4300 = vpop.permute.xlu0 %4299
        %4301 = vrot.lane.b32.xlu0 %v4273, 34
        %v4302 = vpop.permute.xlu0 %4301
        %4303 = vrot.lane.b32.xlu0 %v4275, 34
        %v4304 = vpop.permute.xlu0 %4303
        %4305 = vrot.lane.b32.xlu0 %v4277, 34
        %v4306 = vpop.permute.xlu0 %4305
        %4307 = vrot.lane.b32.xlu0 %v4279, 34
        %v4308 = vpop.permute.xlu0 %4307
        %v4309 = vsel %vm456, %v4294, %v4302
        %v4310 = vsel %vm456, %v4296, %v4304
        %v4311 = vsel %vm456, %v4298, %v4306
        %v4312 = vsel %vm456, %v4300, %v4308
        %v4313 = vsel %vm456, %v4302, %v4294
        %v4314 = vsel %vm456, %v4304, %v4296
        %v4315 = vsel %vm456, %v4306, %v4298
        %v4316 = vsel %vm456, %v4308, %v4300
        %4317 = vrot.lane.b32.xlu0 %v4272, 32
        %v4318 = vpop.permute.xlu0 %4317
        %4319 = vrot.lane.b32.xlu0 %v4274, 32
        %v4320 = vpop.permute.xlu0 %4319
        %4321 = vrot.lane.b32.xlu0 %v4276, 32
        %v4322 = vpop.permute.xlu0 %4321
        %4323 = vrot.lane.b32.xlu0 %v4278, 32
        %v4324 = vpop.permute.xlu0 %4323
        %4325 = vrot.lane.b32.xlu0 %v4273, 32
        %v4326 = vpop.permute.xlu0 %4325
        %4327 = vrot.lane.b32.xlu0 %v4275, 32
        %v4328 = vpop.permute.xlu0 %4327
        %4329 = vrot.lane.b32.xlu0 %v4277, 32
        %v4330 = vpop.permute.xlu0 %4329
        %4331 = vrot.lane.b32.xlu0 %v4279, 32
        %v4332 = vpop.permute.xlu0 %4331
        %v4333 = vsel %vm470, %v4318, %v4326
        %v4334 = vsel %vm470, %v4320, %v4328
        %v4335 = vsel %vm470, %v4322, %v4330
        %v4336 = vsel %vm470, %v4324, %v4332
        %v4337 = vsel %vm470, %v4326, %v4318
        %v4338 = vsel %vm470, %v4328, %v4320
        %v4339 = vsel %vm470, %v4330, %v4322
        %v4340 = vsel %vm470, %v4332, %v4324
        %4341 = vrot.lane.b32.xlu0 %v4272, 30
        %v4342 = vpop.permute.xlu0 %4341
        %4343 = vrot.lane.b32.xlu0 %v4274, 30
        %v4344 = vpop.permute.xlu0 %4343
        %4345 = vrot.lane.b32.xlu0 %v4276, 30
        %v4346 = vpop.permute.xlu0 %4345
        %4347 = vrot.lane.b32.xlu0 %v4278, 30
        %v4348 = vpop.permute.xlu0 %4347
        %4349 = vrot.lane.b32.xlu0 %v4273, 30
        %v4350 = vpop.permute.xlu0 %4349
        %4351 = vrot.lane.b32.xlu0 %v4275, 30
        %v4352 = vpop.permute.xlu0 %4351
        %4353 = vrot.lane.b32.xlu0 %v4277, 30
        %v4354 = vpop.permute.xlu0 %4353
        %4355 = vrot.lane.b32.xlu0 %v4279, 30
        %v4356 = vpop.permute.xlu0 %4355
        %v4357 = vsel %vm484, %v4342, %v4350
        %v4358 = vsel %vm484, %v4344, %v4352
        %v4359 = vsel %vm484, %v4346, %v4354
        %v4360 = vsel %vm484, %v4348, %v4356
        %v4361 = vsel %vm484, %v4350, %v4342
        %v4362 = vsel %vm484, %v4352, %v4344
        %v4363 = vsel %vm484, %v4354, %v4346
        %v4364 = vsel %vm484, %v4356, %v4348
        %4365 = vrot.lane.b32.xlu0 %v4272, 2
        %v4366 = vpop.permute.xlu0 %4365
        %4367 = vrot.lane.b32.xlu0 %v4274, 2
        %v4368 = vpop.permute.xlu0 %4367
        %4369 = vrot.lane.b32.xlu0 %v4276, 2
        %v4370 = vpop.permute.xlu0 %4369
        %4371 = vrot.lane.b32.xlu0 %v4278, 2
        %v4372 = vpop.permute.xlu0 %4371
        %4373 = vrot.lane.b32.xlu0 %v4273, 2
        %v4374 = vpop.permute.xlu0 %4373
        %4375 = vrot.lane.b32.xlu0 %v4275, 2
        %v4376 = vpop.permute.xlu0 %4375
        %4377 = vrot.lane.b32.xlu0 %v4277, 2
        %v4378 = vpop.permute.xlu0 %4377
        %4379 = vrot.lane.b32.xlu0 %v4279, 2
        %v4380 = vpop.permute.xlu0 %4379
        %v4381 = vsel %vm526, %v4366, %v4374
        %v4382 = vsel %vm526, %v4368, %v4376
        %v4383 = vsel %vm526, %v4370, %v4378
        %v4384 = vsel %vm526, %v4372, %v4380
        %v4385 = vsel %vm526, %v4374, %v4366
        %v4386 = vsel %vm526, %v4376, %v4368
        %v4387 = vsel %vm526, %v4378, %v4370
        %v4388 = vsel %vm526, %v4380, %v4372
        %4389 = vrot.lane.b32.xlu0 %v4272, 126
        %v4390 = vpop.permute.xlu0 %4389
        %4391 = vrot.lane.b32.xlu0 %v4274, 126
        %v4392 = vpop.permute.xlu0 %4391
        %4393 = vrot.lane.b32.xlu0 %v4276, 126
        %v4394 = vpop.permute.xlu0 %4393
        %4395 = vrot.lane.b32.xlu0 %v4278, 126
        %v4396 = vpop.permute.xlu0 %4395
        %4397 = vrot.lane.b32.xlu0 %v4273, 126
        %v4398 = vpop.permute.xlu0 %4397
        %4399 = vrot.lane.b32.xlu0 %v4275, 126
        %v4400 = vpop.permute.xlu0 %4399
        %4401 = vrot.lane.b32.xlu0 %v4277, 126
        %v4402 = vpop.permute.xlu0 %4401
        %4403 = vrot.lane.b32.xlu0 %v4279, 126
        %v4404 = vpop.permute.xlu0 %4403
        %v4405 = vsel %vm547, %v4390, %v4398
        %v4406 = vsel %vm547, %v4392, %v4400
        %v4407 = vsel %vm547, %v4394, %v4402
        %v4408 = vsel %vm547, %v4396, %v4404
        %v4409 = vsel %vm547, %v4398, %v4390
        %v4410 = vsel %vm547, %v4400, %v4392
        %v4411 = vsel %vm547, %v4402, %v4394
        %v4412 = vsel %vm547, %v4404, %v4396
        %4413 = vrot.lane.b32.xlu0 %v4272, 98
        %v4414 = vpop.permute.xlu0 %4413
        %4415 = vrot.lane.b32.xlu0 %v4274, 98
        %v4416 = vpop.permute.xlu0 %4415
        %4417 = vrot.lane.b32.xlu0 %v4276, 98
        %v4418 = vpop.permute.xlu0 %4417
        %4419 = vrot.lane.b32.xlu0 %v4278, 98
        %v4420 = vpop.permute.xlu0 %4419
        %4421 = vrot.lane.b32.xlu0 %v4273, 98
        %v4422 = vpop.permute.xlu0 %4421
        %4423 = vrot.lane.b32.xlu0 %v4275, 98
        %v4424 = vpop.permute.xlu0 %4423
        %4425 = vrot.lane.b32.xlu0 %v4277, 98
        %v4426 = vpop.permute.xlu0 %4425
        %4427 = vrot.lane.b32.xlu0 %v4279, 98
        %v4428 = vpop.permute.xlu0 %4427
        %v4429 = vsel %vm589, %v4414, %v4422
        %v4430 = vsel %vm589, %v4416, %v4424
        %v4431 = vsel %vm589, %v4418, %v4426
        %v4432 = vsel %vm589, %v4420, %v4428
        %v4433 = vsel %vm589, %v4422, %v4414
        %v4434 = vsel %vm589, %v4424, %v4416
        %v4435 = vsel %vm589, %v4426, %v4418
        %v4436 = vsel %vm589, %v4428, %v4420
        %4437 = vrot.lane.b32.xlu0 %v4272, 96
        %v4438 = vpop.permute.xlu0 %4437
        %4439 = vrot.lane.b32.xlu0 %v4274, 96
        %v4440 = vpop.permute.xlu0 %4439
        %4441 = vrot.lane.b32.xlu0 %v4276, 96
        %v4442 = vpop.permute.xlu0 %4441
        %4443 = vrot.lane.b32.xlu0 %v4278, 96
        %v4444 = vpop.permute.xlu0 %4443
        %4445 = vrot.lane.b32.xlu0 %v4273, 96
        %v4446 = vpop.permute.xlu0 %4445
        %4447 = vrot.lane.b32.xlu0 %v4275, 96
        %v4448 = vpop.permute.xlu0 %4447
        %4449 = vrot.lane.b32.xlu0 %v4277, 96
        %v4450 = vpop.permute.xlu0 %4449
        %4451 = vrot.lane.b32.xlu0 %v4279, 96
        %v4452 = vpop.permute.xlu0 %4451
        %v4453 = vsel %vm603, %v4438, %v4446
        %v4454 = vsel %vm603, %v4440, %v4448
        %v4455 = vsel %vm603, %v4442, %v4450
        %v4456 = vsel %vm603, %v4444, %v4452
        %v4457 = vsel %vm603, %v4446, %v4438
        %v4458 = vsel %vm603, %v4448, %v4440
        %v4459 = vsel %vm603, %v4450, %v4442
        %v4460 = vsel %vm603, %v4452, %v4444
        %4461 = vrot.lane.b32.xlu0 %v4272, 94
        %v4462 = vpop.permute.xlu0 %4461
        %4463 = vrot.lane.b32.xlu0 %v4274, 94
        %v4464 = vpop.permute.xlu0 %4463
        %4465 = vrot.lane.b32.xlu0 %v4276, 94
        %v4466 = vpop.permute.xlu0 %4465
        %4467 = vrot.lane.b32.xlu0 %v4278, 94
        %v4468 = vpop.permute.xlu0 %4467
        %4469 = vrot.lane.b32.xlu0 %v4273, 94
        %v4470 = vpop.permute.xlu0 %4469
        %4471 = vrot.lane.b32.xlu0 %v4275, 94
        %v4472 = vpop.permute.xlu0 %4471
        %4473 = vrot.lane.b32.xlu0 %v4277, 94
        %v4474 = vpop.permute.xlu0 %4473
        %4475 = vrot.lane.b32.xlu0 %v4279, 94
        %v4476 = vpop.permute.xlu0 %4475
        %v4477 = vsel %vm617, %v4462, %v4470
        %v4478 = vsel %vm617, %v4464, %v4472
        %v4479 = vsel %vm617, %v4466, %v4474
        %v4480 = vsel %vm617, %v4468, %v4476
        %v4481 = vsel %vm617, %v4470, %v4462
        %v4482 = vsel %vm617, %v4472, %v4464
        %v4483 = vsel %vm617, %v4474, %v4466
        %v4484 = vsel %vm617, %v4476, %v4468
        %v4485 = vmul.f32 %v4313, %v1653
        %v4486 = vmul.f32 %v4309, %v1654
        %v4487 = vmul.f32 %v4314, %v1655
        %v4488 = vmul.f32 %v4310, %v1656
        %v4489 = vmul.f32 %v4315, %v1657
        %v4490 = vmul.f32 %v4311, %v1658
        %v4491 = vmul.f32 %v4316, %v1659
        %v4492 = vmul.f32 %v4312, %v1660
        %v4493 = vmul.f32 %v4337, %v1661
        %v4494 = vmul.f32 %v4333, %v1662
        %v4495 = vmul.f32 %v4338, %v1663
        %v4496 = vmul.f32 %v4334, %v1664
        %v4497 = vmul.f32 %v4339, %v1665
        %v4498 = vmul.f32 %v4335, %v1666
        %v4499 = vmul.f32 %v4340, %v1667
        %v4500 = vmul.f32 %v4336, %v1668
        %v4501 = vmul.f32 %v4361, %v1669
        %v4502 = vmul.f32 %v4357, %v1670
        %v4503 = vmul.f32 %v4362, %v1671
        %v4504 = vmul.f32 %v4358, %v1672
        %v4505 = vmul.f32 %v4363, %v1673
        %v4506 = vmul.f32 %v4359, %v1674
        %v4507 = vmul.f32 %v4364, %v1675
        %v4508 = vmul.f32 %v4360, %v1676
        %v4509 = vmul.f32 %v4385, %v1677
        %v4510 = vmul.f32 %v4381, %v1678
        %v4511 = vmul.f32 %v4386, %v1679
        %v4512 = vmul.f32 %v4382, %v1680
        %v4513 = vmul.f32 %v4387, %v1681
        %v4514 = vmul.f32 %v4383, %v1682
        %v4515 = vmul.f32 %v4388, %v1683
        %v4516 = vmul.f32 %v4384, %v1684
        %v4517 = vmul.f32 %v4272, %v1685
        %v4518 = vmul.f32 %v4273, %v1686
        %v4519 = vmul.f32 %v4274, %v1687
        %v4520 = vmul.f32 %v4275, %v1688
        %v4521 = vmul.f32 %v4276, %v1689
        %v4522 = vmul.f32 %v4277, %v1690
        %v4523 = vmul.f32 %v4278, %v1691
        %v4524 = vmul.f32 %v4279, %v1692
        %v4525 = vmul.f32 %v4405, %v1693
        %v4526 = vmul.f32 %v4409, %v1694
        %v4527 = vmul.f32 %v4406, %v1695
        %v4528 = vmul.f32 %v4410, %v1696
        %v4529 = vmul.f32 %v4407, %v1697
        %v4530 = vmul.f32 %v4411, %v1698
        %v4531 = vmul.f32 %v4408, %v1699
        %v4532 = vmul.f32 %v4412, %v1700
        %v4533 = vmul.f32 %v4429, %v1701
        %v4534 = vmul.f32 %v4433, %v1702
        %v4535 = vmul.f32 %v4430, %v1703
        %v4536 = vmul.f32 %v4434, %v1704
        %v4537 = vmul.f32 %v4431, %v1705
        %v4538 = vmul.f32 %v4435, %v1706
        %v4539 = vmul.f32 %v4432, %v1707
        %v4540 = vmul.f32 %v4436, %v1708
        %v4541 = vmul.f32 %v4453, %v1709
        %v4542 = vmul.f32 %v4457, %v1710
        %v4543 = vmul.f32 %v4454, %v1711
        %v4544 = vmul.f32 %v4458, %v1712
        %v4545 = vmul.f32 %v4455, %v1713
        %v4546 = vmul.f32 %v4459, %v1714
        %v4547 = vmul.f32 %v4456, %v1715
        %v4548 = vmul.f32 %v4460, %v1716
        %v4549 = vmul.f32 %v4477, %v1717
        %v4550 = vmul.f32 %v4481, %v1718
        %v4551 = vmul.f32 %v4478, %v1719
        %v4552 = vmul.f32 %v4482, %v1720
        %v4553 = vmul.f32 %v4479, %v1721
        %v4554 = vmul.f32 %v4483, %v1722
        %v4555 = vmul.f32 %v4480, %v1723
        %v4556 = vmul.f32 %v4484, %v1724
        %s4557 = scalar_lea.vmem %s8, 384
        %v4558 = vld [vmem:[%s4557] sm:$0xff]
        %v4559 = vld [vmem:[%s4557 + $0x8] sm:$0xff]
        %v4560 = vld [vmem:[%s4557 + $0x10] sm:$0xff]
        %v4561 = vld [vmem:[%s4557 + $0x18] sm:$0xff]
        %4563 = vset.pattern.permute.xlu0 0
        %4564 = vperm.xlu0 %4563, %v4558
        %v4565 = vpop.permute.xlu0 %4564
        %4568 = vset.pattern.permute.xlu0 0
        %4569 = vperm.xlu0 %4568, %v4559
        %v4570 = vpop.permute.xlu0 %4569
        %4573 = vset.pattern.permute.xlu0 0
        %4574 = vperm.xlu0 %4573, %v4560
        %v4575 = vpop.permute.xlu0 %4574
        %4578 = vset.pattern.permute.xlu0 0
        %4579 = vperm.xlu0 %4578, %v4561
        %v4580 = vpop.permute.xlu0 %4579
        %v4583 = vsel %vm1177, %v4283, 0
        %v4586 = vsel %vm1177, %v4286, 0
        %v4589 = vsel %vm1177, %v4289, 0
        %v4592 = vsel %vm1177, %v4292, 0
        %4594 = vmatprep.subr.mxu0 %v4486
        %4595 = vmatpush1.msra.mxu0 %v4485
        %4596 = vmatprep.subr.mxu0 %v4488
        %4597 = vmatpush1.msra.mxu0 %v4487
        %4598 = vmatprep.subr.mxu0 %v4490
        %4599 = vmatpush1.msra.mxu0 %v4489
        %4600 = vmatprep.subr.mxu0 %v4492
        %4601 = vmatpush1.msra.mxu0 %v4491
        %4602 = vmatprep.subr.mxu0 %v4494
        %4603 = vmatpush1.msra.mxu0 %v4493
        %4604 = vmatprep.subr.mxu0 %v4496
        %4605 = vmatpush1.msra.mxu0 %v4495
        %4606 = vmatprep.subr.mxu0 %v4498
        %4607 = vmatpush1.msra.mxu0 %v4497
        %4608 = vmatprep.subr.mxu0 %v4500
        %4609 = vmatpush1.msra.mxu0 %v4499
        %4610 = vmatprep.subr.mxu0 %v4502
        %4611 = vmatpush1.msra.mxu0 %v4501
        %4612 = vmatprep.subr.mxu0 %v4504
        %4613 = vmatpush1.msra.mxu0 %v4503
        %4614 = vmatprep.subr.mxu0 %v4506
        %4615 = vmatpush1.msra.mxu0 %v4505
        %4616 = vmatprep.subr.mxu0 %v4508
        %4617 = vmatpush1.msra.mxu0 %v4507
        %4618 = vmatprep.subr.mxu0 %v4510
        %4619 = vmatpush1.msra.mxu0 %v4509
        %4620 = vmatprep.subr.mxu0 %v4512
        %4621 = vmatpush1.msra.mxu0 %v4511
        %4622 = vmatprep.subr.mxu0 %v4514
        %4623 = vmatpush1.msra.mxu0 %v4513
        %4624 = vmatprep.subr.mxu0 %v4516
        %4625 = vmatpush1.msra.mxu0 %v4515
        %4626 = vmatprep.subr.mxu0 %v4518
        %4627 = vmatpush1.msra.mxu0 %v4517
        %4628 = vmatprep.subr.mxu0 %v4520
        %4629 = vmatpush1.msra.mxu0 %v4519
        %4630 = vmatprep.subr.mxu0 %v4522
        %4631 = vmatpush1.msra.mxu0 %v4521
        %4632 = vmatprep.subr.mxu0 %v4524
        %4633 = vmatpush1.msra.mxu0 %v4523
        %4634 = vmatprep.subr.mxu0 %v4526
        %4635 = vmatpush1.msra.mxu0 %v4525
        %4636 = vmatprep.subr.mxu0 %v4528
        %4637 = vmatpush1.msra.mxu0 %v4527
        %4638 = vmatprep.subr.mxu0 %v4530
        %4639 = vmatpush1.msra.mxu0 %v4529
        %4640 = vmatprep.subr.mxu0 %v4532
        %4641 = vmatpush1.msra.mxu0 %v4531
        %4642 = vmatprep.subr.mxu0 %v4534
        %4643 = vmatpush1.msra.mxu0 %v4533
        %4644 = vmatprep.subr.mxu0 %v4536
        %4645 = vmatpush1.msra.mxu0 %v4535
        %4646 = vmatprep.subr.mxu0 %v4538
        %4647 = vmatpush1.msra.mxu0 %v4537
        %4648 = vmatprep.subr.mxu0 %v4540
        %4649 = vmatpush1.msra.mxu0 %v4539
        %4650 = vmatprep.subr.mxu0 %v4542
        %4651 = vmatpush1.msra.mxu0 %v4541
        %4652 = vmatprep.subr.mxu0 %v4544
        %4653 = vmatpush1.msra.mxu0 %v4543
        %4654 = vmatprep.subr.mxu0 %v4546
        %4655 = vmatpush1.msra.mxu0 %v4545
        %4656 = vmatprep.subr.mxu0 %v4548
        %4657 = vmatpush1.msra.mxu0 %v4547
        %4658 = vmatprep.mubr.f32.mxu0 %v4282
        %4659 = vmatmul.mubr.f32.gmra.mrb[0].mxu0 %v4281
        %v4660 = vpop.f32.mrb[0].mxu0
        %v4661 = vadd.f32 %v4565, %v4660
        %v4662 = vpop.f32.mrb[0].mxu0
        %v4663 = vadd.f32 %v4565, %v4662
        %4664 = vmatprep.mubr.f32.mxu0 %v4285
        %4665 = vmatmul.mubr.f32.gmra.mrb[0].mxu0 %v4284
        %v4666 = vpop.f32.mrb[0].mxu0
        %v4667 = vadd.f32 %v4570, %v4666
        %v4668 = vpop.f32.mrb[0].mxu0
        %v4669 = vadd.f32 %v4570, %v4668
        %4670 = vmatprep.mubr.f32.mxu0 %v4288
        %4671 = vmatmul.mubr.f32.gmra.mrb[0].mxu0 %v4287
        %v4672 = vpop.f32.mrb[0].mxu0
        %v4673 = vadd.f32 %v4575, %v4672
        %v4674 = vpop.f32.mrb[0].mxu0
        %v4675 = vadd.f32 %v4575, %v4674
        %4676 = vmatprep.mubr.f32.mxu0 %v4291
        %4677 = vmatmul.mubr.f32.gmra.mrb[0].mxu0 %v4290
        %v4678 = vpop.f32.mrb[0].mxu0
        %v4679 = vadd.f32 %v4580, %v4678
        %v4680 = vpop.f32.mrb[0].mxu0
        %v4681 = vadd.f32 %v4580, %v4680
        %4682 = vdwg.mxu0
        %4683 = vmatprep.subr.mxu0 %v4550
        %4684 = vmatpush1.msra.mxu0 %v4549
        %4685 = vmatprep.subr.mxu0 %v4552
        %4686 = vmatpush1.msra.mxu0 %v4551
        %4687 = vmatprep.subr.mxu0 %v4554
        %4688 = vmatpush1.msra.mxu0 %v4553
        %4689 = vmatprep.subr.mxu0 %v4556
        %4690 = vmatpush1.msra.mxu0 %v4555
        %4691 = vmatprep.subr.mxu0 0.0
        %4692 = vmatpush1.msra.mxu0 0.0
        %4693 = vmatprep.subr.mxu0 0.0
        %4694 = vmatpush1.msra.mxu0 0.0
        %4695 = vmatprep.subr.mxu0 0.0
        %4696 = vmatpush1.msra.mxu0 0.0
        %4697 = vmatprep.subr.mxu0 0.0
        %4698 = vmatpush1.msra.mxu0 0.0
        %4699 = vmatprep.subr.mxu0 0.0
        %4700 = vmatpush1.msra.mxu0 0.0
        %4701 = vmatprep.subr.mxu0 0.0
        %4702 = vmatpush1.msra.mxu0 0.0
        %4703 = vmatprep.subr.mxu0 0.0
        %4704 = vmatpush1.msra.mxu0 0.0
        %4705 = vmatprep.subr.mxu0 0.0
        %4706 = vmatpush1.msra.mxu0 0.0
        %4707 = vmatprep.subr.mxu0 0.0
        %4708 = vmatpush1.msra.mxu0 0.0
        %4709 = vmatprep.subr.mxu0 0.0
        %4710 = vmatpush1.msra.mxu0 0.0
        %4711 = vmatprep.subr.mxu0 0.0
        %4712 = vmatpush1.msra.mxu0 0.0
        %4713 = vmatprep.subr.mxu0 0.0
        %4714 = vmatpush1.msra.mxu0 0.0
        %4715 = vmatprep.subr.mxu0 0.0
        %4716 = vmatpush1.msra.mxu0 0.0
        %4717 = vmatprep.subr.mxu0 0.0
        %4718 = vmatpush1.msra.mxu0 0.0
        %4719 = vmatprep.subr.mxu0 0.0
        %4720 = vmatpush1.msra.mxu0 0.0
        %4721 = vmatprep.subr.mxu0 0.0
        %4722 = vmatpush1.msra.mxu0 0.0
        %4723 = vmatprep.subr.mxu0 0.0
        %4724 = vmatpush1.msra.mxu0 0.0
        %4725 = vmatprep.subr.mxu0 0.0
        %4726 = vmatpush1.msra.mxu0 0.0
        %4727 = vmatprep.subr.mxu0 0.0
        %4728 = vmatpush1.msra.mxu0 0.0
        %4729 = vmatprep.subr.mxu0 0.0
        %4730 = vmatpush1.msra.mxu0 0.0
        %4731 = vmatprep.subr.mxu0 0.0
        %4732 = vmatpush1.msra.mxu0 0.0
        %4733 = vmatprep.subr.mxu0 0.0
        %4734 = vmatpush1.msra.mxu0 0.0
        %4735 = vmatprep.subr.mxu0 0.0
        %4736 = vmatpush1.msra.mxu0 0.0
        %4737 = vmatprep.subr.mxu0 0.0
        %4738 = vmatpush1.msra.mxu0 0.0
        %4739 = vmatprep.subr.mxu0 0.0
        %4740 = vmatpush1.msra.mxu0 0.0
        %4741 = vmatprep.subr.mxu0 0.0
        %4742 = vmatpush1.msra.mxu0 0.0
        %4743 = vmatprep.subr.mxu0 0.0
        %4744 = vmatpush1.msra.mxu0 0.0
        %4745 = vmatprep.subr.mxu0 0.0
        %4746 = vmatpush1.msra.mxu0 0.0
        %4747 = vmatprep.mubr.f32.mxu0 0.0
        %4748 = vmatmul.mubr.f32.gmra.mrb[0].mxu0 %v4583
        %v4749 = vpop.f32.mrb[0].mxu0
        %v4750 = vadd.f32 %v4661, %v4749
        %v4751 = vpop.f32.mrb[0].mxu0
        %v4752 = vadd.f32 %v4663, %v4751
        %4753 = vmatprep.mubr.f32.mxu0 0.0
        %4754 = vmatmul.mubr.f32.gmra.mrb[0].mxu0 %v4586
        %v4755 = vpop.f32.mrb[0].mxu0
        %v4756 = vadd.f32 %v4667, %v4755
        %v4757 = vpop.f32.mrb[0].mxu0
        %v4758 = vadd.f32 %v4669, %v4757
        %4759 = vmatprep.mubr.f32.mxu0 0.0
        %4760 = vmatmul.mubr.f32.gmra.mrb[0].mxu0 %v4589
        %v4761 = vpop.f32.mrb[0].mxu0
        %v4762 = vadd.f32 %v4673, %v4761
        %v4763 = vpop.f32.mrb[0].mxu0
        %v4764 = vadd.f32 %v4675, %v4763
        %4765 = vmatprep.mubr.f32.mxu0 0.0
        %4766 = vmatmul.mubr.f32.gmra.mrb[0].mxu0 %v4592
        %v4767 = vpop.f32.mrb[0].mxu0
        %v4768 = vadd.f32 %v4679, %v4767
        %v4769 = vpop.f32.mrb[0].mxu0
        %v4770 = vadd.f32 %v4681, %v4769
        %4771 = vdwg.mxu0
        %v4772 = vmax.f32 %v4750, 0.0
        %v4773 = vmax.f32 %v4752, 0.0
        %v4774 = vmax.f32 %v4756, 0.0
        %v4775 = vmax.f32 %v4758, 0.0
        %v4776 = vmax.f32 %v4762, 0.0
        %v4777 = vmax.f32 %v4764, 0.0
        %v4778 = vmax.f32 %v4768, 0.0
        %v4779 = vmax.f32 %v4770, 0.0
        %s4780 = scalar_lea.vmem [#allocation7], 192
        %v4781 = vld [vmem:[%s4780] sm:$0xff]
        %v4782 = vld [vmem:[%s4780 + $0x8] sm:$0xff]
        %v4783 = vld [vmem:[%s4780 + $0x10] sm:$0xff]
        %v4784 = vld [vmem:[%s4780 + $0x18] sm:$0xff]
        %s4785 = scalar_lea.vmem %s8, 416
        %v4786 = vld [vmem:[%s4785] sm:$0xff]
        %v4787 = vld [vmem:[%s4785 + $0x8] sm:$0xff]
        %v4788 = vld [vmem:[%s4785 + $0x10] sm:$0xff]
        %v4789 = vld [vmem:[%s4785 + $0x18] sm:$0xff]
        %4791 = vset.pattern.permute.xlu0 0
        %4792 = vperm.xlu0 %4791, %v4786
        %v4793 = vpop.permute.xlu0 %4792
        %4796 = vset.pattern.permute.xlu0 0
        %4797 = vperm.xlu0 %4796, %v4787
        %v4798 = vpop.permute.xlu0 %4797
        %4801 = vset.pattern.permute.xlu0 0
        %4802 = vperm.xlu0 %4801, %v4788
        %v4803 = vpop.permute.xlu0 %4802
        %4806 = vset.pattern.permute.xlu0 0
        %4807 = vperm.xlu0 %4806, %v4789
        %v4808 = vpop.permute.xlu0 %4807
        %v4811 = vsel %vm1177, %v4781, 0
        %v4814 = vsel %vm1177, %v4782, 0
        %v4817 = vsel %vm1177, %v4783, 0
        %v4820 = vsel %vm1177, %v4784, 0
        %4822 = vmatprep.subr.mxu0 %v4773
        %4823 = vmatpush1.msra.mxu0 %v4772
        %4824 = vmatprep.subr.mxu0 %v4775
        %4825 = vmatpush1.msra.mxu0 %v4774
        %4826 = vmatprep.subr.mxu0 %v4777
        %4827 = vmatpush1.msra.mxu0 %v4776
        %4828 = vmatprep.subr.mxu0 %v4779
        %4829 = vmatpush1.msra.mxu0 %v4778
        %4830 = vmatprep.subr.mxu0 0.0
        %4831 = vmatpush1.msra.mxu0 0.0
        %4832 = vmatprep.subr.mxu0 0.0
        %4833 = vmatpush1.msra.mxu0 0.0
        %4834 = vmatprep.subr.mxu0 0.0
        %4835 = vmatpush1.msra.mxu0 0.0
        %4836 = vmatprep.subr.mxu0 0.0
        %4837 = vmatpush1.msra.mxu0 0.0
        %4838 = vmatprep.subr.mxu0 0.0
        %4839 = vmatpush1.msra.mxu0 0.0
        %4840 = vmatprep.subr.mxu0 0.0
        %4841 = vmatpush1.msra.mxu0 0.0
        %4842 = vmatprep.subr.mxu0 0.0
        %4843 = vmatpush1.msra.mxu0 0.0
        %4844 = vmatprep.subr.mxu0 0.0
        %4845 = vmatpush1.msra.mxu0 0.0
        %4846 = vmatprep.subr.mxu0 0.0
        %4847 = vmatpush1.msra.mxu0 0.0
        %4848 = vmatprep.subr.mxu0 0.0
        %4849 = vmatpush1.msra.mxu0 0.0
        %4850 = vmatprep.subr.mxu0 0.0
        %4851 = vmatpush1.msra.mxu0 0.0
        %4852 = vmatprep.subr.mxu0 0.0
        %4853 = vmatpush1.msra.mxu0 0.0
        %4854 = vmatprep.subr.mxu0 0.0
        %4855 = vmatpush1.msra.mxu0 0.0
        %4856 = vmatprep.subr.mxu0 0.0
        %4857 = vmatpush1.msra.mxu0 0.0
        %4858 = vmatprep.subr.mxu0 0.0
        %4859 = vmatpush1.msra.mxu0 0.0
        %4860 = vmatprep.subr.mxu0 0.0
        %4861 = vmatpush1.msra.mxu0 0.0
        %4862 = vmatprep.subr.mxu0 0.0
        %4863 = vmatpush1.msra.mxu0 0.0
        %4864 = vmatprep.subr.mxu0 0.0
        %4865 = vmatpush1.msra.mxu0 0.0
        %4866 = vmatprep.subr.mxu0 0.0
        %4867 = vmatpush1.msra.mxu0 0.0
        %4868 = vmatprep.subr.mxu0 0.0
        %4869 = vmatpush1.msra.mxu0 0.0
        %4870 = vmatprep.subr.mxu0 0.0
        %4871 = vmatpush1.msra.mxu0 0.0
        %4872 = vmatprep.subr.mxu0 0.0
        %4873 = vmatpush1.msra.mxu0 0.0
        %4874 = vmatprep.subr.mxu0 0.0
        %4875 = vmatpush1.msra.mxu0 0.0
        %4876 = vmatprep.subr.mxu0 0.0
        %4877 = vmatpush1.msra.mxu0 0.0
        %4878 = vmatprep.subr.mxu0 0.0
        %4879 = vmatpush1.msra.mxu0 0.0
        %4880 = vmatprep.subr.mxu0 0.0
        %4881 = vmatpush1.msra.mxu0 0.0
        %4882 = vmatprep.subr.mxu0 0.0
        %4883 = vmatpush1.msra.mxu0 0.0
        %4884 = vmatprep.subr.mxu0 0.0
        %4885 = vmatpush1.msra.mxu0 0.0
        %4886 = vmatprep.mubr.f32.mxu0 0.0
        %4887 = vmatmul.mubr.f32.gmra.mrb[0].mxu0 %v4811
        %v4888 = vpop.f32.mrb[0].mxu0
        %v4889 = vadd.f32 %v4793, %v4888
        %v4890 = vpop.f32.mrb[0].mxu0
        %v4891 = vadd.f32 %v4793, %v4890
        %4892 = vmatprep.mubr.f32.mxu0 0.0
        %4893 = vmatmul.mubr.f32.gmra.mrb[0].mxu0 %v4814
        %v4894 = vpop.f32.mrb[0].mxu0
        %v4895 = vadd.f32 %v4798, %v4894
        %v4896 = vpop.f32.mrb[0].mxu0
        %v4897 = vadd.f32 %v4798, %v4896
        %4898 = vmatprep.mubr.f32.mxu0 0.0
        %4899 = vmatmul.mubr.f32.gmra.mrb[0].mxu0 %v4817
        %v4900 = vpop.f32.mrb[0].mxu0
        %v4901 = vadd.f32 %v4803, %v4900
        %v4902 = vpop.f32.mrb[0].mxu0
        %v4903 = vadd.f32 %v4803, %v4902
        %4904 = vmatprep.mubr.f32.mxu0 0.0
        %4905 = vmatmul.mubr.f32.gmra.mrb[0].mxu0 %v4820
        %v4906 = vpop.f32.mrb[0].mxu0
        %v4907 = vadd.f32 %v4808, %v4906
        %v4908 = vpop.f32.mrb[0].mxu0
        %v4909 = vadd.f32 %v4808, %v4908
        %4910 = vdwg.mxu0
        %v4911 = vadd.f32 %v4272, %v4889
        %v4912 = vadd.f32 %v4273, %v4891
        %v4913 = vadd.f32 %v4274, %v4895
        %v4914 = vadd.f32 %v4275, %v4897
        %v4915 = vadd.f32 %v4276, %v4901
        %v4916 = vadd.f32 %v4277, %v4903
        %v4917 = vadd.f32 %v4278, %v4907
        %v4918 = vadd.f32 %v4279, %v4909
        %s4919 = scalar_lea.vmem [#allocation4], 480
        %v4920 = vld [vmem:[%s4919] sm:$0xff]
        %v4921 = vld [vmem:[%s4919 + $0x8] sm:$0xff]
        %v4922 = vld [vmem:[%s4919 + $0x10] sm:$0xff]
        %v4923 = vld [vmem:[%s4919 + $0x18] sm:$0xff]
        %v4924 = vld [vmem:[%s4919 + $0x20] sm:$0xff]
        %v4925 = vld [vmem:[%s4919 + $0x28] sm:$0xff]
        %v4926 = vld [vmem:[%s4919 + $0x30] sm:$0xff]
        %v4927 = vld [vmem:[%s4919 + $0x38] sm:$0xff]
        %v4928 = vld [vmem:[%s4919 + $0x40] sm:$0xff]
        %v4929 = vld [vmem:[%s4919 + $0x48] sm:$0xff]
        %v4930 = vld [vmem:[%s4919 + $0x50] sm:$0xff]
        %v4931 = vld [vmem:[%s4919 + $0x58] sm:$0xff]
        %4932 = vrot.lane.b32.xlu0 %v4911, 34
        %v4933 = vpop.permute.xlu0 %4932
        %4934 = vrot.lane.b32.xlu0 %v4913, 34
        %v4935 = vpop.permute.xlu0 %4934
        %4936 = vrot.lane.b32.xlu0 %v4915, 34
        %v4937 = vpop.permute.xlu0 %4936
        %4938 = vrot.lane.b32.xlu0 %v4917, 34
        %v4939 = vpop.permute.xlu0 %4938
        %4940 = vrot.lane.b32.xlu0 %v4912, 34
        %v4941 = vpop.permute.xlu0 %4940
        %4942 = vrot.lane.b32.xlu0 %v4914, 34
        %v4943 = vpop.permute.xlu0 %4942
        %4944 = vrot.lane.b32.xlu0 %v4916, 34
        %v4945 = vpop.permute.xlu0 %4944
        %4946 = vrot.lane.b32.xlu0 %v4918, 34
        %v4947 = vpop.permute.xlu0 %4946
        %v4948 = vsel %vm456, %v4933, %v4941
        %v4949 = vsel %vm456, %v4935, %v4943
        %v4950 = vsel %vm456, %v4937, %v4945
        %v4951 = vsel %vm456, %v4939, %v4947
        %v4952 = vsel %vm456, %v4941, %v4933
        %v4953 = vsel %vm456, %v4943, %v4935
        %v4954 = vsel %vm456, %v4945, %v4937
        %v4955 = vsel %vm456, %v4947, %v4939
        %4956 = vrot.lane.b32.xlu0 %v4911, 32
        %v4957 = vpop.permute.xlu0 %4956
        %4958 = vrot.lane.b32.xlu0 %v4913, 32
        %v4959 = vpop.permute.xlu0 %4958
        %4960 = vrot.lane.b32.xlu0 %v4915, 32
        %v4961 = vpop.permute.xlu0 %4960
        %4962 = vrot.lane.b32.xlu0 %v4917, 32
        %v4963 = vpop.permute.xlu0 %4962
        %4964 = vrot.lane.b32.xlu0 %v4912, 32
        %v4965 = vpop.permute.xlu0 %4964
        %4966 = vrot.lane.b32.xlu0 %v4914, 32
        %v4967 = vpop.permute.xlu0 %4966
        %4968 = vrot.lane.b32.xlu0 %v4916, 32
        %v4969 = vpop.permute.xlu0 %4968
        %4970 = vrot.lane.b32.xlu0 %v4918, 32
        %v4971 = vpop.permute.xlu0 %4970
        %v4972 = vsel %vm470, %v4957, %v4965
        %v4973 = vsel %vm470, %v4959, %v4967
        %v4974 = vsel %vm470, %v4961, %v4969
        %v4975 = vsel %vm470, %v4963, %v4971
        %v4976 = vsel %vm470, %v4965, %v4957
        %v4977 = vsel %vm470, %v4967, %v4959
        %v4978 = vsel %vm470, %v4969, %v4961
        %v4979 = vsel %vm470, %v4971, %v4963
        %4980 = vrot.lane.b32.xlu0 %v4911, 30
        %v4981 = vpop.permute.xlu0 %4980
        %4982 = vrot.lane.b32.xlu0 %v4913, 30
        %v4983 = vpop.permute.xlu0 %4982
        %4984 = vrot.lane.b32.xlu0 %v4915, 30
        %v4985 = vpop.permute.xlu0 %4984
        %4986 = vrot.lane.b32.xlu0 %v4917, 30
        %v4987 = vpop.permute.xlu0 %4986
        %4988 = vrot.lane.b32.xlu0 %v4912, 30
        %v4989 = vpop.permute.xlu0 %4988
        %4990 = vrot.lane.b32.xlu0 %v4914, 30
        %v4991 = vpop.permute.xlu0 %4990
        %4992 = vrot.lane.b32.xlu0 %v4916, 30
        %v4993 = vpop.permute.xlu0 %4992
        %4994 = vrot.lane.b32.xlu0 %v4918, 30
        %v4995 = vpop.permute.xlu0 %4994
        %v4996 = vsel %vm484, %v4981, %v4989
        %v4997 = vsel %vm484, %v4983, %v4991
        %v4998 = vsel %vm484, %v4985, %v4993
        %v4999 = vsel %vm484, %v4987, %v4995
        %v5000 = vsel %vm484, %v4989, %v4981
        %v5001 = vsel %vm484, %v4991, %v4983
        %v5002 = vsel %vm484, %v4993, %v4985
        %v5003 = vsel %vm484, %v4995, %v4987
        %5004 = vrot.lane.b32.xlu0 %v4911, 2
        %v5005 = vpop.permute.xlu0 %5004
        %5006 = vrot.lane.b32.xlu0 %v4913, 2
        %v5007 = vpop.permute.xlu0 %5006
        %5008 = vrot.lane.b32.xlu0 %v4915, 2
        %v5009 = vpop.permute.xlu0 %5008
        %5010 = vrot.lane.b32.xlu0 %v4917, 2
        %v5011 = vpop.permute.xlu0 %5010
        %5012 = vrot.lane.b32.xlu0 %v4912, 2
        %v5013 = vpop.permute.xlu0 %5012
        %5014 = vrot.lane.b32.xlu0 %v4914, 2
        %v5015 = vpop.permute.xlu0 %5014
        %5016 = vrot.lane.b32.xlu0 %v4916, 2
        %v5017 = vpop.permute.xlu0 %5016
        %5018 = vrot.lane.b32.xlu0 %v4918, 2
        %v5019 = vpop.permute.xlu0 %5018
        %v5020 = vsel %vm526, %v5005, %v5013
        %v5021 = vsel %vm526, %v5007, %v5015
        %v5022 = vsel %vm526, %v5009, %v5017
        %v5023 = vsel %vm526, %v5011, %v5019
        %v5024 = vsel %vm526, %v5013, %v5005
        %v5025 = vsel %vm526, %v5015, %v5007
        %v5026 = vsel %vm526, %v5017, %v5009
        %v5027 = vsel %vm526, %v5019, %v5011
        %5028 = vrot.lane.b32.xlu0 %v4911, 126
        %v5029 = vpop.permute.xlu0 %5028
        %5030 = vrot.lane.b32.xlu0 %v4913, 126
        %v5031 = vpop.permute.xlu0 %5030
        %5032 = vrot.lane.b32.xlu0 %v4915, 126
        %v5033 = vpop.permute.xlu0 %5032
        %5034 = vrot.lane.b32.xlu0 %v4917, 126
        %v5035 = vpop.permute.xlu0 %5034
        %5036 = vrot.lane.b32.xlu0 %v4912, 126
        %v5037 = vpop.permute.xlu0 %5036
        %5038 = vrot.lane.b32.xlu0 %v4914, 126
        %v5039 = vpop.permute.xlu0 %5038
        %5040 = vrot.lane.b32.xlu0 %v4916, 126
        %v5041 = vpop.permute.xlu0 %5040
        %5042 = vrot.lane.b32.xlu0 %v4918, 126
        %v5043 = vpop.permute.xlu0 %5042
        %v5044 = vsel %vm547, %v5029, %v5037
        %v5045 = vsel %vm547, %v5031, %v5039
        %v5046 = vsel %vm547, %v5033, %v5041
        %v5047 = vsel %vm547, %v5035, %v5043
        %v5048 = vsel %vm547, %v5037, %v5029
        %v5049 = vsel %vm547, %v5039, %v5031
        %v5050 = vsel %vm547, %v5041, %v5033
        %v5051 = vsel %vm547, %v5043, %v5035
        %5052 = vrot.lane.b32.xlu0 %v4911, 98
        %v5053 = vpop.permute.xlu0 %5052
        %5054 = vrot.lane.b32.xlu0 %v4913, 98
        %v5055 = vpop.permute.xlu0 %5054
        %5056 = vrot.lane.b32.xlu0 %v4915, 98
        %v5057 = vpop.permute.xlu0 %5056
        %5058 = vrot.lane.b32.xlu0 %v4917, 98
        %v5059 = vpop.permute.xlu0 %5058
        %5060 = vrot.lane.b32.xlu0 %v4912, 98
        %v5061 = vpop.permute.xlu0 %5060
        %5062 = vrot.lane.b32.xlu0 %v4914, 98
        %v5063 = vpop.permute.xlu0 %5062
        %5064 = vrot.lane.b32.xlu0 %v4916, 98
        %v5065 = vpop.permute.xlu0 %5064
        %5066 = vrot.lane.b32.xlu0 %v4918, 98
        %v5067 = vpop.permute.xlu0 %5066
        %v5068 = vsel %vm589, %v5053, %v5061
        %v5069 = vsel %vm589, %v5055, %v5063
        %v5070 = vsel %vm589, %v5057, %v5065
        %v5071 = vsel %vm589, %v5059, %v5067
        %v5072 = vsel %vm589, %v5061, %v5053
        %v5073 = vsel %vm589, %v5063, %v5055
        %v5074 = vsel %vm589, %v5065, %v5057
        %v5075 = vsel %vm589, %v5067, %v5059
        %5076 = vrot.lane.b32.xlu0 %v4911, 96
        %v5077 = vpop.permute.xlu0 %5076
        %5078 = vrot.lane.b32.xlu0 %v4913, 96
        %v5079 = vpop.permute.xlu0 %5078
        %5080 = vrot.lane.b32.xlu0 %v4915, 96
        %v5081 = vpop.permute.xlu0 %5080
        %5082 = vrot.lane.b32.xlu0 %v4917, 96
        %v5083 = vpop.permute.xlu0 %5082
        %5084 = vrot.lane.b32.xlu0 %v4912, 96
        %v5085 = vpop.permute.xlu0 %5084
        %5086 = vrot.lane.b32.xlu0 %v4914, 96
        %v5087 = vpop.permute.xlu0 %5086
        %5088 = vrot.lane.b32.xlu0 %v4916, 96
        %v5089 = vpop.permute.xlu0 %5088
        %5090 = vrot.lane.b32.xlu0 %v4918, 96
        %v5091 = vpop.permute.xlu0 %5090
        %v5092 = vsel %vm603, %v5077, %v5085
        %v5093 = vsel %vm603, %v5079, %v5087
        %v5094 = vsel %vm603, %v5081, %v5089
        %v5095 = vsel %vm603, %v5083, %v5091
        %v5096 = vsel %vm603, %v5085, %v5077
        %v5097 = vsel %vm603, %v5087, %v5079
        %v5098 = vsel %vm603, %v5089, %v5081
        %v5099 = vsel %vm603, %v5091, %v5083
        %5100 = vrot.lane.b32.xlu0 %v4911, 94
        %v5101 = vpop.permute.xlu0 %5100
        %5102 = vrot.lane.b32.xlu0 %v4913, 94
        %v5103 = vpop.permute.xlu0 %5102
        %5104 = vrot.lane.b32.xlu0 %v4915, 94
        %v5105 = vpop.permute.xlu0 %5104
        %5106 = vrot.lane.b32.xlu0 %v4917, 94
        %v5107 = vpop.permute.xlu0 %5106
        %5108 = vrot.lane.b32.xlu0 %v4912, 94
        %v5109 = vpop.permute.xlu0 %5108
        %5110 = vrot.lane.b32.xlu0 %v4914, 94
        %v5111 = vpop.permute.xlu0 %5110
        %5112 = vrot.lane.b32.xlu0 %v4916, 94
        %v5113 = vpop.permute.xlu0 %5112
        %5114 = vrot.lane.b32.xlu0 %v4918, 94
        %v5115 = vpop.permute.xlu0 %5114
        %v5116 = vsel %vm617, %v5101, %v5109
        %v5117 = vsel %vm617, %v5103, %v5111
        %v5118 = vsel %vm617, %v5105, %v5113
        %v5119 = vsel %vm617, %v5107, %v5115
        %v5120 = vsel %vm617, %v5109, %v5101
        %v5121 = vsel %vm617, %v5111, %v5103
        %v5122 = vsel %vm617, %v5113, %v5105
        %v5123 = vsel %vm617, %v5115, %v5107
        %v5124 = vmul.f32 %v4952, %v1653
        %v5125 = vmul.f32 %v4948, %v1654
        %v5126 = vmul.f32 %v4953, %v1655
        %v5127 = vmul.f32 %v4949, %v1656
        %v5128 = vmul.f32 %v4954, %v1657
        %v5129 = vmul.f32 %v4950, %v1658
        %v5130 = vmul.f32 %v4955, %v1659
        %v5131 = vmul.f32 %v4951, %v1660
        %v5132 = vmul.f32 %v4976, %v1661
        %v5133 = vmul.f32 %v4972, %v1662
        %v5134 = vmul.f32 %v4977, %v1663
        %v5135 = vmul.f32 %v4973, %v1664
        %v5136 = vmul.f32 %v4978, %v1665
        %v5137 = vmul.f32 %v4974, %v1666
        %v5138 = vmul.f32 %v4979, %v1667
        %v5139 = vmul.f32 %v4975, %v1668
        %v5140 = vmul.f32 %v5000, %v1669
        %v5141 = vmul.f32 %v4996, %v1670
        %v5142 = vmul.f32 %v5001, %v1671
        %v5143 = vmul.f32 %v4997, %v1672
        %v5144 = vmul.f32 %v5002, %v1673
        %v5145 = vmul.f32 %v4998, %v1674
        %v5146 = vmul.f32 %v5003, %v1675
        %v5147 = vmul.f32 %v4999, %v1676
        %v5148 = vmul.f32 %v5024, %v1677
        %v5149 = vmul.f32 %v5020, %v1678
        %v5150 = vmul.f32 %v5025, %v1679
        %v5151 = vmul.f32 %v5021, %v1680
        %v5152 = vmul.f32 %v5026, %v1681
        %v5153 = vmul.f32 %v5022, %v1682
        %v5154 = vmul.f32 %v5027, %v1683
        %v5155 = vmul.f32 %v5023, %v1684
        %v5156 = vmul.f32 %v4911, %v1685
        %v5157 = vmul.f32 %v4912, %v1686
        %v5158 = vmul.f32 %v4913, %v1687
        %v5159 = vmul.f32 %v4914, %v1688
        %v5160 = vmul.f32 %v4915, %v1689
        %v5161 = vmul.f32 %v4916, %v1690
        %v5162 = vmul.f32 %v4917, %v1691
        %v5163 = vmul.f32 %v4918, %v1692
        %v5164 = vmul.f32 %v5044, %v1693
        %v5165 = vmul.f32 %v5048, %v1694
        %v5166 = vmul.f32 %v5045, %v1695
        %v5167 = vmul.f32 %v5049, %v1696
        %v5168 = vmul.f32 %v5046, %v1697
        %v5169 = vmul.f32 %v5050, %v1698
        %v5170 = vmul.f32 %v5047, %v1699
        %v5171 = vmul.f32 %v5051, %v1700
        %v5172 = vmul.f32 %v5068, %v1701
        %v5173 = vmul.f32 %v5072, %v1702
        %v5174 = vmul.f32 %v5069, %v1703
        %v5175 = vmul.f32 %v5073, %v1704
        %v5176 = vmul.f32 %v5070, %v1705
        %v5177 = vmul.f32 %v5074, %v1706
        %v5178 = vmul.f32 %v5071, %v1707
        %v5179 = vmul.f32 %v5075, %v1708
        %v5180 = vmul.f32 %v5092, %v1709
        %v5181 = vmul.f32 %v5096, %v1710
        %v5182 = vmul.f32 %v5093, %v1711
        %v5183 = vmul.f32 %v5097, %v1712
        %v5184 = vmul.f32 %v5094, %v1713
        %v5185 = vmul.f32 %v5098, %v1714
        %v5186 = vmul.f32 %v5095, %v1715
        %v5187 = vmul.f32 %v5099, %v1716
        %v5188 = vmul.f32 %v5116, %v1717
        %v5189 = vmul.f32 %v5120, %v1718
        %v5190 = vmul.f32 %v5117, %v1719
        %v5191 = vmul.f32 %v5121, %v1720
        %v5192 = vmul.f32 %v5118, %v1721
        %v5193 = vmul.f32 %v5122, %v1722
        %v5194 = vmul.f32 %v5119, %v1723
        %v5195 = vmul.f32 %v5123, %v1724
        %s5196 = scalar_lea.vmem %s8, 448
        %v5197 = vld [vmem:[%s5196] sm:$0xff]
        %v5198 = vld [vmem:[%s5196 + $0x8] sm:$0xff]
        %v5199 = vld [vmem:[%s5196 + $0x10] sm:$0xff]
        %v5200 = vld [vmem:[%s5196 + $0x18] sm:$0xff]
        %5202 = vset.pattern.permute.xlu0 0
        %5203 = vperm.xlu0 %5202, %v5197
        %v5204 = vpop.permute.xlu0 %5203
        %5207 = vset.pattern.permute.xlu0 0
        %5208 = vperm.xlu0 %5207, %v5198
        %v5209 = vpop.permute.xlu0 %5208
        %5212 = vset.pattern.permute.xlu0 0
        %5213 = vperm.xlu0 %5212, %v5199
        %v5214 = vpop.permute.xlu0 %5213
        %5217 = vset.pattern.permute.xlu0 0
        %5218 = vperm.xlu0 %5217, %v5200
        %v5219 = vpop.permute.xlu0 %5218
        %v5222 = vsel %vm1177, %v4922, 0
        %v5225 = vsel %vm1177, %v4925, 0
        %v5228 = vsel %vm1177, %v4928, 0
        %v5231 = vsel %vm1177, %v4931, 0
        %5233 = vmatprep.subr.mxu0 %v5125
        %5234 = vmatpush1.msra.mxu0 %v5124
        %5235 = vmatprep.subr.mxu0 %v5127
        %5236 = vmatpush1.msra.mxu0 %v5126
        %5237 = vmatprep.subr.mxu0 %v5129
        %5238 = vmatpush1.msra.mxu0 %v5128
        %5239 = vmatprep.subr.mxu0 %v5131
        %5240 = vmatpush1.msra.mxu0 %v5130
        %5241 = vmatprep.subr.mxu0 %v5133
        %5242 = vmatpush1.msra.mxu0 %v5132
        %5243 = vmatprep.subr.mxu0 %v5135
        %5244 = vmatpush1.msra.mxu0 %v5134
        %5245 = vmatprep.subr.mxu0 %v5137
        %5246 = vmatpush1.msra.mxu0 %v5136
        %5247 = vmatprep.subr.mxu0 %v5139
        %5248 = vmatpush1.msra.mxu0 %v5138
        %5249 = vmatprep.subr.mxu0 %v5141
        %5250 = vmatpush1.msra.mxu0 %v5140
        %5251 = vmatprep.subr.mxu0 %v5143
        %5252 = vmatpush1.msra.mxu0 %v5142
        %5253 = vmatprep.subr.mxu0 %v5145
        %5254 = vmatpush1.msra.mxu0 %v5144
        %5255 = vmatprep.subr.mxu0 %v5147
        %5256 = vmatpush1.msra.mxu0 %v5146
        %5257 = vmatprep.subr.mxu0 %v5149
        %5258 = vmatpush1.msra.mxu0 %v5148
        %5259 = vmatprep.subr.mxu0 %v5151
        %5260 = vmatpush1.msra.mxu0 %v5150
        %5261 = vmatprep.subr.mxu0 %v5153
        %5262 = vmatpush1.msra.mxu0 %v5152
        %5263 = vmatprep.subr.mxu0 %v5155
        %5264 = vmatpush1.msra.mxu0 %v5154
        %5265 = vmatprep.subr.mxu0 %v5157
        %5266 = vmatpush1.msra.mxu0 %v5156
        %5267 = vmatprep.subr.mxu0 %v5159
        %5268 = vmatpush1.msra.mxu0 %v5158
        %5269 = vmatprep.subr.mxu0 %v5161
        %5270 = vmatpush1.msra.mxu0 %v5160
        %5271 = vmatprep.subr.mxu0 %v5163
        %5272 = vmatpush1.msra.mxu0 %v5162
        %5273 = vmatprep.subr.mxu0 %v5165
        %5274 = vmatpush1.msra.mxu0 %v5164
        %5275 = vmatprep.subr.mxu0 %v5167
        %5276 = vmatpush1.msra.mxu0 %v5166
        %5277 = vmatprep.subr.mxu0 %v5169
        %5278 = vmatpush1.msra.mxu0 %v5168
        %5279 = vmatprep.subr.mxu0 %v5171
        %5280 = vmatpush1.msra.mxu0 %v5170
        %5281 = vmatprep.subr.mxu0 %v5173
        %5282 = vmatpush1.msra.mxu0 %v5172
        %5283 = vmatprep.subr.mxu0 %v5175
        %5284 = vmatpush1.msra.mxu0 %v5174
        %5285 = vmatprep.subr.mxu0 %v5177
        %5286 = vmatpush1.msra.mxu0 %v5176
        %5287 = vmatprep.subr.mxu0 %v5179
        %5288 = vmatpush1.msra.mxu0 %v5178
        %5289 = vmatprep.subr.mxu0 %v5181
        %5290 = vmatpush1.msra.mxu0 %v5180
        %5291 = vmatprep.subr.mxu0 %v5183
        %5292 = vmatpush1.msra.mxu0 %v5182
        %5293 = vmatprep.subr.mxu0 %v5185
        %5294 = vmatpush1.msra.mxu0 %v5184
        %5295 = vmatprep.subr.mxu0 %v5187
        %5296 = vmatpush1.msra.mxu0 %v5186
        %5297 = vmatprep.mubr.f32.mxu0 %v4921
        %5298 = vmatmul.mubr.f32.gmra.mrb[0].mxu0 %v4920
        %v5299 = vpop.f32.mrb[0].mxu0
        %v5300 = vadd.f32 %v5204, %v5299
        %v5301 = vpop.f32.mrb[0].mxu0
        %v5302 = vadd.f32 %v5204, %v5301
        %5303 = vmatprep.mubr.f32.mxu0 %v4924
        %5304 = vmatmul.mubr.f32.gmra.mrb[0].mxu0 %v4923
        %v5305 = vpop.f32.mrb[0].mxu0
        %v5306 = vadd.f32 %v5209, %v5305
        %v5307 = vpop.f32.mrb[0].mxu0
        %v5308 = vadd.f32 %v5209, %v5307
        %5309 = vmatprep.mubr.f32.mxu0 %v4927
        %5310 = vmatmul.mubr.f32.gmra.mrb[0].mxu0 %v4926
        %v5311 = vpop.f32.mrb[0].mxu0
        %v5312 = vadd.f32 %v5214, %v5311
        %v5313 = vpop.f32.mrb[0].mxu0
        %v5314 = vadd.f32 %v5214, %v5313
        %5315 = vmatprep.mubr.f32.mxu0 %v4930
        %5316 = vmatmul.mubr.f32.gmra.mrb[0].mxu0 %v4929
        %v5317 = vpop.f32.mrb[0].mxu0
        %v5318 = vadd.f32 %v5219, %v5317
        %v5319 = vpop.f32.mrb[0].mxu0
        %v5320 = vadd.f32 %v5219, %v5319
        %5321 = vdwg.mxu0
        %5322 = vmatprep.subr.mxu0 %v5189
        %5323 = vmatpush1.msra.mxu0 %v5188
        %5324 = vmatprep.subr.mxu0 %v5191
        %5325 = vmatpush1.msra.mxu0 %v5190
        %5326 = vmatprep.subr.mxu0 %v5193
        %5327 = vmatpush1.msra.mxu0 %v5192
        %5328 = vmatprep.subr.mxu0 %v5195
        %5329 = vmatpush1.msra.mxu0 %v5194
        %5330 = vmatprep.subr.mxu0 0.0
        %5331 = vmatpush1.msra.mxu0 0.0
        %5332 = vmatprep.subr.mxu0 0.0
        %5333 = vmatpush1.msra.mxu0 0.0
        %5334 = vmatprep.subr.mxu0 0.0
        %5335 = vmatpush1.msra.mxu0 0.0
        %5336 = vmatprep.subr.mxu0 0.0
        %5337 = vmatpush1.msra.mxu0 0.0
        %5338 = vmatprep.subr.mxu0 0.0
        %5339 = vmatpush1.msra.mxu0 0.0
        %5340 = vmatprep.subr.mxu0 0.0
        %5341 = vmatpush1.msra.mxu0 0.0
        %5342 = vmatprep.subr.mxu0 0.0
        %5343 = vmatpush1.msra.mxu0 0.0
        %5344 = vmatprep.subr.mxu0 0.0
        %5345 = vmatpush1.msra.mxu0 0.0
        %5346 = vmatprep.subr.mxu0 0.0
        %5347 = vmatpush1.msra.mxu0 0.0
        %5348 = vmatprep.subr.mxu0 0.0
        %5349 = vmatpush1.msra.mxu0 0.0
        %5350 = vmatprep.subr.mxu0 0.0
        %5351 = vmatpush1.msra.mxu0 0.0
        %5352 = vmatprep.subr.mxu0 0.0
        %5353 = vmatpush1.msra.mxu0 0.0
        %5354 = vmatprep.subr.mxu0 0.0
        %5355 = vmatpush1.msra.mxu0 0.0
        %5356 = vmatprep.subr.mxu0 0.0
        %5357 = vmatpush1.msra.mxu0 0.0
        %5358 = vmatprep.subr.mxu0 0.0
        %5359 = vmatpush1.msra.mxu0 0.0
        %5360 = vmatprep.subr.mxu0 0.0
        %5361 = vmatpush1.msra.mxu0 0.0
        %5362 = vmatprep.subr.mxu0 0.0
        %5363 = vmatpush1.msra.mxu0 0.0
        %5364 = vmatprep.subr.mxu0 0.0
        %5365 = vmatpush1.msra.mxu0 0.0
        %5366 = vmatprep.subr.mxu0 0.0
        %5367 = vmatpush1.msra.mxu0 0.0
        %5368 = vmatprep.subr.mxu0 0.0
        %5369 = vmatpush1.msra.mxu0 0.0
        %5370 = vmatprep.subr.mxu0 0.0
        %5371 = vmatpush1.msra.mxu0 0.0
        %5372 = vmatprep.subr.mxu0 0.0
        %5373 = vmatpush1.msra.mxu0 0.0
        %5374 = vmatprep.subr.mxu0 0.0
        %5375 = vmatpush1.msra.mxu0 0.0
        %5376 = vmatprep.subr.mxu0 0.0
        %5377 = vmatpush1.msra.mxu0 0.0
        %5378 = vmatprep.subr.mxu0 0.0
        %5379 = vmatpush1.msra.mxu0 0.0
        %5380 = vmatprep.subr.mxu0 0.0
        %5381 = vmatpush1.msra.mxu0 0.0
        %5382 = vmatprep.subr.mxu0 0.0
        %5383 = vmatpush1.msra.mxu0 0.0
        %5384 = vmatprep.subr.mxu0 0.0
        %5385 = vmatpush1.msra.mxu0 0.0
        %5386 = vmatprep.mubr.f32.mxu0 0.0
        %5387 = vmatmul.mubr.f32.gmra.mrb[0].mxu0 %v5222
        %v5388 = vpop.f32.mrb[0].mxu0
        %v5389 = vadd.f32 %v5300, %v5388
        %v5390 = vpop.f32.mrb[0].mxu0
        %v5391 = vadd.f32 %v5302, %v5390
        %5392 = vmatprep.mubr.f32.mxu0 0.0
        %5393 = vmatmul.mubr.f32.gmra.mrb[0].mxu0 %v5225
        %v5394 = vpop.f32.mrb[0].mxu0
        %v5395 = vadd.f32 %v5306, %v5394
        %v5396 = vpop.f32.mrb[0].mxu0
        %v5397 = vadd.f32 %v5308, %v5396
        %5398 = vmatprep.mubr.f32.mxu0 0.0
        %5399 = vmatmul.mubr.f32.gmra.mrb[0].mxu0 %v5228
        %v5400 = vpop.f32.mrb[0].mxu0
        %v5401 = vadd.f32 %v5312, %v5400
        %v5402 = vpop.f32.mrb[0].mxu0
        %v5403 = vadd.f32 %v5314, %v5402
        %5404 = vmatprep.mubr.f32.mxu0 0.0
        %5405 = vmatmul.mubr.f32.gmra.mrb[0].mxu0 %v5231
        %v5406 = vpop.f32.mrb[0].mxu0
        %v5407 = vadd.f32 %v5318, %v5406
        %v5408 = vpop.f32.mrb[0].mxu0
        %v5409 = vadd.f32 %v5320, %v5408
        %5410 = vdwg.mxu0
        %v5411 = vmax.f32 %v5389, 0.0
        %v5412 = vmax.f32 %v5391, 0.0
        %v5413 = vmax.f32 %v5395, 0.0
        %v5414 = vmax.f32 %v5397, 0.0
        %v5415 = vmax.f32 %v5401, 0.0
        %v5416 = vmax.f32 %v5403, 0.0
        %v5417 = vmax.f32 %v5407, 0.0
        %v5418 = vmax.f32 %v5409, 0.0
        %s5419 = scalar_lea.vmem [#allocation7], 224
        %v5420 = vld [vmem:[%s5419] sm:$0xff]
        %v5421 = vld [vmem:[%s5419 + $0x8] sm:$0xff]
        %v5422 = vld [vmem:[%s5419 + $0x10] sm:$0xff]
        %v5423 = vld [vmem:[%s5419 + $0x18] sm:$0xff]
        %s5424 = scalar_lea.vmem %s8, 480
        %v5425 = vld [vmem:[%s5424] sm:$0xff]
        %v5426 = vld [vmem:[%s5424 + $0x8] sm:$0xff]
        %v5427 = vld [vmem:[%s5424 + $0x10] sm:$0xff]
        %v5428 = vld [vmem:[%s5424 + $0x18] sm:$0xff]
        %5430 = vset.pattern.permute.xlu0 0
        %5431 = vperm.xlu0 %5430, %v5425
        %v5432 = vpop.permute.xlu0 %5431
        %5435 = vset.pattern.permute.xlu0 0
        %5436 = vperm.xlu0 %5435, %v5426
        %v5437 = vpop.permute.xlu0 %5436
        %5440 = vset.pattern.permute.xlu0 0
        %5441 = vperm.xlu0 %5440, %v5427
        %v5442 = vpop.permute.xlu0 %5441
        %5445 = vset.pattern.permute.xlu0 0
        %5446 = vperm.xlu0 %5445, %v5428
        %v5447 = vpop.permute.xlu0 %5446
        %v5450 = vsel %vm1177, %v5420, 0
        %v5453 = vsel %vm1177, %v5421, 0
        %v5456 = vsel %vm1177, %v5422, 0
        %v5459 = vsel %vm1177, %v5423, 0
        %5461 = vmatprep.subr.mxu0 %v5412
        %5462 = vmatpush1.msra.mxu0 %v5411
        %5463 = vmatprep.subr.mxu0 %v5414
        %5464 = vmatpush1.msra.mxu0 %v5413
        %5465 = vmatprep.subr.mxu0 %v5416
        %5466 = vmatpush1.msra.mxu0 %v5415
        %5467 = vmatprep.subr.mxu0 %v5418
        %5468 = vmatpush1.msra.mxu0 %v5417
        %5469 = vmatprep.subr.mxu0 0.0
        %5470 = vmatpush1.msra.mxu0 0.0
        %5471 = vmatprep.subr.mxu0 0.0
        %5472 = vmatpush1.msra.mxu0 0.0
        %5473 = vmatprep.subr.mxu0 0.0
        %5474 = vmatpush1.msra.mxu0 0.0
        %5475 = vmatprep.subr.mxu0 0.0
        %5476 = vmatpush1.msra.mxu0 0.0
        %5477 = vmatprep.subr.mxu0 0.0
        %5478 = vmatpush1.msra.mxu0 0.0
        %5479 = vmatprep.subr.mxu0 0.0
        %5480 = vmatpush1.msra.mxu0 0.0
        %5481 = vmatprep.subr.mxu0 0.0
        %5482 = vmatpush1.msra.mxu0 0.0
        %5483 = vmatprep.subr.mxu0 0.0
        %5484 = vmatpush1.msra.mxu0 0.0
        %5485 = vmatprep.subr.mxu0 0.0
        %5486 = vmatpush1.msra.mxu0 0.0
        %5487 = vmatprep.subr.mxu0 0.0
        %5488 = vmatpush1.msra.mxu0 0.0
        %5489 = vmatprep.subr.mxu0 0.0
        %5490 = vmatpush1.msra.mxu0 0.0
        %5491 = vmatprep.subr.mxu0 0.0
        %5492 = vmatpush1.msra.mxu0 0.0
        %5493 = vmatprep.subr.mxu0 0.0
        %5494 = vmatpush1.msra.mxu0 0.0
        %5495 = vmatprep.subr.mxu0 0.0
        %5496 = vmatpush1.msra.mxu0 0.0
        %5497 = vmatprep.subr.mxu0 0.0
        %5498 = vmatpush1.msra.mxu0 0.0
        %5499 = vmatprep.subr.mxu0 0.0
        %5500 = vmatpush1.msra.mxu0 0.0
        %5501 = vmatprep.subr.mxu0 0.0
        %5502 = vmatpush1.msra.mxu0 0.0
        %5503 = vmatprep.subr.mxu0 0.0
        %5504 = vmatpush1.msra.mxu0 0.0
        %5505 = vmatprep.subr.mxu0 0.0
        %5506 = vmatpush1.msra.mxu0 0.0
        %5507 = vmatprep.subr.mxu0 0.0
        %5508 = vmatpush1.msra.mxu0 0.0
        %5509 = vmatprep.subr.mxu0 0.0
        %5510 = vmatpush1.msra.mxu0 0.0
        %5511 = vmatprep.subr.mxu0 0.0
        %5512 = vmatpush1.msra.mxu0 0.0
        %5513 = vmatprep.subr.mxu0 0.0
        %5514 = vmatpush1.msra.mxu0 0.0
        %5515 = vmatprep.subr.mxu0 0.0
        %5516 = vmatpush1.msra.mxu0 0.0
        %5517 = vmatprep.subr.mxu0 0.0
        %5518 = vmatpush1.msra.mxu0 0.0
        %5519 = vmatprep.subr.mxu0 0.0
        %5520 = vmatpush1.msra.mxu0 0.0
        %5521 = vmatprep.subr.mxu0 0.0
        %5522 = vmatpush1.msra.mxu0 0.0
        %5523 = vmatprep.subr.mxu0 0.0
        %5524 = vmatpush1.msra.mxu0 0.0
        %5525 = vmatprep.mubr.f32.mxu0 0.0
        %5526 = vmatmul.mubr.f32.gmra.mrb[0].mxu0 %v5450
        %v5527 = vpop.f32.mrb[0].mxu0
        %v5528 = vadd.f32 %v5432, %v5527
        %v5529 = vpop.f32.mrb[0].mxu0
        %v5530 = vadd.f32 %v5432, %v5529
        %5531 = vmatprep.mubr.f32.mxu0 0.0
        %5532 = vmatmul.mubr.f32.gmra.mrb[0].mxu0 %v5453
        %v5533 = vpop.f32.mrb[0].mxu0
        %v5534 = vadd.f32 %v5437, %v5533
        %v5535 = vpop.f32.mrb[0].mxu0
        %v5536 = vadd.f32 %v5437, %v5535
        %5537 = vmatprep.mubr.f32.mxu0 0.0
        %5538 = vmatmul.mubr.f32.gmra.mrb[0].mxu0 %v5456
        %v5539 = vpop.f32.mrb[0].mxu0
        %v5540 = vadd.f32 %v5442, %v5539
        %v5541 = vpop.f32.mrb[0].mxu0
        %v5542 = vadd.f32 %v5442, %v5541
        %5543 = vmatprep.mubr.f32.mxu0 0.0
        %5544 = vmatmul.mubr.f32.gmra.mrb[0].mxu0 %v5459
        %v5545 = vpop.f32.mrb[0].mxu0
        %v5546 = vadd.f32 %v5447, %v5545
        %v5547 = vpop.f32.mrb[0].mxu0
        %v5548 = vadd.f32 %v5447, %v5547
        %5549 = vdwg.mxu0
        %v5550 = vadd.f32 %v4911, %v5528
        %v5551 = vadd.f32 %v4912, %v5530
        %v5552 = vadd.f32 %v4913, %v5534
        %v5553 = vadd.f32 %v4914, %v5536
        %v5554 = vadd.f32 %v4915, %v5540
        %v5555 = vadd.f32 %v4916, %v5542
        %v5556 = vadd.f32 %v4917, %v5546
        %v5557 = vadd.f32 %v4918, %v5548
        %s5558 = scalar_lea.vmem [#allocation7], 256
        %v5559 = vld [vmem:[%s5558] sm:$0xff]
        %v5560 = vld [vmem:[%s5558 + $0x8] sm:$0xff]
        %v5561 = vld [vmem:[%s5558 + $0x10] sm:$0xff]
        %v5562 = vld [vmem:[%s5558 + $0x18] sm:$0xff]
        %s5563 = scalar_lea.vmem %s8, 512
        %v5564 = vld [vmem:[%s5563] sm:$0xff]
        %v5565 = vld [vmem:[%s5563 + $0x8] sm:$0xff]
        %v5566 = vld [vmem:[%s5563 + $0x10] sm:$0xff]
        %v5567 = vld [vmem:[%s5563 + $0x18] sm:$0xff]
        %5569 = vset.pattern.permute.xlu0 0
        %5570 = vperm.xlu0 %5569, %v5564
        %v5571 = vpop.permute.xlu0 %5570
        %5574 = vset.pattern.permute.xlu0 0
        %5575 = vperm.xlu0 %5574, %v5565
        %v5576 = vpop.permute.xlu0 %5575
        %5579 = vset.pattern.permute.xlu0 0
        %5580 = vperm.xlu0 %5579, %v5566
        %v5581 = vpop.permute.xlu0 %5580
        %5584 = vset.pattern.permute.xlu0 0
        %5585 = vperm.xlu0 %5584, %v5567
        %v5586 = vpop.permute.xlu0 %5585
        %v5589 = vsel %vm1177, %v5559, 0
        %v5592 = vsel %vm1177, %v5560, 0
        %v5595 = vsel %vm1177, %v5561, 0
        %v5598 = vsel %vm1177, %v5562, 0
        %5600 = vmatprep.subr.mxu0 %v5551
        %5601 = vmatpush1.msra.mxu0 %v5550
        %5602 = vmatprep.subr.mxu0 %v5553
        %5603 = vmatpush1.msra.mxu0 %v5552
        %5604 = vmatprep.subr.mxu0 %v5555
        %5605 = vmatpush1.msra.mxu0 %v5554
        %5606 = vmatprep.subr.mxu0 %v5557
        %5607 = vmatpush1.msra.mxu0 %v5556
        %5608 = vmatprep.subr.mxu0 0.0
        %5609 = vmatpush1.msra.mxu0 0.0
        %5610 = vmatprep.subr.mxu0 0.0
        %5611 = vmatpush1.msra.mxu0 0.0
        %5612 = vmatprep.subr.mxu0 0.0
        %5613 = vmatpush1.msra.mxu0 0.0
        %5614 = vmatprep.subr.mxu0 0.0
        %5615 = vmatpush1.msra.mxu0 0.0
        %5616 = vmatprep.subr.mxu0 0.0
        %5617 = vmatpush1.msra.mxu0 0.0
        %5618 = vmatprep.subr.mxu0 0.0
        %5619 = vmatpush1.msra.mxu0 0.0
        %5620 = vmatprep.subr.mxu0 0.0
        %5621 = vmatpush1.msra.mxu0 0.0
        %5622 = vmatprep.subr.mxu0 0.0
        %5623 = vmatpush1.msra.mxu0 0.0
        %5624 = vmatprep.subr.mxu0 0.0
        %5625 = vmatpush1.msra.mxu0 0.0
        %5626 = vmatprep.subr.mxu0 0.0
        %5627 = vmatpush1.msra.mxu0 0.0
        %5628 = vmatprep.subr.mxu0 0.0
        %5629 = vmatpush1.msra.mxu0 0.0
        %5630 = vmatprep.subr.mxu0 0.0
        %5631 = vmatpush1.msra.mxu0 0.0
        %5632 = vmatprep.subr.mxu0 0.0
        %5633 = vmatpush1.msra.mxu0 0.0
        %5634 = vmatprep.subr.mxu0 0.0
        %5635 = vmatpush1.msra.mxu0 0.0
        %5636 = vmatprep.subr.mxu0 0.0
        %5637 = vmatpush1.msra.mxu0 0.0
        %5638 = vmatprep.subr.mxu0 0.0
        %5639 = vmatpush1.msra.mxu0 0.0
        %5640 = vmatprep.subr.mxu0 0.0
        %5641 = vmatpush1.msra.mxu0 0.0
        %5642 = vmatprep.subr.mxu0 0.0
        %5643 = vmatpush1.msra.mxu0 0.0
        %5644 = vmatprep.subr.mxu0 0.0
        %5645 = vmatpush1.msra.mxu0 0.0
        %5646 = vmatprep.subr.mxu0 0.0
        %5647 = vmatpush1.msra.mxu0 0.0
        %5648 = vmatprep.subr.mxu0 0.0
        %5649 = vmatpush1.msra.mxu0 0.0
        %5650 = vmatprep.subr.mxu0 0.0
        %5651 = vmatpush1.msra.mxu0 0.0
        %5652 = vmatprep.subr.mxu0 0.0
        %5653 = vmatpush1.msra.mxu0 0.0
        %5654 = vmatprep.subr.mxu0 0.0
        %5655 = vmatpush1.msra.mxu0 0.0
        %5656 = vmatprep.subr.mxu0 0.0
        %5657 = vmatpush1.msra.mxu0 0.0
        %5658 = vmatprep.subr.mxu0 0.0
        %5659 = vmatpush1.msra.mxu0 0.0
        %5660 = vmatprep.subr.mxu0 0.0
        %5661 = vmatpush1.msra.mxu0 0.0
        %5662 = vmatprep.subr.mxu0 0.0
        %5663 = vmatpush1.msra.mxu0 0.0
        %5664 = vmatprep.mubr.f32.mxu0 0.0
        %5665 = vmatmul.mubr.f32.gmra.mrb[0].mxu0 %v5589
        %v5666 = vpop.f32.mrb[0].mxu0
        %v5667 = vadd.f32 %v5571, %v5666
        %v5668 = vpop.f32.mrb[0].mxu0
        %v5669 = vadd.f32 %v5571, %v5668
        %5670 = vmatprep.mubr.f32.mxu0 0.0
        %5671 = vmatmul.mubr.f32.gmra.mrb[0].mxu0 %v5592
        %v5672 = vpop.f32.mrb[0].mxu0
        %v5673 = vadd.f32 %v5576, %v5672
        %v5674 = vpop.f32.mrb[0].mxu0
        %v5675 = vadd.f32 %v5576, %v5674
        %5676 = vmatprep.mubr.f32.mxu0 0.0
        %5677 = vmatmul.mubr.f32.gmra.mrb[0].mxu0 %v5595
        %v5678 = vpop.f32.mrb[0].mxu0
        %v5679 = vadd.f32 %v5581, %v5678
        %v5680 = vpop.f32.mrb[0].mxu0
        %v5681 = vadd.f32 %v5581, %v5680
        %5682 = vmatprep.mubr.f32.mxu0 0.0
        %5683 = vmatmul.mubr.f32.gmra.mrb[0].mxu0 %v5598
        %v5684 = vpop.f32.mrb[0].mxu0
        %v5685 = vadd.f32 %v5586, %v5684
        %v5686 = vpop.f32.mrb[0].mxu0
        %v5687 = vadd.f32 %v5586, %v5686
        %5688 = vdwg.mxu0
        %v5689 = vmax.f32 %v5667, 0.0
        %v5690 = vmax.f32 %v5669, 0.0
        %v5691 = vmax.f32 %v5673, 0.0
        %v5692 = vmax.f32 %v5675, 0.0
        %v5693 = vmax.f32 %v5679, 0.0
        %v5694 = vmax.f32 %v5681, 0.0
        %v5695 = vmax.f32 %v5685, 0.0
        %v5696 = vmax.f32 %v5687, 0.0
        %s5697 = scalar_lea.vmem [#allocation7], 288
        %v5698 = vld [vmem:[%s5697] sm:$0xff]
        %v5699 = vld [vmem:[%s5697 + $0x8] sm:$0xff]
        %v5700 = vld [vmem:[%s5697 + $0x10] sm:$0xff]
        %v5701 = vld [vmem:[%s5697 + $0x18] sm:$0xff]
        %s5702 = scalar_lea.vmem %s8, 544
        %v5703 = vld [vmem:[%s5702] sm:$0xff]
        %v5704 = vld [vmem:[%s5702 + $0x8] sm:$0xff]
        %v5705 = vld [vmem:[%s5702 + $0x10] sm:$0xff]
        %v5706 = vld [vmem:[%s5702 + $0x18] sm:$0xff]
        %5708 = vset.pattern.permute.xlu0 0
        %5709 = vperm.xlu0 %5708, %v5703
        %v5710 = vpop.permute.xlu0 %5709
        %5713 = vset.pattern.permute.xlu0 0
        %5714 = vperm.xlu0 %5713, %v5704
        %v5715 = vpop.permute.xlu0 %5714
        %5718 = vset.pattern.permute.xlu0 0
        %5719 = vperm.xlu0 %5718, %v5705
        %v5720 = vpop.permute.xlu0 %5719
        %5723 = vset.pattern.permute.xlu0 0
        %5724 = vperm.xlu0 %5723, %v5706
        %v5725 = vpop.permute.xlu0 %5724
        %v5728 = vsel %vm1177, %v5698, 0
        %v5731 = vsel %vm1177, %v5699, 0
        %v5734 = vsel %vm1177, %v5700, 0
        %v5737 = vsel %vm1177, %v5701, 0
        %5739 = vmatprep.subr.mxu0 %v5690
        %5740 = vmatpush1.msra.mxu0 %v5689
        %5741 = vmatprep.subr.mxu0 %v5692
        %5742 = vmatpush1.msra.mxu0 %v5691
        %5743 = vmatprep.subr.mxu0 %v5694
        %5744 = vmatpush1.msra.mxu0 %v5693
        %5745 = vmatprep.subr.mxu0 %v5696
        %5746 = vmatpush1.msra.mxu0 %v5695
        %5747 = vmatprep.subr.mxu0 0.0
        %5748 = vmatpush1.msra.mxu0 0.0
        %5749 = vmatprep.subr.mxu0 0.0
        %5750 = vmatpush1.msra.mxu0 0.0
        %5751 = vmatprep.subr.mxu0 0.0
        %5752 = vmatpush1.msra.mxu0 0.0
        %5753 = vmatprep.subr.mxu0 0.0
        %5754 = vmatpush1.msra.mxu0 0.0
        %5755 = vmatprep.subr.mxu0 0.0
        %5756 = vmatpush1.msra.mxu0 0.0
        %5757 = vmatprep.subr.mxu0 0.0
        %5758 = vmatpush1.msra.mxu0 0.0
        %5759 = vmatprep.subr.mxu0 0.0
        %5760 = vmatpush1.msra.mxu0 0.0
        %5761 = vmatprep.subr.mxu0 0.0
        %5762 = vmatpush1.msra.mxu0 0.0
        %5763 = vmatprep.subr.mxu0 0.0
        %5764 = vmatpush1.msra.mxu0 0.0
        %5765 = vmatprep.subr.mxu0 0.0
        %5766 = vmatpush1.msra.mxu0 0.0
        %5767 = vmatprep.subr.mxu0 0.0
        %5768 = vmatpush1.msra.mxu0 0.0
        %5769 = vmatprep.subr.mxu0 0.0
        %5770 = vmatpush1.msra.mxu0 0.0
        %5771 = vmatprep.subr.mxu0 0.0
        %5772 = vmatpush1.msra.mxu0 0.0
        %5773 = vmatprep.subr.mxu0 0.0
        %5774 = vmatpush1.msra.mxu0 0.0
        %5775 = vmatprep.subr.mxu0 0.0
        %5776 = vmatpush1.msra.mxu0 0.0
        %5777 = vmatprep.subr.mxu0 0.0
        %5778 = vmatpush1.msra.mxu0 0.0
        %5779 = vmatprep.subr.mxu0 0.0
        %5780 = vmatpush1.msra.mxu0 0.0
        %5781 = vmatprep.subr.mxu0 0.0
        %5782 = vmatpush1.msra.mxu0 0.0
        %5783 = vmatprep.subr.mxu0 0.0
        %5784 = vmatpush1.msra.mxu0 0.0
        %5785 = vmatprep.subr.mxu0 0.0
        %5786 = vmatpush1.msra.mxu0 0.0
        %5787 = vmatprep.subr.mxu0 0.0
        %5788 = vmatpush1.msra.mxu0 0.0
        %5789 = vmatprep.subr.mxu0 0.0
        %5790 = vmatpush1.msra.mxu0 0.0
        %5791 = vmatprep.subr.mxu0 0.0
        %5792 = vmatpush1.msra.mxu0 0.0
        %5793 = vmatprep.subr.mxu0 0.0
        %5794 = vmatpush1.msra.mxu0 0.0
        %5795 = vmatprep.subr.mxu0 0.0
        %5796 = vmatpush1.msra.mxu0 0.0
        %5797 = vmatprep.subr.mxu0 0.0
        %5798 = vmatpush1.msra.mxu0 0.0
        %5799 = vmatprep.subr.mxu0 0.0
        %5800 = vmatpush1.msra.mxu0 0.0
        %5801 = vmatprep.subr.mxu0 0.0
        %5802 = vmatpush1.msra.mxu0 0.0
        %5803 = vmatprep.mubr.f32.mxu0 0.0
        %5804 = vmatmul.mubr.f32.gmra.mrb[0].mxu0 %v5728
        %v5805 = vpop.f32.mrb[0].mxu0
        %v5806 = vadd.f32 %v5710, %v5805
        %v5807 = vpop.f32.mrb[0].mxu0
        %v5808 = vadd.f32 %v5710, %v5807
        %5809 = vmatprep.mubr.f32.mxu0 0.0
        %5810 = vmatmul.mubr.f32.gmra.mrb[0].mxu0 %v5731
        %v5811 = vpop.f32.mrb[0].mxu0
        %v5812 = vadd.f32 %v5715, %v5811
        %v5813 = vpop.f32.mrb[0].mxu0
        %v5814 = vadd.f32 %v5715, %v5813
        %5815 = vmatprep.mubr.f32.mxu0 0.0
        %5816 = vmatmul.mubr.f32.gmra.mrb[0].mxu0 %v5734
        %v5817 = vpop.f32.mrb[0].mxu0
        %v5818 = vadd.f32 %v5720, %v5817
        %v5819 = vpop.f32.mrb[0].mxu0
        %v5820 = vadd.f32 %v5720, %v5819
        %5821 = vmatprep.mubr.f32.mxu0 0.0
        %5822 = vmatmul.mubr.f32.gmra.mrb[0].mxu0 %v5737
        %v5823 = vpop.f32.mrb[0].mxu0
        %v5824 = vadd.f32 %v5725, %v5823
        %v5825 = vpop.f32.mrb[0].mxu0
        %v5826 = vadd.f32 %v5725, %v5825
        %5827 = vdwg.mxu0
        %v5828 = vmax.f32 %v5806, 0.0
        %v5829 = vmax.f32 %v5808, 0.0
        %v5830 = vmax.f32 %v5812, 0.0
        %v5831 = vmax.f32 %v5814, 0.0
        %v5832 = vmax.f32 %v5818, 0.0
        %v5833 = vmax.f32 %v5820, 0.0
        %v5834 = vmax.f32 %v5824, 0.0
        %v5835 = vmax.f32 %v5826, 0.0
        %s5836 = scalar_lea.vmem [#allocation7], 320
        %v5837 = vld [vmem:[%s5836] sm:$0xff]
        %v5838 = vld [vmem:[%s5836 + $0x8] sm:$0xff]
        %v5839 = vld [vmem:[%s5836 + $0x10] sm:$0xff]
        %v5840 = vld [vmem:[%s5836 + $0x18] sm:$0xff]
        %s5841 = scalar_lea.vmem %s8, 576
        %v5842 = vld [vmem:[%s5841] sm:$0xff]
        %v5843 = vld [vmem:[%s5841 + $0x8] sm:$0xff]
        %v5844 = vld [vmem:[%s5841 + $0x10] sm:$0xff]
        %v5845 = vld [vmem:[%s5841 + $0x18] sm:$0xff]
        %5847 = vset.pattern.permute.xlu0 0
        %5848 = vperm.xlu0 %5847, %v5842
        %v5849 = vpop.permute.xlu0 %5848
        %5852 = vset.pattern.permute.xlu0 0
        %5853 = vperm.xlu0 %5852, %v5843
        %v5854 = vpop.permute.xlu0 %5853
        %5857 = vset.pattern.permute.xlu0 0
        %5858 = vperm.xlu0 %5857, %v5844
        %v5859 = vpop.permute.xlu0 %5858
        %5862 = vset.pattern.permute.xlu0 0
        %5863 = vperm.xlu0 %5862, %v5845
        %v5864 = vpop.permute.xlu0 %5863
        %v5867 = vsel %vm1177, %v5837, 0
        %v5870 = vsel %vm1177, %v5838, 0
        %v5873 = vsel %vm1177, %v5839, 0
        %v5876 = vsel %vm1177, %v5840, 0
        %5878 = vmatprep.subr.mxu0 %v5829
        %5879 = vmatpush1.msra.mxu0 %v5828
        %5880 = vmatprep.subr.mxu0 %v5831
        %5881 = vmatpush1.msra.mxu0 %v5830
        %5882 = vmatprep.subr.mxu0 %v5833
        %5883 = vmatpush1.msra.mxu0 %v5832
        %5884 = vmatprep.subr.mxu0 %v5835
        %5885 = vmatpush1.msra.mxu0 %v5834
        %5886 = vmatprep.subr.mxu0 0.0
        %5887 = vmatpush1.msra.mxu0 0.0
        %5888 = vmatprep.subr.mxu0 0.0
        %5889 = vmatpush1.msra.mxu0 0.0
        %5890 = vmatprep.subr.mxu0 0.0
        %5891 = vmatpush1.msra.mxu0 0.0
        %5892 = vmatprep.subr.mxu0 0.0
        %5893 = vmatpush1.msra.mxu0 0.0
        %5894 = vmatprep.subr.mxu0 0.0
        %5895 = vmatpush1.msra.mxu0 0.0
        %5896 = vmatprep.subr.mxu0 0.0
        %5897 = vmatpush1.msra.mxu0 0.0
        %5898 = vmatprep.subr.mxu0 0.0
        %5899 = vmatpush1.msra.mxu0 0.0
        %5900 = vmatprep.subr.mxu0 0.0
        %5901 = vmatpush1.msra.mxu0 0.0
        %5902 = vmatprep.subr.mxu0 0.0
        %5903 = vmatpush1.msra.mxu0 0.0
        %5904 = vmatprep.subr.mxu0 0.0
        %5905 = vmatpush1.msra.mxu0 0.0
        %5906 = vmatprep.subr.mxu0 0.0
        %5907 = vmatpush1.msra.mxu0 0.0
        %5908 = vmatprep.subr.mxu0 0.0
        %5909 = vmatpush1.msra.mxu0 0.0
        %5910 = vmatprep.subr.mxu0 0.0
        %5911 = vmatpush1.msra.mxu0 0.0
        %5912 = vmatprep.subr.mxu0 0.0
        %5913 = vmatpush1.msra.mxu0 0.0
        %5914 = vmatprep.subr.mxu0 0.0
        %5915 = vmatpush1.msra.mxu0 0.0
        %5916 = vmatprep.subr.mxu0 0.0
        %5917 = vmatpush1.msra.mxu0 0.0
        %5918 = vmatprep.subr.mxu0 0.0
        %5919 = vmatpush1.msra.mxu0 0.0
        %5920 = vmatprep.subr.mxu0 0.0
        %5921 = vmatpush1.msra.mxu0 0.0
        %5922 = vmatprep.subr.mxu0 0.0
        %5923 = vmatpush1.msra.mxu0 0.0
        %5924 = vmatprep.subr.mxu0 0.0
        %5925 = vmatpush1.msra.mxu0 0.0
        %5926 = vmatprep.subr.mxu0 0.0
        %5927 = vmatpush1.msra.mxu0 0.0
        %5928 = vmatprep.subr.mxu0 0.0
        %5929 = vmatpush1.msra.mxu0 0.0
        %5930 = vmatprep.subr.mxu0 0.0
        %5931 = vmatpush1.msra.mxu0 0.0
        %5932 = vmatprep.subr.mxu0 0.0
        %5933 = vmatpush1.msra.mxu0 0.0
        %5934 = vmatprep.subr.mxu0 0.0
        %5935 = vmatpush1.msra.mxu0 0.0
        %5936 = vmatprep.subr.mxu0 0.0
        %5937 = vmatpush1.msra.mxu0 0.0
        %5938 = vmatprep.subr.mxu0 0.0
        %5939 = vmatpush1.msra.mxu0 0.0
        %5940 = vmatprep.subr.mxu0 0.0
        %5941 = vmatpush1.msra.mxu0 0.0
        %5942 = vmatprep.mubr.f32.mxu0 0.0
        %5943 = vmatmul.mubr.f32.gmra.mrb[0].mxu0 %v5867
        %v5944 = vpop.f32.mrb[0].mxu0
        %v5945 = vadd.f32 %v5849, %v5944
        %v5946 = vpop.f32.mrb[0].mxu0
        %v5947 = vadd.f32 %v5849, %v5946
        %5948 = vmatprep.mubr.f32.mxu0 0.0
        %5949 = vmatmul.mubr.f32.gmra.mrb[0].mxu0 %v5870
        %v5950 = vpop.f32.mrb[0].mxu0
        %v5951 = vadd.f32 %v5854, %v5950
        %v5952 = vpop.f32.mrb[0].mxu0
        %v5953 = vadd.f32 %v5854, %v5952
        %5954 = vmatprep.mubr.f32.mxu0 0.0
        %5955 = vmatmul.mubr.f32.gmra.mrb[0].mxu0 %v5873
        %v5956 = vpop.f32.mrb[0].mxu0
        %v5957 = vadd.f32 %v5859, %v5956
        %v5958 = vpop.f32.mrb[0].mxu0
        %v5959 = vadd.f32 %v5859, %v5958
        %5960 = vmatprep.mubr.f32.mxu0 0.0
        %5961 = vmatmul.mubr.f32.gmra.mrb[0].mxu0 %v5876
        %v5962 = vpop.f32.mrb[0].mxu0
        %v5963 = vadd.f32 %v5864, %v5962
        %v5964 = vpop.f32.mrb[0].mxu0
        %v5965 = vadd.f32 %v5864, %v5964
        %5966 = vdwg.mxu0
        %v5967 = vmax.f32 %v5945, 0.0
        %v5968 = vmax.f32 %v5947, 0.0
        %v5969 = vmax.f32 %v5951, 0.0
        %v5970 = vmax.f32 %v5953, 0.0
        %v5971 = vmax.f32 %v5957, 0.0
        %v5972 = vmax.f32 %v5959, 0.0
        %v5973 = vmax.f32 %v5963, 0.0
        %v5974 = vmax.f32 %v5965, 0.0
        %s5975 = scalar_lea.vmem [#allocation7], 352
        %v5976 = vld [vmem:[%s5975] sm:$0xff]
        %v5977 = vld [vmem:[%s5975 + $0x8] sm:$0xff]
        %v5978 = vld [vmem:[%s5975 + $0x10] sm:$0xff]
        %v5979 = vld [vmem:[%s5975 + $0x18] sm:$0xff]
        %s5980 = scalar_lea.vmem %s8, 608
        %v5981 = vld [vmem:[%s5980] sm:$0xff]
        %v5982 = vld [vmem:[%s5980 + $0x8] sm:$0xff]
        %v5983 = vld [vmem:[%s5980 + $0x10] sm:$0xff]
        %v5984 = vld [vmem:[%s5980 + $0x18] sm:$0xff]
        %5986 = vset.pattern.permute.xlu0 0
        %5987 = vperm.xlu0 %5986, %v5981
        %v5988 = vpop.permute.xlu0 %5987
        %5991 = vset.pattern.permute.xlu0 0
        %5992 = vperm.xlu0 %5991, %v5982
        %v5993 = vpop.permute.xlu0 %5992
        %5995 = vset.pattern.permute.xlu0 0
        %5996 = vperm.xlu0 %5995, %v5983
        %v5997 = vpop.permute.xlu0 %5996
        %5999 = vset.pattern.permute.xlu0 0
        %6000 = vperm.xlu0 %5999, %v5984
        %v6001 = vpop.permute.xlu0 %6000
        %v6003 = vsel %vm1177, %v5976, 0
        %v6006 = vsel %vm1177, %v5977, 0
        %v6009 = vsel %vm1177, %v5978, 0
        %v6012 = vsel %vm1177, %v5979, 0
        %6014 = vmatprep.subr.mxu0 %v5968
        %6015 = vmatpush1.msra.mxu0 %v5967
        %6016 = vmatprep.subr.mxu0 %v5970
        %6017 = vmatpush1.msra.mxu0 %v5969
        %6018 = vmatprep.subr.mxu0 %v5972
        %6019 = vmatpush1.msra.mxu0 %v5971
        %6020 = vmatprep.subr.mxu0 %v5974
        %6021 = vmatpush1.msra.mxu0 %v5973
        %6022 = vmatprep.subr.mxu0 0.0
        %6023 = vmatpush1.msra.mxu0 0.0
        %6024 = vmatprep.subr.mxu0 0.0
        %6025 = vmatpush1.msra.mxu0 0.0
        %6026 = vmatprep.subr.mxu0 0.0
        %6027 = vmatpush1.msra.mxu0 0.0
        %6028 = vmatprep.subr.mxu0 0.0
        %6029 = vmatpush1.msra.mxu0 0.0
        %6030 = vmatprep.subr.mxu0 0.0
        %6031 = vmatpush1.msra.mxu0 0.0
        %6032 = vmatprep.subr.mxu0 0.0
        %6033 = vmatpush1.msra.mxu0 0.0
        %6034 = vmatprep.subr.mxu0 0.0
        %6035 = vmatpush1.msra.mxu0 0.0
        %6036 = vmatprep.subr.mxu0 0.0
        %6037 = vmatpush1.msra.mxu0 0.0
        %6038 = vmatprep.subr.mxu0 0.0
        %6039 = vmatpush1.msra.mxu0 0.0
        %6040 = vmatprep.subr.mxu0 0.0
        %6041 = vmatpush1.msra.mxu0 0.0
        %6042 = vmatprep.subr.mxu0 0.0
        %6043 = vmatpush1.msra.mxu0 0.0
        %6044 = vmatprep.subr.mxu0 0.0
        %6045 = vmatpush1.msra.mxu0 0.0
        %6046 = vmatprep.subr.mxu0 0.0
        %6047 = vmatpush1.msra.mxu0 0.0
        %6048 = vmatprep.subr.mxu0 0.0
        %6049 = vmatpush1.msra.mxu0 0.0
        %6050 = vmatprep.subr.mxu0 0.0
        %6051 = vmatpush1.msra.mxu0 0.0
        %6052 = vmatprep.subr.mxu0 0.0
        %6053 = vmatpush1.msra.mxu0 0.0
        %6054 = vmatprep.subr.mxu0 0.0
        %6055 = vmatpush1.msra.mxu0 0.0
        %6056 = vmatprep.subr.mxu0 0.0
        %6057 = vmatpush1.msra.mxu0 0.0
        %6058 = vmatprep.subr.mxu0 0.0
        %6059 = vmatpush1.msra.mxu0 0.0
        %6060 = vmatprep.subr.mxu0 0.0
        %6061 = vmatpush1.msra.mxu0 0.0
        %6062 = vmatprep.subr.mxu0 0.0
        %6063 = vmatpush1.msra.mxu0 0.0
        %6064 = vmatprep.subr.mxu0 0.0
        %6065 = vmatpush1.msra.mxu0 0.0
        %6066 = vmatprep.subr.mxu0 0.0
        %6067 = vmatpush1.msra.mxu0 0.0
        %6068 = vmatprep.subr.mxu0 0.0
        %6069 = vmatpush1.msra.mxu0 0.0
        %6070 = vmatprep.subr.mxu0 0.0
        %6071 = vmatpush1.msra.mxu0 0.0
        %6072 = vmatprep.subr.mxu0 0.0
        %6073 = vmatpush1.msra.mxu0 0.0
        %6074 = vmatprep.subr.mxu0 0.0
        %6075 = vmatpush1.msra.mxu0 0.0
        %6076 = vmatprep.subr.mxu0 0.0
        %6077 = vmatpush1.msra.mxu0 0.0
        %6078 = vmatprep.mubr.f32.mxu0 0.0
        %6079 = vmatmul.mubr.f32.gmra.mrb[0].mxu0 %v6003
        %v6080 = vpop.f32.mrb[0].mxu0
        %v6081 = vadd.f32 %v5988, %v6080
        %v6082 = vpop.f32.mrb[0].mxu0
        %v6083 = vadd.f32 %v5988, %v6082
        %6084 = vmatprep.mubr.f32.mxu0 0.0
        %6085 = vmatmul.mubr.f32.gmra.mrb[0].mxu0 %v6006
        %v6086 = vpop.f32.mrb[0].mxu0
        %v6087 = vpop.f32.mrb[0].mxu0
        %6088 = vmatprep.mubr.f32.mxu0 0.0
        %6089 = vmatmul.mubr.f32.gmra.mrb[0].mxu0 %v6009
        %v6090 = vpop.f32.mrb[0].mxu0
        %v6091 = vpop.f32.mrb[0].mxu0
        %6092 = vmatprep.mubr.f32.mxu0 0.0
        %6093 = vmatmul.mubr.f32.gmra.mrb[0].mxu0 %v6012
        %v6094 = vpop.f32.mrb[0].mxu0
        %v6095 = vpop.f32.mrb[0].mxu0
        %6096 = vdwg.mxu0
        %v6099 = vcombine.low %v6081, %v6083
        %v6101 = vunpack.c.l.s4 1966171168
        %v6102 = vunpack.c.0.s8 %v6101
        %v6103 = vlaneseq
        %v6104 = vshrl.u32 %v6103, 7
        %v6105 = vsub.s32 %v6102, %v6104
        %v6106 = vrot.slane %v6099, %v6105
        %v6108 = vunpack.c.l.s4 1966171168
        %v6109 = vunpack.c.0.s8 %v6108
        %v6110 = vlaneseq
        %v6111 = vshrl.u32 %v6110, 7
        %v6112 = vsub.s32 %v6109, %v6111
        %v6113 = vrot.slane %v6106, %v6112
        %v6115 = vlaneseq
        %vm6116 = vcmp.ge.s32.totalorder %v6115, 0
        %vm6117 = vcmp.lt.s32.totalorder %v6115, 256
        %vm6118 = vmand %vm6116, %vm6117
        %6119 = vst.msk [vmem:[%s389] sm:$0x3] %vm6118, %v6113
        %p6120 = scmp.lt.s32.totalorder %s23, 1
        %s6121 = scalar_select %p6120, %s23, 1
        %s6122 = smul.addr %s6121, 2
        %s6123 = scalar_lea.vmem %s9, %s6122
        // Predicated region
        $region73: #{dbsnet_add_forward.1} parent=55 // pred_check
          %p6124 = pneg %p235
        $region74: #{dbsnet_add_forward.1} parent=55 // pred_check_branch
          %6126 = sbr.rel (%p6124) target = $region76
        $region75: #{dbsnet_add_forward.1} parent=55 // pred_region
          _
        $region76: #{dbsnet_add_forward.1} parent=55 // pred_fallthru
          _
      $region56: #{dbsnet_add_forward.1} parent=5 // pred_fallthru
        _
      %p6127 = scmp.le.s32.totalorder 2, %s18
      // Predicated region
      $region77: #{dbsnet_add_forward.1} parent=5 // pred_check
        %p6128 = pneg %p6127
      $region78: #{dbsnet_add_forward.1} parent=5 // pred_check_branch
        %6130 = sbr.rel (%p6128) target = $region80
      $region79: #{dbsnet_add_forward.1} parent=5 // pred_region
        %s6131 = ssub.s32 %s18, 2
        // Predicated region
        $region81: #{dbsnet_add_forward.1} parent=79 // pred_check
          %p6132 = pneg %p241
        $region82: #{dbsnet_add_forward.1} parent=79 // pred_check_branch
          %6134 = sbr.rel (%p6132) target = $region84
        $region83: #{dbsnet_add_forward.1} parent=79 // pred_region
          %p6135 = scmp.lt.s32.totalorder %s24, 1
          %s6136 = scalar_select %p6135, %s24, 1
          %s6137 = smul.addr %s6136, 2
          %s6138 = scalar_lea.vmem %s9, %s6137
        $region84: #{dbsnet_add_forward.1} parent=79 // pred_fallthru
          _
      $region80: #{dbsnet_add_forward.1} parent=5 // pred_fallthru
        _
    $region6: #{dbsnet_add_forward.1} parent=1 // loop_footer
      %s22 = sadd.s32 1, %s18
    $region7: #{dbsnet_add_forward.1} parent=1 // loop_footer_branch
      %17 = sbr.rel target = $region3
    $region8: #{dbsnet_add_forward.1} parent=1 // loop_exit
      _
    %6139 = vsyncpa [#allocation3], 1
    %s6140 = scalar_lea.sflag [#allocation3], 1
    %6141 = vsyncpa %s6140, 1
    %6142 = vsyncpa [#allocation5], 1
    %6143 = vsyncpa [#allocation8], 1

</llo_original>
